<compile_context>
chip_gen: v7x
topology: tpu7x:2x2x1
jax: 0.10.0
libtpu: 0.0.40
codegen_flags: <defaults>
</compile_context>

<pallas_src>
import numpy as np

import jax
import jax.numpy as jnp
from jax import lax
from jax.experimental import pallas as pl
from jax.experimental.pallas import tpu as pltpu

LANES = 128
X_HW = 32 * 32          # input pixels per sample
C1_ROWS = 896           # conv1 row space (valid rows go up to 27*32+27 = 891)
P1_ROWS = 14 * 14       # 196 pooled rows after pool1
C2_ROWS = 136           # conv2 row space (valid rows go up to 9*14+9 = 135)
P2_ROWS = 5 * 5         # 25 pooled rows after pool2
S_PER_STEP = 8          # samples processed per grid step


# ---------------------------------------------------------------------------
# Fused Pallas kernel: conv1+tanh+pool -> conv2+tanh+pool -> conv3+tanh ->
# fc1+tanh -> fc2, for S_PER_STEP samples per grid step.
# ---------------------------------------------------------------------------
def _lenet_fused_kernel(x_ref, w1_ref, b1_ref, q1_ref,
                        w2_ref, b2_ref, q2_ref,
                        w3_ref, b3_ref,
                        w4_ref, b4_ref, w5_ref, b5_ref,
                        out_ref, a2_ref, a3_ref, h3_ref):
    f32 = jnp.float32
    bf16 = jnp.bfloat16

    def sample_body(s, carry):
        # ---- conv1 (1->6, 5x5) as ONE bf16 MXU matmul on the im2col slab ----
        # x_ref[s] : (896, 128) bf16, lanes 0..24 hold the 25 shifted taps.
        act1 = jnp.tanh(
            jnp.dot(x_ref[s], w1_ref[...], preferred_element_type=f32)
            + b1_ref[...])                                   # (896, 128) f32

        # ---- 2x2 avg-pool + compaction to the 14x14 row space (one matmul) --
        a2_ref[...] = jnp.dot(q1_ref[...], act1.astype(bf16),
                              preferred_element_type=f32)    # (196, 128) f32

        # ---- conv2 (6->16, 5x5): 25 shift+matmul taps, f32 accumulation -----
        acc2 = jnp.broadcast_to(b2_ref[...], (C2_ROWS, LANES))   # bias-init
        for kh in range(5):
            for kw in range(5):
                t = kh * 5 + kw
                a_sl = a2_ref[pl.ds(kh * 14 + kw, C2_ROWS), :].astype(bf16)
                acc2 = acc2 + jnp.dot(a_sl, w2_ref[t],
                                      preferred_element_type=f32)
        act2 = jnp.tanh(acc2)                                 # (136, 128) f32

        # ---- 2x2 avg-pool + compaction to the 5x5 row space -----------------
        a3_ref[...] = jnp.dot(q2_ref[...], act2.astype(bf16),
                              preferred_element_type=f32)     # (25, 128) f32

        # ---- conv3 (16->120, 5x5 on 5x5 -> 1x1): 25 taps, f32 accumulation --
        acc3 = b3_ref[...]                                    # (1, 128) f32
        for p in range(25):
            acc3 = acc3 + jnp.dot(a3_ref[pl.ds(p, 1), :].astype(bf16),
                                  w3_ref[p], preferred_element_type=f32)
        h3_ref[pl.ds(s, 1), :] = jnp.tanh(acc3)               # row s of (S,128)
        return carry

    lax.fori_loop(0, S_PER_STEP, sample_body, 0)

    # ---- fc1 + tanh, fc2 : batched across the S samples of this step (M=8) --
    h3 = h3_ref[...].astype(bf16)                             # (S, 128)
    h4 = jnp.tanh(jnp.dot(h3, w4_ref[...], preferred_element_type=f32)
                  + b4_ref[...])
    logits = jnp.dot(h4.astype(bf16), w5_ref[...],
                     preferred_element_type=f32) + b5_ref[...]
    out_ref[...] = logits                                     # dense (8,128) vst


# ---------------------------------------------------------------------------
# Host-side helpers (one-time layout glue)
# ---------------------------------------------------------------------------
def _pad2(a, rows, cols, dtype=jnp.float32):
    a = jnp.asarray(a, jnp.float32)
    out = jnp.zeros((rows, cols), jnp.float32)
    out = out.at[:a.shape[0], :a.shape[1]].set(a)
    return out.astype(dtype)


def _pool_matrix(out_hw, in_w, n_cols):
    # q[p, m] = 0.25 where m = (2*ph+dh)*in_w + 2*pw+dw, p = ph*out_hw + pw.
    # Only valid rows of the conv row space are selected -> masks the
    # wrap-around garbage rows produced by the shift+matmul convolutions.
    q = np.zeros((out_hw * out_hw, n_cols), np.float32)
    for ph in range(out_hw):
        for pw in range(out_hw):
            row = ph * out_hw + pw
            for dh in range(2):
                for dw in range(2):
                    q[row, (2 * ph + dh) * in_w + (2 * pw + dw)] = 0.25
    return q


_Q1 = _pool_matrix(14, 32, C1_ROWS)   # (196, 896)
_Q2 = _pool_matrix(5, 14, C2_ROWS)    # (25, 136)


# ---------------------------------------------------------------------------
# LeNet parameters + forward
# ---------------------------------------------------------------------------
def init_lenet_params(key, num_classes=10):
    def uniform(key, shape, fan_in):
        bound = 1.0 / jnp.sqrt(jnp.float32(fan_in))
        return jax.random.uniform(key, shape, jnp.float32, -bound, bound)

    keys = jax.random.split(key, 10)
    return {
        "conv1_w": uniform(keys[0], (6, 1, 5, 5), 1 * 5 * 5),
        "conv1_b": uniform(keys[1], (6,), 1 * 5 * 5),
        "conv2_w": uniform(keys[2], (16, 6, 5, 5), 6 * 5 * 5),
        "conv2_b": uniform(keys[3], (16,), 6 * 5 * 5),
        "conv3_w": uniform(keys[4], (120, 16, 5, 5), 16 * 5 * 5),
        "conv3_b": uniform(keys[5], (120,), 16 * 5 * 5),
        "fc1_w": uniform(keys[6], (84, 120), 120),   # PyTorch (out, in)
        "fc1_b": uniform(keys[7], (84,), 120),
        "fc2_w": uniform(keys[8], (16,) if False else (10, 84), 84)
        if False else uniform(keys[8], (10, 84), 84),
        "fc2_b": uniform(keys[9], (10,), 84),
    }


def lenet_forward(params, x, num_classes=10):
    B = x.shape[0]
    f32, bf16 = jnp.float32, jnp.bfloat16
    S = S_PER_STEP
    B_pad = ((B + S - 1) // S) * S

    # --- weights: lane-pad to 128; bf16 for MXU operands, f32 biases ---------
    w1p = _pad2(params["conv1_w"].reshape(6, 25).T, LANES, LANES, bf16)
    b1p = _pad2(params["conv1_b"].reshape(1, 6), 1, LANES, f32)
    w2p = jnp.zeros((25, LANES, LANES), f32).at[:, :6, :16].set(
        params["conv2_w"].transpose(2, 3, 1, 0).reshape(25, 6, 16)).astype(bf16)
    b2p = _pad2(params["conv2_b"].reshape(1, 16), 1, LANES, f32)
    w3p = jnp.zeros((25, LANES, LANES), f32).at[:, :16, :120].set(
        params["conv3_w"].transpose(2, 3, 1, 0).reshape(25, 16, 120)).astype(bf16)
    b3p = _pad2(params["conv3_b"].reshape(1, 120), 1, LANES, f32)
    w4p = _pad2(params["fc1_w"].T, LANES, LANES, bf16)
    b4p = _pad2(params["fc1_b"].reshape(1, -1), 1, LANES, f32)
    w5p = _pad2(params["fc2_w"].T, LANES, LANES, bf16)
    b5p = _pad2(params["fc2_b"].reshape(1, -1), 1, LANES, f32)
    q1 = jnp.asarray(_Q1, bf16)   # 0.25 / 0.0 are exact in bf16
    q2 = jnp.asarray(_Q2, bf16)

    # --- input: lane-dense im2col slab per sample (conv1 -> one MXU matmul) --
    # xcol[b, m, kh*5+kw] = x_flat[b, m + kh*32 + kw]  (tail / wrap rows are
    # garbage but never selected by Q1).
    xf = x.reshape(B, X_HW).astype(f32)
    xf = jnp.pad(xf, ((0, B_pad - B), (0, 4)))                    # (B_pad, 1028)
    offs = [kh * 32 + kw for kh in range(5) for kw in range(5)]
    taps = jnp.stack([xf[:, o:o + C1_ROWS] for o in offs], axis=-1)  # (B_pad,896,25)
    xcol = jnp.pad(taps, ((0, 0), (0, 0), (0, LANES - 25))).astype(bf16)

    out = pl.pallas_call(
        _lenet_fused_kernel,
        out_shape=jax.ShapeDtypeStruct((B_pad, LANES), f32),
        grid=(B_pad // S,),
        in_specs=[
            pl.BlockSpec((S, C1_ROWS, LANES), lambda i: (i, 0, 0)),   # im2col x
            pl.BlockSpec((LANES, LANES), lambda i: (0, 0)),           # w1
            pl.BlockSpec((1, LANES), lambda i: (0, 0)),               # b1
            pl.BlockSpec((P1_ROWS, C1_ROWS), lambda i: (0, 0)),       # pool1 Q
            pl.BlockSpec((25, LANES, LANES), lambda i: (0, 0, 0)),    # w2 taps
            pl.BlockSpec((1, LANES), lambda i: (0, 0)),               # b2
            pl.BlockSpec((P2_ROWS, C2_ROWS), lambda i: (0, 0)),       # pool2 Q
            pl.BlockSpec((25, LANES, LANES), lambda i: (0, 0, 0)),    # w3 taps
            pl.BlockSpec((1, LANES), lambda i: (0, 0)),               # b3
            pl.BlockSpec((LANES, LANES), lambda i: (0, 0)),           # fc1 w
            pl.BlockSpec((1, LANES), lambda i: (0, 0)),               # fc1 b
            pl.BlockSpec((LANES, LANES), lambda i: (0, 0)),           # fc2 w
            pl.BlockSpec((1, LANES), lambda i: (0, 0)),               # fc2 b
        ],
        out_specs=pl.BlockSpec((S, LANES), lambda i: (i, 0)),
        scratch_shapes=[
            pltpu.VMEM((P1_ROWS, LANES), f32),     # pooled conv1 activations
            pltpu.VMEM((P2_ROWS, LANES), f32),     # pooled conv2 activations
            pltpu.VMEM((S, LANES), f32),           # per-sample conv3/tanh rows
        ],
        compiler_params=pltpu.CompilerParams(
            dimension_semantics=("parallel",),
            vmem_limit_bytes=32 * 1024 * 1024,
        ),
    )(xcol, w1p, b1p, q1, w2p, b2p, q2, w3p, b3p, w4p, b4p, w5p, b5p)

    return out[:B, :num_classes]


# ---------------------------------------------------------------------------
# Pure-JAX reference (f32) for the correctness check
# ---------------------------------------------------------------------------
def lenet_reference(params, x):
    dn = ("NCHW", "OIHW", "NCHW")
    hp = jax.lax.Precision.HIGHEST

    def conv(v, w, b):
        y = jax.lax.conv_general_dilated(v, w, (1, 1), "VALID",
                                         dimension_numbers=dn, precision=hp)
        return y + b.reshape(1, -1, 1, 1)

    def pool(v):
        return jax.lax.reduce_window(v, 0.0, jax.lax.add,
                                     (1, 1, 2, 2), (1, 1, 2, 2), "VALID") * 0.25

    v = pool(jnp.tanh(conv(x, params["conv1_w"], params["conv1_b"])))
    v = pool(jnp.tanh(conv(v, params["conv2_w"], params["conv2_b"])))
    v = jnp.tanh(conv(v, params["conv3_w"], params["conv3_b"])).reshape(-1, 120)
    v = jnp.tanh(jnp.dot(v, params["fc1_w"].T, precision=hp) + params["fc1_b"])
    return jnp.dot(v, params["fc2_w"].T, precision=hp) + params["fc2_b"]


if __name__ == "__main__":
    key = jax.random.PRNGKey(0)
    pkey, xkey = jax.random.split(key)
    params = init_lenet_params(pkey, num_classes=10)

    # LeNet's forward implies a 1-channel 32x32 input (conv3 reduces to 1x1).
    batch = 4
    x = jax.random.normal(xkey, (batch, 1, 32, 32), dtype=jnp.float32)

    logits = jax.jit(lenet_forward)(params, x)
    jax.block_until_ready(logits)
    assert logits.shape == (batch, 10)

    ref = jax.jit(lenet_reference)(params, x)
    max_err = float(jnp.max(jnp.abs(logits - ref)))
    # bf16 MXU operands with f32 accumulation: allow bf16-level rounding.
    assert max_err < 1e-1, f"kernel/reference mismatch: max |diff| = {max_err}"

    print("KERNEL_OK")
</pallas_src>

<mosaic_0001>
module attributes {stable_mosaic.version = 11 : i64} {
  func.func @_lenet_fused_kernel(%arg0: i32, %arg1: memref<8x896x128xbf16, #tpu.memory_space<vmem>>, %arg2: memref<128x128xbf16, #tpu.memory_space<vmem>>, %arg3: memref<1x128xf32, #tpu.memory_space<vmem>>, %arg4: memref<196x896xbf16, #tpu.memory_space<vmem>>, %arg5: memref<25x128x128xbf16, #tpu.memory_space<vmem>>, %arg6: memref<1x128xf32, #tpu.memory_space<vmem>>, %arg7: memref<25x136xbf16, #tpu.memory_space<vmem>>, %arg8: memref<25x128x128xbf16, #tpu.memory_space<vmem>>, %arg9: memref<1x128xf32, #tpu.memory_space<vmem>>, %arg10: memref<128x128xbf16, #tpu.memory_space<vmem>>, %arg11: memref<1x128xf32, #tpu.memory_space<vmem>>, %arg12: memref<128x128xbf16, #tpu.memory_space<vmem>>, %arg13: memref<1x128xf32, #tpu.memory_space<vmem>>, %arg14: memref<8x128xf32, #tpu.memory_space<vmem>>, %arg15: memref<196x128xf32, #tpu.memory_space<vmem>>, %arg16: memref<25x128xf32, #tpu.memory_space<vmem>>, %arg17: memref<8x128xf32, #tpu.memory_space<vmem>>) attributes {dimension_semantics = [#tpu.dimension_semantics<parallel>], iteration_bounds = array<i64: 1>, scalar_prefetch = 0 : i64, scratch_operands = 3 : i64, tpu.core_type = #tpu.core_type<tc>, window_params = [{transform_indices = @transform_0, window_bounds = array<i64: 8, 896, 128>}, {pipeline_mode = #tpu.pipeline_mode<synchronous>, transform_indices = @transform_1, window_bounds = array<i64: 128, 128>}, {pipeline_mode = #tpu.pipeline_mode<synchronous>, transform_indices = @transform_2, window_bounds = array<i64: 1, 128>}, {pipeline_mode = #tpu.pipeline_mode<synchronous>, transform_indices = @transform_3, window_bounds = array<i64: 196, 896>}, {pipeline_mode = #tpu.pipeline_mode<synchronous>, transform_indices = @transform_4, window_bounds = array<i64: 25, 128, 128>}, {pipeline_mode = #tpu.pipeline_mode<synchronous>, transform_indices = @transform_5, window_bounds = array<i64: 1, 128>}, {pipeline_mode = #tpu.pipeline_mode<synchronous>, transform_indices = @transform_6, window_bounds = array<i64: 25, 136>}, {pipeline_mode = #tpu.pipeline_mode<synchronous>, transform_indices = @transform_7, window_bounds = array<i64: 25, 128, 128>}, {pipeline_mode = #tpu.pipeline_mode<synchronous>, transform_indices = @transform_8, window_bounds = array<i64: 1, 128>}, {pipeline_mode = #tpu.pipeline_mode<synchronous>, transform_indices = @transform_9, window_bounds = array<i64: 128, 128>}, {pipeline_mode = #tpu.pipeline_mode<synchronous>, transform_indices = @transform_10, window_bounds = array<i64: 1, 128>}, {pipeline_mode = #tpu.pipeline_mode<synchronous>, transform_indices = @transform_11, window_bounds = array<i64: 128, 128>}, {pipeline_mode = #tpu.pipeline_mode<synchronous>, transform_indices = @transform_12, window_bounds = array<i64: 1, 128>}, {transform_indices = @transform_13, window_bounds = array<i64: 8, 128>}]} {
    %c0_i32 = arith.constant 0 : i32
    %c8_i32 = arith.constant 8 : i32
    %0 = arith.addi %c0_i32, %c8_i32 : i32
    %c1_i32 = arith.constant 1 : i32
    scf.for %arg18 = %c0_i32 to %0 step %c1_i32  : i32 {
      %16 = arith.index_cast %arg18 : i32 to index
      %c0_13 = arith.constant 0 : index
      %c0_14 = arith.constant 0 : index
      %17 = vector.load %arg1[%16, %c0_13, %c0_14] : memref<8x896x128xbf16, #tpu.memory_space<vmem>>, vector<1x896x128xbf16>
      %18 = vector.shape_cast %17 : vector<1x896x128xbf16> to vector<896x128xbf16>
      %c0_15 = arith.constant 0 : index
      %c0_16 = arith.constant 0 : index
      %19 = vector.load %arg2[%c0_15, %c0_16] : memref<128x128xbf16, #tpu.memory_space<vmem>>, vector<128x128xbf16>
      %cst_17 = arith.constant dense<0.000000e+00> : vector<896x128xf32>
      %20 = tpu.matmul %18, %19, %cst_17 {dimension_numbers = #tpu.dot_dimension_numbers<[1], [0], [0], [1], [0, 0, 1, 1], [], []>} : vector<896x128xbf16>, vector<128x128xbf16>, vector<896x128xf32> -> vector<896x128xf32>
      %c0_18 = arith.constant 0 : index
      %c0_19 = arith.constant 0 : index
      %21 = vector.load %arg3[%c0_18, %c0_19] : memref<1x128xf32, #tpu.memory_space<vmem>>, vector<1x128xf32>
      %22 = vector.broadcast %21 : vector<1x128xf32> to vector<896x128xf32>
      %23 = arith.addf %20, %22 : vector<896x128xf32>
      %24 = math.tanh %23 : vector<896x128xf32>
      %c0_20 = arith.constant 0 : index
      %c0_21 = arith.constant 0 : index
      %25 = vector.load %arg4[%c0_20, %c0_21] : memref<196x896xbf16, #tpu.memory_space<vmem>>, vector<196x896xbf16>
      %26 = arith.truncf %24 : vector<896x128xf32> to vector<896x128xbf16>
      %cst_22 = arith.constant dense<0.000000e+00> : vector<196x128xf32>
      %27 = tpu.matmul %25, %26, %cst_22 {dimension_numbers = #tpu.dot_dimension_numbers<[1], [0], [0], [1], [0, 0, 1, 1], [], []>} : vector<196x896xbf16>, vector<896x128xbf16>, vector<196x128xf32> -> vector<196x128xf32>
      %c0_23 = arith.constant 0 : index
      %c0_24 = arith.constant 0 : index
      %28 = vector.load %arg15[%c0_23, %c0_24] : memref<196x128xf32, #tpu.memory_space<vmem>>, vector<196x128xf32>
      tpu.vector_store %arg15[%c0_23, %c0_24], %27 {strides = array<i32>} : memref<196x128xf32, #tpu.memory_space<vmem>>, vector<196x128xf32>,
      %c0_25 = arith.constant 0 : index
      %c0_26 = arith.constant 0 : index
      %29 = vector.load %arg6[%c0_25, %c0_26] : memref<1x128xf32, #tpu.memory_space<vmem>>, vector<1x128xf32>
      %30 = vector.shape_cast %29 : vector<1x128xf32> to vector<1x128xf32>
      %31 = vector.broadcast %30 : vector<1x128xf32> to vector<136x128xf32>
      %c0_27 = arith.constant 0 : index
      %c0_28 = arith.constant 0 : index
      %32 = vector.load %arg15[%c0_27, %c0_28] : memref<196x128xf32, #tpu.memory_space<vmem>>, vector<136x128xf32>
      %33 = arith.truncf %32 : vector<136x128xf32> to vector<136x128xbf16>
      %c0_29 = arith.constant 0 : index
      %c0_30 = arith.constant 0 : index
      %c0_31 = arith.constant 0 : index
      %34 = vector.load %arg5[%c0_29, %c0_30, %c0_31] : memref<25x128x128xbf16, #tpu.memory_space<vmem>>, vector<1x128x128xbf16>
      %35 = vector.shape_cast %34 : vector<1x128x128xbf16> to vector<128x128xbf16>
      %cst_32 = arith.constant dense<0.000000e+00> : vector<136x128xf32>
      %36 = tpu.matmul %33, %35, %cst_32 {dimension_numbers = #tpu.dot_dimension_numbers<[1], [0], [0], [1], [0, 0, 1, 1], [], []>} : vector<136x128xbf16>, vector<128x128xbf16>, vector<136x128xf32> -> vector<136x128xf32>
      %37 = arith.addf %31, %36 : vector<136x128xf32>
      %c1 = arith.constant 1 : index
      %c0_33 = arith.constant 0 : index
      %38 = vector.load %arg15[%c1, %c0_33] : memref<196x128xf32, #tpu.memory_space<vmem>>, vector<136x128xf32>
      %39 = arith.truncf %38 : vector<136x128xf32> to vector<136x128xbf16>
      %c1_34 = arith.constant 1 : index
      %c0_35 = arith.constant 0 : index
      %c0_36 = arith.constant 0 : index
      %40 = vector.load %arg5[%c1_34, %c0_35, %c0_36] : memref<25x128x128xbf16, #tpu.memory_space<vmem>>, vector<1x128x128xbf16>
      %41 = vector.shape_cast %40 : vector<1x128x128xbf16> to vector<128x128xbf16>
      %cst_37 = arith.constant dense<0.000000e+00> : vector<136x128xf32>
      %42 = tpu.matmul %39, %41, %cst_37 {dimension_numbers = #tpu.dot_dimension_numbers<[1], [0], [0], [1], [0, 0, 1, 1], [], []>} : vector<136x128xbf16>, vector<128x128xbf16>, vector<136x128xf32> -> vector<136x128xf32>
      %43 = arith.addf %37, %42 : vector<136x128xf32>
      %c2 = arith.constant 2 : index
      %c0_38 = arith.constant 0 : index
      %44 = vector.load %arg15[%c2, %c0_38] : memref<196x128xf32, #tpu.memory_space<vmem>>, vector<136x128xf32>
      %45 = arith.truncf %44 : vector<136x128xf32> to vector<136x128xbf16>
      %c2_39 = arith.constant 2 : index
      %c0_40 = arith.constant 0 : index
      %c0_41 = arith.constant 0 : index
      %46 = vector.load %arg5[%c2_39, %c0_40, %c0_41] : memref<25x128x128xbf16, #tpu.memory_space<vmem>>, vector<1x128x128xbf16>
      %47 = vector.shape_cast %46 : vector<1x128x128xbf16> to vector<128x128xbf16>
      %cst_42 = arith.constant dense<0.000000e+00> : vector<136x128xf32>
      %48 = tpu.matmul %45, %47, %cst_42 {dimension_numbers = #tpu.dot_dimension_numbers<[1], [0], [0], [1], [0, 0, 1, 1], [], []>} : vector<136x128xbf16>, vector<128x128xbf16>, vector<136x128xf32> -> vector<136x128xf32>
      %49 = arith.addf %43, %48 : vector<136x128xf32>
      %c3 = arith.constant 3 : index
      %c0_43 = arith.constant 0 : index
      %50 = vector.load %arg15[%c3, %c0_43] : memref<196x128xf32, #tpu.memory_space<vmem>>, vector<136x128xf32>
      %51 = arith.truncf %50 : vector<136x128xf32> to vector<136x128xbf16>
      %c3_44 = arith.constant 3 : index
      %c0_45 = arith.constant 0 : index
      %c0_46 = arith.constant 0 : index
      %52 = vector.load %arg5[%c3_44, %c0_45, %c0_46] : memref<25x128x128xbf16, #tpu.memory_space<vmem>>, vector<1x128x128xbf16>
      %53 = vector.shape_cast %52 : vector<1x128x128xbf16> to vector<128x128xbf16>
      %cst_47 = arith.constant dense<0.000000e+00> : vector<136x128xf32>
      %54 = tpu.matmul %51, %53, %cst_47 {dimension_numbers = #tpu.dot_dimension_numbers<[1], [0], [0], [1], [0, 0, 1, 1], [], []>} : vector<136x128xbf16>, vector<128x128xbf16>, vector<136x128xf32> -> vector<136x128xf32>
      %55 = arith.addf %49, %54 : vector<136x128xf32>
      %c4 = arith.constant 4 : index
      %c0_48 = arith.constant 0 : index
      %56 = vector.load %arg15[%c4, %c0_48] : memref<196x128xf32, #tpu.memory_space<vmem>>, vector<136x128xf32>
      %57 = arith.truncf %56 : vector<136x128xf32> to vector<136x128xbf16>
      %c4_49 = arith.constant 4 : index
      %c0_50 = arith.constant 0 : index
      %c0_51 = arith.constant 0 : index
      %58 = vector.load %arg5[%c4_49, %c0_50, %c0_51] : memref<25x128x128xbf16, #tpu.memory_space<vmem>>, vector<1x128x128xbf16>
      %59 = vector.shape_cast %58 : vector<1x128x128xbf16> to vector<128x128xbf16>
      %cst_52 = arith.constant dense<0.000000e+00> : vector<136x128xf32>
      %60 = tpu.matmul %57, %59, %cst_52 {dimension_numbers = #tpu.dot_dimension_numbers<[1], [0], [0], [1], [0, 0, 1, 1], [], []>} : vector<136x128xbf16>, vector<128x128xbf16>, vector<136x128xf32> -> vector<136x128xf32>
      %61 = arith.addf %55, %60 : vector<136x128xf32>
      %c14 = arith.constant 14 : index
      %c0_53 = arith.constant 0 : index
      %62 = vector.load %arg15[%c14, %c0_53] : memref<196x128xf32, #tpu.memory_space<vmem>>, vector<136x128xf32>
      %63 = arith.truncf %62 : vector<136x128xf32> to vector<136x128xbf16>
      %c5 = arith.constant 5 : index
      %c0_54 = arith.constant 0 : index
      %c0_55 = arith.constant 0 : index
      %64 = vector.load %arg5[%c5, %c0_54, %c0_55] : memref<25x128x128xbf16, #tpu.memory_space<vmem>>, vector<1x128x128xbf16>
      %65 = vector.shape_cast %64 : vector<1x128x128xbf16> to vector<128x128xbf16>
      %cst_56 = arith.constant dense<0.000000e+00> : vector<136x128xf32>
      %66 = tpu.matmul %63, %65, %cst_56 {dimension_numbers = #tpu.dot_dimension_numbers<[1], [0], [0], [1], [0, 0, 1, 1], [], []>} : vector<136x128xbf16>, vector<128x128xbf16>, vector<136x128xf32> -> vector<136x128xf32>
      %67 = arith.addf %61, %66 : vector<136x128xf32>
      %c15 = arith.constant 15 : index
      %c0_57 = arith.constant 0 : index
      %68 = vector.load %arg15[%c15, %c0_57] : memref<196x128xf32, #tpu.memory_space<vmem>>, vector<136x128xf32>
      %69 = arith.truncf %68 : vector<136x128xf32> to vector<136x128xbf16>
      %c6 = arith.constant 6 : index
      %c0_58 = arith.constant 0 : index
      %c0_59 = arith.constant 0 : index
      %70 = vector.load %arg5[%c6, %c0_58, %c0_59] : memref<25x128x128xbf16, #tpu.memory_space<vmem>>, vector<1x128x128xbf16>
      %71 = vector.shape_cast %70 : vector<1x128x128xbf16> to vector<128x128xbf16>
      %cst_60 = arith.constant dense<0.000000e+00> : vector<136x128xf32>
      %72 = tpu.matmul %69, %71, %cst_60 {dimension_numbers = #tpu.dot_dimension_numbers<[1], [0], [0], [1], [0, 0, 1, 1], [], []>} : vector<136x128xbf16>, vector<128x128xbf16>, vector<136x128xf32> -> vector<136x128xf32>
      %73 = arith.addf %67, %72 : vector<136x128xf32>
      %c16 = arith.constant 16 : index
      %c0_61 = arith.constant 0 : index
      %74 = vector.load %arg15[%c16, %c0_61] : memref<196x128xf32, #tpu.memory_space<vmem>>, vector<136x128xf32>
      %75 = arith.truncf %74 : vector<136x128xf32> to vector<136x128xbf16>
      %c7 = arith.constant 7 : index
      %c0_62 = arith.constant 0 : index
      %c0_63 = arith.constant 0 : index
      %76 = vector.load %arg5[%c7, %c0_62, %c0_63] : memref<25x128x128xbf16, #tpu.memory_space<vmem>>, vector<1x128x128xbf16>
      %77 = vector.shape_cast %76 : vector<1x128x128xbf16> to vector<128x128xbf16>
      %cst_64 = arith.constant dense<0.000000e+00> : vector<136x128xf32>
      %78 = tpu.matmul %75, %77, %cst_64 {dimension_numbers = #tpu.dot_dimension_numbers<[1], [0], [0], [1], [0, 0, 1, 1], [], []>} : vector<136x128xbf16>, vector<128x128xbf16>, vector<136x128xf32> -> vector<136x128xf32>
      %79 = arith.addf %73, %78 : vector<136x128xf32>
      %c17 = arith.constant 17 : index
      %c0_65 = arith.constant 0 : index
      %80 = vector.load %arg15[%c17, %c0_65] : memref<196x128xf32, #tpu.memory_space<vmem>>, vector<136x128xf32>
      %81 = arith.truncf %80 : vector<136x128xf32> to vector<136x128xbf16>
      %c8 = arith.constant 8 : index
      %c0_66 = arith.constant 0 : index
      %c0_67 = arith.constant 0 : index
      %82 = vector.load %arg5[%c8, %c0_66, %c0_67] : memref<25x128x128xbf16, #tpu.memory_space<vmem>>, vector<1x128x128xbf16>
      %83 = vector.shape_cast %82 : vector<1x128x128xbf16> to vector<128x128xbf16>
      %cst_68 = arith.constant dense<0.000000e+00> : vector<136x128xf32>
      %84 = tpu.matmul %81, %83, %cst_68 {dimension_numbers = #tpu.dot_dimension_numbers<[1], [0], [0], [1], [0, 0, 1, 1], [], []>} : vector<136x128xbf16>, vector<128x128xbf16>, vector<136x128xf32> -> vector<136x128xf32>
      %85 = arith.addf %79, %84 : vector<136x128xf32>
      %c18 = arith.constant 18 : index
      %c0_69 = arith.constant 0 : index
      %86 = vector.load %arg15[%c18, %c0_69] : memref<196x128xf32, #tpu.memory_space<vmem>>, vector<136x128xf32>
      %87 = arith.truncf %86 : vector<136x128xf32> to vector<136x128xbf16>
      %c9 = arith.constant 9 : index
      %c0_70 = arith.constant 0 : index
      %c0_71 = arith.constant 0 : index
      %88 = vector.load %arg5[%c9, %c0_70, %c0_71] : memref<25x128x128xbf16, #tpu.memory_space<vmem>>, vector<1x128x128xbf16>
      %89 = vector.shape_cast %88 : vector<1x128x128xbf16> to vector<128x128xbf16>
      %cst_72 = arith.constant dense<0.000000e+00> : vector<136x128xf32>
      %90 = tpu.matmul %87, %89, %cst_72 {dimension_numbers = #tpu.dot_dimension_numbers<[1], [0], [0], [1], [0, 0, 1, 1], [], []>} : vector<136x128xbf16>, vector<128x128xbf16>, vector<136x128xf32> -> vector<136x128xf32>
      %91 = arith.addf %85, %90 : vector<136x128xf32>
      %c28 = arith.constant 28 : index
      %c0_73 = arith.constant 0 : index
      %92 = vector.load %arg15[%c28, %c0_73] : memref<196x128xf32, #tpu.memory_space<vmem>>, vector<136x128xf32>
      %93 = arith.truncf %92 : vector<136x128xf32> to vector<136x128xbf16>
      %c10 = arith.constant 10 : index
      %c0_74 = arith.constant 0 : index
      %c0_75 = arith.constant 0 : index
      %94 = vector.load %arg5[%c10, %c0_74, %c0_75] : memref<25x128x128xbf16, #tpu.memory_space<vmem>>, vector<1x128x128xbf16>
      %95 = vector.shape_cast %94 : vector<1x128x128xbf16> to vector<128x128xbf16>
      %cst_76 = arith.constant dense<0.000000e+00> : vector<136x128xf32>
      %96 = tpu.matmul %93, %95, %cst_76 {dimension_numbers = #tpu.dot_dimension_numbers<[1], [0], [0], [1], [0, 0, 1, 1], [], []>} : vector<136x128xbf16>, vector<128x128xbf16>, vector<136x128xf32> -> vector<136x128xf32>
      %97 = arith.addf %91, %96 : vector<136x128xf32>
      %c29 = arith.constant 29 : index
      %c0_77 = arith.constant 0 : index
      %98 = vector.load %arg15[%c29, %c0_77] : memref<196x128xf32, #tpu.memory_space<vmem>>, vector<136x128xf32>
      %99 = arith.truncf %98 : vector<136x128xf32> to vector<136x128xbf16>
      %c11 = arith.constant 11 : index
      %c0_78 = arith.constant 0 : index
      %c0_79 = arith.constant 0 : index
      %100 = vector.load %arg5[%c11, %c0_78, %c0_79] : memref<25x128x128xbf16, #tpu.memory_space<vmem>>, vector<1x128x128xbf16>
      %101 = vector.shape_cast %100 : vector<1x128x128xbf16> to vector<128x128xbf16>
      %cst_80 = arith.constant dense<0.000000e+00> : vector<136x128xf32>
      %102 = tpu.matmul %99, %101, %cst_80 {dimension_numbers = #tpu.dot_dimension_numbers<[1], [0], [0], [1], [0, 0, 1, 1], [], []>} : vector<136x128xbf16>, vector<128x128xbf16>, vector<136x128xf32> -> vector<136x128xf32>
      %103 = arith.addf %97, %102 : vector<136x128xf32>
      %c30 = arith.constant 30 : index
      %c0_81 = arith.constant 0 : index
      %104 = vector.load %arg15[%c30, %c0_81] : memref<196x128xf32, #tpu.memory_space<vmem>>, vector<136x128xf32>
      %105 = arith.truncf %104 : vector<136x128xf32> to vector<136x128xbf16>
      %c12 = arith.constant 12 : index
      %c0_82 = arith.constant 0 : index
      %c0_83 = arith.constant 0 : index
      %106 = vector.load %arg5[%c12, %c0_82, %c0_83] : memref<25x128x128xbf16, #tpu.memory_space<vmem>>, vector<1x128x128xbf16>
      %107 = vector.shape_cast %106 : vector<1x128x128xbf16> to vector<128x128xbf16>
      %cst_84 = arith.constant dense<0.000000e+00> : vector<136x128xf32>
      %108 = tpu.matmul %105, %107, %cst_84 {dimension_numbers = #tpu.dot_dimension_numbers<[1], [0], [0], [1], [0, 0, 1, 1], [], []>} : vector<136x128xbf16>, vector<128x128xbf16>, vector<136x128xf32> -> vector<136x128xf32>
      %109 = arith.addf %103, %108 : vector<136x128xf32>
      %c31 = arith.constant 31 : index
      %c0_85 = arith.constant 0 : index
      %110 = vector.load %arg15[%c31, %c0_85] : memref<196x128xf32, #tpu.memory_space<vmem>>, vector<136x128xf32>
      %111 = arith.truncf %110 : vector<136x128xf32> to vector<136x128xbf16>
      %c13 = arith.constant 13 : index
      %c0_86 = arith.constant 0 : index
      %c0_87 = arith.constant 0 : index
      %112 = vector.load %arg5[%c13, %c0_86, %c0_87] : memref<25x128x128xbf16, #tpu.memory_space<vmem>>, vector<1x128x128xbf16>
      %113 = vector.shape_cast %112 : vector<1x128x128xbf16> to vector<128x128xbf16>
      %cst_88 = arith.constant dense<0.000000e+00> : vector<136x128xf32>
      %114 = tpu.matmul %111, %113, %cst_88 {dimension_numbers = #tpu.dot_dimension_numbers<[1], [0], [0], [1], [0, 0, 1, 1], [], []>} : vector<136x128xbf16>, vector<128x128xbf16>, vector<136x128xf32> -> vector<136x128xf32>
      %115 = arith.addf %109, %114 : vector<136x128xf32>
      %c32 = arith.constant 32 : index
      %c0_89 = arith.constant 0 : index
      %116 = vector.load %arg15[%c32, %c0_89] : memref<196x128xf32, #tpu.memory_space<vmem>>, vector<136x128xf32>
      %117 = arith.truncf %116 : vector<136x128xf32> to vector<136x128xbf16>
      %c14_90 = arith.constant 14 : index
      %c0_91 = arith.constant 0 : index
      %c0_92 = arith.constant 0 : index
      %118 = vector.load %arg5[%c14_90, %c0_91, %c0_92] : memref<25x128x128xbf16, #tpu.memory_space<vmem>>, vector<1x128x128xbf16>
      %119 = vector.shape_cast %118 : vector<1x128x128xbf16> to vector<128x128xbf16>
      %cst_93 = arith.constant dense<0.000000e+00> : vector<136x128xf32>
      %120 = tpu.matmul %117, %119, %cst_93 {dimension_numbers = #tpu.dot_dimension_numbers<[1], [0], [0], [1], [0, 0, 1, 1], [], []>} : vector<136x128xbf16>, vector<128x128xbf16>, vector<136x128xf32> -> vector<136x128xf32>
      %121 = arith.addf %115, %120 : vector<136x128xf32>
      %c42 = arith.constant 42 : index
      %c0_94 = arith.constant 0 : index
      %122 = vector.load %arg15[%c42, %c0_94] : memref<196x128xf32, #tpu.memory_space<vmem>>, vector<136x128xf32>
      %123 = arith.truncf %122 : vector<136x128xf32> to vector<136x128xbf16>
      %c15_95 = arith.constant 15 : index
      %c0_96 = arith.constant 0 : index
      %c0_97 = arith.constant 0 : index
      %124 = vector.load %arg5[%c15_95, %c0_96, %c0_97] : memref<25x128x128xbf16, #tpu.memory_space<vmem>>, vector<1x128x128xbf16>
      %125 = vector.shape_cast %124 : vector<1x128x128xbf16> to vector<128x128xbf16>
      %cst_98 = arith.constant dense<0.000000e+00> : vector<136x128xf32>
      %126 = tpu.matmul %123, %125, %cst_98 {dimension_numbers = #tpu.dot_dimension_numbers<[1], [0], [0], [1], [0, 0, 1, 1], [], []>} : vector<136x128xbf16>, vector<128x128xbf16>, vector<136x128xf32> -> vector<136x128xf32>
      %127 = arith.addf %121, %126 : vector<136x128xf32>
      %c43 = arith.constant 43 : index
      %c0_99 = arith.constant 0 : index
      %128 = vector.load %arg15[%c43, %c0_99] : memref<196x128xf32, #tpu.memory_space<vmem>>, vector<136x128xf32>
      %129 = arith.truncf %128 : vector<136x128xf32> to vector<136x128xbf16>
      %c16_100 = arith.constant 16 : index
      %c0_101 = arith.constant 0 : index
      %c0_102 = arith.constant 0 : index
      %130 = vector.load %arg5[%c16_100, %c0_101, %c0_102] : memref<25x128x128xbf16, #tpu.memory_space<vmem>>, vector<1x128x128xbf16>
      %131 = vector.shape_cast %130 : vector<1x128x128xbf16> to vector<128x128xbf16>
      %cst_103 = arith.constant dense<0.000000e+00> : vector<136x128xf32>
      %132 = tpu.matmul %129, %131, %cst_103 {dimension_numbers = #tpu.dot_dimension_numbers<[1], [0], [0], [1], [0, 0, 1, 1], [], []>} : vector<136x128xbf16>, vector<128x128xbf16>, vector<136x128xf32> -> vector<136x128xf32>
      %133 = arith.addf %127, %132 : vector<136x128xf32>
      %c44 = arith.constant 44 : index
      %c0_104 = arith.constant 0 : index
      %134 = vector.load %arg15[%c44, %c0_104] : memref<196x128xf32, #tpu.memory_space<vmem>>, vector<136x128xf32>
      %135 = arith.truncf %134 : vector<136x128xf32> to vector<136x128xbf16>
      %c17_105 = arith.constant 17 : index
      %c0_106 = arith.constant 0 : index
      %c0_107 = arith.constant 0 : index
      %136 = vector.load %arg5[%c17_105, %c0_106, %c0_107] : memref<25x128x128xbf16, #tpu.memory_space<vmem>>, vector<1x128x128xbf16>
      %137 = vector.shape_cast %136 : vector<1x128x128xbf16> to vector<128x128xbf16>
      %cst_108 = arith.constant dense<0.000000e+00> : vector<136x128xf32>
      %138 = tpu.matmul %135, %137, %cst_108 {dimension_numbers = #tpu.dot_dimension_numbers<[1], [0], [0], [1], [0, 0, 1, 1], [], []>} : vector<136x128xbf16>, vector<128x128xbf16>, vector<136x128xf32> -> vector<136x128xf32>
      %139 = arith.addf %133, %138 : vector<136x128xf32>
      %c45 = arith.constant 45 : index
      %c0_109 = arith.constant 0 : index
      %140 = vector.load %arg15[%c45, %c0_109] : memref<196x128xf32, #tpu.memory_space<vmem>>, vector<136x128xf32>
      %141 = arith.truncf %140 : vector<136x128xf32> to vector<136x128xbf16>
      %c18_110 = arith.constant 18 : index
      %c0_111 = arith.constant 0 : index
      %c0_112 = arith.constant 0 : index
      %142 = vector.load %arg5[%c18_110, %c0_111, %c0_112] : memref<25x128x128xbf16, #tpu.memory_space<vmem>>, vector<1x128x128xbf16>
      %143 = vector.shape_cast %142 : vector<1x128x128xbf16> to vector<128x128xbf16>
      %cst_113 = arith.constant dense<0.000000e+00> : vector<136x128xf32>
      %144 = tpu.matmul %141, %143, %cst_113 {dimension_numbers = #tpu.dot_dimension_numbers<[1], [0], [0], [1], [0, 0, 1, 1], [], []>} : vector<136x128xbf16>, vector<128x128xbf16>, vector<136x128xf32> -> vector<136x128xf32>
      %145 = arith.addf %139, %144 : vector<136x128xf32>
      %c46 = arith.constant 46 : index
      %c0_114 = arith.constant 0 : index
      %146 = vector.load %arg15[%c46, %c0_114] : memref<196x128xf32, #tpu.memory_space<vmem>>, vector<136x128xf32>
      %147 = arith.truncf %146 : vector<136x128xf32> to vector<136x128xbf16>
      %c19 = arith.constant 19 : index
      %c0_115 = arith.constant 0 : index
      %c0_116 = arith.constant 0 : index
      %148 = vector.load %arg5[%c19, %c0_115, %c0_116] : memref<25x128x128xbf16, #tpu.memory_space<vmem>>, vector<1x128x128xbf16>
      %149 = vector.shape_cast %148 : vector<1x128x128xbf16> to vector<128x128xbf16>
      %cst_117 = arith.constant dense<0.000000e+00> : vector<136x128xf32>
      %150 = tpu.matmul %147, %149, %cst_117 {dimension_numbers = #tpu.dot_dimension_numbers<[1], [0], [0], [1], [0, 0, 1, 1], [], []>} : vector<136x128xbf16>, vector<128x128xbf16>, vector<136x128xf32> -> vector<136x128xf32>
      %151 = arith.addf %145, %150 : vector<136x128xf32>
      %c56 = arith.constant 56 : index
      %c0_118 = arith.constant 0 : index
      %152 = vector.load %arg15[%c56, %c0_118] : memref<196x128xf32, #tpu.memory_space<vmem>>, vector<136x128xf32>
      %153 = arith.truncf %152 : vector<136x128xf32> to vector<136x128xbf16>
      %c20 = arith.constant 20 : index
      %c0_119 = arith.constant 0 : index
      %c0_120 = arith.constant 0 : index
      %154 = vector.load %arg5[%c20, %c0_119, %c0_120] : memref<25x128x128xbf16, #tpu.memory_space<vmem>>, vector<1x128x128xbf16>
      %155 = vector.shape_cast %154 : vector<1x128x128xbf16> to vector<128x128xbf16>
      %cst_121 = arith.constant dense<0.000000e+00> : vector<136x128xf32>
      %156 = tpu.matmul %153, %155, %cst_121 {dimension_numbers = #tpu.dot_dimension_numbers<[1], [0], [0], [1], [0, 0, 1, 1], [], []>} : vector<136x128xbf16>, vector<128x128xbf16>, vector<136x128xf32> -> vector<136x128xf32>
      %157 = arith.addf %151, %156 : vector<136x128xf32>
      %c57 = arith.constant 57 : index
      %c0_122 = arith.constant 0 : index
      %158 = vector.load %arg15[%c57, %c0_122] : memref<196x128xf32, #tpu.memory_space<vmem>>, vector<136x128xf32>
      %159 = arith.truncf %158 : vector<136x128xf32> to vector<136x128xbf16>
      %c21 = arith.constant 21 : index
      %c0_123 = arith.constant 0 : index
      %c0_124 = arith.constant 0 : index
      %160 = vector.load %arg5[%c21, %c0_123, %c0_124] : memref<25x128x128xbf16, #tpu.memory_space<vmem>>, vector<1x128x128xbf16>
      %161 = vector.shape_cast %160 : vector<1x128x128xbf16> to vector<128x128xbf16>
      %cst_125 = arith.constant dense<0.000000e+00> : vector<136x128xf32>
      %162 = tpu.matmul %159, %161, %cst_125 {dimension_numbers = #tpu.dot_dimension_numbers<[1], [0], [0], [1], [0, 0, 1, 1], [], []>} : vector<136x128xbf16>, vector<128x128xbf16>, vector<136x128xf32> -> vector<136x128xf32>
      %163 = arith.addf %157, %162 : vector<136x128xf32>
      %c58 = arith.constant 58 : index
      %c0_126 = arith.constant 0 : index
      %164 = vector.load %arg15[%c58, %c0_126] : memref<196x128xf32, #tpu.memory_space<vmem>>, vector<136x128xf32>
      %165 = arith.truncf %164 : vector<136x128xf32> to vector<136x128xbf16>
      %c22 = arith.constant 22 : index
      %c0_127 = arith.constant 0 : index
      %c0_128 = arith.constant 0 : index
      %166 = vector.load %arg5[%c22, %c0_127, %c0_128] : memref<25x128x128xbf16, #tpu.memory_space<vmem>>, vector<1x128x128xbf16>
      %167 = vector.shape_cast %166 : vector<1x128x128xbf16> to vector<128x128xbf16>
      %cst_129 = arith.constant dense<0.000000e+00> : vector<136x128xf32>
      %168 = tpu.matmul %165, %167, %cst_129 {dimension_numbers = #tpu.dot_dimension_numbers<[1], [0], [0], [1], [0, 0, 1, 1], [], []>} : vector<136x128xbf16>, vector<128x128xbf16>, vector<136x128xf32> -> vector<136x128xf32>
      %169 = arith.addf %163, %168 : vector<136x128xf32>
      %c59 = arith.constant 59 : index
      %c0_130 = arith.constant 0 : index
      %170 = vector.load %arg15[%c59, %c0_130] : memref<196x128xf32, #tpu.memory_space<vmem>>, vector<136x128xf32>
      %171 = arith.truncf %170 : vector<136x128xf32> to vector<136x128xbf16>
      %c23 = arith.constant 23 : index
      %c0_131 = arith.constant 0 : index
      %c0_132 = arith.constant 0 : index
      %172 = vector.load %arg5[%c23, %c0_131, %c0_132] : memref<25x128x128xbf16, #tpu.memory_space<vmem>>, vector<1x128x128xbf16>
      %173 = vector.shape_cast %172 : vector<1x128x128xbf16> to vector<128x128xbf16>
      %cst_133 = arith.constant dense<0.000000e+00> : vector<136x128xf32>
      %174 = tpu.matmul %171, %173, %cst_133 {dimension_numbers = #tpu.dot_dimension_numbers<[1], [0], [0], [1], [0, 0, 1, 1], [], []>} : vector<136x128xbf16>, vector<128x128xbf16>, vector<136x128xf32> -> vector<136x128xf32>
      %175 = arith.addf %169, %174 : vector<136x128xf32>
      %c60 = arith.constant 60 : index
      %c0_134 = arith.constant 0 : index
      %176 = vector.load %arg15[%c60, %c0_134] : memref<196x128xf32, #tpu.memory_space<vmem>>, vector<136x128xf32>
      %177 = arith.truncf %176 : vector<136x128xf32> to vector<136x128xbf16>
      %c24 = arith.constant 24 : index
      %c0_135 = arith.constant 0 : index
      %c0_136 = arith.constant 0 : index
      %178 = vector.load %arg5[%c24, %c0_135, %c0_136] : memref<25x128x128xbf16, #tpu.memory_space<vmem>>, vector<1x128x128xbf16>
      %179 = vector.shape_cast %178 : vector<1x128x128xbf16> to vector<128x128xbf16>
      %cst_137 = arith.constant dense<0.000000e+00> : vector<136x128xf32>
      %180 = tpu.matmul %177, %179, %cst_137 {dimension_numbers = #tpu.dot_dimension_numbers<[1], [0], [0], [1], [0, 0, 1, 1], [], []>} : vector<136x128xbf16>, vector<128x128xbf16>, vector<136x128xf32> -> vector<136x128xf32>
      %181 = arith.addf %175, %180 : vector<136x128xf32>
      %182 = math.tanh %181 : vector<136x128xf32>
      %c0_138 = arith.constant 0 : index
      %c0_139 = arith.constant 0 : index
      %183 = vector.load %arg7[%c0_138, %c0_139] : memref<25x136xbf16, #tpu.memory_space<vmem>>, vector<25x136xbf16>
      %184 = arith.truncf %182 : vector<136x128xf32> to vector<136x128xbf16>
      %cst_140 = arith.constant dense<0.000000e+00> : vector<25x128xf32>
      %185 = tpu.matmul %183, %184, %cst_140 {dimension_numbers = #tpu.dot_dimension_numbers<[1], [0], [0], [1], [0, 0, 1, 1], [], []>} : vector<25x136xbf16>, vector<136x128xbf16>, vector<25x128xf32> -> vector<25x128xf32>
      %c0_141 = arith.constant 0 : index
      %c0_142 = arith.constant 0 : index
      %186 = vector.load %arg16[%c0_141, %c0_142] : memref<25x128xf32, #tpu.memory_space<vmem>>, vector<25x128xf32>
      tpu.vector_store %arg16[%c0_141, %c0_142], %185 {strides = array<i32>} : memref<25x128xf32, #tpu.memory_space<vmem>>, vector<25x128xf32>,
      %c0_143 = arith.constant 0 : index
      %c0_144 = arith.constant 0 : index
      %187 = vector.load %arg9[%c0_143, %c0_144] : memref<1x128xf32, #tpu.memory_space<vmem>>, vector<1x128xf32>
      %c0_145 = arith.constant 0 : index
      %c0_146 = arith.constant 0 : index
      %188 = vector.load %arg16[%c0_145, %c0_146] : memref<25x128xf32, #tpu.memory_space<vmem>>, vector<1x128xf32>
      %189 = arith.truncf %188 : vector<1x128xf32> to vector<1x128xbf16>
      %c0_147 = arith.constant 0 : index
      %c0_148 = arith.constant 0 : index
      %c0_149 = arith.constant 0 : index
      %190 = vector.load %arg8[%c0_147, %c0_148, %c0_149] : memref<25x128x128xbf16, #tpu.memory_space<vmem>>, vector<1x128x128xbf16>
      %191 = vector.shape_cast %190 : vector<1x128x128xbf16> to vector<128x128xbf16>
      %cst_150 = arith.constant dense<0.000000e+00> : vector<1x128xf32>
      %192 = tpu.matmul %189, %191, %cst_150 {dimension_numbers = #tpu.dot_dimension_numbers<[1], [0], [0], [1], [0, 0, 1, 1], [], []>} : vector<1x128xbf16>, vector<128x128xbf16>, vector<1x128xf32> -> vector<1x128xf32>
      %193 = arith.addf %187, %192 : vector<1x128xf32>
      %c1_151 = arith.constant 1 : index
      %c0_152 = arith.constant 0 : index
      %194 = vector.load %arg16[%c1_151, %c0_152] : memref<25x128xf32, #tpu.memory_space<vmem>>, vector<1x128xf32>
      %195 = arith.truncf %194 : vector<1x128xf32> to vector<1x128xbf16>
      %c1_153 = arith.constant 1 : index
      %c0_154 = arith.constant 0 : index
      %c0_155 = arith.constant 0 : index
      %196 = vector.load %arg8[%c1_153, %c0_154, %c0_155] : memref<25x128x128xbf16, #tpu.memory_space<vmem>>, vector<1x128x128xbf16>
      %197 = vector.shape_cast %196 : vector<1x128x128xbf16> to vector<128x128xbf16>
      %cst_156 = arith.constant dense<0.000000e+00> : vector<1x128xf32>
      %198 = tpu.matmul %195, %197, %cst_156 {dimension_numbers = #tpu.dot_dimension_numbers<[1], [0], [0], [1], [0, 0, 1, 1], [], []>} : vector<1x128xbf16>, vector<128x128xbf16>, vector<1x128xf32> -> vector<1x128xf32>
      %199 = arith.addf %193, %198 : vector<1x128xf32>
      %c2_157 = arith.constant 2 : index
      %c0_158 = arith.constant 0 : index
      %200 = vector.load %arg16[%c2_157, %c0_158] : memref<25x128xf32, #tpu.memory_space<vmem>>, vector<1x128xf32>
      %201 = arith.truncf %200 : vector<1x128xf32> to vector<1x128xbf16>
      %c2_159 = arith.constant 2 : index
      %c0_160 = arith.constant 0 : index
      %c0_161 = arith.constant 0 : index
      %202 = vector.load %arg8[%c2_159, %c0_160, %c0_161] : memref<25x128x128xbf16, #tpu.memory_space<vmem>>, vector<1x128x128xbf16>
      %203 = vector.shape_cast %202 : vector<1x128x128xbf16> to vector<128x128xbf16>
      %cst_162 = arith.constant dense<0.000000e+00> : vector<1x128xf32>
      %204 = tpu.matmul %201, %203, %cst_162 {dimension_numbers = #tpu.dot_dimension_numbers<[1], [0], [0], [1], [0, 0, 1, 1], [], []>} : vector<1x128xbf16>, vector<128x128xbf16>, vector<1x128xf32> -> vector<1x128xf32>
      %205 = arith.addf %199, %204 : vector<1x128xf32>
      %c3_163 = arith.constant 3 : index
      %c0_164 = arith.constant 0 : index
      %206 = vector.load %arg16[%c3_163, %c0_164] : memref<25x128xf32, #tpu.memory_space<vmem>>, vector<1x128xf32>
      %207 = arith.truncf %206 : vector<1x128xf32> to vector<1x128xbf16>
      %c3_165 = arith.constant 3 : index
      %c0_166 = arith.constant 0 : index
      %c0_167 = arith.constant 0 : index
      %208 = vector.load %arg8[%c3_165, %c0_166, %c0_167] : memref<25x128x128xbf16, #tpu.memory_space<vmem>>, vector<1x128x128xbf16>
      %209 = vector.shape_cast %208 : vector<1x128x128xbf16> to vector<128x128xbf16>
      %cst_168 = arith.constant dense<0.000000e+00> : vector<1x128xf32>
      %210 = tpu.matmul %207, %209, %cst_168 {dimension_numbers = #tpu.dot_dimension_numbers<[1], [0], [0], [1], [0, 0, 1, 1], [], []>} : vector<1x128xbf16>, vector<128x128xbf16>, vector<1x128xf32> -> vector<1x128xf32>
      %211 = arith.addf %205, %210 : vector<1x128xf32>
      %c4_169 = arith.constant 4 : index
      %c0_170 = arith.constant 0 : index
      %212 = vector.load %arg16[%c4_169, %c0_170] : memref<25x128xf32, #tpu.memory_space<vmem>>, vector<1x128xf32>
      %213 = arith.truncf %212 : vector<1x128xf32> to vector<1x128xbf16>
      %c4_171 = arith.constant 4 : index
      %c0_172 = arith.constant 0 : index
      %c0_173 = arith.constant 0 : index
      %214 = vector.load %arg8[%c4_171, %c0_172, %c0_173] : memref<25x128x128xbf16, #tpu.memory_space<vmem>>, vector<1x128x128xbf16>
      %215 = vector.shape_cast %214 : vector<1x128x128xbf16> to vector<128x128xbf16>
      %cst_174 = arith.constant dense<0.000000e+00> : vector<1x128xf32>
      %216 = tpu.matmul %213, %215, %cst_174 {dimension_numbers = #tpu.dot_dimension_numbers<[1], [0], [0], [1], [0, 0, 1, 1], [], []>} : vector<1x128xbf16>, vector<128x128xbf16>, vector<1x128xf32> -> vector<1x128xf32>
      %217 = arith.addf %211, %216 : vector<1x128xf32>
      %c5_175 = arith.constant 5 : index
      %c0_176 = arith.constant 0 : index
      %218 = vector.load %arg16[%c5_175, %c0_176] : memref<25x128xf32, #tpu.memory_space<vmem>>, vector<1x128xf32>
      %219 = arith.truncf %218 : vector<1x128xf32> to vector<1x128xbf16>
      %c5_177 = arith.constant 5 : index
      %c0_178 = arith.constant 0 : index
      %c0_179 = arith.constant 0 : index
      %220 = vector.load %arg8[%c5_177, %c0_178, %c0_179] : memref<25x128x128xbf16, #tpu.memory_space<vmem>>, vector<1x128x128xbf16>
      %221 = vector.shape_cast %220 : vector<1x128x128xbf16> to vector<128x128xbf16>
      %cst_180 = arith.constant dense<0.000000e+00> : vector<1x128xf32>
      %222 = tpu.matmul %219, %221, %cst_180 {dimension_numbers = #tpu.dot_dimension_numbers<[1], [0], [0], [1], [0, 0, 1, 1], [], []>} : vector<1x128xbf16>, vector<128x128xbf16>, vector<1x128xf32> -> vector<1x128xf32>
      %223 = arith.addf %217, %222 : vector<1x128xf32>
      %c6_181 = arith.constant 6 : index
      %c0_182 = arith.constant 0 : index
      %224 = vector.load %arg16[%c6_181, %c0_182] : memref<25x128xf32, #tpu.memory_space<vmem>>, vector<1x128xf32>
      %225 = arith.truncf %224 : vector<1x128xf32> to vector<1x128xbf16>
      %c6_183 = arith.constant 6 : index
      %c0_184 = arith.constant 0 : index
      %c0_185 = arith.constant 0 : index
      %226 = vector.load %arg8[%c6_183, %c0_184, %c0_185] : memref<25x128x128xbf16, #tpu.memory_space<vmem>>, vector<1x128x128xbf16>
      %227 = vector.shape_cast %226 : vector<1x128x128xbf16> to vector<128x128xbf16>
      %cst_186 = arith.constant dense<0.000000e+00> : vector<1x128xf32>
      %228 = tpu.matmul %225, %227, %cst_186 {dimension_numbers = #tpu.dot_dimension_numbers<[1], [0], [0], [1], [0, 0, 1, 1], [], []>} : vector<1x128xbf16>, vector<128x128xbf16>, vector<1x128xf32> -> vector<1x128xf32>
      %229 = arith.addf %223, %228 : vector<1x128xf32>
      %c7_187 = arith.constant 7 : index
      %c0_188 = arith.constant 0 : index
      %230 = vector.load %arg16[%c7_187, %c0_188] : memref<25x128xf32, #tpu.memory_space<vmem>>, vector<1x128xf32>
      %231 = arith.truncf %230 : vector<1x128xf32> to vector<1x128xbf16>
      %c7_189 = arith.constant 7 : index
      %c0_190 = arith.constant 0 : index
      %c0_191 = arith.constant 0 : index
      %232 = vector.load %arg8[%c7_189, %c0_190, %c0_191] : memref<25x128x128xbf16, #tpu.memory_space<vmem>>, vector<1x128x128xbf16>
      %233 = vector.shape_cast %232 : vector<1x128x128xbf16> to vector<128x128xbf16>
      %cst_192 = arith.constant dense<0.000000e+00> : vector<1x128xf32>
      %234 = tpu.matmul %231, %233, %cst_192 {dimension_numbers = #tpu.dot_dimension_numbers<[1], [0], [0], [1], [0, 0, 1, 1], [], []>} : vector<1x128xbf16>, vector<128x128xbf16>, vector<1x128xf32> -> vector<1x128xf32>
      %235 = arith.addf %229, %234 : vector<1x128xf32>
      %c8_193 = arith.constant 8 : index
      %c0_194 = arith.constant 0 : index
      %236 = vector.load %arg16[%c8_193, %c0_194] : memref<25x128xf32, #tpu.memory_space<vmem>>, vector<1x128xf32>
      %237 = arith.truncf %236 : vector<1x128xf32> to vector<1x128xbf16>
      %c8_195 = arith.constant 8 : index
      %c0_196 = arith.constant 0 : index
      %c0_197 = arith.constant 0 : index
      %238 = vector.load %arg8[%c8_195, %c0_196, %c0_197] : memref<25x128x128xbf16, #tpu.memory_space<vmem>>, vector<1x128x128xbf16>
      %239 = vector.shape_cast %238 : vector<1x128x128xbf16> to vector<128x128xbf16>
      %cst_198 = arith.constant dense<0.000000e+00> : vector<1x128xf32>
      %240 = tpu.matmul %237, %239, %cst_198 {dimension_numbers = #tpu.dot_dimension_numbers<[1], [0], [0], [1], [0, 0, 1, 1], [], []>} : vector<1x128xbf16>, vector<128x128xbf16>, vector<1x128xf32> -> vector<1x128xf32>
      %241 = arith.addf %235, %240 : vector<1x128xf32>
      %c9_199 = arith.constant 9 : index
      %c0_200 = arith.constant 0 : index
      %242 = vector.load %arg16[%c9_199, %c0_200] : memref<25x128xf32, #tpu.memory_space<vmem>>, vector<1x128xf32>
      %243 = arith.truncf %242 : vector<1x128xf32> to vector<1x128xbf16>
      %c9_201 = arith.constant 9 : index
      %c0_202 = arith.constant 0 : index
      %c0_203 = arith.constant 0 : index
      %244 = vector.load %arg8[%c9_201, %c0_202, %c0_203] : memref<25x128x128xbf16, #tpu.memory_space<vmem>>, vector<1x128x128xbf16>
      %245 = vector.shape_cast %244 : vector<1x128x128xbf16> to vector<128x128xbf16>
      %cst_204 = arith.constant dense<0.000000e+00> : vector<1x128xf32>
      %246 = tpu.matmul %243, %245, %cst_204 {dimension_numbers = #tpu.dot_dimension_numbers<[1], [0], [0], [1], [0, 0, 1, 1], [], []>} : vector<1x128xbf16>, vector<128x128xbf16>, vector<1x128xf32> -> vector<1x128xf32>
      %247 = arith.addf %241, %246 : vector<1x128xf32>
      %c10_205 = arith.constant 10 : index
      %c0_206 = arith.constant 0 : index
      %248 = vector.load %arg16[%c10_205, %c0_206] : memref<25x128xf32, #tpu.memory_space<vmem>>, vector<1x128xf32>
      %249 = arith.truncf %248 : vector<1x128xf32> to vector<1x128xbf16>
      %c10_207 = arith.constant 10 : index
      %c0_208 = arith.constant 0 : index
      %c0_209 = arith.constant 0 : index
      %250 = vector.load %arg8[%c10_207, %c0_208, %c0_209] : memref<25x128x128xbf16, #tpu.memory_space<vmem>>, vector<1x128x128xbf16>
      %251 = vector.shape_cast %250 : vector<1x128x128xbf16> to vector<128x128xbf16>
      %cst_210 = arith.constant dense<0.000000e+00> : vector<1x128xf32>
      %252 = tpu.matmul %249, %251, %cst_210 {dimension_numbers = #tpu.dot_dimension_numbers<[1], [0], [0], [1], [0, 0, 1, 1], [], []>} : vector<1x128xbf16>, vector<128x128xbf16>, vector<1x128xf32> -> vector<1x128xf32>
      %253 = arith.addf %247, %252 : vector<1x128xf32>
      %c11_211 = arith.constant 11 : index
      %c0_212 = arith.constant 0 : index
      %254 = vector.load %arg16[%c11_211, %c0_212] : memref<25x128xf32, #tpu.memory_space<vmem>>, vector<1x128xf32>
      %255 = arith.truncf %254 : vector<1x128xf32> to vector<1x128xbf16>
      %c11_213 = arith.constant 11 : index
      %c0_214 = arith.constant 0 : index
      %c0_215 = arith.constant 0 : index
      %256 = vector.load %arg8[%c11_213, %c0_214, %c0_215] : memref<25x128x128xbf16, #tpu.memory_space<vmem>>, vector<1x128x128xbf16>
      %257 = vector.shape_cast %256 : vector<1x128x128xbf16> to vector<128x128xbf16>
      %cst_216 = arith.constant dense<0.000000e+00> : vector<1x128xf32>
      %258 = tpu.matmul %255, %257, %cst_216 {dimension_numbers = #tpu.dot_dimension_numbers<[1], [0], [0], [1], [0, 0, 1, 1], [], []>} : vector<1x128xbf16>, vector<128x128xbf16>, vector<1x128xf32> -> vector<1x128xf32>
      %259 = arith.addf %253, %258 : vector<1x128xf32>
      %c12_217 = arith.constant 12 : index
      %c0_218 = arith.constant 0 : index
      %260 = vector.load %arg16[%c12_217, %c0_218] : memref<25x128xf32, #tpu.memory_space<vmem>>, vector<1x128xf32>
      %261 = arith.truncf %260 : vector<1x128xf32> to vector<1x128xbf16>
      %c12_219 = arith.constant 12 : index
      %c0_220 = arith.constant 0 : index
      %c0_221 = arith.constant 0 : index
      %262 = vector.load %arg8[%c12_219, %c0_220, %c0_221] : memref<25x128x128xbf16, #tpu.memory_space<vmem>>, vector<1x128x128xbf16>
      %263 = vector.shape_cast %262 : vector<1x128x128xbf16> to vector<128x128xbf16>
      %cst_222 = arith.constant dense<0.000000e+00> : vector<1x128xf32>
      %264 = tpu.matmul %261, %263, %cst_222 {dimension_numbers = #tpu.dot_dimension_numbers<[1], [0], [0], [1], [0, 0, 1, 1], [], []>} : vector<1x128xbf16>, vector<128x128xbf16>, vector<1x128xf32> -> vector<1x128xf32>
      %265 = arith.addf %259, %264 : vector<1x128xf32>
      %c13_223 = arith.constant 13 : index
      %c0_224 = arith.constant 0 : index
      %266 = vector.load %arg16[%c13_223, %c0_224] : memref<25x128xf32, #tpu.memory_space<vmem>>, vector<1x128xf32>
      %267 = arith.truncf %266 : vector<1x128xf32> to vector<1x128xbf16>
      %c13_225 = arith.constant 13 : index
      %c0_226 = arith.constant 0 : index
      %c0_227 = arith.constant 0 : index
      %268 = vector.load %arg8[%c13_225, %c0_226, %c0_227] : memref<25x128x128xbf16, #tpu.memory_space<vmem>>, vector<1x128x128xbf16>
      %269 = vector.shape_cast %268 : vector<1x128x128xbf16> to vector<128x128xbf16>
      %cst_228 = arith.constant dense<0.000000e+00> : vector<1x128xf32>
      %270 = tpu.matmul %267, %269, %cst_228 {dimension_numbers = #tpu.dot_dimension_numbers<[1], [0], [0], [1], [0, 0, 1, 1], [], []>} : vector<1x128xbf16>, vector<128x128xbf16>, vector<1x128xf32> -> vector<1x128xf32>
      %271 = arith.addf %265, %270 : vector<1x128xf32>
      %c14_229 = arith.constant 14 : index
      %c0_230 = arith.constant 0 : index
      %272 = vector.load %arg16[%c14_229, %c0_230] : memref<25x128xf32, #tpu.memory_space<vmem>>, vector<1x128xf32>
      %273 = arith.truncf %272 : vector<1x128xf32> to vector<1x128xbf16>
      %c14_231 = arith.constant 14 : index
      %c0_232 = arith.constant 0 : index
      %c0_233 = arith.constant 0 : index
      %274 = vector.load %arg8[%c14_231, %c0_232, %c0_233] : memref<25x128x128xbf16, #tpu.memory_space<vmem>>, vector<1x128x128xbf16>
      %275 = vector.shape_cast %274 : vector<1x128x128xbf16> to vector<128x128xbf16>
      %cst_234 = arith.constant dense<0.000000e+00> : vector<1x128xf32>
      %276 = tpu.matmul %273, %275, %cst_234 {dimension_numbers = #tpu.dot_dimension_numbers<[1], [0], [0], [1], [0, 0, 1, 1], [], []>} : vector<1x128xbf16>, vector<128x128xbf16>, vector<1x128xf32> -> vector<1x128xf32>
      %277 = arith.addf %271, %276 : vector<1x128xf32>
      %c15_235 = arith.constant 15 : index
      %c0_236 = arith.constant 0 : index
      %278 = vector.load %arg16[%c15_235, %c0_236] : memref<25x128xf32, #tpu.memory_space<vmem>>, vector<1x128xf32>
      %279 = arith.truncf %278 : vector<1x128xf32> to vector<1x128xbf16>
      %c15_237 = arith.constant 15 : index
      %c0_238 = arith.constant 0 : index
      %c0_239 = arith.constant 0 : index
      %280 = vector.load %arg8[%c15_237, %c0_238, %c0_239] : memref<25x128x128xbf16, #tpu.memory_space<vmem>>, vector<1x128x128xbf16>
      %281 = vector.shape_cast %280 : vector<1x128x128xbf16> to vector<128x128xbf16>
      %cst_240 = arith.constant dense<0.000000e+00> : vector<1x128xf32>
      %282 = tpu.matmul %279, %281, %cst_240 {dimension_numbers = #tpu.dot_dimension_numbers<[1], [0], [0], [1], [0, 0, 1, 1], [], []>} : vector<1x128xbf16>, vector<128x128xbf16>, vector<1x128xf32> -> vector<1x128xf32>
      %283 = arith.addf %277, %282 : vector<1x128xf32>
      %c16_241 = arith.constant 16 : index
      %c0_242 = arith.constant 0 : index
      %284 = vector.load %arg16[%c16_241, %c0_242] : memref<25x128xf32, #tpu.memory_space<vmem>>, vector<1x128xf32>
      %285 = arith.truncf %284 : vector<1x128xf32> to vector<1x128xbf16>
      %c16_243 = arith.constant 16 : index
      %c0_244 = arith.constant 0 : index
      %c0_245 = arith.constant 0 : index
      %286 = vector.load %arg8[%c16_243, %c0_244, %c0_245] : memref<25x128x128xbf16, #tpu.memory_space<vmem>>, vector<1x128x128xbf16>
      %287 = vector.shape_cast %286 : vector<1x128x128xbf16> to vector<128x128xbf16>
      %cst_246 = arith.constant dense<0.000000e+00> : vector<1x128xf32>
      %288 = tpu.matmul %285, %287, %cst_246 {dimension_numbers = #tpu.dot_dimension_numbers<[1], [0], [0], [1], [0, 0, 1, 1], [], []>} : vector<1x128xbf16>, vector<128x128xbf16>, vector<1x128xf32> -> vector<1x128xf32>
      %289 = arith.addf %283, %288 : vector<1x128xf32>
      %c17_247 = arith.constant 17 : index
      %c0_248 = arith.constant 0 : index
      %290 = vector.load %arg16[%c17_247, %c0_248] : memref<25x128xf32, #tpu.memory_space<vmem>>, vector<1x128xf32>
      %291 = arith.truncf %290 : vector<1x128xf32> to vector<1x128xbf16>
      %c17_249 = arith.constant 17 : index
      %c0_250 = arith.constant 0 : index
      %c0_251 = arith.constant 0 : index
      %292 = vector.load %arg8[%c17_249, %c0_250, %c0_251] : memref<25x128x128xbf16, #tpu.memory_space<vmem>>, vector<1x128x128xbf16>
      %293 = vector.shape_cast %292 : vector<1x128x128xbf16> to vector<128x128xbf16>
      %cst_252 = arith.constant dense<0.000000e+00> : vector<1x128xf32>
      %294 = tpu.matmul %291, %293, %cst_252 {dimension_numbers = #tpu.dot_dimension_numbers<[1], [0], [0], [1], [0, 0, 1, 1], [], []>} : vector<1x128xbf16>, vector<128x128xbf16>, vector<1x128xf32> -> vector<1x128xf32>
      %295 = arith.addf %289, %294 : vector<1x128xf32>
      %c18_253 = arith.constant 18 : index
      %c0_254 = arith.constant 0 : index
      %296 = vector.load %arg16[%c18_253, %c0_254] : memref<25x128xf32, #tpu.memory_space<vmem>>, vector<1x128xf32>
      %297 = arith.truncf %296 : vector<1x128xf32> to vector<1x128xbf16>
      %c18_255 = arith.constant 18 : index
      %c0_256 = arith.constant 0 : index
      %c0_257 = arith.constant 0 : index
      %298 = vector.load %arg8[%c18_255, %c0_256, %c0_257] : memref<25x128x128xbf16, #tpu.memory_space<vmem>>, vector<1x128x128xbf16>
      %299 = vector.shape_cast %298 : vector<1x128x128xbf16> to vector<128x128xbf16>
      %cst_258 = arith.constant dense<0.000000e+00> : vector<1x128xf32>
      %300 = tpu.matmul %297, %299, %cst_258 {dimension_numbers = #tpu.dot_dimension_numbers<[1], [0], [0], [1], [0, 0, 1, 1], [], []>} : vector<1x128xbf16>, vector<128x128xbf16>, vector<1x128xf32> -> vector<1x128xf32>
      %301 = arith.addf %295, %300 : vector<1x128xf32>
      %c19_259 = arith.constant 19 : index
      %c0_260 = arith.constant 0 : index
      %302 = vector.load %arg16[%c19_259, %c0_260] : memref<25x128xf32, #tpu.memory_space<vmem>>, vector<1x128xf32>
      %303 = arith.truncf %302 : vector<1x128xf32> to vector<1x128xbf16>
      %c19_261 = arith.constant 19 : index
      %c0_262 = arith.constant 0 : index
      %c0_263 = arith.constant 0 : index
      %304 = vector.load %arg8[%c19_261, %c0_262, %c0_263] : memref<25x128x128xbf16, #tpu.memory_space<vmem>>, vector<1x128x128xbf16>
      %305 = vector.shape_cast %304 : vector<1x128x128xbf16> to vector<128x128xbf16>
      %cst_264 = arith.constant dense<0.000000e+00> : vector<1x128xf32>
      %306 = tpu.matmul %303, %305, %cst_264 {dimension_numbers = #tpu.dot_dimension_numbers<[1], [0], [0], [1], [0, 0, 1, 1], [], []>} : vector<1x128xbf16>, vector<128x128xbf16>, vector<1x128xf32> -> vector<1x128xf32>
      %307 = arith.addf %301, %306 : vector<1x128xf32>
      %c20_265 = arith.constant 20 : index
      %c0_266 = arith.constant 0 : index
      %308 = vector.load %arg16[%c20_265, %c0_266] : memref<25x128xf32, #tpu.memory_space<vmem>>, vector<1x128xf32>
      %309 = arith.truncf %308 : vector<1x128xf32> to vector<1x128xbf16>
      %c20_267 = arith.constant 20 : index
      %c0_268 = arith.constant 0 : index
      %c0_269 = arith.constant 0 : index
      %310 = vector.load %arg8[%c20_267, %c0_268, %c0_269] : memref<25x128x128xbf16, #tpu.memory_space<vmem>>, vector<1x128x128xbf16>
      %311 = vector.shape_cast %310 : vector<1x128x128xbf16> to vector<128x128xbf16>
      %cst_270 = arith.constant dense<0.000000e+00> : vector<1x128xf32>
      %312 = tpu.matmul %309, %311, %cst_270 {dimension_numbers = #tpu.dot_dimension_numbers<[1], [0], [0], [1], [0, 0, 1, 1], [], []>} : vector<1x128xbf16>, vector<128x128xbf16>, vector<1x128xf32> -> vector<1x128xf32>
      %313 = arith.addf %307, %312 : vector<1x128xf32>
      %c21_271 = arith.constant 21 : index
      %c0_272 = arith.constant 0 : index
      %314 = vector.load %arg16[%c21_271, %c0_272] : memref<25x128xf32, #tpu.memory_space<vmem>>, vector<1x128xf32>
      %315 = arith.truncf %314 : vector<1x128xf32> to vector<1x128xbf16>
      %c21_273 = arith.constant 21 : index
      %c0_274 = arith.constant 0 : index
      %c0_275 = arith.constant 0 : index
      %316 = vector.load %arg8[%c21_273, %c0_274, %c0_275] : memref<25x128x128xbf16, #tpu.memory_space<vmem>>, vector<1x128x128xbf16>
      %317 = vector.shape_cast %316 : vector<1x128x128xbf16> to vector<128x128xbf16>
      %cst_276 = arith.constant dense<0.000000e+00> : vector<1x128xf32>
      %318 = tpu.matmul %315, %317, %cst_276 {dimension_numbers = #tpu.dot_dimension_numbers<[1], [0], [0], [1], [0, 0, 1, 1], [], []>} : vector<1x128xbf16>, vector<128x128xbf16>, vector<1x128xf32> -> vector<1x128xf32>
      %319 = arith.addf %313, %318 : vector<1x128xf32>
      %c22_277 = arith.constant 22 : index
      %c0_278 = arith.constant 0 : index
      %320 = vector.load %arg16[%c22_277, %c0_278] : memref<25x128xf32, #tpu.memory_space<vmem>>, vector<1x128xf32>
      %321 = arith.truncf %320 : vector<1x128xf32> to vector<1x128xbf16>
      %c22_279 = arith.constant 22 : index
      %c0_280 = arith.constant 0 : index
      %c0_281 = arith.constant 0 : index
      %322 = vector.load %arg8[%c22_279, %c0_280, %c0_281] : memref<25x128x128xbf16, #tpu.memory_space<vmem>>, vector<1x128x128xbf16>
      %323 = vector.shape_cast %322 : vector<1x128x128xbf16> to vector<128x128xbf16>
      %cst_282 = arith.constant dense<0.000000e+00> : vector<1x128xf32>
      %324 = tpu.matmul %321, %323, %cst_282 {dimension_numbers = #tpu.dot_dimension_numbers<[1], [0], [0], [1], [0, 0, 1, 1], [], []>} : vector<1x128xbf16>, vector<128x128xbf16>, vector<1x128xf32> -> vector<1x128xf32>
      %325 = arith.addf %319, %324 : vector<1x128xf32>
      %c23_283 = arith.constant 23 : index
      %c0_284 = arith.constant 0 : index
      %326 = vector.load %arg16[%c23_283, %c0_284] : memref<25x128xf32, #tpu.memory_space<vmem>>, vector<1x128xf32>
      %327 = arith.truncf %326 : vector<1x128xf32> to vector<1x128xbf16>
      %c23_285 = arith.constant 23 : index
      %c0_286 = arith.constant 0 : index
      %c0_287 = arith.constant 0 : index
      %328 = vector.load %arg8[%c23_285, %c0_286, %c0_287] : memref<25x128x128xbf16, #tpu.memory_space<vmem>>, vector<1x128x128xbf16>
      %329 = vector.shape_cast %328 : vector<1x128x128xbf16> to vector<128x128xbf16>
      %cst_288 = arith.constant dense<0.000000e+00> : vector<1x128xf32>
      %330 = tpu.matmul %327, %329, %cst_288 {dimension_numbers = #tpu.dot_dimension_numbers<[1], [0], [0], [1], [0, 0, 1, 1], [], []>} : vector<1x128xbf16>, vector<128x128xbf16>, vector<1x128xf32> -> vector<1x128xf32>
      %331 = arith.addf %325, %330 : vector<1x128xf32>
      %c24_289 = arith.constant 24 : index
      %c0_290 = arith.constant 0 : index
      %332 = vector.load %arg16[%c24_289, %c0_290] : memref<25x128xf32, #tpu.memory_space<vmem>>, vector<1x128xf32>
      %333 = arith.truncf %332 : vector<1x128xf32> to vector<1x128xbf16>
      %c24_291 = arith.constant 24 : index
      %c0_292 = arith.constant 0 : index
      %c0_293 = arith.constant 0 : index
      %334 = vector.load %arg8[%c24_291, %c0_292, %c0_293] : memref<25x128x128xbf16, #tpu.memory_space<vmem>>, vector<1x128x128xbf16>
      %335 = vector.shape_cast %334 : vector<1x128x128xbf16> to vector<128x128xbf16>
      %cst_294 = arith.constant dense<0.000000e+00> : vector<1x128xf32>
      %336 = tpu.matmul %333, %335, %cst_294 {dimension_numbers = #tpu.dot_dimension_numbers<[1], [0], [0], [1], [0, 0, 1, 1], [], []>} : vector<1x128xbf16>, vector<128x128xbf16>, vector<1x128xf32> -> vector<1x128xf32>
      %337 = arith.addf %331, %336 : vector<1x128xf32>
      %338 = math.tanh %337 : vector<1x128xf32>
      %339 = arith.index_cast %arg18 : i32 to index
      %c0_295 = arith.constant 0 : index
      %340 = vector.load %arg17[%339, %c0_295] : memref<8x128xf32, #tpu.memory_space<vmem>>, vector<1x128xf32>
      tpu.vector_store %arg17[%339, %c0_295], %338 {strides = array<i32>} : memref<8x128xf32, #tpu.memory_space<vmem>>, vector<1x128xf32>,
    }
    %c8_i32_0 = arith.constant 8 : i32
    %c0 = arith.constant 0 : index
    %c0_1 = arith.constant 0 : index
    %1 = vector.load %arg17[%c0, %c0_1] : memref<8x128xf32, #tpu.memory_space<vmem>>, vector<8x128xf32>
    %2 = arith.truncf %1 : vector<8x128xf32> to vector<8x128xbf16>
    %c0_2 = arith.constant 0 : index
    %c0_3 = arith.constant 0 : index
    %3 = vector.load %arg10[%c0_2, %c0_3] : memref<128x128xbf16, #tpu.memory_space<vmem>>, vector<128x128xbf16>
    %cst = arith.constant dense<0.000000e+00> : vector<8x128xf32>
    %4 = tpu.matmul %2, %3, %cst {dimension_numbers = #tpu.dot_dimension_numbers<[1], [0], [0], [1], [0, 0, 1, 1], [], []>} : vector<8x128xbf16>, vector<128x128xbf16>, vector<8x128xf32> -> vector<8x128xf32>
    %c0_4 = arith.constant 0 : index
    %c0_5 = arith.constant 0 : index
    %5 = vector.load %arg11[%c0_4, %c0_5] : memref<1x128xf32, #tpu.memory_space<vmem>>, vector<1x128xf32>
    %6 = vector.broadcast %5 : vector<1x128xf32> to vector<8x128xf32>
    %7 = arith.addf %4, %6 : vector<8x128xf32>
    %8 = math.tanh %7 : vector<8x128xf32>
    %9 = arith.truncf %8 : vector<8x128xf32> to vector<8x128xbf16>
    %c0_6 = arith.constant 0 : index
    %c0_7 = arith.constant 0 : index
    %10 = vector.load %arg12[%c0_6, %c0_7] : memref<128x128xbf16, #tpu.memory_space<vmem>>, vector<128x128xbf16>
    %cst_8 = arith.constant dense<0.000000e+00> : vector<8x128xf32>
    %11 = tpu.matmul %9, %10, %cst_8 {dimension_numbers = #tpu.dot_dimension_numbers<[1], [0], [0], [1], [0, 0, 1, 1], [], []>} : vector<8x128xbf16>, vector<128x128xbf16>, vector<8x128xf32> -> vector<8x128xf32>
    %c0_9 = arith.constant 0 : index
    %c0_10 = arith.constant 0 : index
    %12 = vector.load %arg13[%c0_9, %c0_10] : memref<1x128xf32, #tpu.memory_space<vmem>>, vector<1x128xf32>
    %13 = vector.broadcast %12 : vector<1x128xf32> to vector<8x128xf32>
    %14 = arith.addf %11, %13 : vector<8x128xf32>
    %c0_11 = arith.constant 0 : index
    %c0_12 = arith.constant 0 : index
    %15 = vector.load %arg14[%c0_11, %c0_12] : memref<8x128xf32, #tpu.memory_space<vmem>>, vector<8x128xf32>
    tpu.vector_store %arg14[%c0_11, %c0_12], %14 {strides = array<i32>} : memref<8x128xf32, #tpu.memory_space<vmem>>, vector<8x128xf32>,
    return
  }
  func.func @transform_0(%arg0: i32) -> (i32, i32, i32) {
    %c0_i32 = arith.constant 0 : i32
    %c0_i32_0 = arith.constant 0 : i32
    %c0_i32_1 = arith.constant 0 : i32
    return %arg0, %c0_i32, %c0_i32_0 : i32, i32, i32
  }
  func.func @transform_1(%arg0: i32) -> (i32, i32) {
    %c0_i32 = arith.constant 0 : i32
    %c0_i32_0 = arith.constant 0 : i32
    %c0_i32_1 = arith.constant 0 : i32
    return %c0_i32, %c0_i32_0 : i32, i32
  }
  func.func @transform_2(%arg0: i32) -> (i32, i32) {
    %c0_i32 = arith.constant 0 : i32
    %c0_i32_0 = arith.constant 0 : i32
    %c0_i32_1 = arith.constant 0 : i32
    return %c0_i32, %c0_i32_0 : i32, i32
  }
  func.func @transform_3(%arg0: i32) -> (i32, i32) {
    %c0_i32 = arith.constant 0 : i32
    %c0_i32_0 = arith.constant 0 : i32
    %c0_i32_1 = arith.constant 0 : i32
    return %c0_i32, %c0_i32_0 : i32, i32
  }
  func.func @transform_4(%arg0: i32) -> (i32, i32, i32) {
    %c0_i32 = arith.constant 0 : i32
    %c0_i32_0 = arith.constant 0 : i32
    %c0_i32_1 = arith.constant 0 : i32
    %c0_i32_2 = arith.constant 0 : i32
    return %c0_i32, %c0_i32_0, %c0_i32_1 : i32, i32, i32
  }
  func.func @transform_5(%arg0: i32) -> (i32, i32) {
    %c0_i32 = arith.constant 0 : i32
    %c0_i32_0 = arith.constant 0 : i32
    %c0_i32_1 = arith.constant 0 : i32
    return %c0_i32, %c0_i32_0 : i32, i32
  }
  func.func @transform_6(%arg0: i32) -> (i32, i32) {
    %c0_i32 = arith.constant 0 : i32
    %c0_i32_0 = arith.constant 0 : i32
    %c0_i32_1 = arith.constant 0 : i32
    return %c0_i32, %c0_i32_0 : i32, i32
  }
  func.func @transform_7(%arg0: i32) -> (i32, i32, i32) {
    %c0_i32 = arith.constant 0 : i32
    %c0_i32_0 = arith.constant 0 : i32
    %c0_i32_1 = arith.constant 0 : i32
    %c0_i32_2 = arith.constant 0 : i32
    return %c0_i32, %c0_i32_0, %c0_i32_1 : i32, i32, i32
  }
  func.func @transform_8(%arg0: i32) -> (i32, i32) {
    %c0_i32 = arith.constant 0 : i32
    %c0_i32_0 = arith.constant 0 : i32
    %c0_i32_1 = arith.constant 0 : i32
    return %c0_i32, %c0_i32_0 : i32, i32
  }
  func.func @transform_9(%arg0: i32) -> (i32, i32) {
    %c0_i32 = arith.constant 0 : i32
    %c0_i32_0 = arith.constant 0 : i32
    %c0_i32_1 = arith.constant 0 : i32
    return %c0_i32, %c0_i32_0 : i32, i32
  }
  func.func @transform_10(%arg0: i32) -> (i32, i32) {
    %c0_i32 = arith.constant 0 : i32
    %c0_i32_0 = arith.constant 0 : i32
    %c0_i32_1 = arith.constant 0 : i32
    return %c0_i32, %c0_i32_0 : i32, i32
  }
  func.func @transform_11(%arg0: i32) -> (i32, i32) {
    %c0_i32 = arith.constant 0 : i32
    %c0_i32_0 = arith.constant 0 : i32
    %c0_i32_1 = arith.constant 0 : i32
    return %c0_i32, %c0_i32_0 : i32, i32
  }
  func.func @transform_12(%arg0: i32) -> (i32, i32) {
    %c0_i32 = arith.constant 0 : i32
    %c0_i32_0 = arith.constant 0 : i32
    %c0_i32_1 = arith.constant 0 : i32
    return %c0_i32, %c0_i32_0 : i32, i32
  }
  func.func @transform_13(%arg0: i32) -> (i32, i32) {
    %c0_i32 = arith.constant 0 : i32
    %c0_i32_0 = arith.constant 0 : i32
    return %arg0, %c0_i32 : i32, i32
  }
}

</mosaic_0001>

<llo_original>
// kernel: lenet_forward.1
$region0: #{lenet_forward.1}
  #allocation0 [shape = 'u32[]', space=smem, size = 0x4, offset = 0x4, fixed_abs, tag = 'smem constant byte address 0x4 - core index']
  #allocation1 [shape = 'u32[144,128]{1,0:T(1,128)}', space=vmem, size = 0x12000, scoped, tag = 'internal scratch']
  #allocation2 [shape = 'f32[196,128]{1,0:T(8,128)}', space=vmem, size = 0x19000, scoped, tag = 'scratch operand']
  #allocation3 [shape = 'f32[25,128]{1,0:T(8,128)}', space=vmem, size = 0x4000, scoped, tag = 'scratch operand']
  #allocation4 [shape = 'f32[8,128]{1,0:T(8,128)}', space=vmem, size = 0x1000, scoped, tag = 'scratch operand']
  %s0 = inlined_call_operand.vmem [shape: bf16[8,896,128], index: 0, kind: input, shape index: {}]
  %s1 = inlined_call_operand.vmem [shape: bf16[128,128], index: 1, kind: input, shape index: {}]
  %s2 = inlined_call_operand.vmem [shape: f32[1,128], index: 2, kind: input, shape index: {}]
  %s3 = inlined_call_operand.vmem [shape: bf16[196,896], index: 3, kind: input, shape index: {}]
  %s4 = inlined_call_operand.vmem [shape: bf16[25,128,128], index: 4, kind: input, shape index: {}]
  %s5 = inlined_call_operand.vmem [shape: f32[1,128], index: 5, kind: input, shape index: {}]
  %s6 = inlined_call_operand.vmem [shape: bf16[25,136], index: 6, kind: input, shape index: {}]
  %s7 = inlined_call_operand.vmem [shape: bf16[25,128,128], index: 7, kind: input, shape index: {}]
  %s8 = inlined_call_operand.vmem [shape: f32[1,128], index: 8, kind: input, shape index: {}]
  %s9 = inlined_call_operand.vmem [shape: bf16[128,128], index: 9, kind: input, shape index: {}]
  %s10 = inlined_call_operand.vmem [shape: f32[1,128], index: 10, kind: input, shape index: {}]
  %s11 = inlined_call_operand.vmem [shape: bf16[128,128], index: 11, kind: input, shape index: {}]
  %s12 = inlined_call_operand.vmem [shape: f32[1,128], index: 12, kind: input, shape index: {}]
  %s13 = inlined_call_operand.vmem [shape: f32[8,128], index: 13, kind: output, shape index: {}]
  %s14 = sld [smem:[#allocation0]]
  $region69: #{lenet_forward.1} parent=0
    _
  %s16 = ssub.s32 1, %s14
  %s17 = scalar_select 0, %s16, %s14
  // Predicated region
  $region2: #{lenet_forward.1} parent=0 // pred_check
    _
  $region3: #{lenet_forward.1} parent=0 // pred_check_branch
    %19 = sbr.rel (0) target = $region5
  $region4: #{lenet_forward.1} parent=0 // pred_region
    _
  $region5: #{lenet_forward.1} parent=0 // pred_fallthru
    _
  // Predicated region
  $region6: #{lenet_forward.1} parent=0 // pred_check
    _
  $region7: #{lenet_forward.1} parent=0 // pred_check_branch
    %21 = sbr.rel (0) target = $region9
  $region8: #{lenet_forward.1} parent=0 // pred_region
    _
  $region9: #{lenet_forward.1} parent=0 // pred_fallthru
    _
  // Predicated region
  $region10: #{lenet_forward.1} parent=0 // pred_check
    _
  $region11: #{lenet_forward.1} parent=0 // pred_check_branch
    %23 = sbr.rel (0) target = $region13
  $region12: #{lenet_forward.1} parent=0 // pred_region
    _
  $region13: #{lenet_forward.1} parent=0 // pred_fallthru
    _
  // Predicated region
  $region14: #{lenet_forward.1} parent=0 // pred_check
    _
  $region15: #{lenet_forward.1} parent=0 // pred_check_branch
    %25 = sbr.rel (0) target = $region17
  $region16: #{lenet_forward.1} parent=0 // pred_region
    _
  $region17: #{lenet_forward.1} parent=0 // pred_fallthru
    _
  // Predicated region
  $region18: #{lenet_forward.1} parent=0 // pred_check
    _
  $region19: #{lenet_forward.1} parent=0 // pred_check_branch
    %27 = sbr.rel (0) target = $region21
  $region20: #{lenet_forward.1} parent=0 // pred_region
    _
  $region21: #{lenet_forward.1} parent=0 // pred_fallthru
    _
  // Predicated region
  $region22: #{lenet_forward.1} parent=0 // pred_check
    _
  $region23: #{lenet_forward.1} parent=0 // pred_check_branch
    %29 = sbr.rel (0) target = $region25
  $region24: #{lenet_forward.1} parent=0 // pred_region
    _
  $region25: #{lenet_forward.1} parent=0 // pred_fallthru
    _
  // Predicated region
  $region26: #{lenet_forward.1} parent=0 // pred_check
    _
  $region27: #{lenet_forward.1} parent=0 // pred_check_branch
    %31 = sbr.rel (0) target = $region29
  $region28: #{lenet_forward.1} parent=0 // pred_region
    _
  $region29: #{lenet_forward.1} parent=0 // pred_fallthru
    _
  // Predicated region
  $region30: #{lenet_forward.1} parent=0 // pred_check
    _
  $region31: #{lenet_forward.1} parent=0 // pred_check_branch
    %33 = sbr.rel (0) target = $region33
  $region32: #{lenet_forward.1} parent=0 // pred_region
    _
  $region33: #{lenet_forward.1} parent=0 // pred_fallthru
    _
  // Predicated region
  $region34: #{lenet_forward.1} parent=0 // pred_check
    _
  $region35: #{lenet_forward.1} parent=0 // pred_check_branch
    %35 = sbr.rel (0) target = $region37
  $region36: #{lenet_forward.1} parent=0 // pred_region
    _
  $region37: #{lenet_forward.1} parent=0 // pred_fallthru
    _
  // Predicated region
  $region38: #{lenet_forward.1} parent=0 // pred_check
    _
  $region39: #{lenet_forward.1} parent=0 // pred_check_branch
    %37 = sbr.rel (0) target = $region41
  $region40: #{lenet_forward.1} parent=0 // pred_region
    _
  $region41: #{lenet_forward.1} parent=0 // pred_fallthru
    _
  // Predicated region
  $region42: #{lenet_forward.1} parent=0 // pred_check
    _
  $region43: #{lenet_forward.1} parent=0 // pred_check_branch
    %39 = sbr.rel (0) target = $region45
  $region44: #{lenet_forward.1} parent=0 // pred_region
    _
  $region45: #{lenet_forward.1} parent=0 // pred_fallthru
    _
  // Predicated region
  $region46: #{lenet_forward.1} parent=0 // pred_check
    _
  $region47: #{lenet_forward.1} parent=0 // pred_check_branch
    %41 = sbr.rel (0) target = $region49
  $region48: #{lenet_forward.1} parent=0 // pred_region
    _
  $region49: #{lenet_forward.1} parent=0 // pred_fallthru
    _
  // Predicated region
  $region50: #{lenet_forward.1} parent=0 // pred_check
    _
  $region51: #{lenet_forward.1} parent=0 // pred_check_branch
    %43 = sbr.rel (0) target = $region53
  $region52: #{lenet_forward.1} parent=0 // pred_region
    _
  $region53: #{lenet_forward.1} parent=0 // pred_fallthru
    _
  loop: start=0, step=1, limit=8
  $region54: #{lenet_forward.1} parent=0 // loop_pre_header
    _
  $region55: #{lenet_forward.1} parent=0 // loop_header
    %s46 = sphi 0, %s50
    %p47 = scmp.ge.s32.totalorder %s46, 8
  $region56: #{lenet_forward.1} parent=0 // loop_header_branch
    %49 = sbr.rel (%p47) target = $region60
  $region57: #{lenet_forward.1} parent=0 // loop_body
    %s51 = smul.u32 %s46, 112
    %s52 = smul.addr %s51, 4
    %s53 = scalar_lea.vmem %s0, %s52
    %v54 = vld [vmem:[%s53] sm:$0xf]
    %v55 = vld [vmem:[%s53 + $0x4] sm:$0xf]
    %v56 = vld [vmem:[%s53 + $0x8] sm:$0xf]
    %v57 = vld [vmem:[%s53 + $0xc] sm:$0xf]
    %v58 = vld [vmem:[%s53 + $0x10] sm:$0xf]
    %v59 = vld [vmem:[%s53 + $0x14] sm:$0xf]
    %v60 = vld [vmem:[%s53 + $0x18] sm:$0xf]
    %v61 = vld [vmem:[%s53 + $0x1c] sm:$0xf]
    %v62 = vld [vmem:[%s53 + $0x20] sm:$0xf]
    %v63 = vld [vmem:[%s53 + $0x24] sm:$0xf]
    %v64 = vld [vmem:[%s53 + $0x28] sm:$0xf]
    %v65 = vld [vmem:[%s53 + $0x2c] sm:$0xf]
    %v66 = vld [vmem:[%s53 + $0x30] sm:$0xf]
    %v67 = vld [vmem:[%s53 + $0x34] sm:$0xf]
    %v68 = vld [vmem:[%s53 + $0x38] sm:$0xf]
    %v69 = vld [vmem:[%s53 + $0x3c] sm:$0xf]
    %v70 = vld [vmem:[%s53 + $0x40] sm:$0xf]
    %v71 = vld [vmem:[%s53 + $0x44] sm:$0xf]
    %v72 = vld [vmem:[%s53 + $0x48] sm:$0xf]
    %v73 = vld [vmem:[%s53 + $0x4c] sm:$0xf]
    %v74 = vld [vmem:[%s53 + $0x50] sm:$0xf]
    %v75 = vld [vmem:[%s53 + $0x54] sm:$0xf]
    %v76 = vld [vmem:[%s53 + $0x58] sm:$0xf]
    %v77 = vld [vmem:[%s53 + $0x5c] sm:$0xf]
    %v78 = vld [vmem:[%s53 + $0x60] sm:$0xf]
    %v79 = vld [vmem:[%s53 + $0x64] sm:$0xf]
    %v80 = vld [vmem:[%s53 + $0x68] sm:$0xf]
    %v81 = vld [vmem:[%s53 + $0x6c] sm:$0xf]
    %v82 = vld [vmem:[%s53 + $0x70] sm:$0xf]
    %v83 = vld [vmem:[%s53 + $0x74] sm:$0xf]
    %v84 = vld [vmem:[%s53 + $0x78] sm:$0xf]
    %v85 = vld [vmem:[%s53 + $0x7c] sm:$0xf]
    %v86 = vld [vmem:[%s53 + $0x80] sm:$0xf]
    %v87 = vld [vmem:[%s53 + $0x84] sm:$0xf]
    %v88 = vld [vmem:[%s53 + $0x88] sm:$0xf]
    %v89 = vld [vmem:[%s53 + $0x8c] sm:$0xf]
    %v90 = vld [vmem:[%s53 + $0x90] sm:$0xf]
    %v91 = vld [vmem:[%s53 + $0x94] sm:$0xf]
    %v92 = vld [vmem:[%s53 + $0x98] sm:$0xf]
    %v93 = vld [vmem:[%s53 + $0x9c] sm:$0xf]
    %v94 = vld [vmem:[%s53 + $0xa0] sm:$0xf]
    %v95 = vld [vmem:[%s53 + $0xa4] sm:$0xf]
    %v96 = vld [vmem:[%s53 + $0xa8] sm:$0xf]
    %v97 = vld [vmem:[%s53 + $0xac] sm:$0xf]
    %v98 = vld [vmem:[%s53 + $0xb0] sm:$0xf]
    %v99 = vld [vmem:[%s53 + $0xb4] sm:$0xf]
    %v100 = vld [vmem:[%s53 + $0xb8] sm:$0xf]
    %v101 = vld [vmem:[%s53 + $0xbc] sm:$0xf]
    %v102 = vld [vmem:[%s53 + $0xc0] sm:$0xf]
    %v103 = vld [vmem:[%s53 + $0xc4] sm:$0xf]
    %v104 = vld [vmem:[%s53 + $0xc8] sm:$0xf]
    %v105 = vld [vmem:[%s53 + $0xcc] sm:$0xf]
    %v106 = vld [vmem:[%s53 + $0xd0] sm:$0xf]
    %v107 = vld [vmem:[%s53 + $0xd4] sm:$0xf]
    %v108 = vld [vmem:[%s53 + $0xd8] sm:$0xf]
    %v109 = vld [vmem:[%s53 + $0xdc] sm:$0xf]
    %v110 = vld [vmem:[%s53 + $0xe0] sm:$0xf]
    %v111 = vld [vmem:[%s53 + $0xe4] sm:$0xf]
    %v112 = vld [vmem:[%s53 + $0xe8] sm:$0xf]
    %v113 = vld [vmem:[%s53 + $0xec] sm:$0xf]
    %v114 = vld [vmem:[%s53 + $0xf0] sm:$0xf]
    %v115 = vld [vmem:[%s53 + $0xf4] sm:$0xf]
    %v116 = vld [vmem:[%s53 + $0xf8] sm:$0xf]
    %v117 = vld [vmem:[%s53 + $0xfc] sm:$0xf]
    %v118 = vld [vmem:[%s53 + $0x100] sm:$0xf]
    %v119 = vld [vmem:[%s53 + $0x104] sm:$0xf]
    %v120 = vld [vmem:[%s53 + $0x108] sm:$0xf]
    %v121 = vld [vmem:[%s53 + $0x10c] sm:$0xf]
    %v122 = vld [vmem:[%s53 + $0x110] sm:$0xf]
    %v123 = vld [vmem:[%s53 + $0x114] sm:$0xf]
    %v124 = vld [vmem:[%s53 + $0x118] sm:$0xf]
    %v125 = vld [vmem:[%s53 + $0x11c] sm:$0xf]
    %v126 = vld [vmem:[%s53 + $0x120] sm:$0xf]
    %v127 = vld [vmem:[%s53 + $0x124] sm:$0xf]
    %v128 = vld [vmem:[%s53 + $0x128] sm:$0xf]
    %v129 = vld [vmem:[%s53 + $0x12c] sm:$0xf]
    %v130 = vld [vmem:[%s53 + $0x130] sm:$0xf]
    %v131 = vld [vmem:[%s53 + $0x134] sm:$0xf]
    %v132 = vld [vmem:[%s53 + $0x138] sm:$0xf]
    %v133 = vld [vmem:[%s53 + $0x13c] sm:$0xf]
    %v134 = vld [vmem:[%s53 + $0x140] sm:$0xf]
    %v135 = vld [vmem:[%s53 + $0x144] sm:$0xf]
    %v136 = vld [vmem:[%s53 + $0x148] sm:$0xf]
    %v137 = vld [vmem:[%s53 + $0x14c] sm:$0xf]
    %v138 = vld [vmem:[%s53 + $0x150] sm:$0xf]
    %v139 = vld [vmem:[%s53 + $0x154] sm:$0xf]
    %v140 = vld [vmem:[%s53 + $0x158] sm:$0xf]
    %v141 = vld [vmem:[%s53 + $0x15c] sm:$0xf]
    %v142 = vld [vmem:[%s53 + $0x160] sm:$0xf]
    %v143 = vld [vmem:[%s53 + $0x164] sm:$0xf]
    %v144 = vld [vmem:[%s53 + $0x168] sm:$0xf]
    %v145 = vld [vmem:[%s53 + $0x16c] sm:$0xf]
    %v146 = vld [vmem:[%s53 + $0x170] sm:$0xf]
    %v147 = vld [vmem:[%s53 + $0x174] sm:$0xf]
    %v148 = vld [vmem:[%s53 + $0x178] sm:$0xf]
    %v149 = vld [vmem:[%s53 + $0x17c] sm:$0xf]
    %v150 = vld [vmem:[%s53 + $0x180] sm:$0xf]
    %v151 = vld [vmem:[%s53 + $0x184] sm:$0xf]
    %v152 = vld [vmem:[%s53 + $0x188] sm:$0xf]
    %v153 = vld [vmem:[%s53 + $0x18c] sm:$0xf]
    %v154 = vld [vmem:[%s53 + $0x190] sm:$0xf]
    %v155 = vld [vmem:[%s53 + $0x194] sm:$0xf]
    %v156 = vld [vmem:[%s53 + $0x198] sm:$0xf]
    %v157 = vld [vmem:[%s53 + $0x19c] sm:$0xf]
    %v158 = vld [vmem:[%s53 + $0x1a0] sm:$0xf]
    %v159 = vld [vmem:[%s53 + $0x1a4] sm:$0xf]
    %v160 = vld [vmem:[%s53 + $0x1a8] sm:$0xf]
    %v161 = vld [vmem:[%s53 + $0x1ac] sm:$0xf]
    %v162 = vld [vmem:[%s53 + $0x1b0] sm:$0xf]
    %v163 = vld [vmem:[%s53 + $0x1b4] sm:$0xf]
    %v164 = vld [vmem:[%s53 + $0x1b8] sm:$0xf]
    %v165 = vld [vmem:[%s53 + $0x1bc] sm:$0xf]
    %v166 = vld [vmem:[%s1] sm:$0xf]
    %v167 = vld [vmem:[%s1 + $0x4] sm:$0xf]
    %v168 = vld [vmem:[%s1 + $0x8] sm:$0xf]
    %v169 = vld [vmem:[%s1 + $0xc] sm:$0xf]
    %v170 = vld [vmem:[%s1 + $0x10] sm:$0xf]
    %v171 = vld [vmem:[%s1 + $0x14] sm:$0xf]
    %v172 = vld [vmem:[%s1 + $0x18] sm:$0xf]
    %v173 = vld [vmem:[%s1 + $0x1c] sm:$0xf]
    %v174 = vld [vmem:[%s1 + $0x20] sm:$0xf]
    %v175 = vld [vmem:[%s1 + $0x24] sm:$0xf]
    %v176 = vld [vmem:[%s1 + $0x28] sm:$0xf]
    %v177 = vld [vmem:[%s1 + $0x2c] sm:$0xf]
    %v178 = vld [vmem:[%s1 + $0x30] sm:$0xf]
    %v179 = vld [vmem:[%s1 + $0x34] sm:$0xf]
    %v180 = vld [vmem:[%s1 + $0x38] sm:$0xf]
    %v181 = vld [vmem:[%s1 + $0x3c] sm:$0xf]
    %v182 = vld [vmem:[%s2] sm:$0x1]
    %v184 = vlaneseq
    %v185 = vshrl.u32 %v184, 7
    %v186 = vsub.s32 0, %v185
    %v187 = vrot.slane %v182, %v186
    %v301 = vunpack.c.l.b16 %v54
    %v302 = vunpack.c.l.b16 %v55
    %v303 = vunpack.c.l.b16 %v56
    %v304 = vunpack.c.l.b16 %v57
    %v305 = vunpack.c.l.b16 %v58
    %v306 = vunpack.c.l.b16 %v59
    %v307 = vunpack.c.l.b16 %v60
    %v308 = vunpack.c.l.b16 %v61
    %v309 = vunpack.c.l.b16 %v62
    %v310 = vunpack.c.l.b16 %v63
    %v311 = vunpack.c.l.b16 %v64
    %v312 = vunpack.c.l.b16 %v65
    %v313 = vunpack.c.l.b16 %v66
    %v314 = vunpack.c.l.b16 %v67
    %v315 = vunpack.c.l.b16 %v68
    %v316 = vunpack.c.l.b16 %v69
    %v317 = vunpack.c.l.b16 %v70
    %v318 = vunpack.c.l.b16 %v71
    %v319 = vunpack.c.l.b16 %v72
    %v320 = vunpack.c.l.b16 %v73
    %v321 = vunpack.c.l.b16 %v74
    %v322 = vunpack.c.l.b16 %v75
    %v323 = vunpack.c.l.b16 %v76
    %v324 = vunpack.c.l.b16 %v77
    %v325 = vunpack.c.l.b16 %v78
    %v326 = vunpack.c.l.b16 %v79
    %v327 = vunpack.c.l.b16 %v80
    %v328 = vunpack.c.l.b16 %v81
    %v329 = vunpack.c.l.b16 %v82
    %v330 = vunpack.c.l.b16 %v83
    %v331 = vunpack.c.l.b16 %v84
    %v332 = vunpack.c.l.b16 %v85
    %v333 = vunpack.c.l.b16 %v86
    %v334 = vunpack.c.l.b16 %v87
    %v335 = vunpack.c.l.b16 %v88
    %v336 = vunpack.c.l.b16 %v89
    %v337 = vunpack.c.l.b16 %v90
    %v338 = vunpack.c.l.b16 %v91
    %v339 = vunpack.c.l.b16 %v92
    %v340 = vunpack.c.l.b16 %v93
    %v341 = vunpack.c.l.b16 %v94
    %v342 = vunpack.c.l.b16 %v95
    %v343 = vunpack.c.l.b16 %v96
    %v344 = vunpack.c.l.b16 %v97
    %v345 = vunpack.c.l.b16 %v98
    %v346 = vunpack.c.l.b16 %v99
    %v347 = vunpack.c.l.b16 %v100
    %v348 = vunpack.c.l.b16 %v101
    %v349 = vunpack.c.l.b16 %v102
    %v350 = vunpack.c.l.b16 %v103
    %v351 = vunpack.c.l.b16 %v104
    %v352 = vunpack.c.l.b16 %v105
    %v353 = vunpack.c.l.b16 %v106
    %v354 = vunpack.c.l.b16 %v107
    %v355 = vunpack.c.l.b16 %v108
    %v356 = vunpack.c.l.b16 %v109
    %v357 = vunpack.c.l.b16 %v110
    %v358 = vunpack.c.l.b16 %v111
    %v359 = vunpack.c.l.b16 %v112
    %v360 = vunpack.c.l.b16 %v113
    %v361 = vunpack.c.l.b16 %v114
    %v362 = vunpack.c.l.b16 %v115
    %v363 = vunpack.c.l.b16 %v116
    %v364 = vunpack.c.l.b16 %v117
    %v365 = vunpack.c.l.b16 %v118
    %v366 = vunpack.c.l.b16 %v119
    %v367 = vunpack.c.l.b16 %v120
    %v368 = vunpack.c.l.b16 %v121
    %v369 = vunpack.c.l.b16 %v122
    %v370 = vunpack.c.l.b16 %v123
    %v371 = vunpack.c.l.b16 %v124
    %v372 = vunpack.c.l.b16 %v125
    %v373 = vunpack.c.l.b16 %v126
    %v374 = vunpack.c.l.b16 %v127
    %v375 = vunpack.c.l.b16 %v128
    %v376 = vunpack.c.l.b16 %v129
    %v377 = vunpack.c.l.b16 %v130
    %v378 = vunpack.c.l.b16 %v131
    %v379 = vunpack.c.l.b16 %v132
    %v380 = vunpack.c.l.b16 %v133
    %v381 = vunpack.c.l.b16 %v134
    %v382 = vunpack.c.l.b16 %v135
    %v383 = vunpack.c.l.b16 %v136
    %v384 = vunpack.c.l.b16 %v137
    %v385 = vunpack.c.l.b16 %v138
    %v386 = vunpack.c.l.b16 %v139
    %v387 = vunpack.c.l.b16 %v140
    %v388 = vunpack.c.l.b16 %v141
    %v389 = vunpack.c.l.b16 %v142
    %v390 = vunpack.c.l.b16 %v143
    %v391 = vunpack.c.l.b16 %v144
    %v392 = vunpack.c.l.b16 %v145
    %v393 = vunpack.c.l.b16 %v146
    %v394 = vunpack.c.l.b16 %v147
    %v395 = vunpack.c.l.b16 %v148
    %v396 = vunpack.c.l.b16 %v149
    %v397 = vunpack.c.l.b16 %v150
    %v398 = vunpack.c.l.b16 %v151
    %v399 = vunpack.c.l.b16 %v152
    %v400 = vunpack.c.l.b16 %v153
    %v401 = vunpack.c.l.b16 %v154
    %v402 = vunpack.c.l.b16 %v155
    %v403 = vunpack.c.l.b16 %v156
    %v404 = vunpack.c.l.b16 %v157
    %v405 = vunpack.c.l.b16 %v158
    %v406 = vunpack.c.l.b16 %v159
    %v407 = vunpack.c.l.b16 %v160
    %v408 = vunpack.c.l.b16 %v161
    %v409 = vunpack.c.l.b16 %v162
    %v410 = vunpack.c.l.b16 %v163
    %v411 = vunpack.c.l.b16 %v164
    %v412 = vunpack.c.l.b16 %v165
    %v413 = vpack.c.b16 %v302, %v301
    %v414 = vpack.c.b16 %v304, %v303
    %v415 = vpack.c.b16 %v306, %v305
    %v416 = vpack.c.b16 %v308, %v307
    %v417 = vpack.c.b16 %v310, %v309
    %v418 = vpack.c.b16 %v312, %v311
    %v419 = vpack.c.b16 %v314, %v313
    %v420 = vpack.c.b16 %v316, %v315
    %v421 = vpack.c.b16 %v318, %v317
    %v422 = vpack.c.b16 %v320, %v319
    %v423 = vpack.c.b16 %v322, %v321
    %v424 = vpack.c.b16 %v324, %v323
    %v425 = vpack.c.b16 %v326, %v325
    %v426 = vpack.c.b16 %v328, %v327
    %v427 = vpack.c.b16 %v330, %v329
    %v428 = vpack.c.b16 %v332, %v331
    %v429 = vpack.c.b16 %v334, %v333
    %v430 = vpack.c.b16 %v336, %v335
    %v431 = vpack.c.b16 %v338, %v337
    %v432 = vpack.c.b16 %v340, %v339
    %v433 = vpack.c.b16 %v342, %v341
    %v434 = vpack.c.b16 %v344, %v343
    %v435 = vpack.c.b16 %v346, %v345
    %v436 = vpack.c.b16 %v348, %v347
    %v437 = vpack.c.b16 %v350, %v349
    %v438 = vpack.c.b16 %v352, %v351
    %v439 = vpack.c.b16 %v354, %v353
    %v440 = vpack.c.b16 %v356, %v355
    %v441 = vpack.c.b16 %v358, %v357
    %v442 = vpack.c.b16 %v360, %v359
    %v443 = vpack.c.b16 %v362, %v361
    %v444 = vpack.c.b16 %v364, %v363
    %v445 = vpack.c.b16 %v366, %v365
    %v446 = vpack.c.b16 %v368, %v367
    %v447 = vpack.c.b16 %v370, %v369
    %v448 = vpack.c.b16 %v372, %v371
    %v449 = vpack.c.b16 %v374, %v373
    %v450 = vpack.c.b16 %v376, %v375
    %v451 = vpack.c.b16 %v378, %v377
    %v452 = vpack.c.b16 %v380, %v379
    %v453 = vpack.c.b16 %v382, %v381
    %v454 = vpack.c.b16 %v384, %v383
    %v455 = vpack.c.b16 %v386, %v385
    %v456 = vpack.c.b16 %v388, %v387
    %v457 = vpack.c.b16 %v390, %v389
    %v458 = vpack.c.b16 %v392, %v391
    %v459 = vpack.c.b16 %v394, %v393
    %v460 = vpack.c.b16 %v396, %v395
    %v461 = vpack.c.b16 %v398, %v397
    %v462 = vpack.c.b16 %v400, %v399
    %v463 = vpack.c.b16 %v402, %v401
    %v464 = vpack.c.b16 %v404, %v403
    %v465 = vpack.c.b16 %v406, %v405
    %v466 = vpack.c.b16 %v408, %v407
    %v467 = vpack.c.b16 %v410, %v409
    %v468 = vpack.c.b16 %v412, %v411
    %v541 = vunpack.c.l.b16 %v166
    %v542 = vunpack.c.l.b16 %v167
    %v543 = vunpack.c.l.b16 %v168
    %v544 = vunpack.c.l.b16 %v169
    %v545 = vunpack.c.l.b16 %v170
    %v546 = vunpack.c.l.b16 %v171
    %v547 = vunpack.c.l.b16 %v172
    %v548 = vunpack.c.l.b16 %v173
    %v549 = vunpack.c.l.b16 %v174
    %v550 = vunpack.c.l.b16 %v175
    %v551 = vunpack.c.l.b16 %v176
    %v552 = vunpack.c.l.b16 %v177
    %v553 = vunpack.c.l.b16 %v178
    %v554 = vunpack.c.l.b16 %v179
    %v555 = vunpack.c.l.b16 %v180
    %v556 = vunpack.c.l.b16 %v181
    %v557 = vpack.c.b16 %v542, %v541
    %v558 = vpack.c.b16 %v544, %v543
    %v559 = vpack.c.b16 %v546, %v545
    %v560 = vpack.c.b16 %v548, %v547
    %v561 = vpack.c.b16 %v550, %v549
    %v562 = vpack.c.b16 %v552, %v551
    %v563 = vpack.c.b16 %v554, %v553
    %v564 = vpack.c.b16 %v556, %v555
    %573 = vmatprep.subr.bf16.mxu0 0
    %574 = vmatpush1.bf16.msra.mxu0 %v557
    %575 = vmatprep.subr.bf16.mxu0 0
    %576 = vmatpush1.bf16.msra.mxu0 %v558
    %577 = vmatprep.subr.bf16.mxu0 0
    %578 = vmatpush1.bf16.msra.mxu0 %v559
    %579 = vmatprep.subr.bf16.mxu0 0
    %580 = vmatpush1.bf16.msra.mxu0 %v560
    %581 = vmatprep.subr.bf16.mxu0 0
    %582 = vmatpush1.bf16.msra.mxu0 %v561
    %583 = vmatprep.subr.bf16.mxu0 0
    %584 = vmatpush1.bf16.msra.mxu0 %v562
    %585 = vmatprep.subr.bf16.mxu0 0
    %586 = vmatpush1.bf16.msra.mxu0 %v563
    %587 = vmatprep.subr.bf16.mxu0 0
    %588 = vmatpush1.bf16.msra.mxu0 %v564
    %589 = vmatprep.subr.bf16.mxu0 0
    %590 = vmatpush1.bf16.msra.mxu0 0
    %591 = vmatprep.subr.bf16.mxu0 0
    %592 = vmatpush1.bf16.msra.mxu0 0
    %593 = vmatprep.subr.bf16.mxu0 0
    %594 = vmatpush1.bf16.msra.mxu0 0
    %595 = vmatprep.subr.bf16.mxu0 0
    %596 = vmatpush1.bf16.msra.mxu0 0
    %597 = vmatprep.subr.bf16.mxu0 0
    %598 = vmatpush1.bf16.msra.mxu0 0
    %599 = vmatprep.subr.bf16.mxu0 0
    %600 = vmatpush1.bf16.msra.mxu0 0
    %601 = vmatprep.subr.bf16.mxu0 0
    %602 = vmatpush1.bf16.msra.mxu0 0
    %603 = vmatprep.subr.bf16.mxu0 0
    %604 = vmatpush1.bf16.msra.mxu0 0
    %605 = vmatprep.mubr.bf16.mxu0 0
    %606 = vmatmul.mubr.bf16.gmra.mrb[0].mxu0 %v413
    %v607 = vpop.f32.mrb[0].mxu0
    %v608 = vadd.f32 %v187, %v607
    %v609 = vpop.f32.mrb[0].mxu0
    %v610 = vpop.f32.mrb[0].mxu0
    %v611 = vadd.f32 %v187, %v610
    %v612 = vpop.f32.mrb[0].mxu0
    %613 = vmatprep.mubr.bf16.mxu0 0
    %614 = vmatmul.mubr.bf16.gmra.mrb[0].mxu0 %v414
    %v615 = vpop.f32.mrb[0].mxu0
    %v616 = vadd.f32 %v187, %v615
    %v617 = vpop.f32.mrb[0].mxu0
    %v618 = vpop.f32.mrb[0].mxu0
    %v619 = vadd.f32 %v187, %v618
    %v620 = vpop.f32.mrb[0].mxu0
    %621 = vmatprep.mubr.bf16.mxu0 0
    %622 = vmatmul.mubr.bf16.gmra.mrb[0].mxu0 %v415
    %v623 = vpop.f32.mrb[0].mxu0
    %v624 = vadd.f32 %v187, %v623
    %v625 = vpop.f32.mrb[0].mxu0
    %v626 = vpop.f32.mrb[0].mxu0
    %v627 = vadd.f32 %v187, %v626
    %v628 = vpop.f32.mrb[0].mxu0
    %629 = vmatprep.mubr.bf16.mxu0 0
    %630 = vmatmul.mubr.bf16.gmra.mrb[0].mxu0 %v416
    %v631 = vpop.f32.mrb[0].mxu0
    %v632 = vadd.f32 %v187, %v631
    %v633 = vpop.f32.mrb[0].mxu0
    %v634 = vpop.f32.mrb[0].mxu0
    %v635 = vadd.f32 %v187, %v634
    %v636 = vpop.f32.mrb[0].mxu0
    %637 = vmatprep.mubr.bf16.mxu0 0
    %638 = vmatmul.mubr.bf16.gmra.mrb[0].mxu0 %v417
    %v639 = vpop.f32.mrb[0].mxu0
    %v640 = vadd.f32 %v187, %v639
    %v641 = vpop.f32.mrb[0].mxu0
    %v642 = vpop.f32.mrb[0].mxu0
    %v643 = vadd.f32 %v187, %v642
    %v644 = vpop.f32.mrb[0].mxu0
    %645 = vmatprep.mubr.bf16.mxu0 0
    %646 = vmatmul.mubr.bf16.gmra.mrb[0].mxu0 %v418
    %v647 = vpop.f32.mrb[0].mxu0
    %v648 = vadd.f32 %v187, %v647
    %v649 = vpop.f32.mrb[0].mxu0
    %v650 = vpop.f32.mrb[0].mxu0
    %v651 = vadd.f32 %v187, %v650
    %v652 = vpop.f32.mrb[0].mxu0
    %653 = vmatprep.mubr.bf16.mxu0 0
    %654 = vmatmul.mubr.bf16.gmra.mrb[0].mxu0 %v419
    %v655 = vpop.f32.mrb[0].mxu0
    %v656 = vadd.f32 %v187, %v655
    %v657 = vpop.f32.mrb[0].mxu0
    %v658 = vpop.f32.mrb[0].mxu0
    %v659 = vadd.f32 %v187, %v658
    %v660 = vpop.f32.mrb[0].mxu0
    %661 = vmatprep.mubr.bf16.mxu0 0
    %662 = vmatmul.mubr.bf16.gmra.mrb[0].mxu0 %v420
    %v663 = vpop.f32.mrb[0].mxu0
    %v664 = vadd.f32 %v187, %v663
    %v665 = vpop.f32.mrb[0].mxu0
    %v666 = vpop.f32.mrb[0].mxu0
    %v667 = vadd.f32 %v187, %v666
    %v668 = vpop.f32.mrb[0].mxu0
    %669 = vmatprep.mubr.bf16.mxu0 0
    %670 = vmatmul.mubr.bf16.gmra.mrb[0].mxu0 %v421
    %v671 = vpop.f32.mrb[0].mxu0
    %v672 = vadd.f32 %v187, %v671
    %v673 = vpop.f32.mrb[0].mxu0
    %v674 = vpop.f32.mrb[0].mxu0
    %v675 = vadd.f32 %v187, %v674
    %v676 = vpop.f32.mrb[0].mxu0
    %677 = vmatprep.mubr.bf16.mxu0 0
    %678 = vmatmul.mubr.bf16.gmra.mrb[0].mxu0 %v422
    %v679 = vpop.f32.mrb[0].mxu0
    %v680 = vadd.f32 %v187, %v679
    %v681 = vpop.f32.mrb[0].mxu0
    %v682 = vpop.f32.mrb[0].mxu0
    %v683 = vadd.f32 %v187, %v682
    %v684 = vpop.f32.mrb[0].mxu0
    %685 = vmatprep.mubr.bf16.mxu0 0
    %686 = vmatmul.mubr.bf16.gmra.mrb[0].mxu0 %v423
    %v687 = vpop.f32.mrb[0].mxu0
    %v688 = vadd.f32 %v187, %v687
    %v689 = vpop.f32.mrb[0].mxu0
    %v690 = vpop.f32.mrb[0].mxu0
    %v691 = vadd.f32 %v187, %v690
    %v692 = vpop.f32.mrb[0].mxu0
    %693 = vmatprep.mubr.bf16.mxu0 0
    %694 = vmatmul.mubr.bf16.gmra.mrb[0].mxu0 %v424
    %v695 = vpop.f32.mrb[0].mxu0
    %v696 = vadd.f32 %v187, %v695
    %v697 = vpop.f32.mrb[0].mxu0
    %v698 = vpop.f32.mrb[0].mxu0
    %v699 = vadd.f32 %v187, %v698
    %v700 = vpop.f32.mrb[0].mxu0
    %701 = vmatprep.mubr.bf16.mxu0 0
    %702 = vmatmul.mubr.bf16.gmra.mrb[0].mxu0 %v425
    %v703 = vpop.f32.mrb[0].mxu0
    %v704 = vadd.f32 %v187, %v703
    %v705 = vpop.f32.mrb[0].mxu0
    %v706 = vpop.f32.mrb[0].mxu0
    %v707 = vadd.f32 %v187, %v706
    %v708 = vpop.f32.mrb[0].mxu0
    %709 = vmatprep.mubr.bf16.mxu0 0
    %710 = vmatmul.mubr.bf16.gmra.mrb[0].mxu0 %v426
    %v711 = vpop.f32.mrb[0].mxu0
    %v712 = vadd.f32 %v187, %v711
    %v713 = vpop.f32.mrb[0].mxu0
    %v714 = vpop.f32.mrb[0].mxu0
    %v715 = vadd.f32 %v187, %v714
    %v716 = vpop.f32.mrb[0].mxu0
    %717 = vmatprep.mubr.bf16.mxu0 0
    %718 = vmatmul.mubr.bf16.gmra.mrb[0].mxu0 %v427
    %v719 = vpop.f32.mrb[0].mxu0
    %v720 = vadd.f32 %v187, %v719
    %v721 = vpop.f32.mrb[0].mxu0
    %v722 = vpop.f32.mrb[0].mxu0
    %v723 = vadd.f32 %v187, %v722
    %v724 = vpop.f32.mrb[0].mxu0
    %725 = vmatprep.mubr.bf16.mxu0 0
    %726 = vmatmul.mubr.bf16.gmra.mrb[0].mxu0 %v428
    %v727 = vpop.f32.mrb[0].mxu0
    %v728 = vadd.f32 %v187, %v727
    %v729 = vpop.f32.mrb[0].mxu0
    %v730 = vpop.f32.mrb[0].mxu0
    %v731 = vadd.f32 %v187, %v730
    %v732 = vpop.f32.mrb[0].mxu0
    %733 = vmatprep.mubr.bf16.mxu0 0
    %734 = vmatmul.mubr.bf16.gmra.mrb[0].mxu0 %v429
    %v735 = vpop.f32.mrb[0].mxu0
    %v736 = vadd.f32 %v187, %v735
    %v737 = vpop.f32.mrb[0].mxu0
    %v738 = vpop.f32.mrb[0].mxu0
    %v739 = vadd.f32 %v187, %v738
    %v740 = vpop.f32.mrb[0].mxu0
    %741 = vmatprep.mubr.bf16.mxu0 0
    %742 = vmatmul.mubr.bf16.gmra.mrb[0].mxu0 %v430
    %v743 = vpop.f32.mrb[0].mxu0
    %v744 = vadd.f32 %v187, %v743
    %v745 = vpop.f32.mrb[0].mxu0
    %v746 = vpop.f32.mrb[0].mxu0
    %v747 = vadd.f32 %v187, %v746
    %v748 = vpop.f32.mrb[0].mxu0
    %749 = vmatprep.mubr.bf16.mxu0 0
    %750 = vmatmul.mubr.bf16.gmra.mrb[0].mxu0 %v431
    %v751 = vpop.f32.mrb[0].mxu0
    %v752 = vadd.f32 %v187, %v751
    %v753 = vpop.f32.mrb[0].mxu0
    %v754 = vpop.f32.mrb[0].mxu0
    %v755 = vadd.f32 %v187, %v754
    %v756 = vpop.f32.mrb[0].mxu0
    %757 = vmatprep.mubr.bf16.mxu0 0
    %758 = vmatmul.mubr.bf16.gmra.mrb[0].mxu0 %v432
    %v759 = vpop.f32.mrb[0].mxu0
    %v760 = vadd.f32 %v187, %v759
    %v761 = vpop.f32.mrb[0].mxu0
    %v762 = vpop.f32.mrb[0].mxu0
    %v763 = vadd.f32 %v187, %v762
    %v764 = vpop.f32.mrb[0].mxu0
    %765 = vmatprep.mubr.bf16.mxu0 0
    %766 = vmatmul.mubr.bf16.gmra.mrb[0].mxu0 %v433
    %v767 = vpop.f32.mrb[0].mxu0
    %v768 = vadd.f32 %v187, %v767
    %v769 = vpop.f32.mrb[0].mxu0
    %v770 = vpop.f32.mrb[0].mxu0
    %v771 = vadd.f32 %v187, %v770
    %v772 = vpop.f32.mrb[0].mxu0
    %773 = vmatprep.mubr.bf16.mxu0 0
    %774 = vmatmul.mubr.bf16.gmra.mrb[0].mxu0 %v434
    %v775 = vpop.f32.mrb[0].mxu0
    %v776 = vadd.f32 %v187, %v775
    %v777 = vpop.f32.mrb[0].mxu0
    %v778 = vpop.f32.mrb[0].mxu0
    %v779 = vadd.f32 %v187, %v778
    %v780 = vpop.f32.mrb[0].mxu0
    %781 = vmatprep.mubr.bf16.mxu0 0
    %782 = vmatmul.mubr.bf16.gmra.mrb[0].mxu0 %v435
    %v783 = vpop.f32.mrb[0].mxu0
    %v784 = vadd.f32 %v187, %v783
    %v785 = vpop.f32.mrb[0].mxu0
    %v786 = vpop.f32.mrb[0].mxu0
    %v787 = vadd.f32 %v187, %v786
    %v788 = vpop.f32.mrb[0].mxu0
    %789 = vmatprep.mubr.bf16.mxu0 0
    %790 = vmatmul.mubr.bf16.gmra.mrb[0].mxu0 %v436
    %v791 = vpop.f32.mrb[0].mxu0
    %v792 = vadd.f32 %v187, %v791
    %v793 = vpop.f32.mrb[0].mxu0
    %v794 = vpop.f32.mrb[0].mxu0
    %v795 = vadd.f32 %v187, %v794
    %v796 = vpop.f32.mrb[0].mxu0
    %797 = vmatprep.mubr.bf16.mxu0 0
    %798 = vmatmul.mubr.bf16.gmra.mrb[0].mxu0 %v437
    %v799 = vpop.f32.mrb[0].mxu0
    %v800 = vadd.f32 %v187, %v799
    %v801 = vpop.f32.mrb[0].mxu0
    %v802 = vpop.f32.mrb[0].mxu0
    %v803 = vadd.f32 %v187, %v802
    %v804 = vpop.f32.mrb[0].mxu0
    %805 = vmatprep.mubr.bf16.mxu0 0
    %806 = vmatmul.mubr.bf16.gmra.mrb[0].mxu0 %v438
    %v807 = vpop.f32.mrb[0].mxu0
    %v808 = vadd.f32 %v187, %v807
    %v809 = vpop.f32.mrb[0].mxu0
    %v810 = vpop.f32.mrb[0].mxu0
    %v811 = vadd.f32 %v187, %v810
    %v812 = vpop.f32.mrb[0].mxu0
    %813 = vmatprep.mubr.bf16.mxu0 0
    %814 = vmatmul.mubr.bf16.gmra.mrb[0].mxu0 %v439
    %v815 = vpop.f32.mrb[0].mxu0
    %v816 = vadd.f32 %v187, %v815
    %v817 = vpop.f32.mrb[0].mxu0
    %v818 = vpop.f32.mrb[0].mxu0
    %v819 = vadd.f32 %v187, %v818
    %v820 = vpop.f32.mrb[0].mxu0
    %821 = vmatprep.mubr.bf16.mxu0 0
    %822 = vmatmul.mubr.bf16.gmra.mrb[0].mxu0 %v440
    %v823 = vpop.f32.mrb[0].mxu0
    %v824 = vadd.f32 %v187, %v823
    %v825 = vpop.f32.mrb[0].mxu0
    %v826 = vpop.f32.mrb[0].mxu0
    %v827 = vadd.f32 %v187, %v826
    %v828 = vpop.f32.mrb[0].mxu0
    %829 = vmatprep.mubr.bf16.mxu0 0
    %830 = vmatmul.mubr.bf16.gmra.mrb[0].mxu0 %v441
    %v831 = vpop.f32.mrb[0].mxu0
    %v832 = vadd.f32 %v187, %v831
    %v833 = vpop.f32.mrb[0].mxu0
    %v834 = vpop.f32.mrb[0].mxu0
    %v835 = vadd.f32 %v187, %v834
    %v836 = vpop.f32.mrb[0].mxu0
    %837 = vmatprep.mubr.bf16.mxu0 0
    %838 = vmatmul.mubr.bf16.gmra.mrb[0].mxu0 %v442
    %v839 = vpop.f32.mrb[0].mxu0
    %v840 = vadd.f32 %v187, %v839
    %v841 = vpop.f32.mrb[0].mxu0
    %v842 = vpop.f32.mrb[0].mxu0
    %v843 = vadd.f32 %v187, %v842
    %v844 = vpop.f32.mrb[0].mxu0
    %845 = vmatprep.mubr.bf16.mxu0 0
    %846 = vmatmul.mubr.bf16.gmra.mrb[0].mxu0 %v443
    %v847 = vpop.f32.mrb[0].mxu0
    %v848 = vadd.f32 %v187, %v847
    %v849 = vpop.f32.mrb[0].mxu0
    %v850 = vpop.f32.mrb[0].mxu0
    %v851 = vadd.f32 %v187, %v850
    %v852 = vpop.f32.mrb[0].mxu0
    %853 = vmatprep.mubr.bf16.mxu0 0
    %854 = vmatmul.mubr.bf16.gmra.mrb[0].mxu0 %v444
    %v855 = vpop.f32.mrb[0].mxu0
    %v856 = vadd.f32 %v187, %v855
    %v857 = vpop.f32.mrb[0].mxu0
    %v858 = vpop.f32.mrb[0].mxu0
    %v859 = vadd.f32 %v187, %v858
    %v860 = vpop.f32.mrb[0].mxu0
    %861 = vmatprep.mubr.bf16.mxu0 0
    %862 = vmatmul.mubr.bf16.gmra.mrb[0].mxu0 %v445
    %v863 = vpop.f32.mrb[0].mxu0
    %v864 = vadd.f32 %v187, %v863
    %v865 = vpop.f32.mrb[0].mxu0
    %v866 = vpop.f32.mrb[0].mxu0
    %v867 = vadd.f32 %v187, %v866
    %v868 = vpop.f32.mrb[0].mxu0
    %869 = vmatprep.mubr.bf16.mxu0 0
    %870 = vmatmul.mubr.bf16.gmra.mrb[0].mxu0 %v446
    %v871 = vpop.f32.mrb[0].mxu0
    %v872 = vadd.f32 %v187, %v871
    %v873 = vpop.f32.mrb[0].mxu0
    %v874 = vpop.f32.mrb[0].mxu0
    %v875 = vadd.f32 %v187, %v874
    %v876 = vpop.f32.mrb[0].mxu0
    %877 = vmatprep.mubr.bf16.mxu0 0
    %878 = vmatmul.mubr.bf16.gmra.mrb[0].mxu0 %v447
    %v879 = vpop.f32.mrb[0].mxu0
    %v880 = vadd.f32 %v187, %v879
    %v881 = vpop.f32.mrb[0].mxu0
    %v882 = vpop.f32.mrb[0].mxu0
    %v883 = vadd.f32 %v187, %v882
    %v884 = vpop.f32.mrb[0].mxu0
    %885 = vmatprep.mubr.bf16.mxu0 0
    %886 = vmatmul.mubr.bf16.gmra.mrb[0].mxu0 %v448
    %v887 = vpop.f32.mrb[0].mxu0
    %v888 = vadd.f32 %v187, %v887
    %v889 = vpop.f32.mrb[0].mxu0
    %v890 = vpop.f32.mrb[0].mxu0
    %v891 = vadd.f32 %v187, %v890
    %v892 = vpop.f32.mrb[0].mxu0
    %893 = vmatprep.mubr.bf16.mxu0 0
    %894 = vmatmul.mubr.bf16.gmra.mrb[0].mxu0 %v449
    %v895 = vpop.f32.mrb[0].mxu0
    %v896 = vadd.f32 %v187, %v895
    %v897 = vpop.f32.mrb[0].mxu0
    %v898 = vpop.f32.mrb[0].mxu0
    %v899 = vadd.f32 %v187, %v898
    %v900 = vpop.f32.mrb[0].mxu0
    %901 = vmatprep.mubr.bf16.mxu0 0
    %902 = vmatmul.mubr.bf16.gmra.mrb[0].mxu0 %v450
    %v903 = vpop.f32.mrb[0].mxu0
    %v904 = vadd.f32 %v187, %v903
    %v905 = vpop.f32.mrb[0].mxu0
    %v906 = vpop.f32.mrb[0].mxu0
    %v907 = vadd.f32 %v187, %v906
    %v908 = vpop.f32.mrb[0].mxu0
    %909 = vmatprep.mubr.bf16.mxu0 0
    %910 = vmatmul.mubr.bf16.gmra.mrb[0].mxu0 %v451
    %v911 = vpop.f32.mrb[0].mxu0
    %v912 = vadd.f32 %v187, %v911
    %v913 = vpop.f32.mrb[0].mxu0
    %v914 = vpop.f32.mrb[0].mxu0
    %v915 = vadd.f32 %v187, %v914
    %v916 = vpop.f32.mrb[0].mxu0
    %917 = vmatprep.mubr.bf16.mxu0 0
    %918 = vmatmul.mubr.bf16.gmra.mrb[0].mxu0 %v452
    %v919 = vpop.f32.mrb[0].mxu0
    %v920 = vadd.f32 %v187, %v919
    %v921 = vpop.f32.mrb[0].mxu0
    %v922 = vpop.f32.mrb[0].mxu0
    %v923 = vadd.f32 %v187, %v922
    %v924 = vpop.f32.mrb[0].mxu0
    %925 = vmatprep.mubr.bf16.mxu0 0
    %926 = vmatmul.mubr.bf16.gmra.mrb[0].mxu0 %v453
    %v927 = vpop.f32.mrb[0].mxu0
    %v928 = vadd.f32 %v187, %v927
    %v929 = vpop.f32.mrb[0].mxu0
    %v930 = vpop.f32.mrb[0].mxu0
    %v931 = vadd.f32 %v187, %v930
    %v932 = vpop.f32.mrb[0].mxu0
    %933 = vmatprep.mubr.bf16.mxu0 0
    %934 = vmatmul.mubr.bf16.gmra.mrb[0].mxu0 %v454
    %v935 = vpop.f32.mrb[0].mxu0
    %v936 = vadd.f32 %v187, %v935
    %v937 = vpop.f32.mrb[0].mxu0
    %v938 = vpop.f32.mrb[0].mxu0
    %v939 = vadd.f32 %v187, %v938
    %v940 = vpop.f32.mrb[0].mxu0
    %941 = vmatprep.mubr.bf16.mxu0 0
    %942 = vmatmul.mubr.bf16.gmra.mrb[0].mxu0 %v455
    %v943 = vpop.f32.mrb[0].mxu0
    %v944 = vadd.f32 %v187, %v943
    %v945 = vpop.f32.mrb[0].mxu0
    %v946 = vpop.f32.mrb[0].mxu0
    %v947 = vadd.f32 %v187, %v946
    %v948 = vpop.f32.mrb[0].mxu0
    %949 = vmatprep.mubr.bf16.mxu0 0
    %950 = vmatmul.mubr.bf16.gmra.mrb[0].mxu0 %v456
    %v951 = vpop.f32.mrb[0].mxu0
    %v952 = vadd.f32 %v187, %v951
    %v953 = vpop.f32.mrb[0].mxu0
    %v954 = vpop.f32.mrb[0].mxu0
    %v955 = vadd.f32 %v187, %v954
    %v956 = vpop.f32.mrb[0].mxu0
    %957 = vmatprep.mubr.bf16.mxu0 0
    %958 = vmatmul.mubr.bf16.gmra.mrb[0].mxu0 %v457
    %v959 = vpop.f32.mrb[0].mxu0
    %v960 = vadd.f32 %v187, %v959
    %v961 = vpop.f32.mrb[0].mxu0
    %v962 = vpop.f32.mrb[0].mxu0
    %v963 = vadd.f32 %v187, %v962
    %v964 = vpop.f32.mrb[0].mxu0
    %965 = vmatprep.mubr.bf16.mxu0 0
    %966 = vmatmul.mubr.bf16.gmra.mrb[0].mxu0 %v458
    %v967 = vpop.f32.mrb[0].mxu0
    %v968 = vadd.f32 %v187, %v967
    %v969 = vpop.f32.mrb[0].mxu0
    %v970 = vpop.f32.mrb[0].mxu0
    %v971 = vadd.f32 %v187, %v970
    %v972 = vpop.f32.mrb[0].mxu0
    %973 = vmatprep.mubr.bf16.mxu0 0
    %974 = vmatmul.mubr.bf16.gmra.mrb[0].mxu0 %v459
    %v975 = vpop.f32.mrb[0].mxu0
    %v976 = vadd.f32 %v187, %v975
    %v977 = vpop.f32.mrb[0].mxu0
    %v978 = vpop.f32.mrb[0].mxu0
    %v979 = vadd.f32 %v187, %v978
    %v980 = vpop.f32.mrb[0].mxu0
    %981 = vmatprep.mubr.bf16.mxu0 0
    %982 = vmatmul.mubr.bf16.gmra.mrb[0].mxu0 %v460
    %v983 = vpop.f32.mrb[0].mxu0
    %v984 = vadd.f32 %v187, %v983
    %v985 = vpop.f32.mrb[0].mxu0
    %v986 = vpop.f32.mrb[0].mxu0
    %v987 = vadd.f32 %v187, %v986
    %v988 = vpop.f32.mrb[0].mxu0
    %989 = vmatprep.mubr.bf16.mxu0 0
    %990 = vmatmul.mubr.bf16.gmra.mrb[0].mxu0 %v461
    %v991 = vpop.f32.mrb[0].mxu0
    %v992 = vadd.f32 %v187, %v991
    %v993 = vpop.f32.mrb[0].mxu0
    %v994 = vpop.f32.mrb[0].mxu0
    %v995 = vadd.f32 %v187, %v994
    %v996 = vpop.f32.mrb[0].mxu0
    %997 = vmatprep.mubr.bf16.mxu0 0
    %998 = vmatmul.mubr.bf16.gmra.mrb[0].mxu0 %v462
    %v999 = vpop.f32.mrb[0].mxu0
    %v1000 = vadd.f32 %v187, %v999
    %v1001 = vpop.f32.mrb[0].mxu0
    %v1002 = vpop.f32.mrb[0].mxu0
    %v1003 = vadd.f32 %v187, %v1002
    %v1004 = vpop.f32.mrb[0].mxu0
    %1005 = vmatprep.mubr.bf16.mxu0 0
    %1006 = vmatmul.mubr.bf16.gmra.mrb[0].mxu0 %v463
    %v1007 = vpop.f32.mrb[0].mxu0
    %v1008 = vadd.f32 %v187, %v1007
    %v1009 = vpop.f32.mrb[0].mxu0
    %v1010 = vpop.f32.mrb[0].mxu0
    %v1011 = vadd.f32 %v187, %v1010
    %v1012 = vpop.f32.mrb[0].mxu0
    %1013 = vmatprep.mubr.bf16.mxu0 0
    %1014 = vmatmul.mubr.bf16.gmra.mrb[0].mxu0 %v464
    %v1015 = vpop.f32.mrb[0].mxu0
    %v1016 = vadd.f32 %v187, %v1015
    %v1017 = vpop.f32.mrb[0].mxu0
    %v1018 = vpop.f32.mrb[0].mxu0
    %v1019 = vadd.f32 %v187, %v1018
    %v1020 = vpop.f32.mrb[0].mxu0
    %1021 = vmatprep.mubr.bf16.mxu0 0
    %1022 = vmatmul.mubr.bf16.gmra.mrb[0].mxu0 %v465
    %v1023 = vpop.f32.mrb[0].mxu0
    %v1024 = vadd.f32 %v187, %v1023
    %v1025 = vpop.f32.mrb[0].mxu0
    %v1026 = vpop.f32.mrb[0].mxu0
    %v1027 = vadd.f32 %v187, %v1026
    %v1028 = vpop.f32.mrb[0].mxu0
    %1029 = vmatprep.mubr.bf16.mxu0 0
    %1030 = vmatmul.mubr.bf16.gmra.mrb[0].mxu0 %v466
    %v1031 = vpop.f32.mrb[0].mxu0
    %v1032 = vadd.f32 %v187, %v1031
    %v1033 = vpop.f32.mrb[0].mxu0
    %v1034 = vpop.f32.mrb[0].mxu0
    %v1035 = vadd.f32 %v187, %v1034
    %v1036 = vpop.f32.mrb[0].mxu0
    %1037 = vmatprep.mubr.bf16.mxu0 0
    %1038 = vmatmul.mubr.bf16.gmra.mrb[0].mxu0 %v467
    %v1039 = vpop.f32.mrb[0].mxu0
    %v1040 = vadd.f32 %v187, %v1039
    %v1041 = vpop.f32.mrb[0].mxu0
    %v1042 = vpop.f32.mrb[0].mxu0
    %v1043 = vadd.f32 %v187, %v1042
    %v1044 = vpop.f32.mrb[0].mxu0
    %1045 = vmatprep.mubr.bf16.mxu0 0
    %1046 = vmatmul.mubr.bf16.gmra.mrb[0].mxu0 %v468
    %v1047 = vpop.f32.mrb[0].mxu0
    %v1048 = vadd.f32 %v187, %v1047
    %v1049 = vpop.f32.mrb[0].mxu0
    %v1050 = vpop.f32.mrb[0].mxu0
    %v1051 = vadd.f32 %v187, %v1050
    %v1052 = vpop.f32.mrb[0].mxu0
    %1053 = vdwg.mxu0
    %v1054 = vtanh.pop %v608
    %v1055 = vtanh.pop %v611
    %v1056 = vtanh.pop %v616
    %v1057 = vtanh.pop %v619
    %v1058 = vtanh.pop %v624
    %v1059 = vtanh.pop %v627
    %v1060 = vtanh.pop %v632
    %v1061 = vtanh.pop %v635
    %v1062 = vtanh.pop %v640
    %v1063 = vtanh.pop %v643
    %v1064 = vtanh.pop %v648
    %v1065 = vtanh.pop %v651
    %v1066 = vtanh.pop %v656
    %v1067 = vtanh.pop %v659
    %v1068 = vtanh.pop %v664
    %v1069 = vtanh.pop %v667
    %v1070 = vtanh.pop %v672
    %v1071 = vtanh.pop %v675
    %v1072 = vtanh.pop %v680
    %v1073 = vtanh.pop %v683
    %v1074 = vtanh.pop %v688
    %v1075 = vtanh.pop %v691
    %v1076 = vtanh.pop %v696
    %v1077 = vtanh.pop %v699
    %v1078 = vtanh.pop %v704
    %v1079 = vtanh.pop %v707
    %v1080 = vtanh.pop %v712
    %v1081 = vtanh.pop %v715
    %v1082 = vtanh.pop %v720
    %v1083 = vtanh.pop %v723
    %v1084 = vtanh.pop %v728
    %v1085 = vtanh.pop %v731
    %v1086 = vtanh.pop %v736
    %v1087 = vtanh.pop %v739
    %v1088 = vtanh.pop %v744
    %v1089 = vtanh.pop %v747
    %v1090 = vtanh.pop %v752
    %v1091 = vtanh.pop %v755
    %v1092 = vtanh.pop %v760
    %v1093 = vtanh.pop %v763
    %v1094 = vtanh.pop %v768
    %v1095 = vtanh.pop %v771
    %v1096 = vtanh.pop %v776
    %v1097 = vtanh.pop %v779
    %v1098 = vtanh.pop %v784
    %v1099 = vtanh.pop %v787
    %v1100 = vtanh.pop %v792
    %v1101 = vtanh.pop %v795
    %v1102 = vtanh.pop %v800
    %v1103 = vtanh.pop %v803
    %v1104 = vtanh.pop %v808
    %v1105 = vtanh.pop %v811
    %v1106 = vtanh.pop %v816
    %v1107 = vtanh.pop %v819
    %v1108 = vtanh.pop %v824
    %v1109 = vtanh.pop %v827
    %v1110 = vtanh.pop %v832
    %v1111 = vtanh.pop %v835
    %v1112 = vtanh.pop %v840
    %v1113 = vtanh.pop %v843
    %v1114 = vtanh.pop %v848
    %v1115 = vtanh.pop %v851
    %v1116 = vtanh.pop %v856
    %v1117 = vtanh.pop %v859
    %v1118 = vtanh.pop %v864
    %v1119 = vtanh.pop %v867
    %v1120 = vtanh.pop %v872
    %v1121 = vtanh.pop %v875
    %v1122 = vtanh.pop %v880
    %v1123 = vtanh.pop %v883
    %v1124 = vtanh.pop %v888
    %v1125 = vtanh.pop %v891
    %v1126 = vtanh.pop %v896
    %v1127 = vtanh.pop %v899
    %v1128 = vtanh.pop %v904
    %v1129 = vtanh.pop %v907
    %v1130 = vtanh.pop %v912
    %v1131 = vtanh.pop %v915
    %v1132 = vtanh.pop %v920
    %v1133 = vtanh.pop %v923
    %v1134 = vtanh.pop %v928
    %v1135 = vtanh.pop %v931
    %v1136 = vtanh.pop %v936
    %v1137 = vtanh.pop %v939
    %v1138 = vtanh.pop %v944
    %v1139 = vtanh.pop %v947
    %v1140 = vtanh.pop %v952
    %v1141 = vtanh.pop %v955
    %v1142 = vtanh.pop %v960
    %v1143 = vtanh.pop %v963
    %v1144 = vtanh.pop %v968
    %v1145 = vtanh.pop %v971
    %v1146 = vtanh.pop %v976
    %v1147 = vtanh.pop %v979
    %v1148 = vtanh.pop %v984
    %v1149 = vtanh.pop %v987
    %v1150 = vtanh.pop %v992
    %v1151 = vtanh.pop %v995
    %v1152 = vtanh.pop %v1000
    %v1153 = vtanh.pop %v1003
    %v1154 = vtanh.pop %v1008
    %v1155 = vtanh.pop %v1011
    %v1156 = vtanh.pop %v1016
    %v1157 = vtanh.pop %v1019
    %v1158 = vtanh.pop %v1024
    %v1159 = vtanh.pop %v1027
    %v1160 = vtanh.pop %v1032
    %v1161 = vtanh.pop %v1035
    %v1162 = vtanh.pop %v1040
    %v1163 = vtanh.pop %v1043
    %v1164 = vtanh.pop %v1048
    %v1165 = vtanh.pop %v1051
    %v1166 = vld [vmem:[%s3] sm:$0xff]
    %v1167 = vld [vmem:[%s3 + $0x8] sm:$0xff]
    %v1168 = vld [vmem:[%s3 + $0x10] sm:$0xff]
    %v1169 = vld [vmem:[%s3 + $0x18] sm:$0xf]
    %v1170 = vld [vmem:[%s3 + $0x1c] sm:$0xff]
    %v1171 = vld [vmem:[%s3 + $0x24] sm:$0xff]
    %v1172 = vld [vmem:[%s3 + $0x2c] sm:$0xff]
    %v1173 = vld [vmem:[%s3 + $0x34] sm:$0xf]
    %v1174 = vld [vmem:[%s3 + $0x38] sm:$0xff]
    %v1175 = vld [vmem:[%s3 + $0x40] sm:$0xff]
    %v1176 = vld [vmem:[%s3 + $0x48] sm:$0xff]
    %v1177 = vld [vmem:[%s3 + $0x50] sm:$0xf]
    %v1178 = vld [vmem:[%s3 + $0x54] sm:$0xff]
    %v1179 = vld [vmem:[%s3 + $0x5c] sm:$0xff]
    %v1180 = vld [vmem:[%s3 + $0x64] sm:$0xff]
    %v1181 = vld [vmem:[%s3 + $0x6c] sm:$0xf]
    %v1182 = vld [vmem:[%s3 + $0x70] sm:$0xff]
    %v1183 = vld [vmem:[%s3 + $0x78] sm:$0xff]
    %v1184 = vld [vmem:[%s3 + $0x80] sm:$0xff]
    %v1185 = vld [vmem:[%s3 + $0x88] sm:$0xf]
    %v1186 = vld [vmem:[%s3 + $0x8c] sm:$0xff]
    %v1187 = vld [vmem:[%s3 + $0x94] sm:$0xff]
    %v1188 = vld [vmem:[%s3 + $0x9c] sm:$0xff]
    %v1189 = vld [vmem:[%s3 + $0xa4] sm:$0xf]
    %v1190 = vld [vmem:[%s3 + $0xa8] sm:$0xff]
    %v1191 = vld [vmem:[%s3 + $0xb0] sm:$0xff]
    %v1192 = vld [vmem:[%s3 + $0xb8] sm:$0xff]
    %v1193 = vld [vmem:[%s3 + $0xc0] sm:$0xf]
    %v1194 = vld [vmem:[%s3 + $0xc4] sm:$0xff]
    %v1195 = vld [vmem:[%s3 + $0xcc] sm:$0xff]
    %v1196 = vld [vmem:[%s3 + $0xd4] sm:$0xff]
    %v1197 = vld [vmem:[%s3 + $0xdc] sm:$0xf]
    %v1198 = vld [vmem:[%s3 + $0xe0] sm:$0xff]
    %v1199 = vld [vmem:[%s3 + $0xe8] sm:$0xff]
    %v1200 = vld [vmem:[%s3 + $0xf0] sm:$0xff]
    %v1201 = vld [vmem:[%s3 + $0xf8] sm:$0xf]
    %v1202 = vld [vmem:[%s3 + $0xfc] sm:$0xff]
    %v1203 = vld [vmem:[%s3 + $0x104] sm:$0xff]
    %v1204 = vld [vmem:[%s3 + $0x10c] sm:$0xff]
    %v1205 = vld [vmem:[%s3 + $0x114] sm:$0xf]
    %v1206 = vld [vmem:[%s3 + $0x118] sm:$0xff]
    %v1207 = vld [vmem:[%s3 + $0x120] sm:$0xff]
    %v1208 = vld [vmem:[%s3 + $0x128] sm:$0xff]
    %v1209 = vld [vmem:[%s3 + $0x130] sm:$0xf]
    %v1210 = vld [vmem:[%s3 + $0x134] sm:$0xff]
    %v1211 = vld [vmem:[%s3 + $0x13c] sm:$0xff]
    %v1212 = vld [vmem:[%s3 + $0x144] sm:$0xff]
    %v1213 = vld [vmem:[%s3 + $0x14c] sm:$0xf]
    %v1214 = vld [vmem:[%s3 + $0x150] sm:$0xff]
    %v1215 = vld [vmem:[%s3 + $0x158] sm:$0xff]
    %v1216 = vld [vmem:[%s3 + $0x160] sm:$0xff]
    %v1217 = vld [vmem:[%s3 + $0x168] sm:$0xf]
    %v1218 = vld [vmem:[%s3 + $0x16c] sm:$0xff]
    %v1219 = vld [vmem:[%s3 + $0x174] sm:$0xff]
    %v1220 = vld [vmem:[%s3 + $0x17c] sm:$0xff]
    %v1221 = vld [vmem:[%s3 + $0x184] sm:$0xf]
    %v1222 = vld [vmem:[%s3 + $0x188] sm:$0xff]
    %v1223 = vld [vmem:[%s3 + $0x190] sm:$0xff]
    %v1224 = vld [vmem:[%s3 + $0x198] sm:$0xff]
    %v1225 = vld [vmem:[%s3 + $0x1a0] sm:$0xf]
    %v1226 = vld [vmem:[%s3 + $0x1a4] sm:$0xff]
    %v1227 = vld [vmem:[%s3 + $0x1ac] sm:$0xff]
    %v1228 = vld [vmem:[%s3 + $0x1b4] sm:$0xff]
    %v1229 = vld [vmem:[%s3 + $0x1bc] sm:$0xf]
    %v1230 = vld [vmem:[%s3 + $0x1c0] sm:$0xff]
    %v1231 = vld [vmem:[%s3 + $0x1c8] sm:$0xff]
    %v1232 = vld [vmem:[%s3 + $0x1d0] sm:$0xff]
    %v1233 = vld [vmem:[%s3 + $0x1d8] sm:$0xf]
    %v1234 = vld [vmem:[%s3 + $0x1dc] sm:$0xff]
    %v1235 = vld [vmem:[%s3 + $0x1e4] sm:$0xff]
    %v1236 = vld [vmem:[%s3 + $0x1ec] sm:$0xff]
    %v1237 = vld [vmem:[%s3 + $0x1f4] sm:$0xf]
    %v1238 = vld [vmem:[%s3 + $0x1f8] sm:$0xff]
    %v1239 = vld [vmem:[%s3 + $0x200] sm:$0xff]
    %v1240 = vld [vmem:[%s3 + $0x208] sm:$0xff]
    %v1241 = vld [vmem:[%s3 + $0x210] sm:$0xf]
    %v1242 = vld [vmem:[%s3 + $0x214] sm:$0xff]
    %v1243 = vld [vmem:[%s3 + $0x21c] sm:$0xff]
    %v1244 = vld [vmem:[%s3 + $0x224] sm:$0xff]
    %v1245 = vld [vmem:[%s3 + $0x22c] sm:$0xf]
    %v1246 = vld [vmem:[%s3 + $0x230] sm:$0xff]
    %v1247 = vld [vmem:[%s3 + $0x238] sm:$0xff]
    %v1248 = vld [vmem:[%s3 + $0x240] sm:$0xff]
    %v1249 = vld [vmem:[%s3 + $0x248] sm:$0xf]
    %v1250 = vld [vmem:[%s3 + $0x24c] sm:$0xff]
    %v1251 = vld [vmem:[%s3 + $0x254] sm:$0xff]
    %v1252 = vld [vmem:[%s3 + $0x25c] sm:$0xff]
    %v1253 = vld [vmem:[%s3 + $0x264] sm:$0xf]
    %v1254 = vld [vmem:[%s3 + $0x268] sm:$0xff]
    %v1255 = vld [vmem:[%s3 + $0x270] sm:$0xff]
    %v1256 = vld [vmem:[%s3 + $0x278] sm:$0xff]
    %v1257 = vld [vmem:[%s3 + $0x280] sm:$0xf]
    %v1258 = vld [vmem:[%s3 + $0x284] sm:$0xff]
    %v1259 = vld [vmem:[%s3 + $0x28c] sm:$0xff]
    %v1260 = vld [vmem:[%s3 + $0x294] sm:$0xff]
    %v1261 = vld [vmem:[%s3 + $0x29c] sm:$0xf]
    %v1262 = vld [vmem:[%s3 + $0x2a0] sm:$0x33]
    %v1263 = vld [vmem:[%s3 + $0x2a8] sm:$0x33]
    %v1264 = vld [vmem:[%s3 + $0x2b0] sm:$0x33]
    %v1265 = vld [vmem:[%s3 + $0x2b8] sm:$0x3]
    %v1266 = vpack.c.bf16 %v1055, %v1054
    %v1267 = vpack.c.bf16 %v1057, %v1056
    %v1268 = vpack.c.bf16 %v1059, %v1058
    %v1269 = vpack.c.bf16 %v1061, %v1060
    %v1270 = vpack.c.bf16 %v1063, %v1062
    %v1271 = vpack.c.bf16 %v1065, %v1064
    %v1272 = vpack.c.bf16 %v1067, %v1066
    %v1273 = vpack.c.bf16 %v1069, %v1068
    %v1274 = vpack.c.bf16 %v1071, %v1070
    %v1275 = vpack.c.bf16 %v1073, %v1072
    %v1276 = vpack.c.bf16 %v1075, %v1074
    %v1277 = vpack.c.bf16 %v1077, %v1076
    %v1278 = vpack.c.bf16 %v1079, %v1078
    %v1279 = vpack.c.bf16 %v1081, %v1080
    %v1280 = vpack.c.bf16 %v1083, %v1082
    %v1281 = vpack.c.bf16 %v1085, %v1084
    %v1282 = vpack.c.bf16 %v1087, %v1086
    %v1283 = vpack.c.bf16 %v1089, %v1088
    %v1284 = vpack.c.bf16 %v1091, %v1090
    %v1285 = vpack.c.bf16 %v1093, %v1092
    %v1286 = vpack.c.bf16 %v1095, %v1094
    %v1287 = vpack.c.bf16 %v1097, %v1096
    %v1288 = vpack.c.bf16 %v1099, %v1098
    %v1289 = vpack.c.bf16 %v1101, %v1100
    %v1290 = vpack.c.bf16 %v1103, %v1102
    %v1291 = vpack.c.bf16 %v1105, %v1104
    %v1292 = vpack.c.bf16 %v1107, %v1106
    %v1293 = vpack.c.bf16 %v1109, %v1108
    %v1294 = vpack.c.bf16 %v1111, %v1110
    %v1295 = vpack.c.bf16 %v1113, %v1112
    %v1296 = vpack.c.bf16 %v1115, %v1114
    %v1297 = vpack.c.bf16 %v1117, %v1116
    %v1298 = vpack.c.bf16 %v1119, %v1118
    %v1299 = vpack.c.bf16 %v1121, %v1120
    %v1300 = vpack.c.bf16 %v1123, %v1122
    %v1301 = vpack.c.bf16 %v1125, %v1124
    %v1302 = vpack.c.bf16 %v1127, %v1126
    %v1303 = vpack.c.bf16 %v1129, %v1128
    %v1304 = vpack.c.bf16 %v1131, %v1130
    %v1305 = vpack.c.bf16 %v1133, %v1132
    %v1306 = vpack.c.bf16 %v1135, %v1134
    %v1307 = vpack.c.bf16 %v1137, %v1136
    %v1308 = vpack.c.bf16 %v1139, %v1138
    %v1309 = vpack.c.bf16 %v1141, %v1140
    %v1310 = vpack.c.bf16 %v1143, %v1142
    %v1311 = vpack.c.bf16 %v1145, %v1144
    %v1312 = vpack.c.bf16 %v1147, %v1146
    %v1313 = vpack.c.bf16 %v1149, %v1148
    %v1314 = vpack.c.bf16 %v1151, %v1150
    %v1315 = vpack.c.bf16 %v1153, %v1152
    %v1316 = vpack.c.bf16 %v1155, %v1154
    %v1317 = vpack.c.bf16 %v1157, %v1156
    %v1318 = vpack.c.bf16 %v1159, %v1158
    %v1319 = vpack.c.bf16 %v1161, %v1160
    %v1320 = vpack.c.bf16 %v1163, %v1162
    %v1321 = vpack.c.bf16 %v1165, %v1164
    %v1422 = vunpack.c.l.b16 %v1166
    %v1423 = vunpack.c.h.b16 %v1166
    %v1424 = vunpack.c.l.b16 %v1167
    %v1425 = vunpack.c.h.b16 %v1167
    %v1426 = vunpack.c.l.b16 %v1168
    %v1427 = vunpack.c.h.b16 %v1168
    %v1428 = vunpack.c.l.b16 %v1169
    %v1429 = vunpack.c.l.b16 %v1170
    %v1430 = vunpack.c.h.b16 %v1170
    %v1431 = vunpack.c.l.b16 %v1171
    %v1432 = vunpack.c.h.b16 %v1171
    %v1433 = vunpack.c.l.b16 %v1172
    %v1434 = vunpack.c.h.b16 %v1172
    %v1435 = vunpack.c.l.b16 %v1173
    %v1436 = vunpack.c.l.b16 %v1174
    %v1437 = vunpack.c.h.b16 %v1174
    %v1438 = vunpack.c.l.b16 %v1175
    %v1439 = vunpack.c.h.b16 %v1175
    %v1440 = vunpack.c.l.b16 %v1176
    %v1441 = vunpack.c.h.b16 %v1176
    %v1442 = vunpack.c.l.b16 %v1177
    %v1443 = vunpack.c.l.b16 %v1178
    %v1444 = vunpack.c.h.b16 %v1178
    %v1445 = vunpack.c.l.b16 %v1179
    %v1446 = vunpack.c.h.b16 %v1179
    %v1447 = vunpack.c.l.b16 %v1180
    %v1448 = vunpack.c.h.b16 %v1180
    %v1449 = vunpack.c.l.b16 %v1181
    %v1450 = vunpack.c.l.b16 %v1182
    %v1451 = vunpack.c.h.b16 %v1182
    %v1452 = vunpack.c.l.b16 %v1183
    %v1453 = vunpack.c.h.b16 %v1183
    %v1454 = vunpack.c.l.b16 %v1184
    %v1455 = vunpack.c.h.b16 %v1184
    %v1456 = vunpack.c.l.b16 %v1185
    %v1457 = vunpack.c.l.b16 %v1186
    %v1458 = vunpack.c.h.b16 %v1186
    %v1459 = vunpack.c.l.b16 %v1187
    %v1460 = vunpack.c.h.b16 %v1187
    %v1461 = vunpack.c.l.b16 %v1188
    %v1462 = vunpack.c.h.b16 %v1188
    %v1463 = vunpack.c.l.b16 %v1189
    %v1464 = vunpack.c.l.b16 %v1190
    %v1465 = vunpack.c.h.b16 %v1190
    %v1466 = vunpack.c.l.b16 %v1191
    %v1467 = vunpack.c.h.b16 %v1191
    %v1468 = vunpack.c.l.b16 %v1192
    %v1469 = vunpack.c.h.b16 %v1192
    %v1470 = vunpack.c.l.b16 %v1193
    %v1471 = vunpack.c.l.b16 %v1194
    %v1472 = vunpack.c.h.b16 %v1194
    %v1473 = vunpack.c.l.b16 %v1195
    %v1474 = vunpack.c.h.b16 %v1195
    %v1475 = vunpack.c.l.b16 %v1196
    %v1476 = vunpack.c.h.b16 %v1196
    %v1477 = vunpack.c.l.b16 %v1197
    %v1478 = vunpack.c.l.b16 %v1198
    %v1479 = vunpack.c.h.b16 %v1198
    %v1480 = vunpack.c.l.b16 %v1199
    %v1481 = vunpack.c.h.b16 %v1199
    %v1482 = vunpack.c.l.b16 %v1200
    %v1483 = vunpack.c.h.b16 %v1200
    %v1484 = vunpack.c.l.b16 %v1201
    %v1485 = vunpack.c.l.b16 %v1202
    %v1486 = vunpack.c.h.b16 %v1202
    %v1487 = vunpack.c.l.b16 %v1203
    %v1488 = vunpack.c.h.b16 %v1203
    %v1489 = vunpack.c.l.b16 %v1204
    %v1490 = vunpack.c.h.b16 %v1204
    %v1491 = vunpack.c.l.b16 %v1205
    %v1492 = vunpack.c.l.b16 %v1206
    %v1493 = vunpack.c.h.b16 %v1206
    %v1494 = vunpack.c.l.b16 %v1207
    %v1495 = vunpack.c.h.b16 %v1207
    %v1496 = vunpack.c.l.b16 %v1208
    %v1497 = vunpack.c.h.b16 %v1208
    %v1498 = vunpack.c.l.b16 %v1209
    %v1499 = vunpack.c.l.b16 %v1210
    %v1500 = vunpack.c.h.b16 %v1210
    %v1501 = vunpack.c.l.b16 %v1211
    %v1502 = vunpack.c.h.b16 %v1211
    %v1503 = vunpack.c.l.b16 %v1212
    %v1504 = vunpack.c.h.b16 %v1212
    %v1505 = vunpack.c.l.b16 %v1213
    %v1506 = vunpack.c.l.b16 %v1214
    %v1507 = vunpack.c.h.b16 %v1214
    %v1508 = vunpack.c.l.b16 %v1215
    %v1509 = vunpack.c.h.b16 %v1215
    %v1510 = vunpack.c.l.b16 %v1216
    %v1511 = vunpack.c.h.b16 %v1216
    %v1512 = vunpack.c.l.b16 %v1217
    %v1513 = vunpack.c.l.b16 %v1218
    %v1514 = vunpack.c.h.b16 %v1218
    %v1515 = vunpack.c.l.b16 %v1219
    %v1516 = vunpack.c.h.b16 %v1219
    %v1517 = vunpack.c.l.b16 %v1220
    %v1518 = vunpack.c.h.b16 %v1220
    %v1519 = vunpack.c.l.b16 %v1221
    %v1520 = vunpack.c.l.b16 %v1222
    %v1521 = vunpack.c.h.b16 %v1222
    %v1522 = vunpack.c.l.b16 %v1223
    %v1523 = vunpack.c.h.b16 %v1223
    %v1524 = vunpack.c.l.b16 %v1224
    %v1525 = vunpack.c.h.b16 %v1224
    %v1526 = vunpack.c.l.b16 %v1225
    %v1527 = vunpack.c.l.b16 %v1226
    %v1528 = vunpack.c.h.b16 %v1226
    %v1529 = vunpack.c.l.b16 %v1227
    %v1530 = vunpack.c.h.b16 %v1227
    %v1531 = vunpack.c.l.b16 %v1228
    %v1532 = vunpack.c.h.b16 %v1228
    %v1533 = vunpack.c.l.b16 %v1229
    %v1534 = vunpack.c.l.b16 %v1230
    %v1535 = vunpack.c.h.b16 %v1230
    %v1536 = vunpack.c.l.b16 %v1231
    %v1537 = vunpack.c.h.b16 %v1231
    %v1538 = vunpack.c.l.b16 %v1232
    %v1539 = vunpack.c.h.b16 %v1232
    %v1540 = vunpack.c.l.b16 %v1233
    %v1541 = vunpack.c.l.b16 %v1234
    %v1542 = vunpack.c.h.b16 %v1234
    %v1543 = vunpack.c.l.b16 %v1235
    %v1544 = vunpack.c.h.b16 %v1235
    %v1545 = vunpack.c.l.b16 %v1236
    %v1546 = vunpack.c.h.b16 %v1236
    %v1547 = vunpack.c.l.b16 %v1237
    %v1548 = vunpack.c.l.b16 %v1238
    %v1549 = vunpack.c.h.b16 %v1238
    %v1550 = vunpack.c.l.b16 %v1239
    %v1551 = vunpack.c.h.b16 %v1239
    %v1552 = vunpack.c.l.b16 %v1240
    %v1553 = vunpack.c.h.b16 %v1240
    %v1554 = vunpack.c.l.b16 %v1241
    %v1555 = vunpack.c.l.b16 %v1242
    %v1556 = vunpack.c.h.b16 %v1242
    %v1557 = vunpack.c.l.b16 %v1243
    %v1558 = vunpack.c.h.b16 %v1243
    %v1559 = vunpack.c.l.b16 %v1244
    %v1560 = vunpack.c.h.b16 %v1244
    %v1561 = vunpack.c.l.b16 %v1245
    %v1562 = vunpack.c.l.b16 %v1246
    %v1563 = vunpack.c.h.b16 %v1246
    %v1564 = vunpack.c.l.b16 %v1247
    %v1565 = vunpack.c.h.b16 %v1247
    %v1566 = vunpack.c.l.b16 %v1248
    %v1567 = vunpack.c.h.b16 %v1248
    %v1568 = vunpack.c.l.b16 %v1249
    %v1569 = vunpack.c.l.b16 %v1250
    %v1570 = vunpack.c.h.b16 %v1250
    %v1571 = vunpack.c.l.b16 %v1251
    %v1572 = vunpack.c.h.b16 %v1251
    %v1573 = vunpack.c.l.b16 %v1252
    %v1574 = vunpack.c.h.b16 %v1252
    %v1575 = vunpack.c.l.b16 %v1253
    %v1576 = vunpack.c.l.b16 %v1254
    %v1577 = vunpack.c.h.b16 %v1254
    %v1578 = vunpack.c.l.b16 %v1255
    %v1579 = vunpack.c.h.b16 %v1255
    %v1580 = vunpack.c.l.b16 %v1256
    %v1581 = vunpack.c.h.b16 %v1256
    %v1582 = vunpack.c.l.b16 %v1257
    %v1583 = vunpack.c.l.b16 %v1258
    %v1584 = vunpack.c.h.b16 %v1258
    %v1585 = vunpack.c.l.b16 %v1259
    %v1586 = vunpack.c.h.b16 %v1259
    %v1587 = vunpack.c.l.b16 %v1260
    %v1588 = vunpack.c.h.b16 %v1260
    %v1589 = vunpack.c.l.b16 %v1261
    %v1590 = vunpack.c.l.b16 %v1262
    %v1591 = vunpack.c.h.b16 %v1262
    %v1592 = vunpack.c.l.b16 %v1263
    %v1593 = vunpack.c.h.b16 %v1263
    %v1594 = vunpack.c.l.b16 %v1264
    %v1595 = vunpack.c.h.b16 %v1264
    %v1596 = vunpack.c.l.b16 %v1265
    %v1597 = vpack.c.b16 %v1429, %v1422
    %v1598 = vpack.c.b16 %v1430, %v1423
    %v1599 = vpack.c.b16 %v1431, %v1424
    %v1600 = vpack.c.b16 %v1432, %v1425
    %v1601 = vpack.c.b16 %v1433, %v1426
    %v1602 = vpack.c.b16 %v1434, %v1427
    %v1603 = vpack.c.b16 %v1435, %v1428
    %v1604 = vpack.c.b16 %v1443, %v1436
    %v1605 = vpack.c.b16 %v1444, %v1437
    %v1606 = vpack.c.b16 %v1445, %v1438
    %v1607 = vpack.c.b16 %v1446, %v1439
    %v1608 = vpack.c.b16 %v1447, %v1440
    %v1609 = vpack.c.b16 %v1448, %v1441
    %v1610 = vpack.c.b16 %v1449, %v1442
    %v1611 = vpack.c.b16 %v1457, %v1450
    %v1612 = vpack.c.b16 %v1458, %v1451
    %v1613 = vpack.c.b16 %v1459, %v1452
    %v1614 = vpack.c.b16 %v1460, %v1453
    %v1615 = vpack.c.b16 %v1461, %v1454
    %v1616 = vpack.c.b16 %v1462, %v1455
    %v1617 = vpack.c.b16 %v1463, %v1456
    %v1618 = vpack.c.b16 %v1471, %v1464
    %v1619 = vpack.c.b16 %v1472, %v1465
    %v1620 = vpack.c.b16 %v1473, %v1466
    %v1621 = vpack.c.b16 %v1474, %v1467
    %v1622 = vpack.c.b16 %v1475, %v1468
    %v1623 = vpack.c.b16 %v1476, %v1469
    %v1624 = vpack.c.b16 %v1477, %v1470
    %v1625 = vpack.c.b16 %v1485, %v1478
    %v1626 = vpack.c.b16 %v1486, %v1479
    %v1627 = vpack.c.b16 %v1487, %v1480
    %v1628 = vpack.c.b16 %v1488, %v1481
    %v1629 = vpack.c.b16 %v1489, %v1482
    %v1630 = vpack.c.b16 %v1490, %v1483
    %v1631 = vpack.c.b16 %v1491, %v1484
    %v1632 = vpack.c.b16 %v1499, %v1492
    %v1633 = vpack.c.b16 %v1500, %v1493
    %v1634 = vpack.c.b16 %v1501, %v1494
    %v1635 = vpack.c.b16 %v1502, %v1495
    %v1636 = vpack.c.b16 %v1503, %v1496
    %v1637 = vpack.c.b16 %v1504, %v1497
    %v1638 = vpack.c.b16 %v1505, %v1498
    %v1639 = vpack.c.b16 %v1513, %v1506
    %v1640 = vpack.c.b16 %v1514, %v1507
    %v1641 = vpack.c.b16 %v1515, %v1508
    %v1642 = vpack.c.b16 %v1516, %v1509
    %v1643 = vpack.c.b16 %v1517, %v1510
    %v1644 = vpack.c.b16 %v1518, %v1511
    %v1645 = vpack.c.b16 %v1519, %v1512
    %v1646 = vpack.c.b16 %v1527, %v1520
    %v1647 = vpack.c.b16 %v1528, %v1521
    %v1648 = vpack.c.b16 %v1529, %v1522
    %v1649 = vpack.c.b16 %v1530, %v1523
    %v1650 = vpack.c.b16 %v1531, %v1524
    %v1651 = vpack.c.b16 %v1532, %v1525
    %v1652 = vpack.c.b16 %v1533, %v1526
    %v1653 = vpack.c.b16 %v1541, %v1534
    %v1654 = vpack.c.b16 %v1542, %v1535
    %v1655 = vpack.c.b16 %v1543, %v1536
    %v1656 = vpack.c.b16 %v1544, %v1537
    %v1657 = vpack.c.b16 %v1545, %v1538
    %v1658 = vpack.c.b16 %v1546, %v1539
    %v1659 = vpack.c.b16 %v1547, %v1540
    %v1660 = vpack.c.b16 %v1555, %v1548
    %v1661 = vpack.c.b16 %v1556, %v1549
    %v1662 = vpack.c.b16 %v1557, %v1550
    %v1663 = vpack.c.b16 %v1558, %v1551
    %v1664 = vpack.c.b16 %v1559, %v1552
    %v1665 = vpack.c.b16 %v1560, %v1553
    %v1666 = vpack.c.b16 %v1561, %v1554
    %v1667 = vpack.c.b16 %v1569, %v1562
    %v1668 = vpack.c.b16 %v1570, %v1563
    %v1669 = vpack.c.b16 %v1571, %v1564
    %v1670 = vpack.c.b16 %v1572, %v1565
    %v1671 = vpack.c.b16 %v1573, %v1566
    %v1672 = vpack.c.b16 %v1574, %v1567
    %v1673 = vpack.c.b16 %v1575, %v1568
    %v1674 = vpack.c.b16 %v1583, %v1576
    %v1675 = vpack.c.b16 %v1584, %v1577
    %v1676 = vpack.c.b16 %v1585, %v1578
    %v1677 = vpack.c.b16 %v1586, %v1579
    %v1678 = vpack.c.b16 %v1587, %v1580
    %v1679 = vpack.c.b16 %v1588, %v1581
    %v1680 = vpack.c.b16 %v1589, %v1582
    %v1681 = vpack.c.b16 %v1590, %v1590
    %v1682 = vpack.c.b16 %v1591, %v1591
    %v1683 = vpack.c.b16 %v1592, %v1592
    %v1684 = vpack.c.b16 %v1593, %v1593
    %v1685 = vpack.c.b16 %v1594, %v1594
    %v1686 = vpack.c.b16 %v1595, %v1595
    %v1687 = vpack.c.b16 %v1596, %v1596
    %1779 = vmatprep.subr.bf16.mxu0 0
    %1780 = vmatpush1.bf16.msra.mxu0 %v1266
    %1781 = vmatprep.subr.bf16.mxu0 0
    %1782 = vmatpush1.bf16.msra.mxu0 %v1267
    %1783 = vmatprep.subr.bf16.mxu0 0
    %1784 = vmatpush1.bf16.msra.mxu0 %v1268
    %1785 = vmatprep.subr.bf16.mxu0 0
    %1786 = vmatpush1.bf16.msra.mxu0 %v1269
    %1787 = vmatprep.subr.bf16.mxu0 0
    %1788 = vmatpush1.bf16.msra.mxu0 %v1270
    %1789 = vmatprep.subr.bf16.mxu0 0
    %1790 = vmatpush1.bf16.msra.mxu0 %v1271
    %1791 = vmatprep.subr.bf16.mxu0 0
    %1792 = vmatpush1.bf16.msra.mxu0 %v1272
    %1793 = vmatprep.subr.bf16.mxu0 0
    %1794 = vmatpush1.bf16.msra.mxu0 %v1273
    %1795 = vmatprep.subr.bf16.mxu0 0
    %1796 = vmatpush1.bf16.msra.mxu0 %v1274
    %1797 = vmatprep.subr.bf16.mxu0 0
    %1798 = vmatpush1.bf16.msra.mxu0 %v1275
    %1799 = vmatprep.subr.bf16.mxu0 0
    %1800 = vmatpush1.bf16.msra.mxu0 %v1276
    %1801 = vmatprep.subr.bf16.mxu0 0
    %1802 = vmatpush1.bf16.msra.mxu0 %v1277
    %1803 = vmatprep.subr.bf16.mxu0 0
    %1804 = vmatpush1.bf16.msra.mxu0 %v1278
    %1805 = vmatprep.subr.bf16.mxu0 0
    %1806 = vmatpush1.bf16.msra.mxu0 %v1279
    %1807 = vmatprep.subr.bf16.mxu0 0
    %1808 = vmatpush1.bf16.msra.mxu0 %v1280
    %1809 = vmatprep.subr.bf16.mxu0 0
    %1810 = vmatpush1.bf16.msra.mxu0 %v1281
    %1811 = vmatprep.mubr.bf16.mxu0 %v1598
    %1812 = vmatmul.mubr.bf16.gmra.mrb[0].mxu0 %v1597
    %v1813 = vpop.f32.mrb[0].mxu0
    %v1814 = vadd.f32 0.0, %v1813
    %v1815 = vpop.f32.mrb[0].mxu0
    %v1816 = vpop.f32.mrb[0].mxu0
    %v1817 = vadd.f32 0.0, %v1816
    %v1818 = vpop.f32.mrb[0].mxu0
    %1819 = vmatprep.mubr.bf16.mxu0 %v1605
    %1820 = vmatmul.mubr.bf16.gmra.mrb[0].mxu0 %v1604
    %v1821 = vpop.f32.mrb[0].mxu0
    %v1822 = vadd.f32 0.0, %v1821
    %v1823 = vpop.f32.mrb[0].mxu0
    %v1824 = vpop.f32.mrb[0].mxu0
    %v1825 = vadd.f32 0.0, %v1824
    %v1826 = vpop.f32.mrb[0].mxu0
    %1827 = vmatprep.mubr.bf16.mxu0 %v1612
    %1828 = vmatmul.mubr.bf16.gmra.mrb[0].mxu0 %v1611
    %v1829 = vpop.f32.mrb[0].mxu0
    %v1830 = vadd.f32 0.0, %v1829
    %v1831 = vpop.f32.mrb[0].mxu0
    %v1832 = vpop.f32.mrb[0].mxu0
    %v1833 = vadd.f32 0.0, %v1832
    %v1834 = vpop.f32.mrb[0].mxu0
    %1835 = vmatprep.mubr.bf16.mxu0 %v1619
    %1836 = vmatmul.mubr.bf16.gmra.mrb[0].mxu0 %v1618
    %v1837 = vpop.f32.mrb[0].mxu0
    %v1838 = vadd.f32 0.0, %v1837
    %v1839 = vpop.f32.mrb[0].mxu0
    %v1840 = vpop.f32.mrb[0].mxu0
    %v1841 = vadd.f32 0.0, %v1840
    %v1842 = vpop.f32.mrb[0].mxu0
    %1843 = vmatprep.mubr.bf16.mxu0 %v1626
    %1844 = vmatmul.mubr.bf16.gmra.mrb[0].mxu0 %v1625
    %v1845 = vpop.f32.mrb[0].mxu0
    %v1846 = vadd.f32 0.0, %v1845
    %v1847 = vpop.f32.mrb[0].mxu0
    %v1848 = vpop.f32.mrb[0].mxu0
    %v1849 = vadd.f32 0.0, %v1848
    %v1850 = vpop.f32.mrb[0].mxu0
    %1851 = vmatprep.mubr.bf16.mxu0 %v1633
    %1852 = vmatmul.mubr.bf16.gmra.mrb[0].mxu0 %v1632
    %v1853 = vpop.f32.mrb[0].mxu0
    %v1854 = vadd.f32 0.0, %v1853
    %v1855 = vpop.f32.mrb[0].mxu0
    %v1856 = vpop.f32.mrb[0].mxu0
    %v1857 = vadd.f32 0.0, %v1856
    %v1858 = vpop.f32.mrb[0].mxu0
    %1859 = vmatprep.mubr.bf16.mxu0 %v1640
    %1860 = vmatmul.mubr.bf16.gmra.mrb[0].mxu0 %v1639
    %v1861 = vpop.f32.mrb[0].mxu0
    %v1862 = vadd.f32 0.0, %v1861
    %v1863 = vpop.f32.mrb[0].mxu0
    %v1864 = vpop.f32.mrb[0].mxu0
    %v1865 = vadd.f32 0.0, %v1864
    %v1866 = vpop.f32.mrb[0].mxu0
    %1867 = vmatprep.mubr.bf16.mxu0 %v1647
    %1868 = vmatmul.mubr.bf16.gmra.mrb[0].mxu0 %v1646
    %v1869 = vpop.f32.mrb[0].mxu0
    %v1870 = vadd.f32 0.0, %v1869
    %v1871 = vpop.f32.mrb[0].mxu0
    %v1872 = vpop.f32.mrb[0].mxu0
    %v1873 = vadd.f32 0.0, %v1872
    %v1874 = vpop.f32.mrb[0].mxu0
    %1875 = vmatprep.mubr.bf16.mxu0 %v1654
    %1876 = vmatmul.mubr.bf16.gmra.mrb[0].mxu0 %v1653
    %v1877 = vpop.f32.mrb[0].mxu0
    %v1878 = vadd.f32 0.0, %v1877
    %v1879 = vpop.f32.mrb[0].mxu0
    %v1880 = vpop.f32.mrb[0].mxu0
    %v1881 = vadd.f32 0.0, %v1880
    %v1882 = vpop.f32.mrb[0].mxu0
    %1883 = vmatprep.mubr.bf16.mxu0 %v1661
    %1884 = vmatmul.mubr.bf16.gmra.mrb[0].mxu0 %v1660
    %v1885 = vpop.f32.mrb[0].mxu0
    %v1886 = vadd.f32 0.0, %v1885
    %v1887 = vpop.f32.mrb[0].mxu0
    %v1888 = vpop.f32.mrb[0].mxu0
    %v1889 = vadd.f32 0.0, %v1888
    %v1890 = vpop.f32.mrb[0].mxu0
    %1891 = vmatprep.mubr.bf16.mxu0 %v1668
    %1892 = vmatmul.mubr.bf16.gmra.mrb[0].mxu0 %v1667
    %v1893 = vpop.f32.mrb[0].mxu0
    %v1894 = vadd.f32 0.0, %v1893
    %v1895 = vpop.f32.mrb[0].mxu0
    %v1896 = vpop.f32.mrb[0].mxu0
    %v1897 = vadd.f32 0.0, %v1896
    %v1898 = vpop.f32.mrb[0].mxu0
    %1899 = vmatprep.mubr.bf16.mxu0 %v1675
    %1900 = vmatmul.mubr.bf16.gmra.mrb[0].mxu0 %v1674
    %v1901 = vpop.f32.mrb[0].mxu0
    %v1902 = vadd.f32 0.0, %v1901
    %v1903 = vpop.f32.mrb[0].mxu0
    %v1904 = vpop.f32.mrb[0].mxu0
    %v1905 = vadd.f32 0.0, %v1904
    %v1906 = vpop.f32.mrb[0].mxu0
    %1907 = vmatprep.mubr.bf16.mxu0 %v1682
    %1908 = vmatmul.mubr.bf16.gmra.mrb[0].mxu0 %v1681
    %v1909 = vpop.f32.mrb[0].mxu0
    %v1910 = vadd.f32 0.0, %v1909
    %v1911 = vpop.f32.mrb[0].mxu0
    %v1912 = vpop.f32.mrb[0].mxu0
    %v1913 = vpop.f32.mrb[0].mxu0
    %1914 = vdwg.mxu0
    %1915 = vmatprep.subr.bf16.mxu0 0
    %1916 = vmatpush1.bf16.msra.mxu0 %v1282
    %1917 = vmatprep.subr.bf16.mxu0 0
    %1918 = vmatpush1.bf16.msra.mxu0 %v1283
    %1919 = vmatprep.subr.bf16.mxu0 0
    %1920 = vmatpush1.bf16.msra.mxu0 %v1284
    %1921 = vmatprep.subr.bf16.mxu0 0
    %1922 = vmatpush1.bf16.msra.mxu0 %v1285
    %1923 = vmatprep.subr.bf16.mxu0 0
    %1924 = vmatpush1.bf16.msra.mxu0 %v1286
    %1925 = vmatprep.subr.bf16.mxu0 0
    %1926 = vmatpush1.bf16.msra.mxu0 %v1287
    %1927 = vmatprep.subr.bf16.mxu0 0
    %1928 = vmatpush1.bf16.msra.mxu0 %v1288
    %1929 = vmatprep.subr.bf16.mxu0 0
    %1930 = vmatpush1.bf16.msra.mxu0 %v1289
    %1931 = vmatprep.subr.bf16.mxu0 0
    %1932 = vmatpush1.bf16.msra.mxu0 %v1290
    %1933 = vmatprep.subr.bf16.mxu0 0
    %1934 = vmatpush1.bf16.msra.mxu0 %v1291
    %1935 = vmatprep.subr.bf16.mxu0 0
    %1936 = vmatpush1.bf16.msra.mxu0 %v1292
    %1937 = vmatprep.subr.bf16.mxu0 0
    %1938 = vmatpush1.bf16.msra.mxu0 %v1293
    %1939 = vmatprep.subr.bf16.mxu0 0
    %1940 = vmatpush1.bf16.msra.mxu0 %v1294
    %1941 = vmatprep.subr.bf16.mxu0 0
    %1942 = vmatpush1.bf16.msra.mxu0 %v1295
    %1943 = vmatprep.subr.bf16.mxu0 0
    %1944 = vmatpush1.bf16.msra.mxu0 %v1296
    %1945 = vmatprep.subr.bf16.mxu0 0
    %1946 = vmatpush1.bf16.msra.mxu0 %v1297
    %1947 = vmatprep.mubr.bf16.mxu0 %v1600
    %1948 = vmatmul.mubr.bf16.gmra.mrb[0].mxu0 %v1599
    %v1949 = vpop.f32.mrb[0].mxu0
    %v1950 = vadd.f32 %v1814, %v1949
    %v1951 = vpop.f32.mrb[0].mxu0
    %v1952 = vpop.f32.mrb[0].mxu0
    %v1953 = vadd.f32 %v1817, %v1952
    %v1954 = vpop.f32.mrb[0].mxu0
    %1955 = vmatprep.mubr.bf16.mxu0 %v1607
    %1956 = vmatmul.mubr.bf16.gmra.mrb[0].mxu0 %v1606
    %v1957 = vpop.f32.mrb[0].mxu0
    %v1958 = vadd.f32 %v1822, %v1957
    %v1959 = vpop.f32.mrb[0].mxu0
    %v1960 = vpop.f32.mrb[0].mxu0
    %v1961 = vadd.f32 %v1825, %v1960
    %v1962 = vpop.f32.mrb[0].mxu0
    %1963 = vmatprep.mubr.bf16.mxu0 %v1614
    %1964 = vmatmul.mubr.bf16.gmra.mrb[0].mxu0 %v1613
    %v1965 = vpop.f32.mrb[0].mxu0
    %v1966 = vadd.f32 %v1830, %v1965
    %v1967 = vpop.f32.mrb[0].mxu0
    %v1968 = vpop.f32.mrb[0].mxu0
    %v1969 = vadd.f32 %v1833, %v1968
    %v1970 = vpop.f32.mrb[0].mxu0
    %1971 = vmatprep.mubr.bf16.mxu0 %v1621
    %1972 = vmatmul.mubr.bf16.gmra.mrb[0].mxu0 %v1620
    %v1973 = vpop.f32.mrb[0].mxu0
    %v1974 = vadd.f32 %v1838, %v1973
    %v1975 = vpop.f32.mrb[0].mxu0
    %v1976 = vpop.f32.mrb[0].mxu0
    %v1977 = vadd.f32 %v1841, %v1976
    %v1978 = vpop.f32.mrb[0].mxu0
    %1979 = vmatprep.mubr.bf16.mxu0 %v1628
    %1980 = vmatmul.mubr.bf16.gmra.mrb[0].mxu0 %v1627
    %v1981 = vpop.f32.mrb[0].mxu0
    %v1982 = vadd.f32 %v1846, %v1981
    %v1983 = vpop.f32.mrb[0].mxu0
    %v1984 = vpop.f32.mrb[0].mxu0
    %v1985 = vadd.f32 %v1849, %v1984
    %v1986 = vpop.f32.mrb[0].mxu0
    %1987 = vmatprep.mubr.bf16.mxu0 %v1635
    %1988 = vmatmul.mubr.bf16.gmra.mrb[0].mxu0 %v1634
    %v1989 = vpop.f32.mrb[0].mxu0
    %v1990 = vadd.f32 %v1854, %v1989
    %v1991 = vpop.f32.mrb[0].mxu0
    %v1992 = vpop.f32.mrb[0].mxu0
    %v1993 = vadd.f32 %v1857, %v1992
    %v1994 = vpop.f32.mrb[0].mxu0
    %1995 = vmatprep.mubr.bf16.mxu0 %v1642
    %1996 = vmatmul.mubr.bf16.gmra.mrb[0].mxu0 %v1641
    %v1997 = vpop.f32.mrb[0].mxu0
    %v1998 = vadd.f32 %v1862, %v1997
    %v1999 = vpop.f32.mrb[0].mxu0
    %v2000 = vpop.f32.mrb[0].mxu0
    %v2001 = vadd.f32 %v1865, %v2000
    %v2002 = vpop.f32.mrb[0].mxu0
    %2003 = vmatprep.mubr.bf16.mxu0 %v1649
    %2004 = vmatmul.mubr.bf16.gmra.mrb[0].mxu0 %v1648
    %v2005 = vpop.f32.mrb[0].mxu0
    %v2006 = vadd.f32 %v1870, %v2005
    %v2007 = vpop.f32.mrb[0].mxu0
    %v2008 = vpop.f32.mrb[0].mxu0
    %v2009 = vadd.f32 %v1873, %v2008
    %v2010 = vpop.f32.mrb[0].mxu0
    %2011 = vmatprep.mubr.bf16.mxu0 %v1656
    %2012 = vmatmul.mubr.bf16.gmra.mrb[0].mxu0 %v1655
    %v2013 = vpop.f32.mrb[0].mxu0
    %v2014 = vadd.f32 %v1878, %v2013
    %v2015 = vpop.f32.mrb[0].mxu0
    %v2016 = vpop.f32.mrb[0].mxu0
    %v2017 = vadd.f32 %v1881, %v2016
    %v2018 = vpop.f32.mrb[0].mxu0
    %2019 = vmatprep.mubr.bf16.mxu0 %v1663
    %2020 = vmatmul.mubr.bf16.gmra.mrb[0].mxu0 %v1662
    %v2021 = vpop.f32.mrb[0].mxu0
    %v2022 = vadd.f32 %v1886, %v2021
    %v2023 = vpop.f32.mrb[0].mxu0
    %v2024 = vpop.f32.mrb[0].mxu0
    %v2025 = vadd.f32 %v1889, %v2024
    %v2026 = vpop.f32.mrb[0].mxu0
    %2027 = vmatprep.mubr.bf16.mxu0 %v1670
    %2028 = vmatmul.mubr.bf16.gmra.mrb[0].mxu0 %v1669
    %v2029 = vpop.f32.mrb[0].mxu0
    %v2030 = vadd.f32 %v1894, %v2029
    %v2031 = vpop.f32.mrb[0].mxu0
    %v2032 = vpop.f32.mrb[0].mxu0
    %v2033 = vadd.f32 %v1897, %v2032
    %v2034 = vpop.f32.mrb[0].mxu0
    %2035 = vmatprep.mubr.bf16.mxu0 %v1677
    %2036 = vmatmul.mubr.bf16.gmra.mrb[0].mxu0 %v1676
    %v2037 = vpop.f32.mrb[0].mxu0
    %v2038 = vadd.f32 %v1902, %v2037
    %v2039 = vpop.f32.mrb[0].mxu0
    %v2040 = vpop.f32.mrb[0].mxu0
    %v2041 = vadd.f32 %v1905, %v2040
    %v2042 = vpop.f32.mrb[0].mxu0
    %2043 = vmatprep.mubr.bf16.mxu0 %v1684
    %2044 = vmatmul.mubr.bf16.gmra.mrb[0].mxu0 %v1683
    %v2045 = vpop.f32.mrb[0].mxu0
    %v2046 = vadd.f32 %v1910, %v2045
    %v2047 = vpop.f32.mrb[0].mxu0
    %v2048 = vpop.f32.mrb[0].mxu0
    %v2049 = vpop.f32.mrb[0].mxu0
    %2050 = vdwg.mxu0
    %2051 = vmatprep.subr.bf16.mxu0 0
    %2052 = vmatpush1.bf16.msra.mxu0 %v1298
    %2053 = vmatprep.subr.bf16.mxu0 0
    %2054 = vmatpush1.bf16.msra.mxu0 %v1299
    %2055 = vmatprep.subr.bf16.mxu0 0
    %2056 = vmatpush1.bf16.msra.mxu0 %v1300
    %2057 = vmatprep.subr.bf16.mxu0 0
    %2058 = vmatpush1.bf16.msra.mxu0 %v1301
    %2059 = vmatprep.subr.bf16.mxu0 0
    %2060 = vmatpush1.bf16.msra.mxu0 %v1302
    %2061 = vmatprep.subr.bf16.mxu0 0
    %2062 = vmatpush1.bf16.msra.mxu0 %v1303
    %2063 = vmatprep.subr.bf16.mxu0 0
    %2064 = vmatpush1.bf16.msra.mxu0 %v1304
    %2065 = vmatprep.subr.bf16.mxu0 0
    %2066 = vmatpush1.bf16.msra.mxu0 %v1305
    %2067 = vmatprep.subr.bf16.mxu0 0
    %2068 = vmatpush1.bf16.msra.mxu0 %v1306
    %2069 = vmatprep.subr.bf16.mxu0 0
    %2070 = vmatpush1.bf16.msra.mxu0 %v1307
    %2071 = vmatprep.subr.bf16.mxu0 0
    %2072 = vmatpush1.bf16.msra.mxu0 %v1308
    %2073 = vmatprep.subr.bf16.mxu0 0
    %2074 = vmatpush1.bf16.msra.mxu0 %v1309
    %2075 = vmatprep.subr.bf16.mxu0 0
    %2076 = vmatpush1.bf16.msra.mxu0 %v1310
    %2077 = vmatprep.subr.bf16.mxu0 0
    %2078 = vmatpush1.bf16.msra.mxu0 %v1311
    %2079 = vmatprep.subr.bf16.mxu0 0
    %2080 = vmatpush1.bf16.msra.mxu0 %v1312
    %2081 = vmatprep.subr.bf16.mxu0 0
    %2082 = vmatpush1.bf16.msra.mxu0 %v1313
    %2083 = vmatprep.mubr.bf16.mxu0 %v1602
    %2084 = vmatmul.mubr.bf16.gmra.mrb[0].mxu0 %v1601
    %v2085 = vpop.f32.mrb[0].mxu0
    %v2086 = vadd.f32 %v1950, %v2085
    %v2087 = vpop.f32.mrb[0].mxu0
    %v2088 = vpop.f32.mrb[0].mxu0
    %v2089 = vadd.f32 %v1953, %v2088
    %v2090 = vpop.f32.mrb[0].mxu0
    %2091 = vmatprep.mubr.bf16.mxu0 %v1609
    %2092 = vmatmul.mubr.bf16.gmra.mrb[0].mxu0 %v1608
    %v2093 = vpop.f32.mrb[0].mxu0
    %v2094 = vadd.f32 %v1958, %v2093
    %v2095 = vpop.f32.mrb[0].mxu0
    %v2096 = vpop.f32.mrb[0].mxu0
    %v2097 = vadd.f32 %v1961, %v2096
    %v2098 = vpop.f32.mrb[0].mxu0
    %2099 = vmatprep.mubr.bf16.mxu0 %v1616
    %2100 = vmatmul.mubr.bf16.gmra.mrb[0].mxu0 %v1615
    %v2101 = vpop.f32.mrb[0].mxu0
    %v2102 = vadd.f32 %v1966, %v2101
    %v2103 = vpop.f32.mrb[0].mxu0
    %v2104 = vpop.f32.mrb[0].mxu0
    %v2105 = vadd.f32 %v1969, %v2104
    %v2106 = vpop.f32.mrb[0].mxu0
    %2107 = vmatprep.mubr.bf16.mxu0 %v1623
    %2108 = vmatmul.mubr.bf16.gmra.mrb[0].mxu0 %v1622
    %v2109 = vpop.f32.mrb[0].mxu0
    %v2110 = vadd.f32 %v1974, %v2109
    %v2111 = vpop.f32.mrb[0].mxu0
    %v2112 = vpop.f32.mrb[0].mxu0
    %v2113 = vadd.f32 %v1977, %v2112
    %v2114 = vpop.f32.mrb[0].mxu0
    %2115 = vmatprep.mubr.bf16.mxu0 %v1630
    %2116 = vmatmul.mubr.bf16.gmra.mrb[0].mxu0 %v1629
    %v2117 = vpop.f32.mrb[0].mxu0
    %v2118 = vadd.f32 %v1982, %v2117
    %v2119 = vpop.f32.mrb[0].mxu0
    %v2120 = vpop.f32.mrb[0].mxu0
    %v2121 = vadd.f32 %v1985, %v2120
    %v2122 = vpop.f32.mrb[0].mxu0
    %2123 = vmatprep.mubr.bf16.mxu0 %v1637
    %2124 = vmatmul.mubr.bf16.gmra.mrb[0].mxu0 %v1636
    %v2125 = vpop.f32.mrb[0].mxu0
    %v2126 = vadd.f32 %v1990, %v2125
    %v2127 = vpop.f32.mrb[0].mxu0
    %v2128 = vpop.f32.mrb[0].mxu0
    %v2129 = vadd.f32 %v1993, %v2128
    %v2130 = vpop.f32.mrb[0].mxu0
    %2131 = vmatprep.mubr.bf16.mxu0 %v1644
    %2132 = vmatmul.mubr.bf16.gmra.mrb[0].mxu0 %v1643
    %v2133 = vpop.f32.mrb[0].mxu0
    %v2134 = vadd.f32 %v1998, %v2133
    %v2135 = vpop.f32.mrb[0].mxu0
    %v2136 = vpop.f32.mrb[0].mxu0
    %v2137 = vadd.f32 %v2001, %v2136
    %v2138 = vpop.f32.mrb[0].mxu0
    %2139 = vmatprep.mubr.bf16.mxu0 %v1651
    %2140 = vmatmul.mubr.bf16.gmra.mrb[0].mxu0 %v1650
    %v2141 = vpop.f32.mrb[0].mxu0
    %v2142 = vadd.f32 %v2006, %v2141
    %v2143 = vpop.f32.mrb[0].mxu0
    %v2144 = vpop.f32.mrb[0].mxu0
    %v2145 = vadd.f32 %v2009, %v2144
    %v2146 = vpop.f32.mrb[0].mxu0
    %2147 = vmatprep.mubr.bf16.mxu0 %v1658
    %2148 = vmatmul.mubr.bf16.gmra.mrb[0].mxu0 %v1657
    %v2149 = vpop.f32.mrb[0].mxu0
    %v2150 = vadd.f32 %v2014, %v2149
    %v2151 = vpop.f32.mrb[0].mxu0
    %v2152 = vpop.f32.mrb[0].mxu0
    %v2153 = vadd.f32 %v2017, %v2152
    %v2154 = vpop.f32.mrb[0].mxu0
    %2155 = vmatprep.mubr.bf16.mxu0 %v1665
    %2156 = vmatmul.mubr.bf16.gmra.mrb[0].mxu0 %v1664
    %v2157 = vpop.f32.mrb[0].mxu0
    %v2158 = vadd.f32 %v2022, %v2157
    %v2159 = vpop.f32.mrb[0].mxu0
    %v2160 = vpop.f32.mrb[0].mxu0
    %v2161 = vadd.f32 %v2025, %v2160
    %v2162 = vpop.f32.mrb[0].mxu0
    %2163 = vmatprep.mubr.bf16.mxu0 %v1672
    %2164 = vmatmul.mubr.bf16.gmra.mrb[0].mxu0 %v1671
    %v2165 = vpop.f32.mrb[0].mxu0
    %v2166 = vadd.f32 %v2030, %v2165
    %v2167 = vpop.f32.mrb[0].mxu0
    %v2168 = vpop.f32.mrb[0].mxu0
    %v2169 = vadd.f32 %v2033, %v2168
    %v2170 = vpop.f32.mrb[0].mxu0
    %2171 = vmatprep.mubr.bf16.mxu0 %v1679
    %2172 = vmatmul.mubr.bf16.gmra.mrb[0].mxu0 %v1678
    %v2173 = vpop.f32.mrb[0].mxu0
    %v2174 = vadd.f32 %v2038, %v2173
    %v2175 = vpop.f32.mrb[0].mxu0
    %v2176 = vpop.f32.mrb[0].mxu0
    %v2177 = vadd.f32 %v2041, %v2176
    %v2178 = vpop.f32.mrb[0].mxu0
    %2179 = vmatprep.mubr.bf16.mxu0 %v1686
    %2180 = vmatmul.mubr.bf16.gmra.mrb[0].mxu0 %v1685
    %v2181 = vpop.f32.mrb[0].mxu0
    %v2182 = vadd.f32 %v2046, %v2181
    %v2183 = vpop.f32.mrb[0].mxu0
    %v2184 = vpop.f32.mrb[0].mxu0
    %v2185 = vpop.f32.mrb[0].mxu0
    %2186 = vdwg.mxu0
    %2187 = vmatprep.subr.bf16.mxu0 0
    %2188 = vmatpush1.bf16.msra.mxu0 %v1314
    %2189 = vmatprep.subr.bf16.mxu0 0
    %2190 = vmatpush1.bf16.msra.mxu0 %v1315
    %2191 = vmatprep.subr.bf16.mxu0 0
    %2192 = vmatpush1.bf16.msra.mxu0 %v1316
    %2193 = vmatprep.subr.bf16.mxu0 0
    %2194 = vmatpush1.bf16.msra.mxu0 %v1317
    %2195 = vmatprep.subr.bf16.mxu0 0
    %2196 = vmatpush1.bf16.msra.mxu0 %v1318
    %2197 = vmatprep.subr.bf16.mxu0 0
    %2198 = vmatpush1.bf16.msra.mxu0 %v1319
    %2199 = vmatprep.subr.bf16.mxu0 0
    %2200 = vmatpush1.bf16.msra.mxu0 %v1320
    %2201 = vmatprep.subr.bf16.mxu0 0
    %2202 = vmatpush1.bf16.msra.mxu0 %v1321
    %2203 = vmatprep.subr.bf16.mxu0 0
    %2204 = vmatpush1.bf16.msra.mxu0 0
    %2205 = vmatprep.subr.bf16.mxu0 0
    %2206 = vmatpush1.bf16.msra.mxu0 0
    %2207 = vmatprep.subr.bf16.mxu0 0
    %2208 = vmatpush1.bf16.msra.mxu0 0
    %2209 = vmatprep.subr.bf16.mxu0 0
    %2210 = vmatpush1.bf16.msra.mxu0 0
    %2211 = vmatprep.subr.bf16.mxu0 0
    %2212 = vmatpush1.bf16.msra.mxu0 0
    %2213 = vmatprep.subr.bf16.mxu0 0
    %2214 = vmatpush1.bf16.msra.mxu0 0
    %2215 = vmatprep.subr.bf16.mxu0 0
    %2216 = vmatpush1.bf16.msra.mxu0 0
    %2217 = vmatprep.subr.bf16.mxu0 0
    %2218 = vmatpush1.bf16.msra.mxu0 0
    %2219 = vmatprep.mubr.bf16.mxu0 0
    %2220 = vmatmul.mubr.bf16.gmra.mrb[0].mxu0 %v1603
    %v2221 = vpop.f32.mrb[0].mxu0
    %v2222 = vadd.f32 %v2086, %v2221
    %v2223 = vpop.f32.mrb[0].mxu0
    %v2224 = vpop.f32.mrb[0].mxu0
    %v2225 = vadd.f32 %v2089, %v2224
    %v2226 = vpop.f32.mrb[0].mxu0
    %2227 = vmatprep.mubr.bf16.mxu0 0
    %2228 = vmatmul.mubr.bf16.gmra.mrb[0].mxu0 %v1610
    %v2229 = vpop.f32.mrb[0].mxu0
    %v2230 = vadd.f32 %v2094, %v2229
    %v2231 = vpop.f32.mrb[0].mxu0
    %v2232 = vpop.f32.mrb[0].mxu0
    %v2233 = vadd.f32 %v2097, %v2232
    %v2234 = vpop.f32.mrb[0].mxu0
    %2235 = vmatprep.mubr.bf16.mxu0 0
    %2236 = vmatmul.mubr.bf16.gmra.mrb[0].mxu0 %v1617
    %v2237 = vpop.f32.mrb[0].mxu0
    %v2238 = vadd.f32 %v2102, %v2237
    %v2239 = vpop.f32.mrb[0].mxu0
    %v2240 = vpop.f32.mrb[0].mxu0
    %v2241 = vadd.f32 %v2105, %v2240
    %v2242 = vpop.f32.mrb[0].mxu0
    %2243 = vmatprep.mubr.bf16.mxu0 0
    %2244 = vmatmul.mubr.bf16.gmra.mrb[0].mxu0 %v1624
    %v2245 = vpop.f32.mrb[0].mxu0
    %v2246 = vadd.f32 %v2110, %v2245
    %v2247 = vpop.f32.mrb[0].mxu0
    %v2248 = vpop.f32.mrb[0].mxu0
    %v2249 = vadd.f32 %v2113, %v2248
    %v2250 = vpop.f32.mrb[0].mxu0
    %2251 = vmatprep.mubr.bf16.mxu0 0
    %2252 = vmatmul.mubr.bf16.gmra.mrb[0].mxu0 %v1631
    %v2253 = vpop.f32.mrb[0].mxu0
    %v2254 = vadd.f32 %v2118, %v2253
    %v2255 = vpop.f32.mrb[0].mxu0
    %v2256 = vpop.f32.mrb[0].mxu0
    %v2257 = vadd.f32 %v2121, %v2256
    %v2258 = vpop.f32.mrb[0].mxu0
    %2259 = vmatprep.mubr.bf16.mxu0 0
    %2260 = vmatmul.mubr.bf16.gmra.mrb[0].mxu0 %v1638
    %v2261 = vpop.f32.mrb[0].mxu0
    %v2262 = vadd.f32 %v2126, %v2261
    %v2263 = vpop.f32.mrb[0].mxu0
    %v2264 = vpop.f32.mrb[0].mxu0
    %v2265 = vadd.f32 %v2129, %v2264
    %v2266 = vpop.f32.mrb[0].mxu0
    %2267 = vmatprep.mubr.bf16.mxu0 0
    %2268 = vmatmul.mubr.bf16.gmra.mrb[0].mxu0 %v1645
    %v2269 = vpop.f32.mrb[0].mxu0
    %v2270 = vadd.f32 %v2134, %v2269
    %v2271 = vpop.f32.mrb[0].mxu0
    %v2272 = vpop.f32.mrb[0].mxu0
    %v2273 = vadd.f32 %v2137, %v2272
    %v2274 = vpop.f32.mrb[0].mxu0
    %2275 = vmatprep.mubr.bf16.mxu0 0
    %2276 = vmatmul.mubr.bf16.gmra.mrb[0].mxu0 %v1652
    %v2277 = vpop.f32.mrb[0].mxu0
    %v2278 = vadd.f32 %v2142, %v2277
    %v2279 = vpop.f32.mrb[0].mxu0
    %v2280 = vpop.f32.mrb[0].mxu0
    %v2281 = vadd.f32 %v2145, %v2280
    %v2282 = vpop.f32.mrb[0].mxu0
    %2283 = vmatprep.mubr.bf16.mxu0 0
    %2284 = vmatmul.mubr.bf16.gmra.mrb[0].mxu0 %v1659
    %v2285 = vpop.f32.mrb[0].mxu0
    %v2286 = vadd.f32 %v2150, %v2285
    %v2287 = vpop.f32.mrb[0].mxu0
    %v2288 = vpop.f32.mrb[0].mxu0
    %v2289 = vadd.f32 %v2153, %v2288
    %v2290 = vpop.f32.mrb[0].mxu0
    %2291 = vmatprep.mubr.bf16.mxu0 0
    %2292 = vmatmul.mubr.bf16.gmra.mrb[0].mxu0 %v1666
    %v2293 = vpop.f32.mrb[0].mxu0
    %v2294 = vadd.f32 %v2158, %v2293
    %v2295 = vpop.f32.mrb[0].mxu0
    %v2296 = vpop.f32.mrb[0].mxu0
    %v2297 = vadd.f32 %v2161, %v2296
    %v2298 = vpop.f32.mrb[0].mxu0
    %2299 = vmatprep.mubr.bf16.mxu0 0
    %2300 = vmatmul.mubr.bf16.gmra.mrb[0].mxu0 %v1673
    %v2301 = vpop.f32.mrb[0].mxu0
    %v2302 = vadd.f32 %v2166, %v2301
    %v2303 = vpop.f32.mrb[0].mxu0
    %v2304 = vpop.f32.mrb[0].mxu0
    %v2305 = vadd.f32 %v2169, %v2304
    %v2306 = vpop.f32.mrb[0].mxu0
    %2307 = vmatprep.mubr.bf16.mxu0 0
    %2308 = vmatmul.mubr.bf16.gmra.mrb[0].mxu0 %v1680
    %v2309 = vpop.f32.mrb[0].mxu0
    %v2310 = vadd.f32 %v2174, %v2309
    %v2311 = vpop.f32.mrb[0].mxu0
    %v2312 = vpop.f32.mrb[0].mxu0
    %v2313 = vadd.f32 %v2177, %v2312
    %v2314 = vpop.f32.mrb[0].mxu0
    %2315 = vmatprep.mubr.bf16.mxu0 0
    %2316 = vmatmul.mubr.bf16.gmra.mrb[0].mxu0 %v1687
    %v2317 = vpop.f32.mrb[0].mxu0
    %v2318 = vadd.f32 %v2182, %v2317
    %v2319 = vpop.f32.mrb[0].mxu0
    %v2320 = vpop.f32.mrb[0].mxu0
    %v2321 = vpop.f32.mrb[0].mxu0
    %2322 = vdwg.mxu0
    %2323 = vst [vmem:[#allocation2] sm:$0xff] %v2222
    %2324 = vst [vmem:[#allocation2 + $0x8] sm:$0xff] %v2225
    %2325 = vst [vmem:[#allocation2 + $0x10] sm:$0xff] %v2230
    %2326 = vst [vmem:[#allocation2 + $0x18] sm:$0xff] %v2233
    %2327 = vst [vmem:[#allocation2 + $0x20] sm:$0xff] %v2238
    %2328 = vst [vmem:[#allocation2 + $0x28] sm:$0xff] %v2241
    %2329 = vst [vmem:[#allocation2 + $0x30] sm:$0xff] %v2246
    %2330 = vst [vmem:[#allocation2 + $0x38] sm:$0xff] %v2249
    %2331 = vst [vmem:[#allocation2 + $0x40] sm:$0xff] %v2254
    %2332 = vst [vmem:[#allocation2 + $0x48] sm:$0xff] %v2257
    %2333 = vst [vmem:[#allocation2 + $0x50] sm:$0xff] %v2262
    %2334 = vst [vmem:[#allocation2 + $0x58] sm:$0xff] %v2265
    %2335 = vst [vmem:[#allocation2 + $0x60] sm:$0xff] %v2270
    %2336 = vst [vmem:[#allocation2 + $0x68] sm:$0xff] %v2273
    %2337 = vst [vmem:[#allocation2 + $0x70] sm:$0xff] %v2278
    %2338 = vst [vmem:[#allocation2 + $0x78] sm:$0xff] %v2281
    %2339 = vst [vmem:[#allocation2 + $0x80] sm:$0xff] %v2286
    %2340 = vst [vmem:[#allocation2 + $0x88] sm:$0xff] %v2289
    %2341 = vst [vmem:[#allocation2 + $0x90] sm:$0xff] %v2294
    %2342 = vst [vmem:[#allocation2 + $0x98] sm:$0xff] %v2297
    %2343 = vst [vmem:[#allocation2 + $0xa0] sm:$0xff] %v2302
    %2344 = vst [vmem:[#allocation2 + $0xa8] sm:$0xff] %v2305
    %2345 = vst [vmem:[#allocation2 + $0xb0] sm:$0xff] %v2310
    %2346 = vst [vmem:[#allocation2 + $0xb8] sm:$0xff] %v2313
    %2347 = vst [vmem:[#allocation2 + $0xc0] sm:$0xf] %v2318
    %v2348 = vld [vmem:[%s5] sm:$0x1]
    %v2350 = vlaneseq
    %v2351 = vshrl.u32 %v2350, 7
    %v2352 = vsub.s32 0, %v2351
    %v2353 = vrot.slane %v2348, %v2352
    %v2355 = vld [vmem:[#allocation2] sm:$0xff]
    %v2356 = vld [vmem:[#allocation2 + $0x8] sm:$0xff]
    %v2357 = vld [vmem:[#allocation2 + $0x10] sm:$0xff]
    %v2358 = vld [vmem:[#allocation2 + $0x18] sm:$0xff]
    %v2359 = vld [vmem:[#allocation2 + $0x20] sm:$0xff]
    %v2360 = vld [vmem:[#allocation2 + $0x28] sm:$0xff]
    %v2361 = vld [vmem:[#allocation2 + $0x30] sm:$0xff]
    %v2362 = vld [vmem:[#allocation2 + $0x38] sm:$0xff]
    %v2363 = vld [vmem:[#allocation2 + $0x40] sm:$0xff]
    %v2364 = vld [vmem:[#allocation2 + $0x48] sm:$0xff]
    %v2365 = vld [vmem:[#allocation2 + $0x50] sm:$0xff]
    %v2366 = vld [vmem:[#allocation2 + $0x58] sm:$0xff]
    %v2367 = vld [vmem:[#allocation2 + $0x60] sm:$0xff]
    %v2368 = vld [vmem:[#allocation2 + $0x68] sm:$0xff]
    %v2369 = vld [vmem:[#allocation2 + $0x70] sm:$0xff]
    %v2370 = vld [vmem:[#allocation2 + $0x78] sm:$0xff]
    %v2371 = vld [vmem:[#allocation2 + $0x80] sm:$0xff]
    %v2372 = vpack.c.bf16 %v2356, %v2355
    %v2373 = vpack.c.bf16 %v2358, %v2357
    %v2374 = vpack.c.bf16 %v2360, %v2359
    %v2375 = vpack.c.bf16 %v2362, %v2361
    %v2376 = vpack.c.bf16 %v2364, %v2363
    %v2377 = vpack.c.bf16 %v2366, %v2365
    %v2378 = vpack.c.bf16 %v2368, %v2367
    %v2379 = vpack.c.bf16 %v2370, %v2369
    %v2380 = vpack.c.bf16 %v2371, %v2371
    %v2381 = vld [vmem:[%s4] sm:$0xf]
    %v2382 = vld [vmem:[%s4 + $0x4] sm:$0xf]
    %v2383 = vld [vmem:[%s4 + $0x8] sm:$0xf]
    %v2384 = vld [vmem:[%s4 + $0xc] sm:$0xf]
    %v2385 = vld [vmem:[%s4 + $0x10] sm:$0xf]
    %v2386 = vld [vmem:[%s4 + $0x14] sm:$0xf]
    %v2387 = vld [vmem:[%s4 + $0x18] sm:$0xf]
    %v2388 = vld [vmem:[%s4 + $0x1c] sm:$0xf]
    %v2389 = vld [vmem:[%s4 + $0x20] sm:$0xf]
    %v2390 = vld [vmem:[%s4 + $0x24] sm:$0xf]
    %v2391 = vld [vmem:[%s4 + $0x28] sm:$0xf]
    %v2392 = vld [vmem:[%s4 + $0x2c] sm:$0xf]
    %v2393 = vld [vmem:[%s4 + $0x30] sm:$0xf]
    %v2394 = vld [vmem:[%s4 + $0x34] sm:$0xf]
    %v2395 = vld [vmem:[%s4 + $0x38] sm:$0xf]
    %v2396 = vld [vmem:[%s4 + $0x3c] sm:$0xf]
    %v2413 = vunpack.c.l.b16 %v2381
    %v2414 = vunpack.c.l.b16 %v2382
    %v2415 = vunpack.c.l.b16 %v2383
    %v2416 = vunpack.c.l.b16 %v2384
    %v2417 = vunpack.c.l.b16 %v2385
    %v2418 = vunpack.c.l.b16 %v2386
    %v2419 = vunpack.c.l.b16 %v2387
    %v2420 = vunpack.c.l.b16 %v2388
    %v2421 = vunpack.c.l.b16 %v2389
    %v2422 = vunpack.c.l.b16 %v2390
    %v2423 = vunpack.c.l.b16 %v2391
    %v2424 = vunpack.c.l.b16 %v2392
    %v2425 = vunpack.c.l.b16 %v2393
    %v2426 = vunpack.c.l.b16 %v2394
    %v2427 = vunpack.c.l.b16 %v2395
    %v2428 = vunpack.c.l.b16 %v2396
    %v2429 = vpack.c.b16 %v2414, %v2413
    %v2430 = vpack.c.b16 %v2416, %v2415
    %v2431 = vpack.c.b16 %v2418, %v2417
    %v2432 = vpack.c.b16 %v2420, %v2419
    %v2433 = vpack.c.b16 %v2422, %v2421
    %v2434 = vpack.c.b16 %v2424, %v2423
    %v2435 = vpack.c.b16 %v2426, %v2425
    %v2436 = vpack.c.b16 %v2428, %v2427
    %2445 = vmatprep.subr.bf16.mxu0 0
    %2446 = vmatpush1.bf16.msra.mxu0 %v2429
    %2447 = vmatprep.subr.bf16.mxu0 0
    %2448 = vmatpush1.bf16.msra.mxu0 %v2430
    %2449 = vmatprep.subr.bf16.mxu0 0
    %2450 = vmatpush1.bf16.msra.mxu0 %v2431
    %2451 = vmatprep.subr.bf16.mxu0 0
    %2452 = vmatpush1.bf16.msra.mxu0 %v2432
    %2453 = vmatprep.subr.bf16.mxu0 0
    %2454 = vmatpush1.bf16.msra.mxu0 %v2433
    %2455 = vmatprep.subr.bf16.mxu0 0
    %2456 = vmatpush1.bf16.msra.mxu0 %v2434
    %2457 = vmatprep.subr.bf16.mxu0 0
    %2458 = vmatpush1.bf16.msra.mxu0 %v2435
    %2459 = vmatprep.subr.bf16.mxu0 0
    %2460 = vmatpush1.bf16.msra.mxu0 %v2436
    %2461 = vmatprep.subr.bf16.mxu0 0
    %2462 = vmatpush1.bf16.msra.mxu0 0
    %2463 = vmatprep.subr.bf16.mxu0 0
    %2464 = vmatpush1.bf16.msra.mxu0 0
    %2465 = vmatprep.subr.bf16.mxu0 0
    %2466 = vmatpush1.bf16.msra.mxu0 0
    %2467 = vmatprep.subr.bf16.mxu0 0
    %2468 = vmatpush1.bf16.msra.mxu0 0
    %2469 = vmatprep.subr.bf16.mxu0 0
    %2470 = vmatpush1.bf16.msra.mxu0 0
    %2471 = vmatprep.subr.bf16.mxu0 0
    %2472 = vmatpush1.bf16.msra.mxu0 0
    %2473 = vmatprep.subr.bf16.mxu0 0
    %2474 = vmatpush1.bf16.msra.mxu0 0
    %2475 = vmatprep.subr.bf16.mxu0 0
    %2476 = vmatpush1.bf16.msra.mxu0 0
    %2477 = vmatprep.mubr.bf16.mxu0 0
    %2478 = vmatmul.mubr.bf16.gmra.mrb[0].mxu0 %v2372
    %v2479 = vpop.f32.mrb[0].mxu0
    %v2480 = vadd.f32 0.0, %v2479
    %v2481 = vpop.f32.mrb[0].mxu0
    %v2482 = vpop.f32.mrb[0].mxu0
    %v2483 = vadd.f32 0.0, %v2482
    %v2484 = vpop.f32.mrb[0].mxu0
    %2485 = vmatprep.mubr.bf16.mxu0 0
    %2486 = vmatmul.mubr.bf16.gmra.mrb[0].mxu0 %v2373
    %v2487 = vpop.f32.mrb[0].mxu0
    %v2488 = vadd.f32 0.0, %v2487
    %v2489 = vpop.f32.mrb[0].mxu0
    %v2490 = vpop.f32.mrb[0].mxu0
    %v2491 = vadd.f32 0.0, %v2490
    %v2492 = vpop.f32.mrb[0].mxu0
    %2493 = vmatprep.mubr.bf16.mxu0 0
    %2494 = vmatmul.mubr.bf16.gmra.mrb[0].mxu0 %v2374
    %v2495 = vpop.f32.mrb[0].mxu0
    %v2496 = vadd.f32 0.0, %v2495
    %v2497 = vpop.f32.mrb[0].mxu0
    %v2498 = vpop.f32.mrb[0].mxu0
    %v2499 = vadd.f32 0.0, %v2498
    %v2500 = vpop.f32.mrb[0].mxu0
    %2501 = vmatprep.mubr.bf16.mxu0 0
    %2502 = vmatmul.mubr.bf16.gmra.mrb[0].mxu0 %v2375
    %v2503 = vpop.f32.mrb[0].mxu0
    %v2504 = vadd.f32 0.0, %v2503
    %v2505 = vpop.f32.mrb[0].mxu0
    %v2506 = vpop.f32.mrb[0].mxu0
    %v2507 = vadd.f32 0.0, %v2506
    %v2508 = vpop.f32.mrb[0].mxu0
    %2509 = vmatprep.mubr.bf16.mxu0 0
    %2510 = vmatmul.mubr.bf16.gmra.mrb[0].mxu0 %v2376
    %v2511 = vpop.f32.mrb[0].mxu0
    %v2512 = vadd.f32 0.0, %v2511
    %v2513 = vpop.f32.mrb[0].mxu0
    %v2514 = vpop.f32.mrb[0].mxu0
    %v2515 = vadd.f32 0.0, %v2514
    %v2516 = vpop.f32.mrb[0].mxu0
    %2517 = vmatprep.mubr.bf16.mxu0 0
    %2518 = vmatmul.mubr.bf16.gmra.mrb[0].mxu0 %v2377
    %v2519 = vpop.f32.mrb[0].mxu0
    %v2520 = vadd.f32 0.0, %v2519
    %v2521 = vpop.f32.mrb[0].mxu0
    %v2522 = vpop.f32.mrb[0].mxu0
    %v2523 = vadd.f32 0.0, %v2522
    %v2524 = vpop.f32.mrb[0].mxu0
    %2525 = vmatprep.mubr.bf16.mxu0 0
    %2526 = vmatmul.mubr.bf16.gmra.mrb[0].mxu0 %v2378
    %v2527 = vpop.f32.mrb[0].mxu0
    %v2528 = vadd.f32 0.0, %v2527
    %v2529 = vpop.f32.mrb[0].mxu0
    %v2530 = vpop.f32.mrb[0].mxu0
    %v2531 = vadd.f32 0.0, %v2530
    %v2532 = vpop.f32.mrb[0].mxu0
    %2533 = vmatprep.mubr.bf16.mxu0 0
    %2534 = vmatmul.mubr.bf16.gmra.mrb[0].mxu0 %v2379
    %v2535 = vpop.f32.mrb[0].mxu0
    %v2536 = vadd.f32 0.0, %v2535
    %v2537 = vpop.f32.mrb[0].mxu0
    %v2538 = vpop.f32.mrb[0].mxu0
    %v2539 = vadd.f32 0.0, %v2538
    %v2540 = vpop.f32.mrb[0].mxu0
    %2541 = vmatprep.mubr.bf16.mxu0 0
    %2542 = vmatmul.mubr.bf16.gmra.mrb[0].mxu0 %v2380
    %v2543 = vpop.f32.mrb[0].mxu0
    %v2544 = vadd.f32 0.0, %v2543
    %v2545 = vpop.f32.mrb[0].mxu0
    %v2546 = vpop.f32.mrb[0].mxu0
    %v2547 = vpop.f32.mrb[0].mxu0
    %2548 = vdwg.mxu0
    %v2549 = vadd.f32 %v2353, %v2480
    %v2550 = vadd.f32 %v2353, %v2483
    %v2551 = vadd.f32 %v2353, %v2488
    %v2552 = vadd.f32 %v2353, %v2491
    %v2553 = vadd.f32 %v2353, %v2496
    %v2554 = vadd.f32 %v2353, %v2499
    %v2555 = vadd.f32 %v2353, %v2504
    %v2556 = vadd.f32 %v2353, %v2507
    %v2557 = vadd.f32 %v2353, %v2512
    %v2558 = vadd.f32 %v2353, %v2515
    %v2559 = vadd.f32 %v2353, %v2520
    %v2560 = vadd.f32 %v2353, %v2523
    %v2561 = vadd.f32 %v2353, %v2528
    %v2562 = vadd.f32 %v2353, %v2531
    %v2563 = vadd.f32 %v2353, %v2536
    %v2564 = vadd.f32 %v2353, %v2539
    %v2565 = vadd.f32 %v2353, %v2544
    %v2566 = vld [vmem:[#allocation2 + $0x1] sm:$0xff]
    %v2567 = vld [vmem:[#allocation2 + $0x9] sm:$0xff]
    %v2568 = vld [vmem:[#allocation2 + $0x11] sm:$0xff]
    %v2569 = vld [vmem:[#allocation2 + $0x19] sm:$0xff]
    %v2570 = vld [vmem:[#allocation2 + $0x21] sm:$0xff]
    %v2571 = vld [vmem:[#allocation2 + $0x29] sm:$0xff]
    %v2572 = vld [vmem:[#allocation2 + $0x31] sm:$0xff]
    %v2573 = vld [vmem:[#allocation2 + $0x39] sm:$0xff]
    %v2574 = vld [vmem:[#allocation2 + $0x41] sm:$0xff]
    %v2575 = vld [vmem:[#allocation2 + $0x49] sm:$0xff]
    %v2576 = vld [vmem:[#allocation2 + $0x51] sm:$0xff]
    %v2577 = vld [vmem:[#allocation2 + $0x59] sm:$0xff]
    %v2578 = vld [vmem:[#allocation2 + $0x61] sm:$0xff]
    %v2579 = vld [vmem:[#allocation2 + $0x69] sm:$0xff]
    %v2580 = vld [vmem:[#allocation2 + $0x71] sm:$0xff]
    %v2581 = vld [vmem:[#allocation2 + $0x79] sm:$0xff]
    %v2582 = vld [vmem:[#allocation2 + $0x81] sm:$0xff]
    %v2583 = vpack.c.bf16 %v2567, %v2566
    %v2584 = vpack.c.bf16 %v2569, %v2568
    %v2585 = vpack.c.bf16 %v2571, %v2570
    %v2586 = vpack.c.bf16 %v2573, %v2572
    %v2587 = vpack.c.bf16 %v2575, %v2574
    %v2588 = vpack.c.bf16 %v2577, %v2576
    %v2589 = vpack.c.bf16 %v2579, %v2578
    %v2590 = vpack.c.bf16 %v2581, %v2580
    %v2591 = vpack.c.bf16 %v2582, %v2582
    %s2592 = scalar_lea.vmem %s4, 64
    %v2593 = vld [vmem:[%s2592] sm:$0xf]
    %v2594 = vld [vmem:[%s2592 + $0x4] sm:$0xf]
    %v2595 = vld [vmem:[%s2592 + $0x8] sm:$0xf]
    %v2596 = vld [vmem:[%s2592 + $0xc] sm:$0xf]
    %v2597 = vld [vmem:[%s2592 + $0x10] sm:$0xf]
    %v2598 = vld [vmem:[%s2592 + $0x14] sm:$0xf]
    %v2599 = vld [vmem:[%s2592 + $0x18] sm:$0xf]
    %v2600 = vld [vmem:[%s2592 + $0x1c] sm:$0xf]
    %v2601 = vld [vmem:[%s2592 + $0x20] sm:$0xf]
    %v2602 = vld [vmem:[%s2592 + $0x24] sm:$0xf]
    %v2603 = vld [vmem:[%s2592 + $0x28] sm:$0xf]
    %v2604 = vld [vmem:[%s2592 + $0x2c] sm:$0xf]
    %v2605 = vld [vmem:[%s2592 + $0x30] sm:$0xf]
    %v2606 = vld [vmem:[%s2592 + $0x34] sm:$0xf]
    %v2607 = vld [vmem:[%s2592 + $0x38] sm:$0xf]
    %v2608 = vld [vmem:[%s2592 + $0x3c] sm:$0xf]
    %v2625 = vunpack.c.l.b16 %v2593
    %v2626 = vunpack.c.l.b16 %v2594
    %v2627 = vunpack.c.l.b16 %v2595
    %v2628 = vunpack.c.l.b16 %v2596
    %v2629 = vunpack.c.l.b16 %v2597
    %v2630 = vunpack.c.l.b16 %v2598
    %v2631 = vunpack.c.l.b16 %v2599
    %v2632 = vunpack.c.l.b16 %v2600
    %v2633 = vunpack.c.l.b16 %v2601
    %v2634 = vunpack.c.l.b16 %v2602
    %v2635 = vunpack.c.l.b16 %v2603
    %v2636 = vunpack.c.l.b16 %v2604
    %v2637 = vunpack.c.l.b16 %v2605
    %v2638 = vunpack.c.l.b16 %v2606
    %v2639 = vunpack.c.l.b16 %v2607
    %v2640 = vunpack.c.l.b16 %v2608
    %v2641 = vpack.c.b16 %v2626, %v2625
    %v2642 = vpack.c.b16 %v2628, %v2627
    %v2643 = vpack.c.b16 %v2630, %v2629
    %v2644 = vpack.c.b16 %v2632, %v2631
    %v2645 = vpack.c.b16 %v2634, %v2633
    %v2646 = vpack.c.b16 %v2636, %v2635
    %v2647 = vpack.c.b16 %v2638, %v2637
    %v2648 = vpack.c.b16 %v2640, %v2639
    %2657 = vmatprep.subr.bf16.mxu0 0
    %2658 = vmatpush1.bf16.msra.mxu0 %v2641
    %2659 = vmatprep.subr.bf16.mxu0 0
    %2660 = vmatpush1.bf16.msra.mxu0 %v2642
    %2661 = vmatprep.subr.bf16.mxu0 0
    %2662 = vmatpush1.bf16.msra.mxu0 %v2643
    %2663 = vmatprep.subr.bf16.mxu0 0
    %2664 = vmatpush1.bf16.msra.mxu0 %v2644
    %2665 = vmatprep.subr.bf16.mxu0 0
    %2666 = vmatpush1.bf16.msra.mxu0 %v2645
    %2667 = vmatprep.subr.bf16.mxu0 0
    %2668 = vmatpush1.bf16.msra.mxu0 %v2646
    %2669 = vmatprep.subr.bf16.mxu0 0
    %2670 = vmatpush1.bf16.msra.mxu0 %v2647
    %2671 = vmatprep.subr.bf16.mxu0 0
    %2672 = vmatpush1.bf16.msra.mxu0 %v2648
    %2673 = vmatprep.subr.bf16.mxu0 0
    %2674 = vmatpush1.bf16.msra.mxu0 0
    %2675 = vmatprep.subr.bf16.mxu0 0
    %2676 = vmatpush1.bf16.msra.mxu0 0
    %2677 = vmatprep.subr.bf16.mxu0 0
    %2678 = vmatpush1.bf16.msra.mxu0 0
    %2679 = vmatprep.subr.bf16.mxu0 0
    %2680 = vmatpush1.bf16.msra.mxu0 0
    %2681 = vmatprep.subr.bf16.mxu0 0
    %2682 = vmatpush1.bf16.msra.mxu0 0
    %2683 = vmatprep.subr.bf16.mxu0 0
    %2684 = vmatpush1.bf16.msra.mxu0 0
    %2685 = vmatprep.subr.bf16.mxu0 0
    %2686 = vmatpush1.bf16.msra.mxu0 0
    %2687 = vmatprep.subr.bf16.mxu0 0
    %2688 = vmatpush1.bf16.msra.mxu0 0
    %2689 = vmatprep.mubr.bf16.mxu0 0
    %2690 = vmatmul.mubr.bf16.gmra.mrb[0].mxu0 %v2583
    %v2691 = vpop.f32.mrb[0].mxu0
    %v2692 = vadd.f32 0.0, %v2691
    %v2693 = vpop.f32.mrb[0].mxu0
    %v2694 = vpop.f32.mrb[0].mxu0
    %v2695 = vadd.f32 0.0, %v2694
    %v2696 = vpop.f32.mrb[0].mxu0
    %2697 = vmatprep.mubr.bf16.mxu0 0
    %2698 = vmatmul.mubr.bf16.gmra.mrb[0].mxu0 %v2584
    %v2699 = vpop.f32.mrb[0].mxu0
    %v2700 = vadd.f32 0.0, %v2699
    %v2701 = vpop.f32.mrb[0].mxu0
    %v2702 = vpop.f32.mrb[0].mxu0
    %v2703 = vadd.f32 0.0, %v2702
    %v2704 = vpop.f32.mrb[0].mxu0
    %2705 = vmatprep.mubr.bf16.mxu0 0
    %2706 = vmatmul.mubr.bf16.gmra.mrb[0].mxu0 %v2585
    %v2707 = vpop.f32.mrb[0].mxu0
    %v2708 = vadd.f32 0.0, %v2707
    %v2709 = vpop.f32.mrb[0].mxu0
    %v2710 = vpop.f32.mrb[0].mxu0
    %v2711 = vadd.f32 0.0, %v2710
    %v2712 = vpop.f32.mrb[0].mxu0
    %2713 = vmatprep.mubr.bf16.mxu0 0
    %2714 = vmatmul.mubr.bf16.gmra.mrb[0].mxu0 %v2586
    %v2715 = vpop.f32.mrb[0].mxu0
    %v2716 = vadd.f32 0.0, %v2715
    %v2717 = vpop.f32.mrb[0].mxu0
    %v2718 = vpop.f32.mrb[0].mxu0
    %v2719 = vadd.f32 0.0, %v2718
    %v2720 = vpop.f32.mrb[0].mxu0
    %2721 = vmatprep.mubr.bf16.mxu0 0
    %2722 = vmatmul.mubr.bf16.gmra.mrb[0].mxu0 %v2587
    %v2723 = vpop.f32.mrb[0].mxu0
    %v2724 = vadd.f32 0.0, %v2723
    %v2725 = vpop.f32.mrb[0].mxu0
    %v2726 = vpop.f32.mrb[0].mxu0
    %v2727 = vadd.f32 0.0, %v2726
    %v2728 = vpop.f32.mrb[0].mxu0
    %2729 = vmatprep.mubr.bf16.mxu0 0
    %2730 = vmatmul.mubr.bf16.gmra.mrb[0].mxu0 %v2588
    %v2731 = vpop.f32.mrb[0].mxu0
    %v2732 = vadd.f32 0.0, %v2731
    %v2733 = vpop.f32.mrb[0].mxu0
    %v2734 = vpop.f32.mrb[0].mxu0
    %v2735 = vadd.f32 0.0, %v2734
    %v2736 = vpop.f32.mrb[0].mxu0
    %2737 = vmatprep.mubr.bf16.mxu0 0
    %2738 = vmatmul.mubr.bf16.gmra.mrb[0].mxu0 %v2589
    %v2739 = vpop.f32.mrb[0].mxu0
    %v2740 = vadd.f32 0.0, %v2739
    %v2741 = vpop.f32.mrb[0].mxu0
    %v2742 = vpop.f32.mrb[0].mxu0
    %v2743 = vadd.f32 0.0, %v2742
    %v2744 = vpop.f32.mrb[0].mxu0
    %2745 = vmatprep.mubr.bf16.mxu0 0
    %2746 = vmatmul.mubr.bf16.gmra.mrb[0].mxu0 %v2590
    %v2747 = vpop.f32.mrb[0].mxu0
    %v2748 = vadd.f32 0.0, %v2747
    %v2749 = vpop.f32.mrb[0].mxu0
    %v2750 = vpop.f32.mrb[0].mxu0
    %v2751 = vadd.f32 0.0, %v2750
    %v2752 = vpop.f32.mrb[0].mxu0
    %2753 = vmatprep.mubr.bf16.mxu0 0
    %2754 = vmatmul.mubr.bf16.gmra.mrb[0].mxu0 %v2591
    %v2755 = vpop.f32.mrb[0].mxu0
    %v2756 = vadd.f32 0.0, %v2755
    %v2757 = vpop.f32.mrb[0].mxu0
    %v2758 = vpop.f32.mrb[0].mxu0
    %v2759 = vpop.f32.mrb[0].mxu0
    %2760 = vdwg.mxu0
    %v2761 = vadd.f32 %v2549, %v2692
    %v2762 = vadd.f32 %v2550, %v2695
    %v2763 = vadd.f32 %v2551, %v2700
    %v2764 = vadd.f32 %v2552, %v2703
    %v2765 = vadd.f32 %v2553, %v2708
    %v2766 = vadd.f32 %v2554, %v2711
    %v2767 = vadd.f32 %v2555, %v2716
    %v2768 = vadd.f32 %v2556, %v2719
    %v2769 = vadd.f32 %v2557, %v2724
    %v2770 = vadd.f32 %v2558, %v2727
    %v2771 = vadd.f32 %v2559, %v2732
    %v2772 = vadd.f32 %v2560, %v2735
    %v2773 = vadd.f32 %v2561, %v2740
    %v2774 = vadd.f32 %v2562, %v2743
    %v2775 = vadd.f32 %v2563, %v2748
    %v2776 = vadd.f32 %v2564, %v2751
    %v2777 = vadd.f32 %v2565, %v2756
    %v2778 = vld [vmem:[#allocation2 + $0x2] sm:$0xff]
    %v2779 = vld [vmem:[#allocation2 + $0xa] sm:$0xff]
    %v2780 = vld [vmem:[#allocation2 + $0x12] sm:$0xff]
    %v2781 = vld [vmem:[#allocation2 + $0x1a] sm:$0xff]
    %v2782 = vld [vmem:[#allocation2 + $0x22] sm:$0xff]
    %v2783 = vld [vmem:[#allocation2 + $0x2a] sm:$0xff]
    %v2784 = vld [vmem:[#allocation2 + $0x32] sm:$0xff]
    %v2785 = vld [vmem:[#allocation2 + $0x3a] sm:$0xff]
    %v2786 = vld [vmem:[#allocation2 + $0x42] sm:$0xff]
    %v2787 = vld [vmem:[#allocation2 + $0x4a] sm:$0xff]
    %v2788 = vld [vmem:[#allocation2 + $0x52] sm:$0xff]
    %v2789 = vld [vmem:[#allocation2 + $0x5a] sm:$0xff]
    %v2790 = vld [vmem:[#allocation2 + $0x62] sm:$0xff]
    %v2791 = vld [vmem:[#allocation2 + $0x6a] sm:$0xff]
    %v2792 = vld [vmem:[#allocation2 + $0x72] sm:$0xff]
    %v2793 = vld [vmem:[#allocation2 + $0x7a] sm:$0xff]
    %v2794 = vld [vmem:[#allocation2 + $0x82] sm:$0xff]
    %v2795 = vpack.c.bf16 %v2779, %v2778
    %v2796 = vpack.c.bf16 %v2781, %v2780
    %v2797 = vpack.c.bf16 %v2783, %v2782
    %v2798 = vpack.c.bf16 %v2785, %v2784
    %v2799 = vpack.c.bf16 %v2787, %v2786
    %v2800 = vpack.c.bf16 %v2789, %v2788
    %v2801 = vpack.c.bf16 %v2791, %v2790
    %v2802 = vpack.c.bf16 %v2793, %v2792
    %v2803 = vpack.c.bf16 %v2794, %v2794
    %s2804 = scalar_lea.vmem %s4, 128
    %v2805 = vld [vmem:[%s2804] sm:$0xf]
    %v2806 = vld [vmem:[%s2804 + $0x4] sm:$0xf]
    %v2807 = vld [vmem:[%s2804 + $0x8] sm:$0xf]
    %v2808 = vld [vmem:[%s2804 + $0xc] sm:$0xf]
    %v2809 = vld [vmem:[%s2804 + $0x10] sm:$0xf]
    %v2810 = vld [vmem:[%s2804 + $0x14] sm:$0xf]
    %v2811 = vld [vmem:[%s2804 + $0x18] sm:$0xf]
    %v2812 = vld [vmem:[%s2804 + $0x1c] sm:$0xf]
    %v2813 = vld [vmem:[%s2804 + $0x20] sm:$0xf]
    %v2814 = vld [vmem:[%s2804 + $0x24] sm:$0xf]
    %v2815 = vld [vmem:[%s2804 + $0x28] sm:$0xf]
    %v2816 = vld [vmem:[%s2804 + $0x2c] sm:$0xf]
    %v2817 = vld [vmem:[%s2804 + $0x30] sm:$0xf]
    %v2818 = vld [vmem:[%s2804 + $0x34] sm:$0xf]
    %v2819 = vld [vmem:[%s2804 + $0x38] sm:$0xf]
    %v2820 = vld [vmem:[%s2804 + $0x3c] sm:$0xf]
    %v2837 = vunpack.c.l.b16 %v2805
    %v2838 = vunpack.c.l.b16 %v2806
    %v2839 = vunpack.c.l.b16 %v2807
    %v2840 = vunpack.c.l.b16 %v2808
    %v2841 = vunpack.c.l.b16 %v2809
    %v2842 = vunpack.c.l.b16 %v2810
    %v2843 = vunpack.c.l.b16 %v2811
    %v2844 = vunpack.c.l.b16 %v2812
    %v2845 = vunpack.c.l.b16 %v2813
    %v2846 = vunpack.c.l.b16 %v2814
    %v2847 = vunpack.c.l.b16 %v2815
    %v2848 = vunpack.c.l.b16 %v2816
    %v2849 = vunpack.c.l.b16 %v2817
    %v2850 = vunpack.c.l.b16 %v2818
    %v2851 = vunpack.c.l.b16 %v2819
    %v2852 = vunpack.c.l.b16 %v2820
    %v2853 = vpack.c.b16 %v2838, %v2837
    %v2854 = vpack.c.b16 %v2840, %v2839
    %v2855 = vpack.c.b16 %v2842, %v2841
    %v2856 = vpack.c.b16 %v2844, %v2843
    %v2857 = vpack.c.b16 %v2846, %v2845
    %v2858 = vpack.c.b16 %v2848, %v2847
    %v2859 = vpack.c.b16 %v2850, %v2849
    %v2860 = vpack.c.b16 %v2852, %v2851
    %2869 = vmatprep.subr.bf16.mxu0 0
    %2870 = vmatpush1.bf16.msra.mxu0 %v2853
    %2871 = vmatprep.subr.bf16.mxu0 0
    %2872 = vmatpush1.bf16.msra.mxu0 %v2854
    %2873 = vmatprep.subr.bf16.mxu0 0
    %2874 = vmatpush1.bf16.msra.mxu0 %v2855
    %2875 = vmatprep.subr.bf16.mxu0 0
    %2876 = vmatpush1.bf16.msra.mxu0 %v2856
    %2877 = vmatprep.subr.bf16.mxu0 0
    %2878 = vmatpush1.bf16.msra.mxu0 %v2857
    %2879 = vmatprep.subr.bf16.mxu0 0
    %2880 = vmatpush1.bf16.msra.mxu0 %v2858
    %2881 = vmatprep.subr.bf16.mxu0 0
    %2882 = vmatpush1.bf16.msra.mxu0 %v2859
    %2883 = vmatprep.subr.bf16.mxu0 0
    %2884 = vmatpush1.bf16.msra.mxu0 %v2860
    %2885 = vmatprep.subr.bf16.mxu0 0
    %2886 = vmatpush1.bf16.msra.mxu0 0
    %2887 = vmatprep.subr.bf16.mxu0 0
    %2888 = vmatpush1.bf16.msra.mxu0 0
    %2889 = vmatprep.subr.bf16.mxu0 0
    %2890 = vmatpush1.bf16.msra.mxu0 0
    %2891 = vmatprep.subr.bf16.mxu0 0
    %2892 = vmatpush1.bf16.msra.mxu0 0
    %2893 = vmatprep.subr.bf16.mxu0 0
    %2894 = vmatpush1.bf16.msra.mxu0 0
    %2895 = vmatprep.subr.bf16.mxu0 0
    %2896 = vmatpush1.bf16.msra.mxu0 0
    %2897 = vmatprep.subr.bf16.mxu0 0
    %2898 = vmatpush1.bf16.msra.mxu0 0
    %2899 = vmatprep.subr.bf16.mxu0 0
    %2900 = vmatpush1.bf16.msra.mxu0 0
    %2901 = vmatprep.mubr.bf16.mxu0 0
    %2902 = vmatmul.mubr.bf16.gmra.mrb[0].mxu0 %v2795
    %v2903 = vpop.f32.mrb[0].mxu0
    %v2904 = vadd.f32 0.0, %v2903
    %v2905 = vpop.f32.mrb[0].mxu0
    %v2906 = vpop.f32.mrb[0].mxu0
    %v2907 = vadd.f32 0.0, %v2906
    %v2908 = vpop.f32.mrb[0].mxu0
    %2909 = vmatprep.mubr.bf16.mxu0 0
    %2910 = vmatmul.mubr.bf16.gmra.mrb[0].mxu0 %v2796
    %v2911 = vpop.f32.mrb[0].mxu0
    %v2912 = vadd.f32 0.0, %v2911
    %v2913 = vpop.f32.mrb[0].mxu0
    %v2914 = vpop.f32.mrb[0].mxu0
    %v2915 = vadd.f32 0.0, %v2914
    %v2916 = vpop.f32.mrb[0].mxu0
    %2917 = vmatprep.mubr.bf16.mxu0 0
    %2918 = vmatmul.mubr.bf16.gmra.mrb[0].mxu0 %v2797
    %v2919 = vpop.f32.mrb[0].mxu0
    %v2920 = vadd.f32 0.0, %v2919
    %v2921 = vpop.f32.mrb[0].mxu0
    %v2922 = vpop.f32.mrb[0].mxu0
    %v2923 = vadd.f32 0.0, %v2922
    %v2924 = vpop.f32.mrb[0].mxu0
    %2925 = vmatprep.mubr.bf16.mxu0 0
    %2926 = vmatmul.mubr.bf16.gmra.mrb[0].mxu0 %v2798
    %v2927 = vpop.f32.mrb[0].mxu0
    %v2928 = vadd.f32 0.0, %v2927
    %v2929 = vpop.f32.mrb[0].mxu0
    %v2930 = vpop.f32.mrb[0].mxu0
    %v2931 = vadd.f32 0.0, %v2930
    %v2932 = vpop.f32.mrb[0].mxu0
    %2933 = vmatprep.mubr.bf16.mxu0 0
    %2934 = vmatmul.mubr.bf16.gmra.mrb[0].mxu0 %v2799
    %v2935 = vpop.f32.mrb[0].mxu0
    %v2936 = vadd.f32 0.0, %v2935
    %v2937 = vpop.f32.mrb[0].mxu0
    %v2938 = vpop.f32.mrb[0].mxu0
    %v2939 = vadd.f32 0.0, %v2938
    %v2940 = vpop.f32.mrb[0].mxu0
    %2941 = vmatprep.mubr.bf16.mxu0 0
    %2942 = vmatmul.mubr.bf16.gmra.mrb[0].mxu0 %v2800
    %v2943 = vpop.f32.mrb[0].mxu0
    %v2944 = vadd.f32 0.0, %v2943
    %v2945 = vpop.f32.mrb[0].mxu0
    %v2946 = vpop.f32.mrb[0].mxu0
    %v2947 = vadd.f32 0.0, %v2946
    %v2948 = vpop.f32.mrb[0].mxu0
    %2949 = vmatprep.mubr.bf16.mxu0 0
    %2950 = vmatmul.mubr.bf16.gmra.mrb[0].mxu0 %v2801
    %v2951 = vpop.f32.mrb[0].mxu0
    %v2952 = vadd.f32 0.0, %v2951
    %v2953 = vpop.f32.mrb[0].mxu0
    %v2954 = vpop.f32.mrb[0].mxu0
    %v2955 = vadd.f32 0.0, %v2954
    %v2956 = vpop.f32.mrb[0].mxu0
    %2957 = vmatprep.mubr.bf16.mxu0 0
    %2958 = vmatmul.mubr.bf16.gmra.mrb[0].mxu0 %v2802
    %v2959 = vpop.f32.mrb[0].mxu0
    %v2960 = vadd.f32 0.0, %v2959
    %v2961 = vpop.f32.mrb[0].mxu0
    %v2962 = vpop.f32.mrb[0].mxu0
    %v2963 = vadd.f32 0.0, %v2962
    %v2964 = vpop.f32.mrb[0].mxu0
    %2965 = vmatprep.mubr.bf16.mxu0 0
    %2966 = vmatmul.mubr.bf16.gmra.mrb[0].mxu0 %v2803
    %v2967 = vpop.f32.mrb[0].mxu0
    %v2968 = vadd.f32 0.0, %v2967
    %v2969 = vpop.f32.mrb[0].mxu0
    %v2970 = vpop.f32.mrb[0].mxu0
    %v2971 = vpop.f32.mrb[0].mxu0
    %2972 = vdwg.mxu0
    %v2973 = vadd.f32 %v2761, %v2904
    %v2974 = vadd.f32 %v2762, %v2907
    %v2975 = vadd.f32 %v2763, %v2912
    %v2976 = vadd.f32 %v2764, %v2915
    %v2977 = vadd.f32 %v2765, %v2920
    %v2978 = vadd.f32 %v2766, %v2923
    %v2979 = vadd.f32 %v2767, %v2928
    %v2980 = vadd.f32 %v2768, %v2931
    %v2981 = vadd.f32 %v2769, %v2936
    %v2982 = vadd.f32 %v2770, %v2939
    %v2983 = vadd.f32 %v2771, %v2944
    %v2984 = vadd.f32 %v2772, %v2947
    %v2985 = vadd.f32 %v2773, %v2952
    %v2986 = vadd.f32 %v2774, %v2955
    %v2987 = vadd.f32 %v2775, %v2960
    %v2988 = vadd.f32 %v2776, %v2963
    %v2989 = vadd.f32 %v2777, %v2968
    %v2990 = vld [vmem:[#allocation2 + $0x3] sm:$0xff]
    %v2991 = vld [vmem:[#allocation2 + $0xb] sm:$0xff]
    %v2992 = vld [vmem:[#allocation2 + $0x13] sm:$0xff]
    %v2993 = vld [vmem:[#allocation2 + $0x1b] sm:$0xff]
    %v2994 = vld [vmem:[#allocation2 + $0x23] sm:$0xff]
    %v2995 = vld [vmem:[#allocation2 + $0x2b] sm:$0xff]
    %v2996 = vld [vmem:[#allocation2 + $0x33] sm:$0xff]
    %v2997 = vld [vmem:[#allocation2 + $0x3b] sm:$0xff]
    %v2998 = vld [vmem:[#allocation2 + $0x43] sm:$0xff]
    %v2999 = vld [vmem:[#allocation2 + $0x4b] sm:$0xff]
    %v3000 = vld [vmem:[#allocation2 + $0x53] sm:$0xff]
    %v3001 = vld [vmem:[#allocation2 + $0x5b] sm:$0xff]
    %v3002 = vld [vmem:[#allocation2 + $0x63] sm:$0xff]
    %v3003 = vld [vmem:[#allocation2 + $0x6b] sm:$0xff]
    %v3004 = vld [vmem:[#allocation2 + $0x73] sm:$0xff]
    %v3005 = vld [vmem:[#allocation2 + $0x7b] sm:$0xff]
    %v3006 = vld [vmem:[#allocation2 + $0x83] sm:$0xff]
    %v3007 = vpack.c.bf16 %v2991, %v2990
    %v3008 = vpack.c.bf16 %v2993, %v2992
    %v3009 = vpack.c.bf16 %v2995, %v2994
    %v3010 = vpack.c.bf16 %v2997, %v2996
    %v3011 = vpack.c.bf16 %v2999, %v2998
    %v3012 = vpack.c.bf16 %v3001, %v3000
    %v3013 = vpack.c.bf16 %v3003, %v3002
    %v3014 = vpack.c.bf16 %v3005, %v3004
    %v3015 = vpack.c.bf16 %v3006, %v3006
    %s3016 = scalar_lea.vmem %s4, 192
    %v3017 = vld [vmem:[%s3016] sm:$0xf]
    %v3018 = vld [vmem:[%s3016 + $0x4] sm:$0xf]
    %v3019 = vld [vmem:[%s3016 + $0x8] sm:$0xf]
    %v3020 = vld [vmem:[%s3016 + $0xc] sm:$0xf]
    %v3021 = vld [vmem:[%s3016 + $0x10] sm:$0xf]
    %v3022 = vld [vmem:[%s3016 + $0x14] sm:$0xf]
    %v3023 = vld [vmem:[%s3016 + $0x18] sm:$0xf]
    %v3024 = vld [vmem:[%s3016 + $0x1c] sm:$0xf]
    %v3025 = vld [vmem:[%s3016 + $0x20] sm:$0xf]
    %v3026 = vld [vmem:[%s3016 + $0x24] sm:$0xf]
    %v3027 = vld [vmem:[%s3016 + $0x28] sm:$0xf]
    %v3028 = vld [vmem:[%s3016 + $0x2c] sm:$0xf]
    %v3029 = vld [vmem:[%s3016 + $0x30] sm:$0xf]
    %v3030 = vld [vmem:[%s3016 + $0x34] sm:$0xf]
    %v3031 = vld [vmem:[%s3016 + $0x38] sm:$0xf]
    %v3032 = vld [vmem:[%s3016 + $0x3c] sm:$0xf]
    %v3049 = vunpack.c.l.b16 %v3017
    %v3050 = vunpack.c.l.b16 %v3018
    %v3051 = vunpack.c.l.b16 %v3019
    %v3052 = vunpack.c.l.b16 %v3020
    %v3053 = vunpack.c.l.b16 %v3021
    %v3054 = vunpack.c.l.b16 %v3022
    %v3055 = vunpack.c.l.b16 %v3023
    %v3056 = vunpack.c.l.b16 %v3024
    %v3057 = vunpack.c.l.b16 %v3025
    %v3058 = vunpack.c.l.b16 %v3026
    %v3059 = vunpack.c.l.b16 %v3027
    %v3060 = vunpack.c.l.b16 %v3028
    %v3061 = vunpack.c.l.b16 %v3029
    %v3062 = vunpack.c.l.b16 %v3030
    %v3063 = vunpack.c.l.b16 %v3031
    %v3064 = vunpack.c.l.b16 %v3032
    %v3065 = vpack.c.b16 %v3050, %v3049
    %v3066 = vpack.c.b16 %v3052, %v3051
    %v3067 = vpack.c.b16 %v3054, %v3053
    %v3068 = vpack.c.b16 %v3056, %v3055
    %v3069 = vpack.c.b16 %v3058, %v3057
    %v3070 = vpack.c.b16 %v3060, %v3059
    %v3071 = vpack.c.b16 %v3062, %v3061
    %v3072 = vpack.c.b16 %v3064, %v3063
    %3081 = vmatprep.subr.bf16.mxu0 0
    %3082 = vmatpush1.bf16.msra.mxu0 %v3065
    %3083 = vmatprep.subr.bf16.mxu0 0
    %3084 = vmatpush1.bf16.msra.mxu0 %v3066
    %3085 = vmatprep.subr.bf16.mxu0 0
    %3086 = vmatpush1.bf16.msra.mxu0 %v3067
    %3087 = vmatprep.subr.bf16.mxu0 0
    %3088 = vmatpush1.bf16.msra.mxu0 %v3068
    %3089 = vmatprep.subr.bf16.mxu0 0
    %3090 = vmatpush1.bf16.msra.mxu0 %v3069
    %3091 = vmatprep.subr.bf16.mxu0 0
    %3092 = vmatpush1.bf16.msra.mxu0 %v3070
    %3093 = vmatprep.subr.bf16.mxu0 0
    %3094 = vmatpush1.bf16.msra.mxu0 %v3071
    %3095 = vmatprep.subr.bf16.mxu0 0
    %3096 = vmatpush1.bf16.msra.mxu0 %v3072
    %3097 = vmatprep.subr.bf16.mxu0 0
    %3098 = vmatpush1.bf16.msra.mxu0 0
    %3099 = vmatprep.subr.bf16.mxu0 0
    %3100 = vmatpush1.bf16.msra.mxu0 0
    %3101 = vmatprep.subr.bf16.mxu0 0
    %3102 = vmatpush1.bf16.msra.mxu0 0
    %3103 = vmatprep.subr.bf16.mxu0 0
    %3104 = vmatpush1.bf16.msra.mxu0 0
    %3105 = vmatprep.subr.bf16.mxu0 0
    %3106 = vmatpush1.bf16.msra.mxu0 0
    %3107 = vmatprep.subr.bf16.mxu0 0
    %3108 = vmatpush1.bf16.msra.mxu0 0
    %3109 = vmatprep.subr.bf16.mxu0 0
    %3110 = vmatpush1.bf16.msra.mxu0 0
    %3111 = vmatprep.subr.bf16.mxu0 0
    %3112 = vmatpush1.bf16.msra.mxu0 0
    %3113 = vmatprep.mubr.bf16.mxu0 0
    %3114 = vmatmul.mubr.bf16.gmra.mrb[0].mxu0 %v3007
    %v3115 = vpop.f32.mrb[0].mxu0
    %v3116 = vadd.f32 0.0, %v3115
    %v3117 = vpop.f32.mrb[0].mxu0
    %v3118 = vpop.f32.mrb[0].mxu0
    %v3119 = vadd.f32 0.0, %v3118
    %v3120 = vpop.f32.mrb[0].mxu0
    %3121 = vmatprep.mubr.bf16.mxu0 0
    %3122 = vmatmul.mubr.bf16.gmra.mrb[0].mxu0 %v3008
    %v3123 = vpop.f32.mrb[0].mxu0
    %v3124 = vadd.f32 0.0, %v3123
    %v3125 = vpop.f32.mrb[0].mxu0
    %v3126 = vpop.f32.mrb[0].mxu0
    %v3127 = vadd.f32 0.0, %v3126
    %v3128 = vpop.f32.mrb[0].mxu0
    %3129 = vmatprep.mubr.bf16.mxu0 0
    %3130 = vmatmul.mubr.bf16.gmra.mrb[0].mxu0 %v3009
    %v3131 = vpop.f32.mrb[0].mxu0
    %v3132 = vadd.f32 0.0, %v3131
    %v3133 = vpop.f32.mrb[0].mxu0
    %v3134 = vpop.f32.mrb[0].mxu0
    %v3135 = vadd.f32 0.0, %v3134
    %v3136 = vpop.f32.mrb[0].mxu0
    %3137 = vmatprep.mubr.bf16.mxu0 0
    %3138 = vmatmul.mubr.bf16.gmra.mrb[0].mxu0 %v3010
    %v3139 = vpop.f32.mrb[0].mxu0
    %v3140 = vadd.f32 0.0, %v3139
    %v3141 = vpop.f32.mrb[0].mxu0
    %v3142 = vpop.f32.mrb[0].mxu0
    %v3143 = vadd.f32 0.0, %v3142
    %v3144 = vpop.f32.mrb[0].mxu0
    %3145 = vmatprep.mubr.bf16.mxu0 0
    %3146 = vmatmul.mubr.bf16.gmra.mrb[0].mxu0 %v3011
    %v3147 = vpop.f32.mrb[0].mxu0
    %v3148 = vadd.f32 0.0, %v3147
    %v3149 = vpop.f32.mrb[0].mxu0
    %v3150 = vpop.f32.mrb[0].mxu0
    %v3151 = vadd.f32 0.0, %v3150
    %v3152 = vpop.f32.mrb[0].mxu0
    %3153 = vmatprep.mubr.bf16.mxu0 0
    %3154 = vmatmul.mubr.bf16.gmra.mrb[0].mxu0 %v3012
    %v3155 = vpop.f32.mrb[0].mxu0
    %v3156 = vadd.f32 0.0, %v3155
    %v3157 = vpop.f32.mrb[0].mxu0
    %v3158 = vpop.f32.mrb[0].mxu0
    %v3159 = vadd.f32 0.0, %v3158
    %v3160 = vpop.f32.mrb[0].mxu0
    %3161 = vmatprep.mubr.bf16.mxu0 0
    %3162 = vmatmul.mubr.bf16.gmra.mrb[0].mxu0 %v3013
    %v3163 = vpop.f32.mrb[0].mxu0
    %v3164 = vadd.f32 0.0, %v3163
    %v3165 = vpop.f32.mrb[0].mxu0
    %v3166 = vpop.f32.mrb[0].mxu0
    %v3167 = vadd.f32 0.0, %v3166
    %v3168 = vpop.f32.mrb[0].mxu0
    %3169 = vmatprep.mubr.bf16.mxu0 0
    %3170 = vmatmul.mubr.bf16.gmra.mrb[0].mxu0 %v3014
    %v3171 = vpop.f32.mrb[0].mxu0
    %v3172 = vadd.f32 0.0, %v3171
    %v3173 = vpop.f32.mrb[0].mxu0
    %v3174 = vpop.f32.mrb[0].mxu0
    %v3175 = vadd.f32 0.0, %v3174
    %v3176 = vpop.f32.mrb[0].mxu0
    %3177 = vmatprep.mubr.bf16.mxu0 0
    %3178 = vmatmul.mubr.bf16.gmra.mrb[0].mxu0 %v3015
    %v3179 = vpop.f32.mrb[0].mxu0
    %v3180 = vadd.f32 0.0, %v3179
    %v3181 = vpop.f32.mrb[0].mxu0
    %v3182 = vpop.f32.mrb[0].mxu0
    %v3183 = vpop.f32.mrb[0].mxu0
    %3184 = vdwg.mxu0
    %v3185 = vadd.f32 %v2973, %v3116
    %v3186 = vadd.f32 %v2974, %v3119
    %v3187 = vadd.f32 %v2975, %v3124
    %v3188 = vadd.f32 %v2976, %v3127
    %v3189 = vadd.f32 %v2977, %v3132
    %v3190 = vadd.f32 %v2978, %v3135
    %v3191 = vadd.f32 %v2979, %v3140
    %v3192 = vadd.f32 %v2980, %v3143
    %v3193 = vadd.f32 %v2981, %v3148
    %v3194 = vadd.f32 %v2982, %v3151
    %v3195 = vadd.f32 %v2983, %v3156
    %v3196 = vadd.f32 %v2984, %v3159
    %v3197 = vadd.f32 %v2985, %v3164
    %v3198 = vadd.f32 %v2986, %v3167
    %v3199 = vadd.f32 %v2987, %v3172
    %v3200 = vadd.f32 %v2988, %v3175
    %v3201 = vadd.f32 %v2989, %v3180
    %v3202 = vld [vmem:[#allocation2 + $0x4] sm:$0xff]
    %v3203 = vld [vmem:[#allocation2 + $0xc] sm:$0xff]
    %v3204 = vld [vmem:[#allocation2 + $0x14] sm:$0xff]
    %v3205 = vld [vmem:[#allocation2 + $0x1c] sm:$0xff]
    %v3206 = vld [vmem:[#allocation2 + $0x24] sm:$0xff]
    %v3207 = vld [vmem:[#allocation2 + $0x2c] sm:$0xff]
    %v3208 = vld [vmem:[#allocation2 + $0x34] sm:$0xff]
    %v3209 = vld [vmem:[#allocation2 + $0x3c] sm:$0xff]
    %v3210 = vld [vmem:[#allocation2 + $0x44] sm:$0xff]
    %v3211 = vld [vmem:[#allocation2 + $0x4c] sm:$0xff]
    %v3212 = vld [vmem:[#allocation2 + $0x54] sm:$0xff]
    %v3213 = vld [vmem:[#allocation2 + $0x5c] sm:$0xff]
    %v3214 = vld [vmem:[#allocation2 + $0x64] sm:$0xff]
    %v3215 = vld [vmem:[#allocation2 + $0x6c] sm:$0xff]
    %v3216 = vld [vmem:[#allocation2 + $0x74] sm:$0xff]
    %v3217 = vld [vmem:[#allocation2 + $0x7c] sm:$0xff]
    %v3218 = vld [vmem:[#allocation2 + $0x84] sm:$0xff]
    %v3219 = vpack.c.bf16 %v3203, %v3202
    %v3220 = vpack.c.bf16 %v3205, %v3204
    %v3221 = vpack.c.bf16 %v3207, %v3206
    %v3222 = vpack.c.bf16 %v3209, %v3208
    %v3223 = vpack.c.bf16 %v3211, %v3210
    %v3224 = vpack.c.bf16 %v3213, %v3212
    %v3225 = vpack.c.bf16 %v3215, %v3214
    %v3226 = vpack.c.bf16 %v3217, %v3216
    %v3227 = vpack.c.bf16 %v3218, %v3218
    %s3228 = scalar_lea.vmem %s4, 256
    %v3229 = vld [vmem:[%s3228] sm:$0xf]
    %v3230 = vld [vmem:[%s3228 + $0x4] sm:$0xf]
    %v3231 = vld [vmem:[%s3228 + $0x8] sm:$0xf]
    %v3232 = vld [vmem:[%s3228 + $0xc] sm:$0xf]
    %v3233 = vld [vmem:[%s3228 + $0x10] sm:$0xf]
    %v3234 = vld [vmem:[%s3228 + $0x14] sm:$0xf]
    %v3235 = vld [vmem:[%s3228 + $0x18] sm:$0xf]
    %v3236 = vld [vmem:[%s3228 + $0x1c] sm:$0xf]
    %v3237 = vld [vmem:[%s3228 + $0x20] sm:$0xf]
    %v3238 = vld [vmem:[%s3228 + $0x24] sm:$0xf]
    %v3239 = vld [vmem:[%s3228 + $0x28] sm:$0xf]
    %v3240 = vld [vmem:[%s3228 + $0x2c] sm:$0xf]
    %v3241 = vld [vmem:[%s3228 + $0x30] sm:$0xf]
    %v3242 = vld [vmem:[%s3228 + $0x34] sm:$0xf]
    %v3243 = vld [vmem:[%s3228 + $0x38] sm:$0xf]
    %v3244 = vld [vmem:[%s3228 + $0x3c] sm:$0xf]
    %v3261 = vunpack.c.l.b16 %v3229
    %v3262 = vunpack.c.l.b16 %v3230
    %v3263 = vunpack.c.l.b16 %v3231
    %v3264 = vunpack.c.l.b16 %v3232
    %v3265 = vunpack.c.l.b16 %v3233
    %v3266 = vunpack.c.l.b16 %v3234
    %v3267 = vunpack.c.l.b16 %v3235
    %v3268 = vunpack.c.l.b16 %v3236
    %v3269 = vunpack.c.l.b16 %v3237
    %v3270 = vunpack.c.l.b16 %v3238
    %v3271 = vunpack.c.l.b16 %v3239
    %v3272 = vunpack.c.l.b16 %v3240
    %v3273 = vunpack.c.l.b16 %v3241
    %v3274 = vunpack.c.l.b16 %v3242
    %v3275 = vunpack.c.l.b16 %v3243
    %v3276 = vunpack.c.l.b16 %v3244
    %v3277 = vpack.c.b16 %v3262, %v3261
    %v3278 = vpack.c.b16 %v3264, %v3263
    %v3279 = vpack.c.b16 %v3266, %v3265
    %v3280 = vpack.c.b16 %v3268, %v3267
    %v3281 = vpack.c.b16 %v3270, %v3269
    %v3282 = vpack.c.b16 %v3272, %v3271
    %v3283 = vpack.c.b16 %v3274, %v3273
    %v3284 = vpack.c.b16 %v3276, %v3275
    %3293 = vmatprep.subr.bf16.mxu0 0
    %3294 = vmatpush1.bf16.msra.mxu0 %v3277
    %3295 = vmatprep.subr.bf16.mxu0 0
    %3296 = vmatpush1.bf16.msra.mxu0 %v3278
    %3297 = vmatprep.subr.bf16.mxu0 0
    %3298 = vmatpush1.bf16.msra.mxu0 %v3279
    %3299 = vmatprep.subr.bf16.mxu0 0
    %3300 = vmatpush1.bf16.msra.mxu0 %v3280
    %3301 = vmatprep.subr.bf16.mxu0 0
    %3302 = vmatpush1.bf16.msra.mxu0 %v3281
    %3303 = vmatprep.subr.bf16.mxu0 0
    %3304 = vmatpush1.bf16.msra.mxu0 %v3282
    %3305 = vmatprep.subr.bf16.mxu0 0
    %3306 = vmatpush1.bf16.msra.mxu0 %v3283
    %3307 = vmatprep.subr.bf16.mxu0 0
    %3308 = vmatpush1.bf16.msra.mxu0 %v3284
    %3309 = vmatprep.subr.bf16.mxu0 0
    %3310 = vmatpush1.bf16.msra.mxu0 0
    %3311 = vmatprep.subr.bf16.mxu0 0
    %3312 = vmatpush1.bf16.msra.mxu0 0
    %3313 = vmatprep.subr.bf16.mxu0 0
    %3314 = vmatpush1.bf16.msra.mxu0 0
    %3315 = vmatprep.subr.bf16.mxu0 0
    %3316 = vmatpush1.bf16.msra.mxu0 0
    %3317 = vmatprep.subr.bf16.mxu0 0
    %3318 = vmatpush1.bf16.msra.mxu0 0
    %3319 = vmatprep.subr.bf16.mxu0 0
    %3320 = vmatpush1.bf16.msra.mxu0 0
    %3321 = vmatprep.subr.bf16.mxu0 0
    %3322 = vmatpush1.bf16.msra.mxu0 0
    %3323 = vmatprep.subr.bf16.mxu0 0
    %3324 = vmatpush1.bf16.msra.mxu0 0
    %3325 = vmatprep.mubr.bf16.mxu0 0
    %3326 = vmatmul.mubr.bf16.gmra.mrb[0].mxu0 %v3219
    %v3327 = vpop.f32.mrb[0].mxu0
    %v3328 = vadd.f32 0.0, %v3327
    %v3329 = vpop.f32.mrb[0].mxu0
    %v3330 = vpop.f32.mrb[0].mxu0
    %v3331 = vadd.f32 0.0, %v3330
    %v3332 = vpop.f32.mrb[0].mxu0
    %3333 = vmatprep.mubr.bf16.mxu0 0
    %3334 = vmatmul.mubr.bf16.gmra.mrb[0].mxu0 %v3220
    %v3335 = vpop.f32.mrb[0].mxu0
    %v3336 = vadd.f32 0.0, %v3335
    %v3337 = vpop.f32.mrb[0].mxu0
    %v3338 = vpop.f32.mrb[0].mxu0
    %v3339 = vadd.f32 0.0, %v3338
    %v3340 = vpop.f32.mrb[0].mxu0
    %3341 = vmatprep.mubr.bf16.mxu0 0
    %3342 = vmatmul.mubr.bf16.gmra.mrb[0].mxu0 %v3221
    %v3343 = vpop.f32.mrb[0].mxu0
    %v3344 = vadd.f32 0.0, %v3343
    %v3345 = vpop.f32.mrb[0].mxu0
    %v3346 = vpop.f32.mrb[0].mxu0
    %v3347 = vadd.f32 0.0, %v3346
    %v3348 = vpop.f32.mrb[0].mxu0
    %3349 = vmatprep.mubr.bf16.mxu0 0
    %3350 = vmatmul.mubr.bf16.gmra.mrb[0].mxu0 %v3222
    %v3351 = vpop.f32.mrb[0].mxu0
    %v3352 = vadd.f32 0.0, %v3351
    %v3353 = vpop.f32.mrb[0].mxu0
    %v3354 = vpop.f32.mrb[0].mxu0
    %v3355 = vadd.f32 0.0, %v3354
    %v3356 = vpop.f32.mrb[0].mxu0
    %3357 = vmatprep.mubr.bf16.mxu0 0
    %3358 = vmatmul.mubr.bf16.gmra.mrb[0].mxu0 %v3223
    %v3359 = vpop.f32.mrb[0].mxu0
    %v3360 = vadd.f32 0.0, %v3359
    %v3361 = vpop.f32.mrb[0].mxu0
    %v3362 = vpop.f32.mrb[0].mxu0
    %v3363 = vadd.f32 0.0, %v3362
    %v3364 = vpop.f32.mrb[0].mxu0
    %3365 = vmatprep.mubr.bf16.mxu0 0
    %3366 = vmatmul.mubr.bf16.gmra.mrb[0].mxu0 %v3224
    %v3367 = vpop.f32.mrb[0].mxu0
    %v3368 = vadd.f32 0.0, %v3367
    %v3369 = vpop.f32.mrb[0].mxu0
    %v3370 = vpop.f32.mrb[0].mxu0
    %v3371 = vadd.f32 0.0, %v3370
    %v3372 = vpop.f32.mrb[0].mxu0
    %3373 = vmatprep.mubr.bf16.mxu0 0
    %3374 = vmatmul.mubr.bf16.gmra.mrb[0].mxu0 %v3225
    %v3375 = vpop.f32.mrb[0].mxu0
    %v3376 = vadd.f32 0.0, %v3375
    %v3377 = vpop.f32.mrb[0].mxu0
    %v3378 = vpop.f32.mrb[0].mxu0
    %v3379 = vadd.f32 0.0, %v3378
    %v3380 = vpop.f32.mrb[0].mxu0
    %3381 = vmatprep.mubr.bf16.mxu0 0
    %3382 = vmatmul.mubr.bf16.gmra.mrb[0].mxu0 %v3226
    %v3383 = vpop.f32.mrb[0].mxu0
    %v3384 = vadd.f32 0.0, %v3383
    %v3385 = vpop.f32.mrb[0].mxu0
    %v3386 = vpop.f32.mrb[0].mxu0
    %v3387 = vadd.f32 0.0, %v3386
    %v3388 = vpop.f32.mrb[0].mxu0
    %3389 = vmatprep.mubr.bf16.mxu0 0
    %3390 = vmatmul.mubr.bf16.gmra.mrb[0].mxu0 %v3227
    %v3391 = vpop.f32.mrb[0].mxu0
    %v3392 = vadd.f32 0.0, %v3391
    %v3393 = vpop.f32.mrb[0].mxu0
    %v3394 = vpop.f32.mrb[0].mxu0
    %v3395 = vpop.f32.mrb[0].mxu0
    %3396 = vdwg.mxu0
    %v3397 = vadd.f32 %v3185, %v3328
    %v3398 = vadd.f32 %v3186, %v3331
    %v3399 = vadd.f32 %v3187, %v3336
    %v3400 = vadd.f32 %v3188, %v3339
    %v3401 = vadd.f32 %v3189, %v3344
    %v3402 = vadd.f32 %v3190, %v3347
    %v3403 = vadd.f32 %v3191, %v3352
    %v3404 = vadd.f32 %v3192, %v3355
    %v3405 = vadd.f32 %v3193, %v3360
    %v3406 = vadd.f32 %v3194, %v3363
    %v3407 = vadd.f32 %v3195, %v3368
    %v3408 = vadd.f32 %v3196, %v3371
    %v3409 = vadd.f32 %v3197, %v3376
    %v3410 = vadd.f32 %v3198, %v3379
    %v3411 = vadd.f32 %v3199, %v3384
    %v3412 = vadd.f32 %v3200, %v3387
    %v3413 = vadd.f32 %v3201, %v3392
    %v3414 = vld [vmem:[#allocation2 + $0xe] sm:$0xff]
    %v3415 = vld [vmem:[#allocation2 + $0x16] sm:$0xff]
    %v3416 = vld [vmem:[#allocation2 + $0x1e] sm:$0xff]
    %v3417 = vld [vmem:[#allocation2 + $0x26] sm:$0xff]
    %v3418 = vld [vmem:[#allocation2 + $0x2e] sm:$0xff]
    %v3419 = vld [vmem:[#allocation2 + $0x36] sm:$0xff]
    %v3420 = vld [vmem:[#allocation2 + $0x3e] sm:$0xff]
    %v3421 = vld [vmem:[#allocation2 + $0x46] sm:$0xff]
    %v3422 = vld [vmem:[#allocation2 + $0x4e] sm:$0xff]
    %v3423 = vld [vmem:[#allocation2 + $0x56] sm:$0xff]
    %v3424 = vld [vmem:[#allocation2 + $0x5e] sm:$0xff]
    %v3425 = vld [vmem:[#allocation2 + $0x66] sm:$0xff]
    %v3426 = vld [vmem:[#allocation2 + $0x6e] sm:$0xff]
    %v3427 = vld [vmem:[#allocation2 + $0x76] sm:$0xff]
    %v3428 = vld [vmem:[#allocation2 + $0x7e] sm:$0xff]
    %v3429 = vld [vmem:[#allocation2 + $0x86] sm:$0xff]
    %v3430 = vld [vmem:[#allocation2 + $0x8e] sm:$0xff]
    %v3431 = vpack.c.bf16 %v3415, %v3414
    %v3432 = vpack.c.bf16 %v3417, %v3416
    %v3433 = vpack.c.bf16 %v3419, %v3418
    %v3434 = vpack.c.bf16 %v3421, %v3420
    %v3435 = vpack.c.bf16 %v3423, %v3422
    %v3436 = vpack.c.bf16 %v3425, %v3424
    %v3437 = vpack.c.bf16 %v3427, %v3426
    %v3438 = vpack.c.bf16 %v3429, %v3428
    %v3439 = vpack.c.bf16 %v3430, %v3430
    %s3440 = scalar_lea.vmem %s4, 320
    %v3441 = vld [vmem:[%s3440] sm:$0xf]
    %v3442 = vld [vmem:[%s3440 + $0x4] sm:$0xf]
    %v3443 = vld [vmem:[%s3440 + $0x8] sm:$0xf]
    %v3444 = vld [vmem:[%s3440 + $0xc] sm:$0xf]
    %v3445 = vld [vmem:[%s3440 + $0x10] sm:$0xf]
    %v3446 = vld [vmem:[%s3440 + $0x14] sm:$0xf]
    %v3447 = vld [vmem:[%s3440 + $0x18] sm:$0xf]
    %v3448 = vld [vmem:[%s3440 + $0x1c] sm:$0xf]
    %v3449 = vld [vmem:[%s3440 + $0x20] sm:$0xf]
    %v3450 = vld [vmem:[%s3440 + $0x24] sm:$0xf]
    %v3451 = vld [vmem:[%s3440 + $0x28] sm:$0xf]
    %v3452 = vld [vmem:[%s3440 + $0x2c] sm:$0xf]
    %v3453 = vld [vmem:[%s3440 + $0x30] sm:$0xf]
    %v3454 = vld [vmem:[%s3440 + $0x34] sm:$0xf]
    %v3455 = vld [vmem:[%s3440 + $0x38] sm:$0xf]
    %v3456 = vld [vmem:[%s3440 + $0x3c] sm:$0xf]
    %v3473 = vunpack.c.l.b16 %v3441
    %v3474 = vunpack.c.l.b16 %v3442
    %v3475 = vunpack.c.l.b16 %v3443
    %v3476 = vunpack.c.l.b16 %v3444
    %v3477 = vunpack.c.l.b16 %v3445
    %v3478 = vunpack.c.l.b16 %v3446
    %v3479 = vunpack.c.l.b16 %v3447
    %v3480 = vunpack.c.l.b16 %v3448
    %v3481 = vunpack.c.l.b16 %v3449
    %v3482 = vunpack.c.l.b16 %v3450
    %v3483 = vunpack.c.l.b16 %v3451
    %v3484 = vunpack.c.l.b16 %v3452
    %v3485 = vunpack.c.l.b16 %v3453
    %v3486 = vunpack.c.l.b16 %v3454
    %v3487 = vunpack.c.l.b16 %v3455
    %v3488 = vunpack.c.l.b16 %v3456
    %v3489 = vpack.c.b16 %v3474, %v3473
    %v3490 = vpack.c.b16 %v3476, %v3475
    %v3491 = vpack.c.b16 %v3478, %v3477
    %v3492 = vpack.c.b16 %v3480, %v3479
    %v3493 = vpack.c.b16 %v3482, %v3481
    %v3494 = vpack.c.b16 %v3484, %v3483
    %v3495 = vpack.c.b16 %v3486, %v3485
    %v3496 = vpack.c.b16 %v3488, %v3487
    %3505 = vmatprep.subr.bf16.mxu0 0
    %3506 = vmatpush1.bf16.msra.mxu0 %v3489
    %3507 = vmatprep.subr.bf16.mxu0 0
    %3508 = vmatpush1.bf16.msra.mxu0 %v3490
    %3509 = vmatprep.subr.bf16.mxu0 0
    %3510 = vmatpush1.bf16.msra.mxu0 %v3491
    %3511 = vmatprep.subr.bf16.mxu0 0
    %3512 = vmatpush1.bf16.msra.mxu0 %v3492
    %3513 = vmatprep.subr.bf16.mxu0 0
    %3514 = vmatpush1.bf16.msra.mxu0 %v3493
    %3515 = vmatprep.subr.bf16.mxu0 0
    %3516 = vmatpush1.bf16.msra.mxu0 %v3494
    %3517 = vmatprep.subr.bf16.mxu0 0
    %3518 = vmatpush1.bf16.msra.mxu0 %v3495
    %3519 = vmatprep.subr.bf16.mxu0 0
    %3520 = vmatpush1.bf16.msra.mxu0 %v3496
    %3521 = vmatprep.subr.bf16.mxu0 0
    %3522 = vmatpush1.bf16.msra.mxu0 0
    %3523 = vmatprep.subr.bf16.mxu0 0
    %3524 = vmatpush1.bf16.msra.mxu0 0
    %3525 = vmatprep.subr.bf16.mxu0 0
    %3526 = vmatpush1.bf16.msra.mxu0 0
    %3527 = vmatprep.subr.bf16.mxu0 0
    %3528 = vmatpush1.bf16.msra.mxu0 0
    %3529 = vmatprep.subr.bf16.mxu0 0
    %3530 = vmatpush1.bf16.msra.mxu0 0
    %3531 = vmatprep.subr.bf16.mxu0 0
    %3532 = vmatpush1.bf16.msra.mxu0 0
    %3533 = vmatprep.subr.bf16.mxu0 0
    %3534 = vmatpush1.bf16.msra.mxu0 0
    %3535 = vmatprep.subr.bf16.mxu0 0
    %3536 = vmatpush1.bf16.msra.mxu0 0
    %3537 = vmatprep.mubr.bf16.mxu0 0
    %3538 = vmatmul.mubr.bf16.gmra.mrb[0].mxu0 %v3431
    %v3539 = vpop.f32.mrb[0].mxu0
    %v3540 = vadd.f32 0.0, %v3539
    %v3541 = vpop.f32.mrb[0].mxu0
    %v3542 = vpop.f32.mrb[0].mxu0
    %v3543 = vadd.f32 0.0, %v3542
    %v3544 = vpop.f32.mrb[0].mxu0
    %3545 = vmatprep.mubr.bf16.mxu0 0
    %3546 = vmatmul.mubr.bf16.gmra.mrb[0].mxu0 %v3432
    %v3547 = vpop.f32.mrb[0].mxu0
    %v3548 = vadd.f32 0.0, %v3547
    %v3549 = vpop.f32.mrb[0].mxu0
    %v3550 = vpop.f32.mrb[0].mxu0
    %v3551 = vadd.f32 0.0, %v3550
    %v3552 = vpop.f32.mrb[0].mxu0
    %3553 = vmatprep.mubr.bf16.mxu0 0
    %3554 = vmatmul.mubr.bf16.gmra.mrb[0].mxu0 %v3433
    %v3555 = vpop.f32.mrb[0].mxu0
    %v3556 = vadd.f32 0.0, %v3555
    %v3557 = vpop.f32.mrb[0].mxu0
    %v3558 = vpop.f32.mrb[0].mxu0
    %v3559 = vadd.f32 0.0, %v3558
    %v3560 = vpop.f32.mrb[0].mxu0
    %3561 = vmatprep.mubr.bf16.mxu0 0
    %3562 = vmatmul.mubr.bf16.gmra.mrb[0].mxu0 %v3434
    %v3563 = vpop.f32.mrb[0].mxu0
    %v3564 = vadd.f32 0.0, %v3563
    %v3565 = vpop.f32.mrb[0].mxu0
    %v3566 = vpop.f32.mrb[0].mxu0
    %v3567 = vadd.f32 0.0, %v3566
    %v3568 = vpop.f32.mrb[0].mxu0
    %3569 = vmatprep.mubr.bf16.mxu0 0
    %3570 = vmatmul.mubr.bf16.gmra.mrb[0].mxu0 %v3435
    %v3571 = vpop.f32.mrb[0].mxu0
    %v3572 = vadd.f32 0.0, %v3571
    %v3573 = vpop.f32.mrb[0].mxu0
    %v3574 = vpop.f32.mrb[0].mxu0
    %v3575 = vadd.f32 0.0, %v3574
    %v3576 = vpop.f32.mrb[0].mxu0
    %3577 = vmatprep.mubr.bf16.mxu0 0
    %3578 = vmatmul.mubr.bf16.gmra.mrb[0].mxu0 %v3436
    %v3579 = vpop.f32.mrb[0].mxu0
    %v3580 = vadd.f32 0.0, %v3579
    %v3581 = vpop.f32.mrb[0].mxu0
    %v3582 = vpop.f32.mrb[0].mxu0
    %v3583 = vadd.f32 0.0, %v3582
    %v3584 = vpop.f32.mrb[0].mxu0
    %3585 = vmatprep.mubr.bf16.mxu0 0
    %3586 = vmatmul.mubr.bf16.gmra.mrb[0].mxu0 %v3437
    %v3587 = vpop.f32.mrb[0].mxu0
    %v3588 = vadd.f32 0.0, %v3587
    %v3589 = vpop.f32.mrb[0].mxu0
    %v3590 = vpop.f32.mrb[0].mxu0
    %v3591 = vadd.f32 0.0, %v3590
    %v3592 = vpop.f32.mrb[0].mxu0
    %3593 = vmatprep.mubr.bf16.mxu0 0
    %3594 = vmatmul.mubr.bf16.gmra.mrb[0].mxu0 %v3438
    %v3595 = vpop.f32.mrb[0].mxu0
    %v3596 = vadd.f32 0.0, %v3595
    %v3597 = vpop.f32.mrb[0].mxu0
    %v3598 = vpop.f32.mrb[0].mxu0
    %v3599 = vadd.f32 0.0, %v3598
    %v3600 = vpop.f32.mrb[0].mxu0
    %3601 = vmatprep.mubr.bf16.mxu0 0
    %3602 = vmatmul.mubr.bf16.gmra.mrb[0].mxu0 %v3439
    %v3603 = vpop.f32.mrb[0].mxu0
    %v3604 = vadd.f32 0.0, %v3603
    %v3605 = vpop.f32.mrb[0].mxu0
    %v3606 = vpop.f32.mrb[0].mxu0
    %v3607 = vpop.f32.mrb[0].mxu0
    %3608 = vdwg.mxu0
    %v3609 = vadd.f32 %v3397, %v3540
    %v3610 = vadd.f32 %v3398, %v3543
    %v3611 = vadd.f32 %v3399, %v3548
    %v3612 = vadd.f32 %v3400, %v3551
    %v3613 = vadd.f32 %v3401, %v3556
    %v3614 = vadd.f32 %v3402, %v3559
    %v3615 = vadd.f32 %v3403, %v3564
    %v3616 = vadd.f32 %v3404, %v3567
    %v3617 = vadd.f32 %v3405, %v3572
    %v3618 = vadd.f32 %v3406, %v3575
    %v3619 = vadd.f32 %v3407, %v3580
    %v3620 = vadd.f32 %v3408, %v3583
    %v3621 = vadd.f32 %v3409, %v3588
    %v3622 = vadd.f32 %v3410, %v3591
    %v3623 = vadd.f32 %v3411, %v3596
    %v3624 = vadd.f32 %v3412, %v3599
    %v3625 = vadd.f32 %v3413, %v3604
    %v3626 = vld [vmem:[#allocation2 + $0xf] sm:$0xff]
    %v3627 = vld [vmem:[#allocation2 + $0x17] sm:$0xff]
    %v3628 = vld [vmem:[#allocation2 + $0x1f] sm:$0xff]
    %v3629 = vld [vmem:[#allocation2 + $0x27] sm:$0xff]
    %v3630 = vld [vmem:[#allocation2 + $0x2f] sm:$0xff]
    %v3631 = vld [vmem:[#allocation2 + $0x37] sm:$0xff]
    %v3632 = vld [vmem:[#allocation2 + $0x3f] sm:$0xff]
    %v3633 = vld [vmem:[#allocation2 + $0x47] sm:$0xff]
    %v3634 = vld [vmem:[#allocation2 + $0x4f] sm:$0xff]
    %v3635 = vld [vmem:[#allocation2 + $0x57] sm:$0xff]
    %v3636 = vld [vmem:[#allocation2 + $0x5f] sm:$0xff]
    %v3637 = vld [vmem:[#allocation2 + $0x67] sm:$0xff]
    %v3638 = vld [vmem:[#allocation2 + $0x6f] sm:$0xff]
    %v3639 = vld [vmem:[#allocation2 + $0x77] sm:$0xff]
    %v3640 = vld [vmem:[#allocation2 + $0x7f] sm:$0xff]
    %v3641 = vld [vmem:[#allocation2 + $0x87] sm:$0xff]
    %v3642 = vld [vmem:[#allocation2 + $0x8f] sm:$0xff]
    %v3643 = vpack.c.bf16 %v3627, %v3626
    %v3644 = vpack.c.bf16 %v3629, %v3628
    %v3645 = vpack.c.bf16 %v3631, %v3630
    %v3646 = vpack.c.bf16 %v3633, %v3632
    %v3647 = vpack.c.bf16 %v3635, %v3634
    %v3648 = vpack.c.bf16 %v3637, %v3636
    %v3649 = vpack.c.bf16 %v3639, %v3638
    %v3650 = vpack.c.bf16 %v3641, %v3640
    %v3651 = vpack.c.bf16 %v3642, %v3642
    %s3652 = scalar_lea.vmem %s4, 384
    %v3653 = vld [vmem:[%s3652] sm:$0xf]
    %v3654 = vld [vmem:[%s3652 + $0x4] sm:$0xf]
    %v3655 = vld [vmem:[%s3652 + $0x8] sm:$0xf]
    %v3656 = vld [vmem:[%s3652 + $0xc] sm:$0xf]
    %v3657 = vld [vmem:[%s3652 + $0x10] sm:$0xf]
    %v3658 = vld [vmem:[%s3652 + $0x14] sm:$0xf]
    %v3659 = vld [vmem:[%s3652 + $0x18] sm:$0xf]
    %v3660 = vld [vmem:[%s3652 + $0x1c] sm:$0xf]
    %v3661 = vld [vmem:[%s3652 + $0x20] sm:$0xf]
    %v3662 = vld [vmem:[%s3652 + $0x24] sm:$0xf]
    %v3663 = vld [vmem:[%s3652 + $0x28] sm:$0xf]
    %v3664 = vld [vmem:[%s3652 + $0x2c] sm:$0xf]
    %v3665 = vld [vmem:[%s3652 + $0x30] sm:$0xf]
    %v3666 = vld [vmem:[%s3652 + $0x34] sm:$0xf]
    %v3667 = vld [vmem:[%s3652 + $0x38] sm:$0xf]
    %v3668 = vld [vmem:[%s3652 + $0x3c] sm:$0xf]
    %v3685 = vunpack.c.l.b16 %v3653
    %v3686 = vunpack.c.l.b16 %v3654
    %v3687 = vunpack.c.l.b16 %v3655
    %v3688 = vunpack.c.l.b16 %v3656
    %v3689 = vunpack.c.l.b16 %v3657
    %v3690 = vunpack.c.l.b16 %v3658
    %v3691 = vunpack.c.l.b16 %v3659
    %v3692 = vunpack.c.l.b16 %v3660
    %v3693 = vunpack.c.l.b16 %v3661
    %v3694 = vunpack.c.l.b16 %v3662
    %v3695 = vunpack.c.l.b16 %v3663
    %v3696 = vunpack.c.l.b16 %v3664
    %v3697 = vunpack.c.l.b16 %v3665
    %v3698 = vunpack.c.l.b16 %v3666
    %v3699 = vunpack.c.l.b16 %v3667
    %v3700 = vunpack.c.l.b16 %v3668
    %v3701 = vpack.c.b16 %v3686, %v3685
    %v3702 = vpack.c.b16 %v3688, %v3687
    %v3703 = vpack.c.b16 %v3690, %v3689
    %v3704 = vpack.c.b16 %v3692, %v3691
    %v3705 = vpack.c.b16 %v3694, %v3693
    %v3706 = vpack.c.b16 %v3696, %v3695
    %v3707 = vpack.c.b16 %v3698, %v3697
    %v3708 = vpack.c.b16 %v3700, %v3699
    %3717 = vmatprep.subr.bf16.mxu0 0
    %3718 = vmatpush1.bf16.msra.mxu0 %v3701
    %3719 = vmatprep.subr.bf16.mxu0 0
    %3720 = vmatpush1.bf16.msra.mxu0 %v3702
    %3721 = vmatprep.subr.bf16.mxu0 0
    %3722 = vmatpush1.bf16.msra.mxu0 %v3703
    %3723 = vmatprep.subr.bf16.mxu0 0
    %3724 = vmatpush1.bf16.msra.mxu0 %v3704
    %3725 = vmatprep.subr.bf16.mxu0 0
    %3726 = vmatpush1.bf16.msra.mxu0 %v3705
    %3727 = vmatprep.subr.bf16.mxu0 0
    %3728 = vmatpush1.bf16.msra.mxu0 %v3706
    %3729 = vmatprep.subr.bf16.mxu0 0
    %3730 = vmatpush1.bf16.msra.mxu0 %v3707
    %3731 = vmatprep.subr.bf16.mxu0 0
    %3732 = vmatpush1.bf16.msra.mxu0 %v3708
    %3733 = vmatprep.subr.bf16.mxu0 0
    %3734 = vmatpush1.bf16.msra.mxu0 0
    %3735 = vmatprep.subr.bf16.mxu0 0
    %3736 = vmatpush1.bf16.msra.mxu0 0
    %3737 = vmatprep.subr.bf16.mxu0 0
    %3738 = vmatpush1.bf16.msra.mxu0 0
    %3739 = vmatprep.subr.bf16.mxu0 0
    %3740 = vmatpush1.bf16.msra.mxu0 0
    %3741 = vmatprep.subr.bf16.mxu0 0
    %3742 = vmatpush1.bf16.msra.mxu0 0
    %3743 = vmatprep.subr.bf16.mxu0 0
    %3744 = vmatpush1.bf16.msra.mxu0 0
    %3745 = vmatprep.subr.bf16.mxu0 0
    %3746 = vmatpush1.bf16.msra.mxu0 0
    %3747 = vmatprep.subr.bf16.mxu0 0
    %3748 = vmatpush1.bf16.msra.mxu0 0
    %3749 = vmatprep.mubr.bf16.mxu0 0
    %3750 = vmatmul.mubr.bf16.gmra.mrb[0].mxu0 %v3643
    %v3751 = vpop.f32.mrb[0].mxu0
    %v3752 = vadd.f32 0.0, %v3751
    %v3753 = vpop.f32.mrb[0].mxu0
    %v3754 = vpop.f32.mrb[0].mxu0
    %v3755 = vadd.f32 0.0, %v3754
    %v3756 = vpop.f32.mrb[0].mxu0
    %3757 = vmatprep.mubr.bf16.mxu0 0
    %3758 = vmatmul.mubr.bf16.gmra.mrb[0].mxu0 %v3644
    %v3759 = vpop.f32.mrb[0].mxu0
    %v3760 = vadd.f32 0.0, %v3759
    %v3761 = vpop.f32.mrb[0].mxu0
    %v3762 = vpop.f32.mrb[0].mxu0
    %v3763 = vadd.f32 0.0, %v3762
    %v3764 = vpop.f32.mrb[0].mxu0
    %3765 = vmatprep.mubr.bf16.mxu0 0
    %3766 = vmatmul.mubr.bf16.gmra.mrb[0].mxu0 %v3645
    %v3767 = vpop.f32.mrb[0].mxu0
    %v3768 = vadd.f32 0.0, %v3767
    %v3769 = vpop.f32.mrb[0].mxu0
    %v3770 = vpop.f32.mrb[0].mxu0
    %v3771 = vadd.f32 0.0, %v3770
    %v3772 = vpop.f32.mrb[0].mxu0
    %3773 = vmatprep.mubr.bf16.mxu0 0
    %3774 = vmatmul.mubr.bf16.gmra.mrb[0].mxu0 %v3646
    %v3775 = vpop.f32.mrb[0].mxu0
    %v3776 = vadd.f32 0.0, %v3775
    %v3777 = vpop.f32.mrb[0].mxu0
    %v3778 = vpop.f32.mrb[0].mxu0
    %v3779 = vadd.f32 0.0, %v3778
    %v3780 = vpop.f32.mrb[0].mxu0
    %3781 = vmatprep.mubr.bf16.mxu0 0
    %3782 = vmatmul.mubr.bf16.gmra.mrb[0].mxu0 %v3647
    %v3783 = vpop.f32.mrb[0].mxu0
    %v3784 = vadd.f32 0.0, %v3783
    %v3785 = vpop.f32.mrb[0].mxu0
    %v3786 = vpop.f32.mrb[0].mxu0
    %v3787 = vadd.f32 0.0, %v3786
    %v3788 = vpop.f32.mrb[0].mxu0
    %3789 = vmatprep.mubr.bf16.mxu0 0
    %3790 = vmatmul.mubr.bf16.gmra.mrb[0].mxu0 %v3648
    %v3791 = vpop.f32.mrb[0].mxu0
    %v3792 = vadd.f32 0.0, %v3791
    %v3793 = vpop.f32.mrb[0].mxu0
    %v3794 = vpop.f32.mrb[0].mxu0
    %v3795 = vadd.f32 0.0, %v3794
    %v3796 = vpop.f32.mrb[0].mxu0
    %3797 = vmatprep.mubr.bf16.mxu0 0
    %3798 = vmatmul.mubr.bf16.gmra.mrb[0].mxu0 %v3649
    %v3799 = vpop.f32.mrb[0].mxu0
    %v3800 = vadd.f32 0.0, %v3799
    %v3801 = vpop.f32.mrb[0].mxu0
    %v3802 = vpop.f32.mrb[0].mxu0
    %v3803 = vadd.f32 0.0, %v3802
    %v3804 = vpop.f32.mrb[0].mxu0
    %3805 = vmatprep.mubr.bf16.mxu0 0
    %3806 = vmatmul.mubr.bf16.gmra.mrb[0].mxu0 %v3650
    %v3807 = vpop.f32.mrb[0].mxu0
    %v3808 = vadd.f32 0.0, %v3807
    %v3809 = vpop.f32.mrb[0].mxu0
    %v3810 = vpop.f32.mrb[0].mxu0
    %v3811 = vadd.f32 0.0, %v3810
    %v3812 = vpop.f32.mrb[0].mxu0
    %3813 = vmatprep.mubr.bf16.mxu0 0
    %3814 = vmatmul.mubr.bf16.gmra.mrb[0].mxu0 %v3651
    %v3815 = vpop.f32.mrb[0].mxu0
    %v3816 = vadd.f32 0.0, %v3815
    %v3817 = vpop.f32.mrb[0].mxu0
    %v3818 = vpop.f32.mrb[0].mxu0
    %v3819 = vpop.f32.mrb[0].mxu0
    %3820 = vdwg.mxu0
    %v3821 = vadd.f32 %v3609, %v3752
    %v3822 = vadd.f32 %v3610, %v3755
    %v3823 = vadd.f32 %v3611, %v3760
    %v3824 = vadd.f32 %v3612, %v3763
    %v3825 = vadd.f32 %v3613, %v3768
    %v3826 = vadd.f32 %v3614, %v3771
    %v3827 = vadd.f32 %v3615, %v3776
    %v3828 = vadd.f32 %v3616, %v3779
    %v3829 = vadd.f32 %v3617, %v3784
    %v3830 = vadd.f32 %v3618, %v3787
    %v3831 = vadd.f32 %v3619, %v3792
    %v3832 = vadd.f32 %v3620, %v3795
    %v3833 = vadd.f32 %v3621, %v3800
    %v3834 = vadd.f32 %v3622, %v3803
    %v3835 = vadd.f32 %v3623, %v3808
    %v3836 = vadd.f32 %v3624, %v3811
    %v3837 = vadd.f32 %v3625, %v3816
    %v3838 = vld [vmem:[#allocation2 + $0x10] sm:$0xff]
    %v3839 = vld [vmem:[#allocation2 + $0x18] sm:$0xff]
    %v3840 = vld [vmem:[#allocation2 + $0x20] sm:$0xff]
    %v3841 = vld [vmem:[#allocation2 + $0x28] sm:$0xff]
    %v3842 = vld [vmem:[#allocation2 + $0x30] sm:$0xff]
    %v3843 = vld [vmem:[#allocation2 + $0x38] sm:$0xff]
    %v3844 = vld [vmem:[#allocation2 + $0x40] sm:$0xff]
    %v3845 = vld [vmem:[#allocation2 + $0x48] sm:$0xff]
    %v3846 = vld [vmem:[#allocation2 + $0x50] sm:$0xff]
    %v3847 = vld [vmem:[#allocation2 + $0x58] sm:$0xff]
    %v3848 = vld [vmem:[#allocation2 + $0x60] sm:$0xff]
    %v3849 = vld [vmem:[#allocation2 + $0x68] sm:$0xff]
    %v3850 = vld [vmem:[#allocation2 + $0x70] sm:$0xff]
    %v3851 = vld [vmem:[#allocation2 + $0x78] sm:$0xff]
    %v3852 = vld [vmem:[#allocation2 + $0x80] sm:$0xff]
    %v3853 = vld [vmem:[#allocation2 + $0x88] sm:$0xff]
    %v3854 = vld [vmem:[#allocation2 + $0x90] sm:$0xff]
    %v3855 = vpack.c.bf16 %v3839, %v3838
    %v3856 = vpack.c.bf16 %v3841, %v3840
    %v3857 = vpack.c.bf16 %v3843, %v3842
    %v3858 = vpack.c.bf16 %v3845, %v3844
    %v3859 = vpack.c.bf16 %v3847, %v3846
    %v3860 = vpack.c.bf16 %v3849, %v3848
    %v3861 = vpack.c.bf16 %v3851, %v3850
    %v3862 = vpack.c.bf16 %v3853, %v3852
    %v3863 = vpack.c.bf16 %v3854, %v3854
    %s3864 = scalar_lea.vmem %s4, 448
    %v3865 = vld [vmem:[%s3864] sm:$0xf]
    %v3866 = vld [vmem:[%s3864 + $0x4] sm:$0xf]
    %v3867 = vld [vmem:[%s3864 + $0x8] sm:$0xf]
    %v3868 = vld [vmem:[%s3864 + $0xc] sm:$0xf]
    %v3869 = vld [vmem:[%s3864 + $0x10] sm:$0xf]
    %v3870 = vld [vmem:[%s3864 + $0x14] sm:$0xf]
    %v3871 = vld [vmem:[%s3864 + $0x18] sm:$0xf]
    %v3872 = vld [vmem:[%s3864 + $0x1c] sm:$0xf]
    %v3873 = vld [vmem:[%s3864 + $0x20] sm:$0xf]
    %v3874 = vld [vmem:[%s3864 + $0x24] sm:$0xf]
    %v3875 = vld [vmem:[%s3864 + $0x28] sm:$0xf]
    %v3876 = vld [vmem:[%s3864 + $0x2c] sm:$0xf]
    %v3877 = vld [vmem:[%s3864 + $0x30] sm:$0xf]
    %v3878 = vld [vmem:[%s3864 + $0x34] sm:$0xf]
    %v3879 = vld [vmem:[%s3864 + $0x38] sm:$0xf]
    %v3880 = vld [vmem:[%s3864 + $0x3c] sm:$0xf]
    %v3897 = vunpack.c.l.b16 %v3865
    %v3898 = vunpack.c.l.b16 %v3866
    %v3899 = vunpack.c.l.b16 %v3867
    %v3900 = vunpack.c.l.b16 %v3868
    %v3901 = vunpack.c.l.b16 %v3869
    %v3902 = vunpack.c.l.b16 %v3870
    %v3903 = vunpack.c.l.b16 %v3871
    %v3904 = vunpack.c.l.b16 %v3872
    %v3905 = vunpack.c.l.b16 %v3873
    %v3906 = vunpack.c.l.b16 %v3874
    %v3907 = vunpack.c.l.b16 %v3875
    %v3908 = vunpack.c.l.b16 %v3876
    %v3909 = vunpack.c.l.b16 %v3877
    %v3910 = vunpack.c.l.b16 %v3878
    %v3911 = vunpack.c.l.b16 %v3879
    %v3912 = vunpack.c.l.b16 %v3880
    %v3913 = vpack.c.b16 %v3898, %v3897
    %v3914 = vpack.c.b16 %v3900, %v3899
    %v3915 = vpack.c.b16 %v3902, %v3901
    %v3916 = vpack.c.b16 %v3904, %v3903
    %v3917 = vpack.c.b16 %v3906, %v3905
    %v3918 = vpack.c.b16 %v3908, %v3907
    %v3919 = vpack.c.b16 %v3910, %v3909
    %v3920 = vpack.c.b16 %v3912, %v3911
    %3929 = vmatprep.subr.bf16.mxu0 0
    %3930 = vmatpush1.bf16.msra.mxu0 %v3913
    %3931 = vmatprep.subr.bf16.mxu0 0
    %3932 = vmatpush1.bf16.msra.mxu0 %v3914
    %3933 = vmatprep.subr.bf16.mxu0 0
    %3934 = vmatpush1.bf16.msra.mxu0 %v3915
    %3935 = vmatprep.subr.bf16.mxu0 0
    %3936 = vmatpush1.bf16.msra.mxu0 %v3916
    %3937 = vmatprep.subr.bf16.mxu0 0
    %3938 = vmatpush1.bf16.msra.mxu0 %v3917
    %3939 = vmatprep.subr.bf16.mxu0 0
    %3940 = vmatpush1.bf16.msra.mxu0 %v3918
    %3941 = vmatprep.subr.bf16.mxu0 0
    %3942 = vmatpush1.bf16.msra.mxu0 %v3919
    %3943 = vmatprep.subr.bf16.mxu0 0
    %3944 = vmatpush1.bf16.msra.mxu0 %v3920
    %3945 = vmatprep.subr.bf16.mxu0 0
    %3946 = vmatpush1.bf16.msra.mxu0 0
    %3947 = vmatprep.subr.bf16.mxu0 0
    %3948 = vmatpush1.bf16.msra.mxu0 0
    %3949 = vmatprep.subr.bf16.mxu0 0
    %3950 = vmatpush1.bf16.msra.mxu0 0
    %3951 = vmatprep.subr.bf16.mxu0 0
    %3952 = vmatpush1.bf16.msra.mxu0 0
    %3953 = vmatprep.subr.bf16.mxu0 0
    %3954 = vmatpush1.bf16.msra.mxu0 0
    %3955 = vmatprep.subr.bf16.mxu0 0
    %3956 = vmatpush1.bf16.msra.mxu0 0
    %3957 = vmatprep.subr.bf16.mxu0 0
    %3958 = vmatpush1.bf16.msra.mxu0 0
    %3959 = vmatprep.subr.bf16.mxu0 0
    %3960 = vmatpush1.bf16.msra.mxu0 0
    %3961 = vmatprep.mubr.bf16.mxu0 0
    %3962 = vmatmul.mubr.bf16.gmra.mrb[0].mxu0 %v3855
    %v3963 = vpop.f32.mrb[0].mxu0
    %v3964 = vadd.f32 0.0, %v3963
    %v3965 = vpop.f32.mrb[0].mxu0
    %v3966 = vpop.f32.mrb[0].mxu0
    %v3967 = vadd.f32 0.0, %v3966
    %v3968 = vpop.f32.mrb[0].mxu0
    %3969 = vmatprep.mubr.bf16.mxu0 0
    %3970 = vmatmul.mubr.bf16.gmra.mrb[0].mxu0 %v3856
    %v3971 = vpop.f32.mrb[0].mxu0
    %v3972 = vadd.f32 0.0, %v3971
    %v3973 = vpop.f32.mrb[0].mxu0
    %v3974 = vpop.f32.mrb[0].mxu0
    %v3975 = vadd.f32 0.0, %v3974
    %v3976 = vpop.f32.mrb[0].mxu0
    %3977 = vmatprep.mubr.bf16.mxu0 0
    %3978 = vmatmul.mubr.bf16.gmra.mrb[0].mxu0 %v3857
    %v3979 = vpop.f32.mrb[0].mxu0
    %v3980 = vadd.f32 0.0, %v3979
    %v3981 = vpop.f32.mrb[0].mxu0
    %v3982 = vpop.f32.mrb[0].mxu0
    %v3983 = vadd.f32 0.0, %v3982
    %v3984 = vpop.f32.mrb[0].mxu0
    %3985 = vmatprep.mubr.bf16.mxu0 0
    %3986 = vmatmul.mubr.bf16.gmra.mrb[0].mxu0 %v3858
    %v3987 = vpop.f32.mrb[0].mxu0
    %v3988 = vadd.f32 0.0, %v3987
    %v3989 = vpop.f32.mrb[0].mxu0
    %v3990 = vpop.f32.mrb[0].mxu0
    %v3991 = vadd.f32 0.0, %v3990
    %v3992 = vpop.f32.mrb[0].mxu0
    %3993 = vmatprep.mubr.bf16.mxu0 0
    %3994 = vmatmul.mubr.bf16.gmra.mrb[0].mxu0 %v3859
    %v3995 = vpop.f32.mrb[0].mxu0
    %v3996 = vadd.f32 0.0, %v3995
    %v3997 = vpop.f32.mrb[0].mxu0
    %v3998 = vpop.f32.mrb[0].mxu0
    %v3999 = vadd.f32 0.0, %v3998
    %v4000 = vpop.f32.mrb[0].mxu0
    %4001 = vmatprep.mubr.bf16.mxu0 0
    %4002 = vmatmul.mubr.bf16.gmra.mrb[0].mxu0 %v3860
    %v4003 = vpop.f32.mrb[0].mxu0
    %v4004 = vadd.f32 0.0, %v4003
    %v4005 = vpop.f32.mrb[0].mxu0
    %v4006 = vpop.f32.mrb[0].mxu0
    %v4007 = vadd.f32 0.0, %v4006
    %v4008 = vpop.f32.mrb[0].mxu0
    %4009 = vmatprep.mubr.bf16.mxu0 0
    %4010 = vmatmul.mubr.bf16.gmra.mrb[0].mxu0 %v3861
    %v4011 = vpop.f32.mrb[0].mxu0
    %v4012 = vadd.f32 0.0, %v4011
    %v4013 = vpop.f32.mrb[0].mxu0
    %v4014 = vpop.f32.mrb[0].mxu0
    %v4015 = vadd.f32 0.0, %v4014
    %v4016 = vpop.f32.mrb[0].mxu0
    %4017 = vmatprep.mubr.bf16.mxu0 0
    %4018 = vmatmul.mubr.bf16.gmra.mrb[0].mxu0 %v3862
    %v4019 = vpop.f32.mrb[0].mxu0
    %v4020 = vadd.f32 0.0, %v4019
    %v4021 = vpop.f32.mrb[0].mxu0
    %v4022 = vpop.f32.mrb[0].mxu0
    %v4023 = vadd.f32 0.0, %v4022
    %v4024 = vpop.f32.mrb[0].mxu0
    %4025 = vmatprep.mubr.bf16.mxu0 0
    %4026 = vmatmul.mubr.bf16.gmra.mrb[0].mxu0 %v3863
    %v4027 = vpop.f32.mrb[0].mxu0
    %v4028 = vadd.f32 0.0, %v4027
    %v4029 = vpop.f32.mrb[0].mxu0
    %v4030 = vpop.f32.mrb[0].mxu0
    %v4031 = vpop.f32.mrb[0].mxu0
    %4032 = vdwg.mxu0
    %v4033 = vadd.f32 %v3821, %v3964
    %v4034 = vadd.f32 %v3822, %v3967
    %v4035 = vadd.f32 %v3823, %v3972
    %v4036 = vadd.f32 %v3824, %v3975
    %v4037 = vadd.f32 %v3825, %v3980
    %v4038 = vadd.f32 %v3826, %v3983
    %v4039 = vadd.f32 %v3827, %v3988
    %v4040 = vadd.f32 %v3828, %v3991
    %v4041 = vadd.f32 %v3829, %v3996
    %v4042 = vadd.f32 %v3830, %v3999
    %v4043 = vadd.f32 %v3831, %v4004
    %v4044 = vadd.f32 %v3832, %v4007
    %v4045 = vadd.f32 %v3833, %v4012
    %v4046 = vadd.f32 %v3834, %v4015
    %v4047 = vadd.f32 %v3835, %v4020
    %v4048 = vadd.f32 %v3836, %v4023
    %v4049 = vadd.f32 %v3837, %v4028
    %v4050 = vld [vmem:[#allocation2 + $0x11] sm:$0xff]
    %v4051 = vld [vmem:[#allocation2 + $0x19] sm:$0xff]
    %v4052 = vld [vmem:[#allocation2 + $0x21] sm:$0xff]
    %v4053 = vld [vmem:[#allocation2 + $0x29] sm:$0xff]
    %v4054 = vld [vmem:[#allocation2 + $0x31] sm:$0xff]
    %v4055 = vld [vmem:[#allocation2 + $0x39] sm:$0xff]
    %v4056 = vld [vmem:[#allocation2 + $0x41] sm:$0xff]
    %v4057 = vld [vmem:[#allocation2 + $0x49] sm:$0xff]
    %v4058 = vld [vmem:[#allocation2 + $0x51] sm:$0xff]
    %v4059 = vld [vmem:[#allocation2 + $0x59] sm:$0xff]
    %v4060 = vld [vmem:[#allocation2 + $0x61] sm:$0xff]
    %v4061 = vld [vmem:[#allocation2 + $0x69] sm:$0xff]
    %v4062 = vld [vmem:[#allocation2 + $0x71] sm:$0xff]
    %v4063 = vld [vmem:[#allocation2 + $0x79] sm:$0xff]
    %v4064 = vld [vmem:[#allocation2 + $0x81] sm:$0xff]
    %v4065 = vld [vmem:[#allocation2 + $0x89] sm:$0xff]
    %v4066 = vld [vmem:[#allocation2 + $0x91] sm:$0xff]
    %v4067 = vpack.c.bf16 %v4051, %v4050
    %v4068 = vpack.c.bf16 %v4053, %v4052
    %v4069 = vpack.c.bf16 %v4055, %v4054
    %v4070 = vpack.c.bf16 %v4057, %v4056
    %v4071 = vpack.c.bf16 %v4059, %v4058
    %v4072 = vpack.c.bf16 %v4061, %v4060
    %v4073 = vpack.c.bf16 %v4063, %v4062
    %v4074 = vpack.c.bf16 %v4065, %v4064
    %v4075 = vpack.c.bf16 %v4066, %v4066
    %s4076 = scalar_lea.vmem %s4, 512
    %v4077 = vld [vmem:[%s4076] sm:$0xf]
    %v4078 = vld [vmem:[%s4076 + $0x4] sm:$0xf]
    %v4079 = vld [vmem:[%s4076 + $0x8] sm:$0xf]
    %v4080 = vld [vmem:[%s4076 + $0xc] sm:$0xf]
    %v4081 = vld [vmem:[%s4076 + $0x10] sm:$0xf]
    %v4082 = vld [vmem:[%s4076 + $0x14] sm:$0xf]
    %v4083 = vld [vmem:[%s4076 + $0x18] sm:$0xf]
    %v4084 = vld [vmem:[%s4076 + $0x1c] sm:$0xf]
    %v4085 = vld [vmem:[%s4076 + $0x20] sm:$0xf]
    %v4086 = vld [vmem:[%s4076 + $0x24] sm:$0xf]
    %v4087 = vld [vmem:[%s4076 + $0x28] sm:$0xf]
    %v4088 = vld [vmem:[%s4076 + $0x2c] sm:$0xf]
    %v4089 = vld [vmem:[%s4076 + $0x30] sm:$0xf]
    %v4090 = vld [vmem:[%s4076 + $0x34] sm:$0xf]
    %v4091 = vld [vmem:[%s4076 + $0x38] sm:$0xf]
    %v4092 = vld [vmem:[%s4076 + $0x3c] sm:$0xf]
    %v4109 = vunpack.c.l.b16 %v4077
    %v4110 = vunpack.c.l.b16 %v4078
    %v4111 = vunpack.c.l.b16 %v4079
    %v4112 = vunpack.c.l.b16 %v4080
    %v4113 = vunpack.c.l.b16 %v4081
    %v4114 = vunpack.c.l.b16 %v4082
    %v4115 = vunpack.c.l.b16 %v4083
    %v4116 = vunpack.c.l.b16 %v4084
    %v4117 = vunpack.c.l.b16 %v4085
    %v4118 = vunpack.c.l.b16 %v4086
    %v4119 = vunpack.c.l.b16 %v4087
    %v4120 = vunpack.c.l.b16 %v4088
    %v4121 = vunpack.c.l.b16 %v4089
    %v4122 = vunpack.c.l.b16 %v4090
    %v4123 = vunpack.c.l.b16 %v4091
    %v4124 = vunpack.c.l.b16 %v4092
    %v4125 = vpack.c.b16 %v4110, %v4109
    %v4126 = vpack.c.b16 %v4112, %v4111
    %v4127 = vpack.c.b16 %v4114, %v4113
    %v4128 = vpack.c.b16 %v4116, %v4115
    %v4129 = vpack.c.b16 %v4118, %v4117
    %v4130 = vpack.c.b16 %v4120, %v4119
    %v4131 = vpack.c.b16 %v4122, %v4121
    %v4132 = vpack.c.b16 %v4124, %v4123
    %4141 = vmatprep.subr.bf16.mxu0 0
    %4142 = vmatpush1.bf16.msra.mxu0 %v4125
    %4143 = vmatprep.subr.bf16.mxu0 0
    %4144 = vmatpush1.bf16.msra.mxu0 %v4126
    %4145 = vmatprep.subr.bf16.mxu0 0
    %4146 = vmatpush1.bf16.msra.mxu0 %v4127
    %4147 = vmatprep.subr.bf16.mxu0 0
    %4148 = vmatpush1.bf16.msra.mxu0 %v4128
    %4149 = vmatprep.subr.bf16.mxu0 0
    %4150 = vmatpush1.bf16.msra.mxu0 %v4129
    %4151 = vmatprep.subr.bf16.mxu0 0
    %4152 = vmatpush1.bf16.msra.mxu0 %v4130
    %4153 = vmatprep.subr.bf16.mxu0 0
    %4154 = vmatpush1.bf16.msra.mxu0 %v4131
    %4155 = vmatprep.subr.bf16.mxu0 0
    %4156 = vmatpush1.bf16.msra.mxu0 %v4132
    %4157 = vmatprep.subr.bf16.mxu0 0
    %4158 = vmatpush1.bf16.msra.mxu0 0
    %4159 = vmatprep.subr.bf16.mxu0 0
    %4160 = vmatpush1.bf16.msra.mxu0 0
    %4161 = vmatprep.subr.bf16.mxu0 0
    %4162 = vmatpush1.bf16.msra.mxu0 0
    %4163 = vmatprep.subr.bf16.mxu0 0
    %4164 = vmatpush1.bf16.msra.mxu0 0
    %4165 = vmatprep.subr.bf16.mxu0 0
    %4166 = vmatpush1.bf16.msra.mxu0 0
    %4167 = vmatprep.subr.bf16.mxu0 0
    %4168 = vmatpush1.bf16.msra.mxu0 0
    %4169 = vmatprep.subr.bf16.mxu0 0
    %4170 = vmatpush1.bf16.msra.mxu0 0
    %4171 = vmatprep.subr.bf16.mxu0 0
    %4172 = vmatpush1.bf16.msra.mxu0 0
    %4173 = vmatprep.mubr.bf16.mxu0 0
    %4174 = vmatmul.mubr.bf16.gmra.mrb[0].mxu0 %v4067
    %v4175 = vpop.f32.mrb[0].mxu0
    %v4176 = vadd.f32 0.0, %v4175
    %v4177 = vpop.f32.mrb[0].mxu0
    %v4178 = vpop.f32.mrb[0].mxu0
    %v4179 = vadd.f32 0.0, %v4178
    %v4180 = vpop.f32.mrb[0].mxu0
    %4181 = vmatprep.mubr.bf16.mxu0 0
    %4182 = vmatmul.mubr.bf16.gmra.mrb[0].mxu0 %v4068
    %v4183 = vpop.f32.mrb[0].mxu0
    %v4184 = vadd.f32 0.0, %v4183
    %v4185 = vpop.f32.mrb[0].mxu0
    %v4186 = vpop.f32.mrb[0].mxu0
    %v4187 = vadd.f32 0.0, %v4186
    %v4188 = vpop.f32.mrb[0].mxu0
    %4189 = vmatprep.mubr.bf16.mxu0 0
    %4190 = vmatmul.mubr.bf16.gmra.mrb[0].mxu0 %v4069
    %v4191 = vpop.f32.mrb[0].mxu0
    %v4192 = vadd.f32 0.0, %v4191
    %v4193 = vpop.f32.mrb[0].mxu0
    %v4194 = vpop.f32.mrb[0].mxu0
    %v4195 = vadd.f32 0.0, %v4194
    %v4196 = vpop.f32.mrb[0].mxu0
    %4197 = vmatprep.mubr.bf16.mxu0 0
    %4198 = vmatmul.mubr.bf16.gmra.mrb[0].mxu0 %v4070
    %v4199 = vpop.f32.mrb[0].mxu0
    %v4200 = vadd.f32 0.0, %v4199
    %v4201 = vpop.f32.mrb[0].mxu0
    %v4202 = vpop.f32.mrb[0].mxu0
    %v4203 = vadd.f32 0.0, %v4202
    %v4204 = vpop.f32.mrb[0].mxu0
    %4205 = vmatprep.mubr.bf16.mxu0 0
    %4206 = vmatmul.mubr.bf16.gmra.mrb[0].mxu0 %v4071
    %v4207 = vpop.f32.mrb[0].mxu0
    %v4208 = vadd.f32 0.0, %v4207
    %v4209 = vpop.f32.mrb[0].mxu0
    %v4210 = vpop.f32.mrb[0].mxu0
    %v4211 = vadd.f32 0.0, %v4210
    %v4212 = vpop.f32.mrb[0].mxu0
    %4213 = vmatprep.mubr.bf16.mxu0 0
    %4214 = vmatmul.mubr.bf16.gmra.mrb[0].mxu0 %v4072
    %v4215 = vpop.f32.mrb[0].mxu0
    %v4216 = vadd.f32 0.0, %v4215
    %v4217 = vpop.f32.mrb[0].mxu0
    %v4218 = vpop.f32.mrb[0].mxu0
    %v4219 = vadd.f32 0.0, %v4218
    %v4220 = vpop.f32.mrb[0].mxu0
    %4221 = vmatprep.mubr.bf16.mxu0 0
    %4222 = vmatmul.mubr.bf16.gmra.mrb[0].mxu0 %v4073
    %v4223 = vpop.f32.mrb[0].mxu0
    %v4224 = vadd.f32 0.0, %v4223
    %v4225 = vpop.f32.mrb[0].mxu0
    %v4226 = vpop.f32.mrb[0].mxu0
    %v4227 = vadd.f32 0.0, %v4226
    %v4228 = vpop.f32.mrb[0].mxu0
    %4229 = vmatprep.mubr.bf16.mxu0 0
    %4230 = vmatmul.mubr.bf16.gmra.mrb[0].mxu0 %v4074
    %v4231 = vpop.f32.mrb[0].mxu0
    %v4232 = vadd.f32 0.0, %v4231
    %v4233 = vpop.f32.mrb[0].mxu0
    %v4234 = vpop.f32.mrb[0].mxu0
    %v4235 = vadd.f32 0.0, %v4234
    %v4236 = vpop.f32.mrb[0].mxu0
    %4237 = vmatprep.mubr.bf16.mxu0 0
    %4238 = vmatmul.mubr.bf16.gmra.mrb[0].mxu0 %v4075
    %v4239 = vpop.f32.mrb[0].mxu0
    %v4240 = vadd.f32 0.0, %v4239
    %v4241 = vpop.f32.mrb[0].mxu0
    %v4242 = vpop.f32.mrb[0].mxu0
    %v4243 = vpop.f32.mrb[0].mxu0
    %4244 = vdwg.mxu0
    %v4245 = vadd.f32 %v4033, %v4176
    %v4246 = vadd.f32 %v4034, %v4179
    %v4247 = vadd.f32 %v4035, %v4184
    %v4248 = vadd.f32 %v4036, %v4187
    %v4249 = vadd.f32 %v4037, %v4192
    %v4250 = vadd.f32 %v4038, %v4195
    %v4251 = vadd.f32 %v4039, %v4200
    %v4252 = vadd.f32 %v4040, %v4203
    %v4253 = vadd.f32 %v4041, %v4208
    %v4254 = vadd.f32 %v4042, %v4211
    %v4255 = vadd.f32 %v4043, %v4216
    %v4256 = vadd.f32 %v4044, %v4219
    %v4257 = vadd.f32 %v4045, %v4224
    %v4258 = vadd.f32 %v4046, %v4227
    %v4259 = vadd.f32 %v4047, %v4232
    %v4260 = vadd.f32 %v4048, %v4235
    %v4261 = vadd.f32 %v4049, %v4240
    %v4262 = vld [vmem:[#allocation2 + $0x12] sm:$0xff]
    %v4263 = vld [vmem:[#allocation2 + $0x1a] sm:$0xff]
    %v4264 = vld [vmem:[#allocation2 + $0x22] sm:$0xff]
    %v4265 = vld [vmem:[#allocation2 + $0x2a] sm:$0xff]
    %v4266 = vld [vmem:[#allocation2 + $0x32] sm:$0xff]
    %v4267 = vld [vmem:[#allocation2 + $0x3a] sm:$0xff]
    %v4268 = vld [vmem:[#allocation2 + $0x42] sm:$0xff]
    %v4269 = vld [vmem:[#allocation2 + $0x4a] sm:$0xff]
    %v4270 = vld [vmem:[#allocation2 + $0x52] sm:$0xff]
    %v4271 = vld [vmem:[#allocation2 + $0x5a] sm:$0xff]
    %v4272 = vld [vmem:[#allocation2 + $0x62] sm:$0xff]
    %v4273 = vld [vmem:[#allocation2 + $0x6a] sm:$0xff]
    %v4274 = vld [vmem:[#allocation2 + $0x72] sm:$0xff]
    %v4275 = vld [vmem:[#allocation2 + $0x7a] sm:$0xff]
    %v4276 = vld [vmem:[#allocation2 + $0x82] sm:$0xff]
    %v4277 = vld [vmem:[#allocation2 + $0x8a] sm:$0xff]
    %v4278 = vld [vmem:[#allocation2 + $0x92] sm:$0xff]
    %v4279 = vpack.c.bf16 %v4263, %v4262
    %v4280 = vpack.c.bf16 %v4265, %v4264
    %v4281 = vpack.c.bf16 %v4267, %v4266
    %v4282 = vpack.c.bf16 %v4269, %v4268
    %v4283 = vpack.c.bf16 %v4271, %v4270
    %v4284 = vpack.c.bf16 %v4273, %v4272
    %v4285 = vpack.c.bf16 %v4275, %v4274
    %v4286 = vpack.c.bf16 %v4277, %v4276
    %v4287 = vpack.c.bf16 %v4278, %v4278
    %s4288 = scalar_lea.vmem %s4, 576
    %v4289 = vld [vmem:[%s4288] sm:$0xf]
    %v4290 = vld [vmem:[%s4288 + $0x4] sm:$0xf]
    %v4291 = vld [vmem:[%s4288 + $0x8] sm:$0xf]
    %v4292 = vld [vmem:[%s4288 + $0xc] sm:$0xf]
    %v4293 = vld [vmem:[%s4288 + $0x10] sm:$0xf]
    %v4294 = vld [vmem:[%s4288 + $0x14] sm:$0xf]
    %v4295 = vld [vmem:[%s4288 + $0x18] sm:$0xf]
    %v4296 = vld [vmem:[%s4288 + $0x1c] sm:$0xf]
    %v4297 = vld [vmem:[%s4288 + $0x20] sm:$0xf]
    %v4298 = vld [vmem:[%s4288 + $0x24] sm:$0xf]
    %v4299 = vld [vmem:[%s4288 + $0x28] sm:$0xf]
    %v4300 = vld [vmem:[%s4288 + $0x2c] sm:$0xf]
    %v4301 = vld [vmem:[%s4288 + $0x30] sm:$0xf]
    %v4302 = vld [vmem:[%s4288 + $0x34] sm:$0xf]
    %v4303 = vld [vmem:[%s4288 + $0x38] sm:$0xf]
    %v4304 = vld [vmem:[%s4288 + $0x3c] sm:$0xf]
    %v4321 = vunpack.c.l.b16 %v4289
    %v4322 = vunpack.c.l.b16 %v4290
    %v4323 = vunpack.c.l.b16 %v4291
    %v4324 = vunpack.c.l.b16 %v4292
    %v4325 = vunpack.c.l.b16 %v4293
    %v4326 = vunpack.c.l.b16 %v4294
    %v4327 = vunpack.c.l.b16 %v4295
    %v4328 = vunpack.c.l.b16 %v4296
    %v4329 = vunpack.c.l.b16 %v4297
    %v4330 = vunpack.c.l.b16 %v4298
    %v4331 = vunpack.c.l.b16 %v4299
    %v4332 = vunpack.c.l.b16 %v4300
    %v4333 = vunpack.c.l.b16 %v4301
    %v4334 = vunpack.c.l.b16 %v4302
    %v4335 = vunpack.c.l.b16 %v4303
    %v4336 = vunpack.c.l.b16 %v4304
    %v4337 = vpack.c.b16 %v4322, %v4321
    %v4338 = vpack.c.b16 %v4324, %v4323
    %v4339 = vpack.c.b16 %v4326, %v4325
    %v4340 = vpack.c.b16 %v4328, %v4327
    %v4341 = vpack.c.b16 %v4330, %v4329
    %v4342 = vpack.c.b16 %v4332, %v4331
    %v4343 = vpack.c.b16 %v4334, %v4333
    %v4344 = vpack.c.b16 %v4336, %v4335
    %4353 = vmatprep.subr.bf16.mxu0 0
    %4354 = vmatpush1.bf16.msra.mxu0 %v4337
    %4355 = vmatprep.subr.bf16.mxu0 0
    %4356 = vmatpush1.bf16.msra.mxu0 %v4338
    %4357 = vmatprep.subr.bf16.mxu0 0
    %4358 = vmatpush1.bf16.msra.mxu0 %v4339
    %4359 = vmatprep.subr.bf16.mxu0 0
    %4360 = vmatpush1.bf16.msra.mxu0 %v4340
    %4361 = vmatprep.subr.bf16.mxu0 0
    %4362 = vmatpush1.bf16.msra.mxu0 %v4341
    %4363 = vmatprep.subr.bf16.mxu0 0
    %4364 = vmatpush1.bf16.msra.mxu0 %v4342
    %4365 = vmatprep.subr.bf16.mxu0 0
    %4366 = vmatpush1.bf16.msra.mxu0 %v4343
    %4367 = vmatprep.subr.bf16.mxu0 0
    %4368 = vmatpush1.bf16.msra.mxu0 %v4344
    %4369 = vmatprep.subr.bf16.mxu0 0
    %4370 = vmatpush1.bf16.msra.mxu0 0
    %4371 = vmatprep.subr.bf16.mxu0 0
    %4372 = vmatpush1.bf16.msra.mxu0 0
    %4373 = vmatprep.subr.bf16.mxu0 0
    %4374 = vmatpush1.bf16.msra.mxu0 0
    %4375 = vmatprep.subr.bf16.mxu0 0
    %4376 = vmatpush1.bf16.msra.mxu0 0
    %4377 = vmatprep.subr.bf16.mxu0 0
    %4378 = vmatpush1.bf16.msra.mxu0 0
    %4379 = vmatprep.subr.bf16.mxu0 0
    %4380 = vmatpush1.bf16.msra.mxu0 0
    %4381 = vmatprep.subr.bf16.mxu0 0
    %4382 = vmatpush1.bf16.msra.mxu0 0
    %4383 = vmatprep.subr.bf16.mxu0 0
    %4384 = vmatpush1.bf16.msra.mxu0 0
    %4385 = vmatprep.mubr.bf16.mxu0 0
    %4386 = vmatmul.mubr.bf16.gmra.mrb[0].mxu0 %v4279
    %v4387 = vpop.f32.mrb[0].mxu0
    %v4388 = vadd.f32 0.0, %v4387
    %v4389 = vpop.f32.mrb[0].mxu0
    %v4390 = vpop.f32.mrb[0].mxu0
    %v4391 = vadd.f32 0.0, %v4390
    %v4392 = vpop.f32.mrb[0].mxu0
    %4393 = vmatprep.mubr.bf16.mxu0 0
    %4394 = vmatmul.mubr.bf16.gmra.mrb[0].mxu0 %v4280
    %v4395 = vpop.f32.mrb[0].mxu0
    %v4396 = vadd.f32 0.0, %v4395
    %v4397 = vpop.f32.mrb[0].mxu0
    %v4398 = vpop.f32.mrb[0].mxu0
    %v4399 = vadd.f32 0.0, %v4398
    %v4400 = vpop.f32.mrb[0].mxu0
    %4401 = vmatprep.mubr.bf16.mxu0 0
    %4402 = vmatmul.mubr.bf16.gmra.mrb[0].mxu0 %v4281
    %v4403 = vpop.f32.mrb[0].mxu0
    %v4404 = vadd.f32 0.0, %v4403
    %v4405 = vpop.f32.mrb[0].mxu0
    %v4406 = vpop.f32.mrb[0].mxu0
    %v4407 = vadd.f32 0.0, %v4406
    %v4408 = vpop.f32.mrb[0].mxu0
    %4409 = vmatprep.mubr.bf16.mxu0 0
    %4410 = vmatmul.mubr.bf16.gmra.mrb[0].mxu0 %v4282
    %v4411 = vpop.f32.mrb[0].mxu0
    %v4412 = vadd.f32 0.0, %v4411
    %v4413 = vpop.f32.mrb[0].mxu0
    %v4414 = vpop.f32.mrb[0].mxu0
    %v4415 = vadd.f32 0.0, %v4414
    %v4416 = vpop.f32.mrb[0].mxu0
    %4417 = vmatprep.mubr.bf16.mxu0 0
    %4418 = vmatmul.mubr.bf16.gmra.mrb[0].mxu0 %v4283
    %v4419 = vpop.f32.mrb[0].mxu0
    %v4420 = vadd.f32 0.0, %v4419
    %v4421 = vpop.f32.mrb[0].mxu0
    %v4422 = vpop.f32.mrb[0].mxu0
    %v4423 = vadd.f32 0.0, %v4422
    %v4424 = vpop.f32.mrb[0].mxu0
    %4425 = vmatprep.mubr.bf16.mxu0 0
    %4426 = vmatmul.mubr.bf16.gmra.mrb[0].mxu0 %v4284
    %v4427 = vpop.f32.mrb[0].mxu0
    %v4428 = vadd.f32 0.0, %v4427
    %v4429 = vpop.f32.mrb[0].mxu0
    %v4430 = vpop.f32.mrb[0].mxu0
    %v4431 = vadd.f32 0.0, %v4430
    %v4432 = vpop.f32.mrb[0].mxu0
    %4433 = vmatprep.mubr.bf16.mxu0 0
    %4434 = vmatmul.mubr.bf16.gmra.mrb[0].mxu0 %v4285
    %v4435 = vpop.f32.mrb[0].mxu0
    %v4436 = vadd.f32 0.0, %v4435
    %v4437 = vpop.f32.mrb[0].mxu0
    %v4438 = vpop.f32.mrb[0].mxu0
    %v4439 = vadd.f32 0.0, %v4438
    %v4440 = vpop.f32.mrb[0].mxu0
    %4441 = vmatprep.mubr.bf16.mxu0 0
    %4442 = vmatmul.mubr.bf16.gmra.mrb[0].mxu0 %v4286
    %v4443 = vpop.f32.mrb[0].mxu0
    %v4444 = vadd.f32 0.0, %v4443
    %v4445 = vpop.f32.mrb[0].mxu0
    %v4446 = vpop.f32.mrb[0].mxu0
    %v4447 = vadd.f32 0.0, %v4446
    %v4448 = vpop.f32.mrb[0].mxu0
    %4449 = vmatprep.mubr.bf16.mxu0 0
    %4450 = vmatmul.mubr.bf16.gmra.mrb[0].mxu0 %v4287
    %v4451 = vpop.f32.mrb[0].mxu0
    %v4452 = vadd.f32 0.0, %v4451
    %v4453 = vpop.f32.mrb[0].mxu0
    %v4454 = vpop.f32.mrb[0].mxu0
    %v4455 = vpop.f32.mrb[0].mxu0
    %4456 = vdwg.mxu0
    %v4457 = vadd.f32 %v4245, %v4388
    %v4458 = vadd.f32 %v4246, %v4391
    %v4459 = vadd.f32 %v4247, %v4396
    %v4460 = vadd.f32 %v4248, %v4399
    %v4461 = vadd.f32 %v4249, %v4404
    %v4462 = vadd.f32 %v4250, %v4407
    %v4463 = vadd.f32 %v4251, %v4412
    %v4464 = vadd.f32 %v4252, %v4415
    %v4465 = vadd.f32 %v4253, %v4420
    %v4466 = vadd.f32 %v4254, %v4423
    %v4467 = vadd.f32 %v4255, %v4428
    %v4468 = vadd.f32 %v4256, %v4431
    %v4469 = vadd.f32 %v4257, %v4436
    %v4470 = vadd.f32 %v4258, %v4439
    %v4471 = vadd.f32 %v4259, %v4444
    %v4472 = vadd.f32 %v4260, %v4447
    %v4473 = vadd.f32 %v4261, %v4452
    %v4474 = vld [vmem:[#allocation2 + $0x1c] sm:$0xff]
    %v4475 = vld [vmem:[#allocation2 + $0x24] sm:$0xff]
    %v4476 = vld [vmem:[#allocation2 + $0x2c] sm:$0xff]
    %v4477 = vld [vmem:[#allocation2 + $0x34] sm:$0xff]
    %v4478 = vld [vmem:[#allocation2 + $0x3c] sm:$0xff]
    %v4479 = vld [vmem:[#allocation2 + $0x44] sm:$0xff]
    %v4480 = vld [vmem:[#allocation2 + $0x4c] sm:$0xff]
    %v4481 = vld [vmem:[#allocation2 + $0x54] sm:$0xff]
    %v4482 = vld [vmem:[#allocation2 + $0x5c] sm:$0xff]
    %v4483 = vld [vmem:[#allocation2 + $0x64] sm:$0xff]
    %v4484 = vld [vmem:[#allocation2 + $0x6c] sm:$0xff]
    %v4485 = vld [vmem:[#allocation2 + $0x74] sm:$0xff]
    %v4486 = vld [vmem:[#allocation2 + $0x7c] sm:$0xff]
    %v4487 = vld [vmem:[#allocation2 + $0x84] sm:$0xff]
    %v4488 = vld [vmem:[#allocation2 + $0x8c] sm:$0xff]
    %v4489 = vld [vmem:[#allocation2 + $0x94] sm:$0xff]
    %v4490 = vld [vmem:[#allocation2 + $0x9c] sm:$0xff]
    %v4491 = vpack.c.bf16 %v4475, %v4474
    %v4492 = vpack.c.bf16 %v4477, %v4476
    %v4493 = vpack.c.bf16 %v4479, %v4478
    %v4494 = vpack.c.bf16 %v4481, %v4480
    %v4495 = vpack.c.bf16 %v4483, %v4482
    %v4496 = vpack.c.bf16 %v4485, %v4484
    %v4497 = vpack.c.bf16 %v4487, %v4486
    %v4498 = vpack.c.bf16 %v4489, %v4488
    %v4499 = vpack.c.bf16 %v4490, %v4490
    %s4500 = scalar_lea.vmem %s4, 640
    %v4501 = vld [vmem:[%s4500] sm:$0xf]
    %v4502 = vld [vmem:[%s4500 + $0x4] sm:$0xf]
    %v4503 = vld [vmem:[%s4500 + $0x8] sm:$0xf]
    %v4504 = vld [vmem:[%s4500 + $0xc] sm:$0xf]
    %v4505 = vld [vmem:[%s4500 + $0x10] sm:$0xf]
    %v4506 = vld [vmem:[%s4500 + $0x14] sm:$0xf]
    %v4507 = vld [vmem:[%s4500 + $0x18] sm:$0xf]
    %v4508 = vld [vmem:[%s4500 + $0x1c] sm:$0xf]
    %v4509 = vld [vmem:[%s4500 + $0x20] sm:$0xf]
    %v4510 = vld [vmem:[%s4500 + $0x24] sm:$0xf]
    %v4511 = vld [vmem:[%s4500 + $0x28] sm:$0xf]
    %v4512 = vld [vmem:[%s4500 + $0x2c] sm:$0xf]
    %v4513 = vld [vmem:[%s4500 + $0x30] sm:$0xf]
    %v4514 = vld [vmem:[%s4500 + $0x34] sm:$0xf]
    %v4515 = vld [vmem:[%s4500 + $0x38] sm:$0xf]
    %v4516 = vld [vmem:[%s4500 + $0x3c] sm:$0xf]
    %v4533 = vunpack.c.l.b16 %v4501
    %v4534 = vunpack.c.l.b16 %v4502
    %v4535 = vunpack.c.l.b16 %v4503
    %v4536 = vunpack.c.l.b16 %v4504
    %v4537 = vunpack.c.l.b16 %v4505
    %v4538 = vunpack.c.l.b16 %v4506
    %v4539 = vunpack.c.l.b16 %v4507
    %v4540 = vunpack.c.l.b16 %v4508
    %v4541 = vunpack.c.l.b16 %v4509
    %v4542 = vunpack.c.l.b16 %v4510
    %v4543 = vunpack.c.l.b16 %v4511
    %v4544 = vunpack.c.l.b16 %v4512
    %v4545 = vunpack.c.l.b16 %v4513
    %v4546 = vunpack.c.l.b16 %v4514
    %v4547 = vunpack.c.l.b16 %v4515
    %v4548 = vunpack.c.l.b16 %v4516
    %v4549 = vpack.c.b16 %v4534, %v4533
    %v4550 = vpack.c.b16 %v4536, %v4535
    %v4551 = vpack.c.b16 %v4538, %v4537
    %v4552 = vpack.c.b16 %v4540, %v4539
    %v4553 = vpack.c.b16 %v4542, %v4541
    %v4554 = vpack.c.b16 %v4544, %v4543
    %v4555 = vpack.c.b16 %v4546, %v4545
    %v4556 = vpack.c.b16 %v4548, %v4547
    %4565 = vmatprep.subr.bf16.mxu0 0
    %4566 = vmatpush1.bf16.msra.mxu0 %v4549
    %4567 = vmatprep.subr.bf16.mxu0 0
    %4568 = vmatpush1.bf16.msra.mxu0 %v4550
    %4569 = vmatprep.subr.bf16.mxu0 0
    %4570 = vmatpush1.bf16.msra.mxu0 %v4551
    %4571 = vmatprep.subr.bf16.mxu0 0
    %4572 = vmatpush1.bf16.msra.mxu0 %v4552
    %4573 = vmatprep.subr.bf16.mxu0 0
    %4574 = vmatpush1.bf16.msra.mxu0 %v4553
    %4575 = vmatprep.subr.bf16.mxu0 0
    %4576 = vmatpush1.bf16.msra.mxu0 %v4554
    %4577 = vmatprep.subr.bf16.mxu0 0
    %4578 = vmatpush1.bf16.msra.mxu0 %v4555
    %4579 = vmatprep.subr.bf16.mxu0 0
    %4580 = vmatpush1.bf16.msra.mxu0 %v4556
    %4581 = vmatprep.subr.bf16.mxu0 0
    %4582 = vmatpush1.bf16.msra.mxu0 0
    %4583 = vmatprep.subr.bf16.mxu0 0
    %4584 = vmatpush1.bf16.msra.mxu0 0
    %4585 = vmatprep.subr.bf16.mxu0 0
    %4586 = vmatpush1.bf16.msra.mxu0 0
    %4587 = vmatprep.subr.bf16.mxu0 0
    %4588 = vmatpush1.bf16.msra.mxu0 0
    %4589 = vmatprep.subr.bf16.mxu0 0
    %4590 = vmatpush1.bf16.msra.mxu0 0
    %4591 = vmatprep.subr.bf16.mxu0 0
    %4592 = vmatpush1.bf16.msra.mxu0 0
    %4593 = vmatprep.subr.bf16.mxu0 0
    %4594 = vmatpush1.bf16.msra.mxu0 0
    %4595 = vmatprep.subr.bf16.mxu0 0
    %4596 = vmatpush1.bf16.msra.mxu0 0
    %4597 = vmatprep.mubr.bf16.mxu0 0
    %4598 = vmatmul.mubr.bf16.gmra.mrb[0].mxu0 %v4491
    %v4599 = vpop.f32.mrb[0].mxu0
    %v4600 = vadd.f32 0.0, %v4599
    %v4601 = vpop.f32.mrb[0].mxu0
    %v4602 = vpop.f32.mrb[0].mxu0
    %v4603 = vadd.f32 0.0, %v4602
    %v4604 = vpop.f32.mrb[0].mxu0
    %4605 = vmatprep.mubr.bf16.mxu0 0
    %4606 = vmatmul.mubr.bf16.gmra.mrb[0].mxu0 %v4492
    %v4607 = vpop.f32.mrb[0].mxu0
    %v4608 = vadd.f32 0.0, %v4607
    %v4609 = vpop.f32.mrb[0].mxu0
    %v4610 = vpop.f32.mrb[0].mxu0
    %v4611 = vadd.f32 0.0, %v4610
    %v4612 = vpop.f32.mrb[0].mxu0
    %4613 = vmatprep.mubr.bf16.mxu0 0
    %4614 = vmatmul.mubr.bf16.gmra.mrb[0].mxu0 %v4493
    %v4615 = vpop.f32.mrb[0].mxu0
    %v4616 = vadd.f32 0.0, %v4615
    %v4617 = vpop.f32.mrb[0].mxu0
    %v4618 = vpop.f32.mrb[0].mxu0
    %v4619 = vadd.f32 0.0, %v4618
    %v4620 = vpop.f32.mrb[0].mxu0
    %4621 = vmatprep.mubr.bf16.mxu0 0
    %4622 = vmatmul.mubr.bf16.gmra.mrb[0].mxu0 %v4494
    %v4623 = vpop.f32.mrb[0].mxu0
    %v4624 = vadd.f32 0.0, %v4623
    %v4625 = vpop.f32.mrb[0].mxu0
    %v4626 = vpop.f32.mrb[0].mxu0
    %v4627 = vadd.f32 0.0, %v4626
    %v4628 = vpop.f32.mrb[0].mxu0
    %4629 = vmatprep.mubr.bf16.mxu0 0
    %4630 = vmatmul.mubr.bf16.gmra.mrb[0].mxu0 %v4495
    %v4631 = vpop.f32.mrb[0].mxu0
    %v4632 = vadd.f32 0.0, %v4631
    %v4633 = vpop.f32.mrb[0].mxu0
    %v4634 = vpop.f32.mrb[0].mxu0
    %v4635 = vadd.f32 0.0, %v4634
    %v4636 = vpop.f32.mrb[0].mxu0
    %4637 = vmatprep.mubr.bf16.mxu0 0
    %4638 = vmatmul.mubr.bf16.gmra.mrb[0].mxu0 %v4496
    %v4639 = vpop.f32.mrb[0].mxu0
    %v4640 = vadd.f32 0.0, %v4639
    %v4641 = vpop.f32.mrb[0].mxu0
    %v4642 = vpop.f32.mrb[0].mxu0
    %v4643 = vadd.f32 0.0, %v4642
    %v4644 = vpop.f32.mrb[0].mxu0
    %4645 = vmatprep.mubr.bf16.mxu0 0
    %4646 = vmatmul.mubr.bf16.gmra.mrb[0].mxu0 %v4497
    %v4647 = vpop.f32.mrb[0].mxu0
    %v4648 = vadd.f32 0.0, %v4647
    %v4649 = vpop.f32.mrb[0].mxu0
    %v4650 = vpop.f32.mrb[0].mxu0
    %v4651 = vadd.f32 0.0, %v4650
    %v4652 = vpop.f32.mrb[0].mxu0
    %4653 = vmatprep.mubr.bf16.mxu0 0
    %4654 = vmatmul.mubr.bf16.gmra.mrb[0].mxu0 %v4498
    %v4655 = vpop.f32.mrb[0].mxu0
    %v4656 = vadd.f32 0.0, %v4655
    %v4657 = vpop.f32.mrb[0].mxu0
    %v4658 = vpop.f32.mrb[0].mxu0
    %v4659 = vadd.f32 0.0, %v4658
    %v4660 = vpop.f32.mrb[0].mxu0
    %4661 = vmatprep.mubr.bf16.mxu0 0
    %4662 = vmatmul.mubr.bf16.gmra.mrb[0].mxu0 %v4499
    %v4663 = vpop.f32.mrb[0].mxu0
    %v4664 = vadd.f32 0.0, %v4663
    %v4665 = vpop.f32.mrb[0].mxu0
    %v4666 = vpop.f32.mrb[0].mxu0
    %v4667 = vpop.f32.mrb[0].mxu0
    %4668 = vdwg.mxu0
    %v4669 = vadd.f32 %v4457, %v4600
    %v4670 = vadd.f32 %v4458, %v4603
    %v4671 = vadd.f32 %v4459, %v4608
    %v4672 = vadd.f32 %v4460, %v4611
    %v4673 = vadd.f32 %v4461, %v4616
    %v4674 = vadd.f32 %v4462, %v4619
    %v4675 = vadd.f32 %v4463, %v4624
    %v4676 = vadd.f32 %v4464, %v4627
    %v4677 = vadd.f32 %v4465, %v4632
    %v4678 = vadd.f32 %v4466, %v4635
    %v4679 = vadd.f32 %v4467, %v4640
    %v4680 = vadd.f32 %v4468, %v4643
    %v4681 = vadd.f32 %v4469, %v4648
    %v4682 = vadd.f32 %v4470, %v4651
    %v4683 = vadd.f32 %v4471, %v4656
    %v4684 = vadd.f32 %v4472, %v4659
    %v4685 = vadd.f32 %v4473, %v4664
    %v4686 = vld [vmem:[#allocation2 + $0x1d] sm:$0xff]
    %v4687 = vld [vmem:[#allocation2 + $0x25] sm:$0xff]
    %v4688 = vld [vmem:[#allocation2 + $0x2d] sm:$0xff]
    %v4689 = vld [vmem:[#allocation2 + $0x35] sm:$0xff]
    %v4690 = vld [vmem:[#allocation2 + $0x3d] sm:$0xff]
    %v4691 = vld [vmem:[#allocation2 + $0x45] sm:$0xff]
    %v4692 = vld [vmem:[#allocation2 + $0x4d] sm:$0xff]
    %v4693 = vld [vmem:[#allocation2 + $0x55] sm:$0xff]
    %v4694 = vld [vmem:[#allocation2 + $0x5d] sm:$0xff]
    %v4695 = vld [vmem:[#allocation2 + $0x65] sm:$0xff]
    %v4696 = vld [vmem:[#allocation2 + $0x6d] sm:$0xff]
    %v4697 = vld [vmem:[#allocation2 + $0x75] sm:$0xff]
    %v4698 = vld [vmem:[#allocation2 + $0x7d] sm:$0xff]
    %v4699 = vld [vmem:[#allocation2 + $0x85] sm:$0xff]
    %v4700 = vld [vmem:[#allocation2 + $0x8d] sm:$0xff]
    %v4701 = vld [vmem:[#allocation2 + $0x95] sm:$0xff]
    %v4702 = vld [vmem:[#allocation2 + $0x9d] sm:$0xff]
    %v4703 = vpack.c.bf16 %v4687, %v4686
    %v4704 = vpack.c.bf16 %v4689, %v4688
    %v4705 = vpack.c.bf16 %v4691, %v4690
    %v4706 = vpack.c.bf16 %v4693, %v4692
    %v4707 = vpack.c.bf16 %v4695, %v4694
    %v4708 = vpack.c.bf16 %v4697, %v4696
    %v4709 = vpack.c.bf16 %v4699, %v4698
    %v4710 = vpack.c.bf16 %v4701, %v4700
    %v4711 = vpack.c.bf16 %v4702, %v4702
    %s4712 = scalar_lea.vmem %s4, 704
    %v4713 = vld [vmem:[%s4712] sm:$0xf]
    %v4714 = vld [vmem:[%s4712 + $0x4] sm:$0xf]
    %v4715 = vld [vmem:[%s4712 + $0x8] sm:$0xf]
    %v4716 = vld [vmem:[%s4712 + $0xc] sm:$0xf]
    %v4717 = vld [vmem:[%s4712 + $0x10] sm:$0xf]
    %v4718 = vld [vmem:[%s4712 + $0x14] sm:$0xf]
    %v4719 = vld [vmem:[%s4712 + $0x18] sm:$0xf]
    %v4720 = vld [vmem:[%s4712 + $0x1c] sm:$0xf]
    %v4721 = vld [vmem:[%s4712 + $0x20] sm:$0xf]
    %v4722 = vld [vmem:[%s4712 + $0x24] sm:$0xf]
    %v4723 = vld [vmem:[%s4712 + $0x28] sm:$0xf]
    %v4724 = vld [vmem:[%s4712 + $0x2c] sm:$0xf]
    %v4725 = vld [vmem:[%s4712 + $0x30] sm:$0xf]
    %v4726 = vld [vmem:[%s4712 + $0x34] sm:$0xf]
    %v4727 = vld [vmem:[%s4712 + $0x38] sm:$0xf]
    %v4728 = vld [vmem:[%s4712 + $0x3c] sm:$0xf]
    %v4745 = vunpack.c.l.b16 %v4713
    %v4746 = vunpack.c.l.b16 %v4714
    %v4747 = vunpack.c.l.b16 %v4715
    %v4748 = vunpack.c.l.b16 %v4716
    %v4749 = vunpack.c.l.b16 %v4717
    %v4750 = vunpack.c.l.b16 %v4718
    %v4751 = vunpack.c.l.b16 %v4719
    %v4752 = vunpack.c.l.b16 %v4720
    %v4753 = vunpack.c.l.b16 %v4721
    %v4754 = vunpack.c.l.b16 %v4722
    %v4755 = vunpack.c.l.b16 %v4723
    %v4756 = vunpack.c.l.b16 %v4724
    %v4757 = vunpack.c.l.b16 %v4725
    %v4758 = vunpack.c.l.b16 %v4726
    %v4759 = vunpack.c.l.b16 %v4727
    %v4760 = vunpack.c.l.b16 %v4728
    %v4761 = vpack.c.b16 %v4746, %v4745
    %v4762 = vpack.c.b16 %v4748, %v4747
    %v4763 = vpack.c.b16 %v4750, %v4749
    %v4764 = vpack.c.b16 %v4752, %v4751
    %v4765 = vpack.c.b16 %v4754, %v4753
    %v4766 = vpack.c.b16 %v4756, %v4755
    %v4767 = vpack.c.b16 %v4758, %v4757
    %v4768 = vpack.c.b16 %v4760, %v4759
    %4777 = vmatprep.subr.bf16.mxu0 0
    %4778 = vmatpush1.bf16.msra.mxu0 %v4761
    %4779 = vmatprep.subr.bf16.mxu0 0
    %4780 = vmatpush1.bf16.msra.mxu0 %v4762
    %4781 = vmatprep.subr.bf16.mxu0 0
    %4782 = vmatpush1.bf16.msra.mxu0 %v4763
    %4783 = vmatprep.subr.bf16.mxu0 0
    %4784 = vmatpush1.bf16.msra.mxu0 %v4764
    %4785 = vmatprep.subr.bf16.mxu0 0
    %4786 = vmatpush1.bf16.msra.mxu0 %v4765
    %4787 = vmatprep.subr.bf16.mxu0 0
    %4788 = vmatpush1.bf16.msra.mxu0 %v4766
    %4789 = vmatprep.subr.bf16.mxu0 0
    %4790 = vmatpush1.bf16.msra.mxu0 %v4767
    %4791 = vmatprep.subr.bf16.mxu0 0
    %4792 = vmatpush1.bf16.msra.mxu0 %v4768
    %4793 = vmatprep.subr.bf16.mxu0 0
    %4794 = vmatpush1.bf16.msra.mxu0 0
    %4795 = vmatprep.subr.bf16.mxu0 0
    %4796 = vmatpush1.bf16.msra.mxu0 0
    %4797 = vmatprep.subr.bf16.mxu0 0
    %4798 = vmatpush1.bf16.msra.mxu0 0
    %4799 = vmatprep.subr.bf16.mxu0 0
    %4800 = vmatpush1.bf16.msra.mxu0 0
    %4801 = vmatprep.subr.bf16.mxu0 0
    %4802 = vmatpush1.bf16.msra.mxu0 0
    %4803 = vmatprep.subr.bf16.mxu0 0
    %4804 = vmatpush1.bf16.msra.mxu0 0
    %4805 = vmatprep.subr.bf16.mxu0 0
    %4806 = vmatpush1.bf16.msra.mxu0 0
    %4807 = vmatprep.subr.bf16.mxu0 0
    %4808 = vmatpush1.bf16.msra.mxu0 0
    %4809 = vmatprep.mubr.bf16.mxu0 0
    %4810 = vmatmul.mubr.bf16.gmra.mrb[0].mxu0 %v4703
    %v4811 = vpop.f32.mrb[0].mxu0
    %v4812 = vadd.f32 0.0, %v4811
    %v4813 = vpop.f32.mrb[0].mxu0
    %v4814 = vpop.f32.mrb[0].mxu0
    %v4815 = vadd.f32 0.0, %v4814
    %v4816 = vpop.f32.mrb[0].mxu0
    %4817 = vmatprep.mubr.bf16.mxu0 0
    %4818 = vmatmul.mubr.bf16.gmra.mrb[0].mxu0 %v4704
    %v4819 = vpop.f32.mrb[0].mxu0
    %v4820 = vadd.f32 0.0, %v4819
    %v4821 = vpop.f32.mrb[0].mxu0
    %v4822 = vpop.f32.mrb[0].mxu0
    %v4823 = vadd.f32 0.0, %v4822
    %v4824 = vpop.f32.mrb[0].mxu0
    %4825 = vmatprep.mubr.bf16.mxu0 0
    %4826 = vmatmul.mubr.bf16.gmra.mrb[0].mxu0 %v4705
    %v4827 = vpop.f32.mrb[0].mxu0
    %v4828 = vadd.f32 0.0, %v4827
    %v4829 = vpop.f32.mrb[0].mxu0
    %v4830 = vpop.f32.mrb[0].mxu0
    %v4831 = vadd.f32 0.0, %v4830
    %v4832 = vpop.f32.mrb[0].mxu0
    %4833 = vmatprep.mubr.bf16.mxu0 0
    %4834 = vmatmul.mubr.bf16.gmra.mrb[0].mxu0 %v4706
    %v4835 = vpop.f32.mrb[0].mxu0
    %v4836 = vadd.f32 0.0, %v4835
    %v4837 = vpop.f32.mrb[0].mxu0
    %v4838 = vpop.f32.mrb[0].mxu0
    %v4839 = vadd.f32 0.0, %v4838
    %v4840 = vpop.f32.mrb[0].mxu0
    %4841 = vmatprep.mubr.bf16.mxu0 0
    %4842 = vmatmul.mubr.bf16.gmra.mrb[0].mxu0 %v4707
    %v4843 = vpop.f32.mrb[0].mxu0
    %v4844 = vadd.f32 0.0, %v4843
    %v4845 = vpop.f32.mrb[0].mxu0
    %v4846 = vpop.f32.mrb[0].mxu0
    %v4847 = vadd.f32 0.0, %v4846
    %v4848 = vpop.f32.mrb[0].mxu0
    %4849 = vmatprep.mubr.bf16.mxu0 0
    %4850 = vmatmul.mubr.bf16.gmra.mrb[0].mxu0 %v4708
    %v4851 = vpop.f32.mrb[0].mxu0
    %v4852 = vadd.f32 0.0, %v4851
    %v4853 = vpop.f32.mrb[0].mxu0
    %v4854 = vpop.f32.mrb[0].mxu0
    %v4855 = vadd.f32 0.0, %v4854
    %v4856 = vpop.f32.mrb[0].mxu0
    %4857 = vmatprep.mubr.bf16.mxu0 0
    %4858 = vmatmul.mubr.bf16.gmra.mrb[0].mxu0 %v4709
    %v4859 = vpop.f32.mrb[0].mxu0
    %v4860 = vadd.f32 0.0, %v4859
    %v4861 = vpop.f32.mrb[0].mxu0
    %v4862 = vpop.f32.mrb[0].mxu0
    %v4863 = vadd.f32 0.0, %v4862
    %v4864 = vpop.f32.mrb[0].mxu0
    %4865 = vmatprep.mubr.bf16.mxu0 0
    %4866 = vmatmul.mubr.bf16.gmra.mrb[0].mxu0 %v4710
    %v4867 = vpop.f32.mrb[0].mxu0
    %v4868 = vadd.f32 0.0, %v4867
    %v4869 = vpop.f32.mrb[0].mxu0
    %v4870 = vpop.f32.mrb[0].mxu0
    %v4871 = vadd.f32 0.0, %v4870
    %v4872 = vpop.f32.mrb[0].mxu0
    %4873 = vmatprep.mubr.bf16.mxu0 0
    %4874 = vmatmul.mubr.bf16.gmra.mrb[0].mxu0 %v4711
    %v4875 = vpop.f32.mrb[0].mxu0
    %v4876 = vadd.f32 0.0, %v4875
    %v4877 = vpop.f32.mrb[0].mxu0
    %v4878 = vpop.f32.mrb[0].mxu0
    %v4879 = vpop.f32.mrb[0].mxu0
    %4880 = vdwg.mxu0
    %v4881 = vadd.f32 %v4669, %v4812
    %v4882 = vadd.f32 %v4670, %v4815
    %v4883 = vadd.f32 %v4671, %v4820
    %v4884 = vadd.f32 %v4672, %v4823
    %v4885 = vadd.f32 %v4673, %v4828
    %v4886 = vadd.f32 %v4674, %v4831
    %v4887 = vadd.f32 %v4675, %v4836
    %v4888 = vadd.f32 %v4676, %v4839
    %v4889 = vadd.f32 %v4677, %v4844
    %v4890 = vadd.f32 %v4678, %v4847
    %v4891 = vadd.f32 %v4679, %v4852
    %v4892 = vadd.f32 %v4680, %v4855
    %v4893 = vadd.f32 %v4681, %v4860
    %v4894 = vadd.f32 %v4682, %v4863
    %v4895 = vadd.f32 %v4683, %v4868
    %v4896 = vadd.f32 %v4684, %v4871
    %v4897 = vadd.f32 %v4685, %v4876
    %v4898 = vld [vmem:[#allocation2 + $0x1e] sm:$0xff]
    %v4899 = vld [vmem:[#allocation2 + $0x26] sm:$0xff]
    %v4900 = vld [vmem:[#allocation2 + $0x2e] sm:$0xff]
    %v4901 = vld [vmem:[#allocation2 + $0x36] sm:$0xff]
    %v4902 = vld [vmem:[#allocation2 + $0x3e] sm:$0xff]
    %v4903 = vld [vmem:[#allocation2 + $0x46] sm:$0xff]
    %v4904 = vld [vmem:[#allocation2 + $0x4e] sm:$0xff]
    %v4905 = vld [vmem:[#allocation2 + $0x56] sm:$0xff]
    %v4906 = vld [vmem:[#allocation2 + $0x5e] sm:$0xff]
    %v4907 = vld [vmem:[#allocation2 + $0x66] sm:$0xff]
    %v4908 = vld [vmem:[#allocation2 + $0x6e] sm:$0xff]
    %v4909 = vld [vmem:[#allocation2 + $0x76] sm:$0xff]
    %v4910 = vld [vmem:[#allocation2 + $0x7e] sm:$0xff]
    %v4911 = vld [vmem:[#allocation2 + $0x86] sm:$0xff]
    %v4912 = vld [vmem:[#allocation2 + $0x8e] sm:$0xff]
    %v4913 = vld [vmem:[#allocation2 + $0x96] sm:$0xff]
    %v4914 = vld [vmem:[#allocation2 + $0x9e] sm:$0xff]
    %v4915 = vpack.c.bf16 %v4899, %v4898
    %v4916 = vpack.c.bf16 %v4901, %v4900
    %v4917 = vpack.c.bf16 %v4903, %v4902
    %v4918 = vpack.c.bf16 %v4905, %v4904
    %v4919 = vpack.c.bf16 %v4907, %v4906
    %v4920 = vpack.c.bf16 %v4909, %v4908
    %v4921 = vpack.c.bf16 %v4911, %v4910
    %v4922 = vpack.c.bf16 %v4913, %v4912
    %v4923 = vpack.c.bf16 %v4914, %v4914
    %s4924 = scalar_lea.vmem %s4, 768
    %v4925 = vld [vmem:[%s4924] sm:$0xf]
    %v4926 = vld [vmem:[%s4924 + $0x4] sm:$0xf]
    %v4927 = vld [vmem:[%s4924 + $0x8] sm:$0xf]
    %v4928 = vld [vmem:[%s4924 + $0xc] sm:$0xf]
    %v4929 = vld [vmem:[%s4924 + $0x10] sm:$0xf]
    %v4930 = vld [vmem:[%s4924 + $0x14] sm:$0xf]
    %v4931 = vld [vmem:[%s4924 + $0x18] sm:$0xf]
    %v4932 = vld [vmem:[%s4924 + $0x1c] sm:$0xf]
    %v4933 = vld [vmem:[%s4924 + $0x20] sm:$0xf]
    %v4934 = vld [vmem:[%s4924 + $0x24] sm:$0xf]
    %v4935 = vld [vmem:[%s4924 + $0x28] sm:$0xf]
    %v4936 = vld [vmem:[%s4924 + $0x2c] sm:$0xf]
    %v4937 = vld [vmem:[%s4924 + $0x30] sm:$0xf]
    %v4938 = vld [vmem:[%s4924 + $0x34] sm:$0xf]
    %v4939 = vld [vmem:[%s4924 + $0x38] sm:$0xf]
    %v4940 = vld [vmem:[%s4924 + $0x3c] sm:$0xf]
    %v4957 = vunpack.c.l.b16 %v4925
    %v4958 = vunpack.c.l.b16 %v4926
    %v4959 = vunpack.c.l.b16 %v4927
    %v4960 = vunpack.c.l.b16 %v4928
    %v4961 = vunpack.c.l.b16 %v4929
    %v4962 = vunpack.c.l.b16 %v4930
    %v4963 = vunpack.c.l.b16 %v4931
    %v4964 = vunpack.c.l.b16 %v4932
    %v4965 = vunpack.c.l.b16 %v4933
    %v4966 = vunpack.c.l.b16 %v4934
    %v4967 = vunpack.c.l.b16 %v4935
    %v4968 = vunpack.c.l.b16 %v4936
    %v4969 = vunpack.c.l.b16 %v4937
    %v4970 = vunpack.c.l.b16 %v4938
    %v4971 = vunpack.c.l.b16 %v4939
    %v4972 = vunpack.c.l.b16 %v4940
    %v4973 = vpack.c.b16 %v4958, %v4957
    %v4974 = vpack.c.b16 %v4960, %v4959
    %v4975 = vpack.c.b16 %v4962, %v4961
    %v4976 = vpack.c.b16 %v4964, %v4963
    %v4977 = vpack.c.b16 %v4966, %v4965
    %v4978 = vpack.c.b16 %v4968, %v4967
    %v4979 = vpack.c.b16 %v4970, %v4969
    %v4980 = vpack.c.b16 %v4972, %v4971
    %4989 = vmatprep.subr.bf16.mxu0 0
    %4990 = vmatpush1.bf16.msra.mxu0 %v4973
    %4991 = vmatprep.subr.bf16.mxu0 0
    %4992 = vmatpush1.bf16.msra.mxu0 %v4974
    %4993 = vmatprep.subr.bf16.mxu0 0
    %4994 = vmatpush1.bf16.msra.mxu0 %v4975
    %4995 = vmatprep.subr.bf16.mxu0 0
    %4996 = vmatpush1.bf16.msra.mxu0 %v4976
    %4997 = vmatprep.subr.bf16.mxu0 0
    %4998 = vmatpush1.bf16.msra.mxu0 %v4977
    %4999 = vmatprep.subr.bf16.mxu0 0
    %5000 = vmatpush1.bf16.msra.mxu0 %v4978
    %5001 = vmatprep.subr.bf16.mxu0 0
    %5002 = vmatpush1.bf16.msra.mxu0 %v4979
    %5003 = vmatprep.subr.bf16.mxu0 0
    %5004 = vmatpush1.bf16.msra.mxu0 %v4980
    %5005 = vmatprep.subr.bf16.mxu0 0
    %5006 = vmatpush1.bf16.msra.mxu0 0
    %5007 = vmatprep.subr.bf16.mxu0 0
    %5008 = vmatpush1.bf16.msra.mxu0 0
    %5009 = vmatprep.subr.bf16.mxu0 0
    %5010 = vmatpush1.bf16.msra.mxu0 0
    %5011 = vmatprep.subr.bf16.mxu0 0
    %5012 = vmatpush1.bf16.msra.mxu0 0
    %5013 = vmatprep.subr.bf16.mxu0 0
    %5014 = vmatpush1.bf16.msra.mxu0 0
    %5015 = vmatprep.subr.bf16.mxu0 0
    %5016 = vmatpush1.bf16.msra.mxu0 0
    %5017 = vmatprep.subr.bf16.mxu0 0
    %5018 = vmatpush1.bf16.msra.mxu0 0
    %5019 = vmatprep.subr.bf16.mxu0 0
    %5020 = vmatpush1.bf16.msra.mxu0 0
    %5021 = vmatprep.mubr.bf16.mxu0 0
    %5022 = vmatmul.mubr.bf16.gmra.mrb[0].mxu0 %v4915
    %v5023 = vpop.f32.mrb[0].mxu0
    %v5024 = vadd.f32 0.0, %v5023
    %v5025 = vpop.f32.mrb[0].mxu0
    %v5026 = vpop.f32.mrb[0].mxu0
    %v5027 = vadd.f32 0.0, %v5026
    %v5028 = vpop.f32.mrb[0].mxu0
    %5029 = vmatprep.mubr.bf16.mxu0 0
    %5030 = vmatmul.mubr.bf16.gmra.mrb[0].mxu0 %v4916
    %v5031 = vpop.f32.mrb[0].mxu0
    %v5032 = vadd.f32 0.0, %v5031
    %v5033 = vpop.f32.mrb[0].mxu0
    %v5034 = vpop.f32.mrb[0].mxu0
    %v5035 = vadd.f32 0.0, %v5034
    %v5036 = vpop.f32.mrb[0].mxu0
    %5037 = vmatprep.mubr.bf16.mxu0 0
    %5038 = vmatmul.mubr.bf16.gmra.mrb[0].mxu0 %v4917
    %v5039 = vpop.f32.mrb[0].mxu0
    %v5040 = vadd.f32 0.0, %v5039
    %v5041 = vpop.f32.mrb[0].mxu0
    %v5042 = vpop.f32.mrb[0].mxu0
    %v5043 = vadd.f32 0.0, %v5042
    %v5044 = vpop.f32.mrb[0].mxu0
    %5045 = vmatprep.mubr.bf16.mxu0 0
    %5046 = vmatmul.mubr.bf16.gmra.mrb[0].mxu0 %v4918
    %v5047 = vpop.f32.mrb[0].mxu0
    %v5048 = vadd.f32 0.0, %v5047
    %v5049 = vpop.f32.mrb[0].mxu0
    %v5050 = vpop.f32.mrb[0].mxu0
    %v5051 = vadd.f32 0.0, %v5050
    %v5052 = vpop.f32.mrb[0].mxu0
    %5053 = vmatprep.mubr.bf16.mxu0 0
    %5054 = vmatmul.mubr.bf16.gmra.mrb[0].mxu0 %v4919
    %v5055 = vpop.f32.mrb[0].mxu0
    %v5056 = vadd.f32 0.0, %v5055
    %v5057 = vpop.f32.mrb[0].mxu0
    %v5058 = vpop.f32.mrb[0].mxu0
    %v5059 = vadd.f32 0.0, %v5058
    %v5060 = vpop.f32.mrb[0].mxu0
    %5061 = vmatprep.mubr.bf16.mxu0 0
    %5062 = vmatmul.mubr.bf16.gmra.mrb[0].mxu0 %v4920
    %v5063 = vpop.f32.mrb[0].mxu0
    %v5064 = vadd.f32 0.0, %v5063
    %v5065 = vpop.f32.mrb[0].mxu0
    %v5066 = vpop.f32.mrb[0].mxu0
    %v5067 = vadd.f32 0.0, %v5066
    %v5068 = vpop.f32.mrb[0].mxu0
    %5069 = vmatprep.mubr.bf16.mxu0 0
    %5070 = vmatmul.mubr.bf16.gmra.mrb[0].mxu0 %v4921
    %v5071 = vpop.f32.mrb[0].mxu0
    %v5072 = vadd.f32 0.0, %v5071
    %v5073 = vpop.f32.mrb[0].mxu0
    %v5074 = vpop.f32.mrb[0].mxu0
    %v5075 = vadd.f32 0.0, %v5074
    %v5076 = vpop.f32.mrb[0].mxu0
    %5077 = vmatprep.mubr.bf16.mxu0 0
    %5078 = vmatmul.mubr.bf16.gmra.mrb[0].mxu0 %v4922
    %v5079 = vpop.f32.mrb[0].mxu0
    %v5080 = vadd.f32 0.0, %v5079
    %v5081 = vpop.f32.mrb[0].mxu0
    %v5082 = vpop.f32.mrb[0].mxu0
    %v5083 = vadd.f32 0.0, %v5082
    %v5084 = vpop.f32.mrb[0].mxu0
    %5085 = vmatprep.mubr.bf16.mxu0 0
    %5086 = vmatmul.mubr.bf16.gmra.mrb[0].mxu0 %v4923
    %v5087 = vpop.f32.mrb[0].mxu0
    %v5088 = vadd.f32 0.0, %v5087
    %v5089 = vpop.f32.mrb[0].mxu0
    %v5090 = vpop.f32.mrb[0].mxu0
    %v5091 = vpop.f32.mrb[0].mxu0
    %5092 = vdwg.mxu0
    %v5093 = vadd.f32 %v4881, %v5024
    %v5094 = vadd.f32 %v4882, %v5027
    %v5095 = vadd.f32 %v4883, %v5032
    %v5096 = vadd.f32 %v4884, %v5035
    %v5097 = vadd.f32 %v4885, %v5040
    %v5098 = vadd.f32 %v4886, %v5043
    %v5099 = vadd.f32 %v4887, %v5048
    %v5100 = vadd.f32 %v4888, %v5051
    %v5101 = vadd.f32 %v4889, %v5056
    %v5102 = vadd.f32 %v4890, %v5059
    %v5103 = vadd.f32 %v4891, %v5064
    %v5104 = vadd.f32 %v4892, %v5067
    %v5105 = vadd.f32 %v4893, %v5072
    %v5106 = vadd.f32 %v4894, %v5075
    %v5107 = vadd.f32 %v4895, %v5080
    %v5108 = vadd.f32 %v4896, %v5083
    %v5109 = vadd.f32 %v4897, %v5088
    %v5110 = vld [vmem:[#allocation2 + $0x1f] sm:$0xff]
    %v5111 = vld [vmem:[#allocation2 + $0x27] sm:$0xff]
    %v5112 = vld [vmem:[#allocation2 + $0x2f] sm:$0xff]
    %v5113 = vld [vmem:[#allocation2 + $0x37] sm:$0xff]
    %v5114 = vld [vmem:[#allocation2 + $0x3f] sm:$0xff]
    %v5115 = vld [vmem:[#allocation2 + $0x47] sm:$0xff]
    %v5116 = vld [vmem:[#allocation2 + $0x4f] sm:$0xff]
    %v5117 = vld [vmem:[#allocation2 + $0x57] sm:$0xff]
    %v5118 = vld [vmem:[#allocation2 + $0x5f] sm:$0xff]
    %v5119 = vld [vmem:[#allocation2 + $0x67] sm:$0xff]
    %v5120 = vld [vmem:[#allocation2 + $0x6f] sm:$0xff]
    %v5121 = vld [vmem:[#allocation2 + $0x77] sm:$0xff]
    %v5122 = vld [vmem:[#allocation2 + $0x7f] sm:$0xff]
    %v5123 = vld [vmem:[#allocation2 + $0x87] sm:$0xff]
    %v5124 = vld [vmem:[#allocation2 + $0x8f] sm:$0xff]
    %v5125 = vld [vmem:[#allocation2 + $0x97] sm:$0xff]
    %v5126 = vld [vmem:[#allocation2 + $0x9f] sm:$0xff]
    %v5127 = vpack.c.bf16 %v5111, %v5110
    %v5128 = vpack.c.bf16 %v5113, %v5112
    %v5129 = vpack.c.bf16 %v5115, %v5114
    %v5130 = vpack.c.bf16 %v5117, %v5116
    %v5131 = vpack.c.bf16 %v5119, %v5118
    %v5132 = vpack.c.bf16 %v5121, %v5120
    %v5133 = vpack.c.bf16 %v5123, %v5122
    %v5134 = vpack.c.bf16 %v5125, %v5124
    %v5135 = vpack.c.bf16 %v5126, %v5126
    %s5136 = scalar_lea.vmem %s4, 832
    %v5137 = vld [vmem:[%s5136] sm:$0xf]
    %v5138 = vld [vmem:[%s5136 + $0x4] sm:$0xf]
    %v5139 = vld [vmem:[%s5136 + $0x8] sm:$0xf]
    %v5140 = vld [vmem:[%s5136 + $0xc] sm:$0xf]
    %v5141 = vld [vmem:[%s5136 + $0x10] sm:$0xf]
    %v5142 = vld [vmem:[%s5136 + $0x14] sm:$0xf]
    %v5143 = vld [vmem:[%s5136 + $0x18] sm:$0xf]
    %v5144 = vld [vmem:[%s5136 + $0x1c] sm:$0xf]
    %v5145 = vld [vmem:[%s5136 + $0x20] sm:$0xf]
    %v5146 = vld [vmem:[%s5136 + $0x24] sm:$0xf]
    %v5147 = vld [vmem:[%s5136 + $0x28] sm:$0xf]
    %v5148 = vld [vmem:[%s5136 + $0x2c] sm:$0xf]
    %v5149 = vld [vmem:[%s5136 + $0x30] sm:$0xf]
    %v5150 = vld [vmem:[%s5136 + $0x34] sm:$0xf]
    %v5151 = vld [vmem:[%s5136 + $0x38] sm:$0xf]
    %v5152 = vld [vmem:[%s5136 + $0x3c] sm:$0xf]
    %v5169 = vunpack.c.l.b16 %v5137
    %v5170 = vunpack.c.l.b16 %v5138
    %v5171 = vunpack.c.l.b16 %v5139
    %v5172 = vunpack.c.l.b16 %v5140
    %v5173 = vunpack.c.l.b16 %v5141
    %v5174 = vunpack.c.l.b16 %v5142
    %v5175 = vunpack.c.l.b16 %v5143
    %v5176 = vunpack.c.l.b16 %v5144
    %v5177 = vunpack.c.l.b16 %v5145
    %v5178 = vunpack.c.l.b16 %v5146
    %v5179 = vunpack.c.l.b16 %v5147
    %v5180 = vunpack.c.l.b16 %v5148
    %v5181 = vunpack.c.l.b16 %v5149
    %v5182 = vunpack.c.l.b16 %v5150
    %v5183 = vunpack.c.l.b16 %v5151
    %v5184 = vunpack.c.l.b16 %v5152
    %v5185 = vpack.c.b16 %v5170, %v5169
    %v5186 = vpack.c.b16 %v5172, %v5171
    %v5187 = vpack.c.b16 %v5174, %v5173
    %v5188 = vpack.c.b16 %v5176, %v5175
    %v5189 = vpack.c.b16 %v5178, %v5177
    %v5190 = vpack.c.b16 %v5180, %v5179
    %v5191 = vpack.c.b16 %v5182, %v5181
    %v5192 = vpack.c.b16 %v5184, %v5183
    %5201 = vmatprep.subr.bf16.mxu0 0
    %5202 = vmatpush1.bf16.msra.mxu0 %v5185
    %5203 = vmatprep.subr.bf16.mxu0 0
    %5204 = vmatpush1.bf16.msra.mxu0 %v5186
    %5205 = vmatprep.subr.bf16.mxu0 0
    %5206 = vmatpush1.bf16.msra.mxu0 %v5187
    %5207 = vmatprep.subr.bf16.mxu0 0
    %5208 = vmatpush1.bf16.msra.mxu0 %v5188
    %5209 = vmatprep.subr.bf16.mxu0 0
    %5210 = vmatpush1.bf16.msra.mxu0 %v5189
    %5211 = vmatprep.subr.bf16.mxu0 0
    %5212 = vmatpush1.bf16.msra.mxu0 %v5190
    %5213 = vmatprep.subr.bf16.mxu0 0
    %5214 = vmatpush1.bf16.msra.mxu0 %v5191
    %5215 = vmatprep.subr.bf16.mxu0 0
    %5216 = vmatpush1.bf16.msra.mxu0 %v5192
    %5217 = vmatprep.subr.bf16.mxu0 0
    %5218 = vmatpush1.bf16.msra.mxu0 0
    %5219 = vmatprep.subr.bf16.mxu0 0
    %5220 = vmatpush1.bf16.msra.mxu0 0
    %5221 = vmatprep.subr.bf16.mxu0 0
    %5222 = vmatpush1.bf16.msra.mxu0 0
    %5223 = vmatprep.subr.bf16.mxu0 0
    %5224 = vmatpush1.bf16.msra.mxu0 0
    %5225 = vmatprep.subr.bf16.mxu0 0
    %5226 = vmatpush1.bf16.msra.mxu0 0
    %5227 = vmatprep.subr.bf16.mxu0 0
    %5228 = vmatpush1.bf16.msra.mxu0 0
    %5229 = vmatprep.subr.bf16.mxu0 0
    %5230 = vmatpush1.bf16.msra.mxu0 0
    %5231 = vmatprep.subr.bf16.mxu0 0
    %5232 = vmatpush1.bf16.msra.mxu0 0
    %5233 = vmatprep.mubr.bf16.mxu0 0
    %5234 = vmatmul.mubr.bf16.gmra.mrb[0].mxu0 %v5127
    %v5235 = vpop.f32.mrb[0].mxu0
    %v5236 = vadd.f32 0.0, %v5235
    %v5237 = vpop.f32.mrb[0].mxu0
    %v5238 = vpop.f32.mrb[0].mxu0
    %v5239 = vadd.f32 0.0, %v5238
    %v5240 = vpop.f32.mrb[0].mxu0
    %5241 = vmatprep.mubr.bf16.mxu0 0
    %5242 = vmatmul.mubr.bf16.gmra.mrb[0].mxu0 %v5128
    %v5243 = vpop.f32.mrb[0].mxu0
    %v5244 = vadd.f32 0.0, %v5243
    %v5245 = vpop.f32.mrb[0].mxu0
    %v5246 = vpop.f32.mrb[0].mxu0
    %v5247 = vadd.f32 0.0, %v5246
    %v5248 = vpop.f32.mrb[0].mxu0
    %5249 = vmatprep.mubr.bf16.mxu0 0
    %5250 = vmatmul.mubr.bf16.gmra.mrb[0].mxu0 %v5129
    %v5251 = vpop.f32.mrb[0].mxu0
    %v5252 = vadd.f32 0.0, %v5251
    %v5253 = vpop.f32.mrb[0].mxu0
    %v5254 = vpop.f32.mrb[0].mxu0
    %v5255 = vadd.f32 0.0, %v5254
    %v5256 = vpop.f32.mrb[0].mxu0
    %5257 = vmatprep.mubr.bf16.mxu0 0
    %5258 = vmatmul.mubr.bf16.gmra.mrb[0].mxu0 %v5130
    %v5259 = vpop.f32.mrb[0].mxu0
    %v5260 = vadd.f32 0.0, %v5259
    %v5261 = vpop.f32.mrb[0].mxu0
    %v5262 = vpop.f32.mrb[0].mxu0
    %v5263 = vadd.f32 0.0, %v5262
    %v5264 = vpop.f32.mrb[0].mxu0
    %5265 = vmatprep.mubr.bf16.mxu0 0
    %5266 = vmatmul.mubr.bf16.gmra.mrb[0].mxu0 %v5131
    %v5267 = vpop.f32.mrb[0].mxu0
    %v5268 = vadd.f32 0.0, %v5267
    %v5269 = vpop.f32.mrb[0].mxu0
    %v5270 = vpop.f32.mrb[0].mxu0
    %v5271 = vadd.f32 0.0, %v5270
    %v5272 = vpop.f32.mrb[0].mxu0
    %5273 = vmatprep.mubr.bf16.mxu0 0
    %5274 = vmatmul.mubr.bf16.gmra.mrb[0].mxu0 %v5132
    %v5275 = vpop.f32.mrb[0].mxu0
    %v5276 = vadd.f32 0.0, %v5275
    %v5277 = vpop.f32.mrb[0].mxu0
    %v5278 = vpop.f32.mrb[0].mxu0
    %v5279 = vadd.f32 0.0, %v5278
    %v5280 = vpop.f32.mrb[0].mxu0
    %5281 = vmatprep.mubr.bf16.mxu0 0
    %5282 = vmatmul.mubr.bf16.gmra.mrb[0].mxu0 %v5133
    %v5283 = vpop.f32.mrb[0].mxu0
    %v5284 = vadd.f32 0.0, %v5283
    %v5285 = vpop.f32.mrb[0].mxu0
    %v5286 = vpop.f32.mrb[0].mxu0
    %v5287 = vadd.f32 0.0, %v5286
    %v5288 = vpop.f32.mrb[0].mxu0
    %5289 = vmatprep.mubr.bf16.mxu0 0
    %5290 = vmatmul.mubr.bf16.gmra.mrb[0].mxu0 %v5134
    %v5291 = vpop.f32.mrb[0].mxu0
    %v5292 = vadd.f32 0.0, %v5291
    %v5293 = vpop.f32.mrb[0].mxu0
    %v5294 = vpop.f32.mrb[0].mxu0
    %v5295 = vadd.f32 0.0, %v5294
    %v5296 = vpop.f32.mrb[0].mxu0
    %5297 = vmatprep.mubr.bf16.mxu0 0
    %5298 = vmatmul.mubr.bf16.gmra.mrb[0].mxu0 %v5135
    %v5299 = vpop.f32.mrb[0].mxu0
    %v5300 = vadd.f32 0.0, %v5299
    %v5301 = vpop.f32.mrb[0].mxu0
    %v5302 = vpop.f32.mrb[0].mxu0
    %v5303 = vpop.f32.mrb[0].mxu0
    %5304 = vdwg.mxu0
    %v5305 = vadd.f32 %v5093, %v5236
    %v5306 = vadd.f32 %v5094, %v5239
    %v5307 = vadd.f32 %v5095, %v5244
    %v5308 = vadd.f32 %v5096, %v5247
    %v5309 = vadd.f32 %v5097, %v5252
    %v5310 = vadd.f32 %v5098, %v5255
    %v5311 = vadd.f32 %v5099, %v5260
    %v5312 = vadd.f32 %v5100, %v5263
    %v5313 = vadd.f32 %v5101, %v5268
    %v5314 = vadd.f32 %v5102, %v5271
    %v5315 = vadd.f32 %v5103, %v5276
    %v5316 = vadd.f32 %v5104, %v5279
    %v5317 = vadd.f32 %v5105, %v5284
    %v5318 = vadd.f32 %v5106, %v5287
    %v5319 = vadd.f32 %v5107, %v5292
    %v5320 = vadd.f32 %v5108, %v5295
    %v5321 = vadd.f32 %v5109, %v5300
    %v5322 = vld [vmem:[#allocation2 + $0x20] sm:$0xff]
    %v5323 = vld [vmem:[#allocation2 + $0x28] sm:$0xff]
    %v5324 = vld [vmem:[#allocation2 + $0x30] sm:$0xff]
    %v5325 = vld [vmem:[#allocation2 + $0x38] sm:$0xff]
    %v5326 = vld [vmem:[#allocation2 + $0x40] sm:$0xff]
    %v5327 = vld [vmem:[#allocation2 + $0x48] sm:$0xff]
    %v5328 = vld [vmem:[#allocation2 + $0x50] sm:$0xff]
    %v5329 = vld [vmem:[#allocation2 + $0x58] sm:$0xff]
    %v5330 = vld [vmem:[#allocation2 + $0x60] sm:$0xff]
    %v5331 = vld [vmem:[#allocation2 + $0x68] sm:$0xff]
    %v5332 = vld [vmem:[#allocation2 + $0x70] sm:$0xff]
    %v5333 = vld [vmem:[#allocation2 + $0x78] sm:$0xff]
    %v5334 = vld [vmem:[#allocation2 + $0x80] sm:$0xff]
    %v5335 = vld [vmem:[#allocation2 + $0x88] sm:$0xff]
    %v5336 = vld [vmem:[#allocation2 + $0x90] sm:$0xff]
    %v5337 = vld [vmem:[#allocation2 + $0x98] sm:$0xff]
    %v5338 = vld [vmem:[#allocation2 + $0xa0] sm:$0xff]
    %v5339 = vpack.c.bf16 %v5323, %v5322
    %v5340 = vpack.c.bf16 %v5325, %v5324
    %v5341 = vpack.c.bf16 %v5327, %v5326
    %v5342 = vpack.c.bf16 %v5329, %v5328
    %v5343 = vpack.c.bf16 %v5331, %v5330
    %v5344 = vpack.c.bf16 %v5333, %v5332
    %v5345 = vpack.c.bf16 %v5335, %v5334
    %v5346 = vpack.c.bf16 %v5337, %v5336
    %v5347 = vpack.c.bf16 %v5338, %v5338
    %s5348 = scalar_lea.vmem %s4, 896
    %v5349 = vld [vmem:[%s5348] sm:$0xf]
    %v5350 = vld [vmem:[%s5348 + $0x4] sm:$0xf]
    %v5351 = vld [vmem:[%s5348 + $0x8] sm:$0xf]
    %v5352 = vld [vmem:[%s5348 + $0xc] sm:$0xf]
    %v5353 = vld [vmem:[%s5348 + $0x10] sm:$0xf]
    %v5354 = vld [vmem:[%s5348 + $0x14] sm:$0xf]
    %v5355 = vld [vmem:[%s5348 + $0x18] sm:$0xf]
    %v5356 = vld [vmem:[%s5348 + $0x1c] sm:$0xf]
    %v5357 = vld [vmem:[%s5348 + $0x20] sm:$0xf]
    %v5358 = vld [vmem:[%s5348 + $0x24] sm:$0xf]
    %v5359 = vld [vmem:[%s5348 + $0x28] sm:$0xf]
    %v5360 = vld [vmem:[%s5348 + $0x2c] sm:$0xf]
    %v5361 = vld [vmem:[%s5348 + $0x30] sm:$0xf]
    %v5362 = vld [vmem:[%s5348 + $0x34] sm:$0xf]
    %v5363 = vld [vmem:[%s5348 + $0x38] sm:$0xf]
    %v5364 = vld [vmem:[%s5348 + $0x3c] sm:$0xf]
    %v5381 = vunpack.c.l.b16 %v5349
    %v5382 = vunpack.c.l.b16 %v5350
    %v5383 = vunpack.c.l.b16 %v5351
    %v5384 = vunpack.c.l.b16 %v5352
    %v5385 = vunpack.c.l.b16 %v5353
    %v5386 = vunpack.c.l.b16 %v5354
    %v5387 = vunpack.c.l.b16 %v5355
    %v5388 = vunpack.c.l.b16 %v5356
    %v5389 = vunpack.c.l.b16 %v5357
    %v5390 = vunpack.c.l.b16 %v5358
    %v5391 = vunpack.c.l.b16 %v5359
    %v5392 = vunpack.c.l.b16 %v5360
    %v5393 = vunpack.c.l.b16 %v5361
    %v5394 = vunpack.c.l.b16 %v5362
    %v5395 = vunpack.c.l.b16 %v5363
    %v5396 = vunpack.c.l.b16 %v5364
    %v5397 = vpack.c.b16 %v5382, %v5381
    %v5398 = vpack.c.b16 %v5384, %v5383
    %v5399 = vpack.c.b16 %v5386, %v5385
    %v5400 = vpack.c.b16 %v5388, %v5387
    %v5401 = vpack.c.b16 %v5390, %v5389
    %v5402 = vpack.c.b16 %v5392, %v5391
    %v5403 = vpack.c.b16 %v5394, %v5393
    %v5404 = vpack.c.b16 %v5396, %v5395
    %5413 = vmatprep.subr.bf16.mxu0 0
    %5414 = vmatpush1.bf16.msra.mxu0 %v5397
    %5415 = vmatprep.subr.bf16.mxu0 0
    %5416 = vmatpush1.bf16.msra.mxu0 %v5398
    %5417 = vmatprep.subr.bf16.mxu0 0
    %5418 = vmatpush1.bf16.msra.mxu0 %v5399
    %5419 = vmatprep.subr.bf16.mxu0 0
    %5420 = vmatpush1.bf16.msra.mxu0 %v5400
    %5421 = vmatprep.subr.bf16.mxu0 0
    %5422 = vmatpush1.bf16.msra.mxu0 %v5401
    %5423 = vmatprep.subr.bf16.mxu0 0
    %5424 = vmatpush1.bf16.msra.mxu0 %v5402
    %5425 = vmatprep.subr.bf16.mxu0 0
    %5426 = vmatpush1.bf16.msra.mxu0 %v5403
    %5427 = vmatprep.subr.bf16.mxu0 0
    %5428 = vmatpush1.bf16.msra.mxu0 %v5404
    %5429 = vmatprep.subr.bf16.mxu0 0
    %5430 = vmatpush1.bf16.msra.mxu0 0
    %5431 = vmatprep.subr.bf16.mxu0 0
    %5432 = vmatpush1.bf16.msra.mxu0 0
    %5433 = vmatprep.subr.bf16.mxu0 0
    %5434 = vmatpush1.bf16.msra.mxu0 0
    %5435 = vmatprep.subr.bf16.mxu0 0
    %5436 = vmatpush1.bf16.msra.mxu0 0
    %5437 = vmatprep.subr.bf16.mxu0 0
    %5438 = vmatpush1.bf16.msra.mxu0 0
    %5439 = vmatprep.subr.bf16.mxu0 0
    %5440 = vmatpush1.bf16.msra.mxu0 0
    %5441 = vmatprep.subr.bf16.mxu0 0
    %5442 = vmatpush1.bf16.msra.mxu0 0
    %5443 = vmatprep.subr.bf16.mxu0 0
    %5444 = vmatpush1.bf16.msra.mxu0 0
    %5445 = vmatprep.mubr.bf16.mxu0 0
    %5446 = vmatmul.mubr.bf16.gmra.mrb[0].mxu0 %v5339
    %v5447 = vpop.f32.mrb[0].mxu0
    %v5448 = vadd.f32 0.0, %v5447
    %v5449 = vpop.f32.mrb[0].mxu0
    %v5450 = vpop.f32.mrb[0].mxu0
    %v5451 = vadd.f32 0.0, %v5450
    %v5452 = vpop.f32.mrb[0].mxu0
    %5453 = vmatprep.mubr.bf16.mxu0 0
    %5454 = vmatmul.mubr.bf16.gmra.mrb[0].mxu0 %v5340
    %v5455 = vpop.f32.mrb[0].mxu0
    %v5456 = vadd.f32 0.0, %v5455
    %v5457 = vpop.f32.mrb[0].mxu0
    %v5458 = vpop.f32.mrb[0].mxu0
    %v5459 = vadd.f32 0.0, %v5458
    %v5460 = vpop.f32.mrb[0].mxu0
    %5461 = vmatprep.mubr.bf16.mxu0 0
    %5462 = vmatmul.mubr.bf16.gmra.mrb[0].mxu0 %v5341
    %v5463 = vpop.f32.mrb[0].mxu0
    %v5464 = vadd.f32 0.0, %v5463
    %v5465 = vpop.f32.mrb[0].mxu0
    %v5466 = vpop.f32.mrb[0].mxu0
    %v5467 = vadd.f32 0.0, %v5466
    %v5468 = vpop.f32.mrb[0].mxu0
    %5469 = vmatprep.mubr.bf16.mxu0 0
    %5470 = vmatmul.mubr.bf16.gmra.mrb[0].mxu0 %v5342
    %v5471 = vpop.f32.mrb[0].mxu0
    %v5472 = vadd.f32 0.0, %v5471
    %v5473 = vpop.f32.mrb[0].mxu0
    %v5474 = vpop.f32.mrb[0].mxu0
    %v5475 = vadd.f32 0.0, %v5474
    %v5476 = vpop.f32.mrb[0].mxu0
    %5477 = vmatprep.mubr.bf16.mxu0 0
    %5478 = vmatmul.mubr.bf16.gmra.mrb[0].mxu0 %v5343
    %v5479 = vpop.f32.mrb[0].mxu0
    %v5480 = vadd.f32 0.0, %v5479
    %v5481 = vpop.f32.mrb[0].mxu0
    %v5482 = vpop.f32.mrb[0].mxu0
    %v5483 = vadd.f32 0.0, %v5482
    %v5484 = vpop.f32.mrb[0].mxu0
    %5485 = vmatprep.mubr.bf16.mxu0 0
    %5486 = vmatmul.mubr.bf16.gmra.mrb[0].mxu0 %v5344
    %v5487 = vpop.f32.mrb[0].mxu0
    %v5488 = vadd.f32 0.0, %v5487
    %v5489 = vpop.f32.mrb[0].mxu0
    %v5490 = vpop.f32.mrb[0].mxu0
    %v5491 = vadd.f32 0.0, %v5490
    %v5492 = vpop.f32.mrb[0].mxu0
    %5493 = vmatprep.mubr.bf16.mxu0 0
    %5494 = vmatmul.mubr.bf16.gmra.mrb[0].mxu0 %v5345
    %v5495 = vpop.f32.mrb[0].mxu0
    %v5496 = vadd.f32 0.0, %v5495
    %v5497 = vpop.f32.mrb[0].mxu0
    %v5498 = vpop.f32.mrb[0].mxu0
    %v5499 = vadd.f32 0.0, %v5498
    %v5500 = vpop.f32.mrb[0].mxu0
    %5501 = vmatprep.mubr.bf16.mxu0 0
    %5502 = vmatmul.mubr.bf16.gmra.mrb[0].mxu0 %v5346
    %v5503 = vpop.f32.mrb[0].mxu0
    %v5504 = vadd.f32 0.0, %v5503
    %v5505 = vpop.f32.mrb[0].mxu0
    %v5506 = vpop.f32.mrb[0].mxu0
    %v5507 = vadd.f32 0.0, %v5506
    %v5508 = vpop.f32.mrb[0].mxu0
    %5509 = vmatprep.mubr.bf16.mxu0 0
    %5510 = vmatmul.mubr.bf16.gmra.mrb[0].mxu0 %v5347
    %v5511 = vpop.f32.mrb[0].mxu0
    %v5512 = vadd.f32 0.0, %v5511
    %v5513 = vpop.f32.mrb[0].mxu0
    %v5514 = vpop.f32.mrb[0].mxu0
    %v5515 = vpop.f32.mrb[0].mxu0
    %5516 = vdwg.mxu0
    %v5517 = vadd.f32 %v5305, %v5448
    %v5518 = vadd.f32 %v5306, %v5451
    %v5519 = vadd.f32 %v5307, %v5456
    %v5520 = vadd.f32 %v5308, %v5459
    %v5521 = vadd.f32 %v5309, %v5464
    %v5522 = vadd.f32 %v5310, %v5467
    %v5523 = vadd.f32 %v5311, %v5472
    %v5524 = vadd.f32 %v5312, %v5475
    %v5525 = vadd.f32 %v5313, %v5480
    %v5526 = vadd.f32 %v5314, %v5483
    %v5527 = vadd.f32 %v5315, %v5488
    %v5528 = vadd.f32 %v5316, %v5491
    %v5529 = vadd.f32 %v5317, %v5496
    %v5530 = vadd.f32 %v5318, %v5499
    %v5531 = vadd.f32 %v5319, %v5504
    %v5532 = vadd.f32 %v5320, %v5507
    %v5533 = vadd.f32 %v5321, %v5512
    %v5534 = vld [vmem:[#allocation2 + $0x2a] sm:$0xff]
    %v5535 = vld [vmem:[#allocation2 + $0x32] sm:$0xff]
    %v5536 = vld [vmem:[#allocation2 + $0x3a] sm:$0xff]
    %v5537 = vld [vmem:[#allocation2 + $0x42] sm:$0xff]
    %v5538 = vld [vmem:[#allocation2 + $0x4a] sm:$0xff]
    %v5539 = vld [vmem:[#allocation2 + $0x52] sm:$0xff]
    %v5540 = vld [vmem:[#allocation2 + $0x5a] sm:$0xff]
    %v5541 = vld [vmem:[#allocation2 + $0x62] sm:$0xff]
    %v5542 = vld [vmem:[#allocation2 + $0x6a] sm:$0xff]
    %v5543 = vld [vmem:[#allocation2 + $0x72] sm:$0xff]
    %v5544 = vld [vmem:[#allocation2 + $0x7a] sm:$0xff]
    %v5545 = vld [vmem:[#allocation2 + $0x82] sm:$0xff]
    %v5546 = vld [vmem:[#allocation2 + $0x8a] sm:$0xff]
    %v5547 = vld [vmem:[#allocation2 + $0x92] sm:$0xff]
    %v5548 = vld [vmem:[#allocation2 + $0x9a] sm:$0xff]
    %v5549 = vld [vmem:[#allocation2 + $0xa2] sm:$0xff]
    %v5550 = vld [vmem:[#allocation2 + $0xaa] sm:$0xff]
    %v5551 = vpack.c.bf16 %v5535, %v5534
    %v5552 = vpack.c.bf16 %v5537, %v5536
    %v5553 = vpack.c.bf16 %v5539, %v5538
    %v5554 = vpack.c.bf16 %v5541, %v5540
    %v5555 = vpack.c.bf16 %v5543, %v5542
    %v5556 = vpack.c.bf16 %v5545, %v5544
    %v5557 = vpack.c.bf16 %v5547, %v5546
    %v5558 = vpack.c.bf16 %v5549, %v5548
    %v5559 = vpack.c.bf16 %v5550, %v5550
    %s5560 = scalar_lea.vmem %s4, 960
    %v5561 = vld [vmem:[%s5560] sm:$0xf]
    %v5562 = vld [vmem:[%s5560 + $0x4] sm:$0xf]
    %v5563 = vld [vmem:[%s5560 + $0x8] sm:$0xf]
    %v5564 = vld [vmem:[%s5560 + $0xc] sm:$0xf]
    %v5565 = vld [vmem:[%s5560 + $0x10] sm:$0xf]
    %v5566 = vld [vmem:[%s5560 + $0x14] sm:$0xf]
    %v5567 = vld [vmem:[%s5560 + $0x18] sm:$0xf]
    %v5568 = vld [vmem:[%s5560 + $0x1c] sm:$0xf]
    %v5569 = vld [vmem:[%s5560 + $0x20] sm:$0xf]
    %v5570 = vld [vmem:[%s5560 + $0x24] sm:$0xf]
    %v5571 = vld [vmem:[%s5560 + $0x28] sm:$0xf]
    %v5572 = vld [vmem:[%s5560 + $0x2c] sm:$0xf]
    %v5573 = vld [vmem:[%s5560 + $0x30] sm:$0xf]
    %v5574 = vld [vmem:[%s5560 + $0x34] sm:$0xf]
    %v5575 = vld [vmem:[%s5560 + $0x38] sm:$0xf]
    %v5576 = vld [vmem:[%s5560 + $0x3c] sm:$0xf]
    %v5593 = vunpack.c.l.b16 %v5561
    %v5594 = vunpack.c.l.b16 %v5562
    %v5595 = vunpack.c.l.b16 %v5563
    %v5596 = vunpack.c.l.b16 %v5564
    %v5597 = vunpack.c.l.b16 %v5565
    %v5598 = vunpack.c.l.b16 %v5566
    %v5599 = vunpack.c.l.b16 %v5567
    %v5600 = vunpack.c.l.b16 %v5568
    %v5601 = vunpack.c.l.b16 %v5569
    %v5602 = vunpack.c.l.b16 %v5570
    %v5603 = vunpack.c.l.b16 %v5571
    %v5604 = vunpack.c.l.b16 %v5572
    %v5605 = vunpack.c.l.b16 %v5573
    %v5606 = vunpack.c.l.b16 %v5574
    %v5607 = vunpack.c.l.b16 %v5575
    %v5608 = vunpack.c.l.b16 %v5576
    %v5609 = vpack.c.b16 %v5594, %v5593
    %v5610 = vpack.c.b16 %v5596, %v5595
    %v5611 = vpack.c.b16 %v5598, %v5597
    %v5612 = vpack.c.b16 %v5600, %v5599
    %v5613 = vpack.c.b16 %v5602, %v5601
    %v5614 = vpack.c.b16 %v5604, %v5603
    %v5615 = vpack.c.b16 %v5606, %v5605
    %v5616 = vpack.c.b16 %v5608, %v5607
    %5625 = vmatprep.subr.bf16.mxu0 0
    %5626 = vmatpush1.bf16.msra.mxu0 %v5609
    %5627 = vmatprep.subr.bf16.mxu0 0
    %5628 = vmatpush1.bf16.msra.mxu0 %v5610
    %5629 = vmatprep.subr.bf16.mxu0 0
    %5630 = vmatpush1.bf16.msra.mxu0 %v5611
    %5631 = vmatprep.subr.bf16.mxu0 0
    %5632 = vmatpush1.bf16.msra.mxu0 %v5612
    %5633 = vmatprep.subr.bf16.mxu0 0
    %5634 = vmatpush1.bf16.msra.mxu0 %v5613
    %5635 = vmatprep.subr.bf16.mxu0 0
    %5636 = vmatpush1.bf16.msra.mxu0 %v5614
    %5637 = vmatprep.subr.bf16.mxu0 0
    %5638 = vmatpush1.bf16.msra.mxu0 %v5615
    %5639 = vmatprep.subr.bf16.mxu0 0
    %5640 = vmatpush1.bf16.msra.mxu0 %v5616
    %5641 = vmatprep.subr.bf16.mxu0 0
    %5642 = vmatpush1.bf16.msra.mxu0 0
    %5643 = vmatprep.subr.bf16.mxu0 0
    %5644 = vmatpush1.bf16.msra.mxu0 0
    %5645 = vmatprep.subr.bf16.mxu0 0
    %5646 = vmatpush1.bf16.msra.mxu0 0
    %5647 = vmatprep.subr.bf16.mxu0 0
    %5648 = vmatpush1.bf16.msra.mxu0 0
    %5649 = vmatprep.subr.bf16.mxu0 0
    %5650 = vmatpush1.bf16.msra.mxu0 0
    %5651 = vmatprep.subr.bf16.mxu0 0
    %5652 = vmatpush1.bf16.msra.mxu0 0
    %5653 = vmatprep.subr.bf16.mxu0 0
    %5654 = vmatpush1.bf16.msra.mxu0 0
    %5655 = vmatprep.subr.bf16.mxu0 0
    %5656 = vmatpush1.bf16.msra.mxu0 0
    %5657 = vmatprep.mubr.bf16.mxu0 0
    %5658 = vmatmul.mubr.bf16.gmra.mrb[0].mxu0 %v5551
    %v5659 = vpop.f32.mrb[0].mxu0
    %v5660 = vadd.f32 0.0, %v5659
    %v5661 = vpop.f32.mrb[0].mxu0
    %v5662 = vpop.f32.mrb[0].mxu0
    %v5663 = vadd.f32 0.0, %v5662
    %v5664 = vpop.f32.mrb[0].mxu0
    %5665 = vmatprep.mubr.bf16.mxu0 0
    %5666 = vmatmul.mubr.bf16.gmra.mrb[0].mxu0 %v5552
    %v5667 = vpop.f32.mrb[0].mxu0
    %v5668 = vadd.f32 0.0, %v5667
    %v5669 = vpop.f32.mrb[0].mxu0
    %v5670 = vpop.f32.mrb[0].mxu0
    %v5671 = vadd.f32 0.0, %v5670
    %v5672 = vpop.f32.mrb[0].mxu0
    %5673 = vmatprep.mubr.bf16.mxu0 0
    %5674 = vmatmul.mubr.bf16.gmra.mrb[0].mxu0 %v5553
    %v5675 = vpop.f32.mrb[0].mxu0
    %v5676 = vadd.f32 0.0, %v5675
    %v5677 = vpop.f32.mrb[0].mxu0
    %v5678 = vpop.f32.mrb[0].mxu0
    %v5679 = vadd.f32 0.0, %v5678
    %v5680 = vpop.f32.mrb[0].mxu0
    %5681 = vmatprep.mubr.bf16.mxu0 0
    %5682 = vmatmul.mubr.bf16.gmra.mrb[0].mxu0 %v5554
    %v5683 = vpop.f32.mrb[0].mxu0
    %v5684 = vadd.f32 0.0, %v5683
    %v5685 = vpop.f32.mrb[0].mxu0
    %v5686 = vpop.f32.mrb[0].mxu0
    %v5687 = vadd.f32 0.0, %v5686
    %v5688 = vpop.f32.mrb[0].mxu0
    %5689 = vmatprep.mubr.bf16.mxu0 0
    %5690 = vmatmul.mubr.bf16.gmra.mrb[0].mxu0 %v5555
    %v5691 = vpop.f32.mrb[0].mxu0
    %v5692 = vadd.f32 0.0, %v5691
    %v5693 = vpop.f32.mrb[0].mxu0
    %v5694 = vpop.f32.mrb[0].mxu0
    %v5695 = vadd.f32 0.0, %v5694
    %v5696 = vpop.f32.mrb[0].mxu0
    %5697 = vmatprep.mubr.bf16.mxu0 0
    %5698 = vmatmul.mubr.bf16.gmra.mrb[0].mxu0 %v5556
    %v5699 = vpop.f32.mrb[0].mxu0
    %v5700 = vadd.f32 0.0, %v5699
    %v5701 = vpop.f32.mrb[0].mxu0
    %v5702 = vpop.f32.mrb[0].mxu0
    %v5703 = vadd.f32 0.0, %v5702
    %v5704 = vpop.f32.mrb[0].mxu0
    %5705 = vmatprep.mubr.bf16.mxu0 0
    %5706 = vmatmul.mubr.bf16.gmra.mrb[0].mxu0 %v5557
    %v5707 = vpop.f32.mrb[0].mxu0
    %v5708 = vadd.f32 0.0, %v5707
    %v5709 = vpop.f32.mrb[0].mxu0
    %v5710 = vpop.f32.mrb[0].mxu0
    %v5711 = vadd.f32 0.0, %v5710
    %v5712 = vpop.f32.mrb[0].mxu0
    %5713 = vmatprep.mubr.bf16.mxu0 0
    %5714 = vmatmul.mubr.bf16.gmra.mrb[0].mxu0 %v5558
    %v5715 = vpop.f32.mrb[0].mxu0
    %v5716 = vadd.f32 0.0, %v5715
    %v5717 = vpop.f32.mrb[0].mxu0
    %v5718 = vpop.f32.mrb[0].mxu0
    %v5719 = vadd.f32 0.0, %v5718
    %v5720 = vpop.f32.mrb[0].mxu0
    %5721 = vmatprep.mubr.bf16.mxu0 0
    %5722 = vmatmul.mubr.bf16.gmra.mrb[0].mxu0 %v5559
    %v5723 = vpop.f32.mrb[0].mxu0
    %v5724 = vadd.f32 0.0, %v5723
    %v5725 = vpop.f32.mrb[0].mxu0
    %v5726 = vpop.f32.mrb[0].mxu0
    %v5727 = vpop.f32.mrb[0].mxu0
    %5728 = vdwg.mxu0
    %v5729 = vadd.f32 %v5517, %v5660
    %v5730 = vadd.f32 %v5518, %v5663
    %v5731 = vadd.f32 %v5519, %v5668
    %v5732 = vadd.f32 %v5520, %v5671
    %v5733 = vadd.f32 %v5521, %v5676
    %v5734 = vadd.f32 %v5522, %v5679
    %v5735 = vadd.f32 %v5523, %v5684
    %v5736 = vadd.f32 %v5524, %v5687
    %v5737 = vadd.f32 %v5525, %v5692
    %v5738 = vadd.f32 %v5526, %v5695
    %v5739 = vadd.f32 %v5527, %v5700
    %v5740 = vadd.f32 %v5528, %v5703
    %v5741 = vadd.f32 %v5529, %v5708
    %v5742 = vadd.f32 %v5530, %v5711
    %v5743 = vadd.f32 %v5531, %v5716
    %v5744 = vadd.f32 %v5532, %v5719
    %v5745 = vadd.f32 %v5533, %v5724
    %v5746 = vld [vmem:[#allocation2 + $0x2b] sm:$0xff]
    %v5747 = vld [vmem:[#allocation2 + $0x33] sm:$0xff]
    %v5748 = vld [vmem:[#allocation2 + $0x3b] sm:$0xff]
    %v5749 = vld [vmem:[#allocation2 + $0x43] sm:$0xff]
    %v5750 = vld [vmem:[#allocation2 + $0x4b] sm:$0xff]
    %v5751 = vld [vmem:[#allocation2 + $0x53] sm:$0xff]
    %v5752 = vld [vmem:[#allocation2 + $0x5b] sm:$0xff]
    %v5753 = vld [vmem:[#allocation2 + $0x63] sm:$0xff]
    %v5754 = vld [vmem:[#allocation2 + $0x6b] sm:$0xff]
    %v5755 = vld [vmem:[#allocation2 + $0x73] sm:$0xff]
    %v5756 = vld [vmem:[#allocation2 + $0x7b] sm:$0xff]
    %v5757 = vld [vmem:[#allocation2 + $0x83] sm:$0xff]
    %v5758 = vld [vmem:[#allocation2 + $0x8b] sm:$0xff]
    %v5759 = vld [vmem:[#allocation2 + $0x93] sm:$0xff]
    %v5760 = vld [vmem:[#allocation2 + $0x9b] sm:$0xff]
    %v5761 = vld [vmem:[#allocation2 + $0xa3] sm:$0xff]
    %v5762 = vld [vmem:[#allocation2 + $0xab] sm:$0xff]
    %v5763 = vpack.c.bf16 %v5747, %v5746
    %v5764 = vpack.c.bf16 %v5749, %v5748
    %v5765 = vpack.c.bf16 %v5751, %v5750
    %v5766 = vpack.c.bf16 %v5753, %v5752
    %v5767 = vpack.c.bf16 %v5755, %v5754
    %v5768 = vpack.c.bf16 %v5757, %v5756
    %v5769 = vpack.c.bf16 %v5759, %v5758
    %v5770 = vpack.c.bf16 %v5761, %v5760
    %v5771 = vpack.c.bf16 %v5762, %v5762
    %s5772 = scalar_lea.vmem %s4, 1024
    %v5773 = vld [vmem:[%s5772] sm:$0xf]
    %v5774 = vld [vmem:[%s5772 + $0x4] sm:$0xf]
    %v5775 = vld [vmem:[%s5772 + $0x8] sm:$0xf]
    %v5776 = vld [vmem:[%s5772 + $0xc] sm:$0xf]
    %v5777 = vld [vmem:[%s5772 + $0x10] sm:$0xf]
    %v5778 = vld [vmem:[%s5772 + $0x14] sm:$0xf]
    %v5779 = vld [vmem:[%s5772 + $0x18] sm:$0xf]
    %v5780 = vld [vmem:[%s5772 + $0x1c] sm:$0xf]
    %v5781 = vld [vmem:[%s5772 + $0x20] sm:$0xf]
    %v5782 = vld [vmem:[%s5772 + $0x24] sm:$0xf]
    %v5783 = vld [vmem:[%s5772 + $0x28] sm:$0xf]
    %v5784 = vld [vmem:[%s5772 + $0x2c] sm:$0xf]
    %v5785 = vld [vmem:[%s5772 + $0x30] sm:$0xf]
    %v5786 = vld [vmem:[%s5772 + $0x34] sm:$0xf]
    %v5787 = vld [vmem:[%s5772 + $0x38] sm:$0xf]
    %v5788 = vld [vmem:[%s5772 + $0x3c] sm:$0xf]
    %v5805 = vunpack.c.l.b16 %v5773
    %v5806 = vunpack.c.l.b16 %v5774
    %v5807 = vunpack.c.l.b16 %v5775
    %v5808 = vunpack.c.l.b16 %v5776
    %v5809 = vunpack.c.l.b16 %v5777
    %v5810 = vunpack.c.l.b16 %v5778
    %v5811 = vunpack.c.l.b16 %v5779
    %v5812 = vunpack.c.l.b16 %v5780
    %v5813 = vunpack.c.l.b16 %v5781
    %v5814 = vunpack.c.l.b16 %v5782
    %v5815 = vunpack.c.l.b16 %v5783
    %v5816 = vunpack.c.l.b16 %v5784
    %v5817 = vunpack.c.l.b16 %v5785
    %v5818 = vunpack.c.l.b16 %v5786
    %v5819 = vunpack.c.l.b16 %v5787
    %v5820 = vunpack.c.l.b16 %v5788
    %v5821 = vpack.c.b16 %v5806, %v5805
    %v5822 = vpack.c.b16 %v5808, %v5807
    %v5823 = vpack.c.b16 %v5810, %v5809
    %v5824 = vpack.c.b16 %v5812, %v5811
    %v5825 = vpack.c.b16 %v5814, %v5813
    %v5826 = vpack.c.b16 %v5816, %v5815
    %v5827 = vpack.c.b16 %v5818, %v5817
    %v5828 = vpack.c.b16 %v5820, %v5819
    %5837 = vmatprep.subr.bf16.mxu0 0
    %5838 = vmatpush1.bf16.msra.mxu0 %v5821
    %5839 = vmatprep.subr.bf16.mxu0 0
    %5840 = vmatpush1.bf16.msra.mxu0 %v5822
    %5841 = vmatprep.subr.bf16.mxu0 0
    %5842 = vmatpush1.bf16.msra.mxu0 %v5823
    %5843 = vmatprep.subr.bf16.mxu0 0
    %5844 = vmatpush1.bf16.msra.mxu0 %v5824
    %5845 = vmatprep.subr.bf16.mxu0 0
    %5846 = vmatpush1.bf16.msra.mxu0 %v5825
    %5847 = vmatprep.subr.bf16.mxu0 0
    %5848 = vmatpush1.bf16.msra.mxu0 %v5826
    %5849 = vmatprep.subr.bf16.mxu0 0
    %5850 = vmatpush1.bf16.msra.mxu0 %v5827
    %5851 = vmatprep.subr.bf16.mxu0 0
    %5852 = vmatpush1.bf16.msra.mxu0 %v5828
    %5853 = vmatprep.subr.bf16.mxu0 0
    %5854 = vmatpush1.bf16.msra.mxu0 0
    %5855 = vmatprep.subr.bf16.mxu0 0
    %5856 = vmatpush1.bf16.msra.mxu0 0
    %5857 = vmatprep.subr.bf16.mxu0 0
    %5858 = vmatpush1.bf16.msra.mxu0 0
    %5859 = vmatprep.subr.bf16.mxu0 0
    %5860 = vmatpush1.bf16.msra.mxu0 0
    %5861 = vmatprep.subr.bf16.mxu0 0
    %5862 = vmatpush1.bf16.msra.mxu0 0
    %5863 = vmatprep.subr.bf16.mxu0 0
    %5864 = vmatpush1.bf16.msra.mxu0 0
    %5865 = vmatprep.subr.bf16.mxu0 0
    %5866 = vmatpush1.bf16.msra.mxu0 0
    %5867 = vmatprep.subr.bf16.mxu0 0
    %5868 = vmatpush1.bf16.msra.mxu0 0
    %5869 = vmatprep.mubr.bf16.mxu0 0
    %5870 = vmatmul.mubr.bf16.gmra.mrb[0].mxu0 %v5763
    %v5871 = vpop.f32.mrb[0].mxu0
    %v5872 = vadd.f32 0.0, %v5871
    %v5873 = vpop.f32.mrb[0].mxu0
    %v5874 = vpop.f32.mrb[0].mxu0
    %v5875 = vadd.f32 0.0, %v5874
    %v5876 = vpop.f32.mrb[0].mxu0
    %5877 = vmatprep.mubr.bf16.mxu0 0
    %5878 = vmatmul.mubr.bf16.gmra.mrb[0].mxu0 %v5764
    %v5879 = vpop.f32.mrb[0].mxu0
    %v5880 = vadd.f32 0.0, %v5879
    %v5881 = vpop.f32.mrb[0].mxu0
    %v5882 = vpop.f32.mrb[0].mxu0
    %v5883 = vadd.f32 0.0, %v5882
    %v5884 = vpop.f32.mrb[0].mxu0
    %5885 = vmatprep.mubr.bf16.mxu0 0
    %5886 = vmatmul.mubr.bf16.gmra.mrb[0].mxu0 %v5765
    %v5887 = vpop.f32.mrb[0].mxu0
    %v5888 = vadd.f32 0.0, %v5887
    %v5889 = vpop.f32.mrb[0].mxu0
    %v5890 = vpop.f32.mrb[0].mxu0
    %v5891 = vadd.f32 0.0, %v5890
    %v5892 = vpop.f32.mrb[0].mxu0
    %5893 = vmatprep.mubr.bf16.mxu0 0
    %5894 = vmatmul.mubr.bf16.gmra.mrb[0].mxu0 %v5766
    %v5895 = vpop.f32.mrb[0].mxu0
    %v5896 = vadd.f32 0.0, %v5895
    %v5897 = vpop.f32.mrb[0].mxu0
    %v5898 = vpop.f32.mrb[0].mxu0
    %v5899 = vadd.f32 0.0, %v5898
    %v5900 = vpop.f32.mrb[0].mxu0
    %5901 = vmatprep.mubr.bf16.mxu0 0
    %5902 = vmatmul.mubr.bf16.gmra.mrb[0].mxu0 %v5767
    %v5903 = vpop.f32.mrb[0].mxu0
    %v5904 = vadd.f32 0.0, %v5903
    %v5905 = vpop.f32.mrb[0].mxu0
    %v5906 = vpop.f32.mrb[0].mxu0
    %v5907 = vadd.f32 0.0, %v5906
    %v5908 = vpop.f32.mrb[0].mxu0
    %5909 = vmatprep.mubr.bf16.mxu0 0
    %5910 = vmatmul.mubr.bf16.gmra.mrb[0].mxu0 %v5768
    %v5911 = vpop.f32.mrb[0].mxu0
    %v5912 = vadd.f32 0.0, %v5911
    %v5913 = vpop.f32.mrb[0].mxu0
    %v5914 = vpop.f32.mrb[0].mxu0
    %v5915 = vadd.f32 0.0, %v5914
    %v5916 = vpop.f32.mrb[0].mxu0
    %5917 = vmatprep.mubr.bf16.mxu0 0
    %5918 = vmatmul.mubr.bf16.gmra.mrb[0].mxu0 %v5769
    %v5919 = vpop.f32.mrb[0].mxu0
    %v5920 = vadd.f32 0.0, %v5919
    %v5921 = vpop.f32.mrb[0].mxu0
    %v5922 = vpop.f32.mrb[0].mxu0
    %v5923 = vadd.f32 0.0, %v5922
    %v5924 = vpop.f32.mrb[0].mxu0
    %5925 = vmatprep.mubr.bf16.mxu0 0
    %5926 = vmatmul.mubr.bf16.gmra.mrb[0].mxu0 %v5770
    %v5927 = vpop.f32.mrb[0].mxu0
    %v5928 = vadd.f32 0.0, %v5927
    %v5929 = vpop.f32.mrb[0].mxu0
    %v5930 = vpop.f32.mrb[0].mxu0
    %v5931 = vadd.f32 0.0, %v5930
    %v5932 = vpop.f32.mrb[0].mxu0
    %5933 = vmatprep.mubr.bf16.mxu0 0
    %5934 = vmatmul.mubr.bf16.gmra.mrb[0].mxu0 %v5771
    %v5935 = vpop.f32.mrb[0].mxu0
    %v5936 = vadd.f32 0.0, %v5935
    %v5937 = vpop.f32.mrb[0].mxu0
    %v5938 = vpop.f32.mrb[0].mxu0
    %v5939 = vpop.f32.mrb[0].mxu0
    %5940 = vdwg.mxu0
    %v5941 = vadd.f32 %v5729, %v5872
    %v5942 = vadd.f32 %v5730, %v5875
    %v5943 = vadd.f32 %v5731, %v5880
    %v5944 = vadd.f32 %v5732, %v5883
    %v5945 = vadd.f32 %v5733, %v5888
    %v5946 = vadd.f32 %v5734, %v5891
    %v5947 = vadd.f32 %v5735, %v5896
    %v5948 = vadd.f32 %v5736, %v5899
    %v5949 = vadd.f32 %v5737, %v5904
    %v5950 = vadd.f32 %v5738, %v5907
    %v5951 = vadd.f32 %v5739, %v5912
    %v5952 = vadd.f32 %v5740, %v5915
    %v5953 = vadd.f32 %v5741, %v5920
    %v5954 = vadd.f32 %v5742, %v5923
    %v5955 = vadd.f32 %v5743, %v5928
    %v5956 = vadd.f32 %v5744, %v5931
    %v5957 = vadd.f32 %v5745, %v5936
    %v5958 = vld [vmem:[#allocation2 + $0x2c] sm:$0xff]
    %v5959 = vld [vmem:[#allocation2 + $0x34] sm:$0xff]
    %v5960 = vld [vmem:[#allocation2 + $0x3c] sm:$0xff]
    %v5961 = vld [vmem:[#allocation2 + $0x44] sm:$0xff]
    %v5962 = vld [vmem:[#allocation2 + $0x4c] sm:$0xff]
    %v5963 = vld [vmem:[#allocation2 + $0x54] sm:$0xff]
    %v5964 = vld [vmem:[#allocation2 + $0x5c] sm:$0xff]
    %v5965 = vld [vmem:[#allocation2 + $0x64] sm:$0xff]
    %v5966 = vld [vmem:[#allocation2 + $0x6c] sm:$0xff]
    %v5967 = vld [vmem:[#allocation2 + $0x74] sm:$0xff]
    %v5968 = vld [vmem:[#allocation2 + $0x7c] sm:$0xff]
    %v5969 = vld [vmem:[#allocation2 + $0x84] sm:$0xff]
    %v5970 = vld [vmem:[#allocation2 + $0x8c] sm:$0xff]
    %v5971 = vld [vmem:[#allocation2 + $0x94] sm:$0xff]
    %v5972 = vld [vmem:[#allocation2 + $0x9c] sm:$0xff]
    %v5973 = vld [vmem:[#allocation2 + $0xa4] sm:$0xff]
    %v5974 = vld [vmem:[#allocation2 + $0xac] sm:$0xff]
    %v5975 = vpack.c.bf16 %v5959, %v5958
    %v5976 = vpack.c.bf16 %v5961, %v5960
    %v5977 = vpack.c.bf16 %v5963, %v5962
    %v5978 = vpack.c.bf16 %v5965, %v5964
    %v5979 = vpack.c.bf16 %v5967, %v5966
    %v5980 = vpack.c.bf16 %v5969, %v5968
    %v5981 = vpack.c.bf16 %v5971, %v5970
    %v5982 = vpack.c.bf16 %v5973, %v5972
    %v5983 = vpack.c.bf16 %v5974, %v5974
    %s5984 = scalar_lea.vmem %s4, 1088
    %v5985 = vld [vmem:[%s5984] sm:$0xf]
    %v5986 = vld [vmem:[%s5984 + $0x4] sm:$0xf]
    %v5987 = vld [vmem:[%s5984 + $0x8] sm:$0xf]
    %v5988 = vld [vmem:[%s5984 + $0xc] sm:$0xf]
    %v5989 = vld [vmem:[%s5984 + $0x10] sm:$0xf]
    %v5990 = vld [vmem:[%s5984 + $0x14] sm:$0xf]
    %v5991 = vld [vmem:[%s5984 + $0x18] sm:$0xf]
    %v5992 = vld [vmem:[%s5984 + $0x1c] sm:$0xf]
    %v5993 = vld [vmem:[%s5984 + $0x20] sm:$0xf]
    %v5994 = vld [vmem:[%s5984 + $0x24] sm:$0xf]
    %v5995 = vld [vmem:[%s5984 + $0x28] sm:$0xf]
    %v5996 = vld [vmem:[%s5984 + $0x2c] sm:$0xf]
    %v5997 = vld [vmem:[%s5984 + $0x30] sm:$0xf]
    %v5998 = vld [vmem:[%s5984 + $0x34] sm:$0xf]
    %v5999 = vld [vmem:[%s5984 + $0x38] sm:$0xf]
    %v6000 = vld [vmem:[%s5984 + $0x3c] sm:$0xf]
    %v6017 = vunpack.c.l.b16 %v5985
    %v6018 = vunpack.c.l.b16 %v5986
    %v6019 = vunpack.c.l.b16 %v5987
    %v6020 = vunpack.c.l.b16 %v5988
    %v6021 = vunpack.c.l.b16 %v5989
    %v6022 = vunpack.c.l.b16 %v5990
    %v6023 = vunpack.c.l.b16 %v5991
    %v6024 = vunpack.c.l.b16 %v5992
    %v6025 = vunpack.c.l.b16 %v5993
    %v6026 = vunpack.c.l.b16 %v5994
    %v6027 = vunpack.c.l.b16 %v5995
    %v6028 = vunpack.c.l.b16 %v5996
    %v6029 = vunpack.c.l.b16 %v5997
    %v6030 = vunpack.c.l.b16 %v5998
    %v6031 = vunpack.c.l.b16 %v5999
    %v6032 = vunpack.c.l.b16 %v6000
    %v6033 = vpack.c.b16 %v6018, %v6017
    %v6034 = vpack.c.b16 %v6020, %v6019
    %v6035 = vpack.c.b16 %v6022, %v6021
    %v6036 = vpack.c.b16 %v6024, %v6023
    %v6037 = vpack.c.b16 %v6026, %v6025
    %v6038 = vpack.c.b16 %v6028, %v6027
    %v6039 = vpack.c.b16 %v6030, %v6029
    %v6040 = vpack.c.b16 %v6032, %v6031
    %6049 = vmatprep.subr.bf16.mxu0 0
    %6050 = vmatpush1.bf16.msra.mxu0 %v6033
    %6051 = vmatprep.subr.bf16.mxu0 0
    %6052 = vmatpush1.bf16.msra.mxu0 %v6034
    %6053 = vmatprep.subr.bf16.mxu0 0
    %6054 = vmatpush1.bf16.msra.mxu0 %v6035
    %6055 = vmatprep.subr.bf16.mxu0 0
    %6056 = vmatpush1.bf16.msra.mxu0 %v6036
    %6057 = vmatprep.subr.bf16.mxu0 0
    %6058 = vmatpush1.bf16.msra.mxu0 %v6037
    %6059 = vmatprep.subr.bf16.mxu0 0
    %6060 = vmatpush1.bf16.msra.mxu0 %v6038
    %6061 = vmatprep.subr.bf16.mxu0 0
    %6062 = vmatpush1.bf16.msra.mxu0 %v6039
    %6063 = vmatprep.subr.bf16.mxu0 0
    %6064 = vmatpush1.bf16.msra.mxu0 %v6040
    %6065 = vmatprep.subr.bf16.mxu0 0
    %6066 = vmatpush1.bf16.msra.mxu0 0
    %6067 = vmatprep.subr.bf16.mxu0 0
    %6068 = vmatpush1.bf16.msra.mxu0 0
    %6069 = vmatprep.subr.bf16.mxu0 0
    %6070 = vmatpush1.bf16.msra.mxu0 0
    %6071 = vmatprep.subr.bf16.mxu0 0
    %6072 = vmatpush1.bf16.msra.mxu0 0
    %6073 = vmatprep.subr.bf16.mxu0 0
    %6074 = vmatpush1.bf16.msra.mxu0 0
    %6075 = vmatprep.subr.bf16.mxu0 0
    %6076 = vmatpush1.bf16.msra.mxu0 0
    %6077 = vmatprep.subr.bf16.mxu0 0
    %6078 = vmatpush1.bf16.msra.mxu0 0
    %6079 = vmatprep.subr.bf16.mxu0 0
    %6080 = vmatpush1.bf16.msra.mxu0 0
    %6081 = vmatprep.mubr.bf16.mxu0 0
    %6082 = vmatmul.mubr.bf16.gmra.mrb[0].mxu0 %v5975
    %v6083 = vpop.f32.mrb[0].mxu0
    %v6084 = vadd.f32 0.0, %v6083
    %v6085 = vpop.f32.mrb[0].mxu0
    %v6086 = vpop.f32.mrb[0].mxu0
    %v6087 = vadd.f32 0.0, %v6086
    %v6088 = vpop.f32.mrb[0].mxu0
    %6089 = vmatprep.mubr.bf16.mxu0 0
    %6090 = vmatmul.mubr.bf16.gmra.mrb[0].mxu0 %v5976
    %v6091 = vpop.f32.mrb[0].mxu0
    %v6092 = vadd.f32 0.0, %v6091
    %v6093 = vpop.f32.mrb[0].mxu0
    %v6094 = vpop.f32.mrb[0].mxu0
    %v6095 = vadd.f32 0.0, %v6094
    %v6096 = vpop.f32.mrb[0].mxu0
    %6097 = vmatprep.mubr.bf16.mxu0 0
    %6098 = vmatmul.mubr.bf16.gmra.mrb[0].mxu0 %v5977
    %v6099 = vpop.f32.mrb[0].mxu0
    %v6100 = vadd.f32 0.0, %v6099
    %v6101 = vpop.f32.mrb[0].mxu0
    %v6102 = vpop.f32.mrb[0].mxu0
    %v6103 = vadd.f32 0.0, %v6102
    %v6104 = vpop.f32.mrb[0].mxu0
    %6105 = vmatprep.mubr.bf16.mxu0 0
    %6106 = vmatmul.mubr.bf16.gmra.mrb[0].mxu0 %v5978
    %v6107 = vpop.f32.mrb[0].mxu0
    %v6108 = vadd.f32 0.0, %v6107
    %v6109 = vpop.f32.mrb[0].mxu0
    %v6110 = vpop.f32.mrb[0].mxu0
    %v6111 = vadd.f32 0.0, %v6110
    %v6112 = vpop.f32.mrb[0].mxu0
    %6113 = vmatprep.mubr.bf16.mxu0 0
    %6114 = vmatmul.mubr.bf16.gmra.mrb[0].mxu0 %v5979
    %v6115 = vpop.f32.mrb[0].mxu0
    %v6116 = vadd.f32 0.0, %v6115
    %v6117 = vpop.f32.mrb[0].mxu0
    %v6118 = vpop.f32.mrb[0].mxu0
    %v6119 = vadd.f32 0.0, %v6118
    %v6120 = vpop.f32.mrb[0].mxu0
    %6121 = vmatprep.mubr.bf16.mxu0 0
    %6122 = vmatmul.mubr.bf16.gmra.mrb[0].mxu0 %v5980
    %v6123 = vpop.f32.mrb[0].mxu0
    %v6124 = vadd.f32 0.0, %v6123
    %v6125 = vpop.f32.mrb[0].mxu0
    %v6126 = vpop.f32.mrb[0].mxu0
    %v6127 = vadd.f32 0.0, %v6126
    %v6128 = vpop.f32.mrb[0].mxu0
    %6129 = vmatprep.mubr.bf16.mxu0 0
    %6130 = vmatmul.mubr.bf16.gmra.mrb[0].mxu0 %v5981
    %v6131 = vpop.f32.mrb[0].mxu0
    %v6132 = vadd.f32 0.0, %v6131
    %v6133 = vpop.f32.mrb[0].mxu0
    %v6134 = vpop.f32.mrb[0].mxu0
    %v6135 = vadd.f32 0.0, %v6134
    %v6136 = vpop.f32.mrb[0].mxu0
    %6137 = vmatprep.mubr.bf16.mxu0 0
    %6138 = vmatmul.mubr.bf16.gmra.mrb[0].mxu0 %v5982
    %v6139 = vpop.f32.mrb[0].mxu0
    %v6140 = vadd.f32 0.0, %v6139
    %v6141 = vpop.f32.mrb[0].mxu0
    %v6142 = vpop.f32.mrb[0].mxu0
    %v6143 = vadd.f32 0.0, %v6142
    %v6144 = vpop.f32.mrb[0].mxu0
    %6145 = vmatprep.mubr.bf16.mxu0 0
    %6146 = vmatmul.mubr.bf16.gmra.mrb[0].mxu0 %v5983
    %v6147 = vpop.f32.mrb[0].mxu0
    %v6148 = vadd.f32 0.0, %v6147
    %v6149 = vpop.f32.mrb[0].mxu0
    %v6150 = vpop.f32.mrb[0].mxu0
    %v6151 = vpop.f32.mrb[0].mxu0
    %6152 = vdwg.mxu0
    %v6153 = vadd.f32 %v5941, %v6084
    %v6154 = vadd.f32 %v5942, %v6087
    %v6155 = vadd.f32 %v5943, %v6092
    %v6156 = vadd.f32 %v5944, %v6095
    %v6157 = vadd.f32 %v5945, %v6100
    %v6158 = vadd.f32 %v5946, %v6103
    %v6159 = vadd.f32 %v5947, %v6108
    %v6160 = vadd.f32 %v5948, %v6111
    %v6161 = vadd.f32 %v5949, %v6116
    %v6162 = vadd.f32 %v5950, %v6119
    %v6163 = vadd.f32 %v5951, %v6124
    %v6164 = vadd.f32 %v5952, %v6127
    %v6165 = vadd.f32 %v5953, %v6132
    %v6166 = vadd.f32 %v5954, %v6135
    %v6167 = vadd.f32 %v5955, %v6140
    %v6168 = vadd.f32 %v5956, %v6143
    %v6169 = vadd.f32 %v5957, %v6148
    %v6170 = vld [vmem:[#allocation2 + $0x2d] sm:$0xff]
    %v6171 = vld [vmem:[#allocation2 + $0x35] sm:$0xff]
    %v6172 = vld [vmem:[#allocation2 + $0x3d] sm:$0xff]
    %v6173 = vld [vmem:[#allocation2 + $0x45] sm:$0xff]
    %v6174 = vld [vmem:[#allocation2 + $0x4d] sm:$0xff]
    %v6175 = vld [vmem:[#allocation2 + $0x55] sm:$0xff]
    %v6176 = vld [vmem:[#allocation2 + $0x5d] sm:$0xff]
    %v6177 = vld [vmem:[#allocation2 + $0x65] sm:$0xff]
    %v6178 = vld [vmem:[#allocation2 + $0x6d] sm:$0xff]
    %v6179 = vld [vmem:[#allocation2 + $0x75] sm:$0xff]
    %v6180 = vld [vmem:[#allocation2 + $0x7d] sm:$0xff]
    %v6181 = vld [vmem:[#allocation2 + $0x85] sm:$0xff]
    %v6182 = vld [vmem:[#allocation2 + $0x8d] sm:$0xff]
    %v6183 = vld [vmem:[#allocation2 + $0x95] sm:$0xff]
    %v6184 = vld [vmem:[#allocation2 + $0x9d] sm:$0xff]
    %v6185 = vld [vmem:[#allocation2 + $0xa5] sm:$0xff]
    %v6186 = vld [vmem:[#allocation2 + $0xad] sm:$0xff]
    %v6187 = vpack.c.bf16 %v6171, %v6170
    %v6188 = vpack.c.bf16 %v6173, %v6172
    %v6189 = vpack.c.bf16 %v6175, %v6174
    %v6190 = vpack.c.bf16 %v6177, %v6176
    %v6191 = vpack.c.bf16 %v6179, %v6178
    %v6192 = vpack.c.bf16 %v6181, %v6180
    %v6193 = vpack.c.bf16 %v6183, %v6182
    %v6194 = vpack.c.bf16 %v6185, %v6184
    %v6195 = vpack.c.bf16 %v6186, %v6186
    %s6196 = scalar_lea.vmem %s4, 1152
    %v6197 = vld [vmem:[%s6196] sm:$0xf]
    %v6198 = vld [vmem:[%s6196 + $0x4] sm:$0xf]
    %v6199 = vld [vmem:[%s6196 + $0x8] sm:$0xf]
    %v6200 = vld [vmem:[%s6196 + $0xc] sm:$0xf]
    %v6201 = vld [vmem:[%s6196 + $0x10] sm:$0xf]
    %v6202 = vld [vmem:[%s6196 + $0x14] sm:$0xf]
    %v6203 = vld [vmem:[%s6196 + $0x18] sm:$0xf]
    %v6204 = vld [vmem:[%s6196 + $0x1c] sm:$0xf]
    %v6205 = vld [vmem:[%s6196 + $0x20] sm:$0xf]
    %v6206 = vld [vmem:[%s6196 + $0x24] sm:$0xf]
    %v6207 = vld [vmem:[%s6196 + $0x28] sm:$0xf]
    %v6208 = vld [vmem:[%s6196 + $0x2c] sm:$0xf]
    %v6209 = vld [vmem:[%s6196 + $0x30] sm:$0xf]
    %v6210 = vld [vmem:[%s6196 + $0x34] sm:$0xf]
    %v6211 = vld [vmem:[%s6196 + $0x38] sm:$0xf]
    %v6212 = vld [vmem:[%s6196 + $0x3c] sm:$0xf]
    %v6229 = vunpack.c.l.b16 %v6197
    %v6230 = vunpack.c.l.b16 %v6198
    %v6231 = vunpack.c.l.b16 %v6199
    %v6232 = vunpack.c.l.b16 %v6200
    %v6233 = vunpack.c.l.b16 %v6201
    %v6234 = vunpack.c.l.b16 %v6202
    %v6235 = vunpack.c.l.b16 %v6203
    %v6236 = vunpack.c.l.b16 %v6204
    %v6237 = vunpack.c.l.b16 %v6205
    %v6238 = vunpack.c.l.b16 %v6206
    %v6239 = vunpack.c.l.b16 %v6207
    %v6240 = vunpack.c.l.b16 %v6208
    %v6241 = vunpack.c.l.b16 %v6209
    %v6242 = vunpack.c.l.b16 %v6210
    %v6243 = vunpack.c.l.b16 %v6211
    %v6244 = vunpack.c.l.b16 %v6212
    %v6245 = vpack.c.b16 %v6230, %v6229
    %v6246 = vpack.c.b16 %v6232, %v6231
    %v6247 = vpack.c.b16 %v6234, %v6233
    %v6248 = vpack.c.b16 %v6236, %v6235
    %v6249 = vpack.c.b16 %v6238, %v6237
    %v6250 = vpack.c.b16 %v6240, %v6239
    %v6251 = vpack.c.b16 %v6242, %v6241
    %v6252 = vpack.c.b16 %v6244, %v6243
    %6261 = vmatprep.subr.bf16.mxu0 0
    %6262 = vmatpush1.bf16.msra.mxu0 %v6245
    %6263 = vmatprep.subr.bf16.mxu0 0
    %6264 = vmatpush1.bf16.msra.mxu0 %v6246
    %6265 = vmatprep.subr.bf16.mxu0 0
    %6266 = vmatpush1.bf16.msra.mxu0 %v6247
    %6267 = vmatprep.subr.bf16.mxu0 0
    %6268 = vmatpush1.bf16.msra.mxu0 %v6248
    %6269 = vmatprep.subr.bf16.mxu0 0
    %6270 = vmatpush1.bf16.msra.mxu0 %v6249
    %6271 = vmatprep.subr.bf16.mxu0 0
    %6272 = vmatpush1.bf16.msra.mxu0 %v6250
    %6273 = vmatprep.subr.bf16.mxu0 0
    %6274 = vmatpush1.bf16.msra.mxu0 %v6251
    %6275 = vmatprep.subr.bf16.mxu0 0
    %6276 = vmatpush1.bf16.msra.mxu0 %v6252
    %6277 = vmatprep.subr.bf16.mxu0 0
    %6278 = vmatpush1.bf16.msra.mxu0 0
    %6279 = vmatprep.subr.bf16.mxu0 0
    %6280 = vmatpush1.bf16.msra.mxu0 0
    %6281 = vmatprep.subr.bf16.mxu0 0
    %6282 = vmatpush1.bf16.msra.mxu0 0
    %6283 = vmatprep.subr.bf16.mxu0 0
    %6284 = vmatpush1.bf16.msra.mxu0 0
    %6285 = vmatprep.subr.bf16.mxu0 0
    %6286 = vmatpush1.bf16.msra.mxu0 0
    %6287 = vmatprep.subr.bf16.mxu0 0
    %6288 = vmatpush1.bf16.msra.mxu0 0
    %6289 = vmatprep.subr.bf16.mxu0 0
    %6290 = vmatpush1.bf16.msra.mxu0 0
    %6291 = vmatprep.subr.bf16.mxu0 0
    %6292 = vmatpush1.bf16.msra.mxu0 0
    %6293 = vmatprep.mubr.bf16.mxu0 0
    %6294 = vmatmul.mubr.bf16.gmra.mrb[0].mxu0 %v6187
    %v6295 = vpop.f32.mrb[0].mxu0
    %v6296 = vadd.f32 0.0, %v6295
    %v6297 = vpop.f32.mrb[0].mxu0
    %v6298 = vpop.f32.mrb[0].mxu0
    %v6299 = vadd.f32 0.0, %v6298
    %v6300 = vpop.f32.mrb[0].mxu0
    %6301 = vmatprep.mubr.bf16.mxu0 0
    %6302 = vmatmul.mubr.bf16.gmra.mrb[0].mxu0 %v6188
    %v6303 = vpop.f32.mrb[0].mxu0
    %v6304 = vadd.f32 0.0, %v6303
    %v6305 = vpop.f32.mrb[0].mxu0
    %v6306 = vpop.f32.mrb[0].mxu0
    %v6307 = vadd.f32 0.0, %v6306
    %v6308 = vpop.f32.mrb[0].mxu0
    %6309 = vmatprep.mubr.bf16.mxu0 0
    %6310 = vmatmul.mubr.bf16.gmra.mrb[0].mxu0 %v6189
    %v6311 = vpop.f32.mrb[0].mxu0
    %v6312 = vadd.f32 0.0, %v6311
    %v6313 = vpop.f32.mrb[0].mxu0
    %v6314 = vpop.f32.mrb[0].mxu0
    %v6315 = vadd.f32 0.0, %v6314
    %v6316 = vpop.f32.mrb[0].mxu0
    %6317 = vmatprep.mubr.bf16.mxu0 0
    %6318 = vmatmul.mubr.bf16.gmra.mrb[0].mxu0 %v6190
    %v6319 = vpop.f32.mrb[0].mxu0
    %v6320 = vadd.f32 0.0, %v6319
    %v6321 = vpop.f32.mrb[0].mxu0
    %v6322 = vpop.f32.mrb[0].mxu0
    %v6323 = vadd.f32 0.0, %v6322
    %v6324 = vpop.f32.mrb[0].mxu0
    %6325 = vmatprep.mubr.bf16.mxu0 0
    %6326 = vmatmul.mubr.bf16.gmra.mrb[0].mxu0 %v6191
    %v6327 = vpop.f32.mrb[0].mxu0
    %v6328 = vadd.f32 0.0, %v6327
    %v6329 = vpop.f32.mrb[0].mxu0
    %v6330 = vpop.f32.mrb[0].mxu0
    %v6331 = vadd.f32 0.0, %v6330
    %v6332 = vpop.f32.mrb[0].mxu0
    %6333 = vmatprep.mubr.bf16.mxu0 0
    %6334 = vmatmul.mubr.bf16.gmra.mrb[0].mxu0 %v6192
    %v6335 = vpop.f32.mrb[0].mxu0
    %v6336 = vadd.f32 0.0, %v6335
    %v6337 = vpop.f32.mrb[0].mxu0
    %v6338 = vpop.f32.mrb[0].mxu0
    %v6339 = vadd.f32 0.0, %v6338
    %v6340 = vpop.f32.mrb[0].mxu0
    %6341 = vmatprep.mubr.bf16.mxu0 0
    %6342 = vmatmul.mubr.bf16.gmra.mrb[0].mxu0 %v6193
    %v6343 = vpop.f32.mrb[0].mxu0
    %v6344 = vadd.f32 0.0, %v6343
    %v6345 = vpop.f32.mrb[0].mxu0
    %v6346 = vpop.f32.mrb[0].mxu0
    %v6347 = vadd.f32 0.0, %v6346
    %v6348 = vpop.f32.mrb[0].mxu0
    %6349 = vmatprep.mubr.bf16.mxu0 0
    %6350 = vmatmul.mubr.bf16.gmra.mrb[0].mxu0 %v6194
    %v6351 = vpop.f32.mrb[0].mxu0
    %v6352 = vadd.f32 0.0, %v6351
    %v6353 = vpop.f32.mrb[0].mxu0
    %v6354 = vpop.f32.mrb[0].mxu0
    %v6355 = vadd.f32 0.0, %v6354
    %v6356 = vpop.f32.mrb[0].mxu0
    %6357 = vmatprep.mubr.bf16.mxu0 0
    %6358 = vmatmul.mubr.bf16.gmra.mrb[0].mxu0 %v6195
    %v6359 = vpop.f32.mrb[0].mxu0
    %v6360 = vadd.f32 0.0, %v6359
    %v6361 = vpop.f32.mrb[0].mxu0
    %v6362 = vpop.f32.mrb[0].mxu0
    %v6363 = vpop.f32.mrb[0].mxu0
    %6364 = vdwg.mxu0
    %v6365 = vadd.f32 %v6153, %v6296
    %v6366 = vadd.f32 %v6154, %v6299
    %v6367 = vadd.f32 %v6155, %v6304
    %v6368 = vadd.f32 %v6156, %v6307
    %v6369 = vadd.f32 %v6157, %v6312
    %v6370 = vadd.f32 %v6158, %v6315
    %v6371 = vadd.f32 %v6159, %v6320
    %v6372 = vadd.f32 %v6160, %v6323
    %v6373 = vadd.f32 %v6161, %v6328
    %v6374 = vadd.f32 %v6162, %v6331
    %v6375 = vadd.f32 %v6163, %v6336
    %v6376 = vadd.f32 %v6164, %v6339
    %v6377 = vadd.f32 %v6165, %v6344
    %v6378 = vadd.f32 %v6166, %v6347
    %v6379 = vadd.f32 %v6167, %v6352
    %v6380 = vadd.f32 %v6168, %v6355
    %v6381 = vadd.f32 %v6169, %v6360
    %v6382 = vld [vmem:[#allocation2 + $0x2e] sm:$0xff]
    %v6383 = vld [vmem:[#allocation2 + $0x36] sm:$0xff]
    %v6384 = vld [vmem:[#allocation2 + $0x3e] sm:$0xff]
    %v6385 = vld [vmem:[#allocation2 + $0x46] sm:$0xff]
    %v6386 = vld [vmem:[#allocation2 + $0x4e] sm:$0xff]
    %v6387 = vld [vmem:[#allocation2 + $0x56] sm:$0xff]
    %v6388 = vld [vmem:[#allocation2 + $0x5e] sm:$0xff]
    %v6389 = vld [vmem:[#allocation2 + $0x66] sm:$0xff]
    %v6390 = vld [vmem:[#allocation2 + $0x6e] sm:$0xff]
    %v6391 = vld [vmem:[#allocation2 + $0x76] sm:$0xff]
    %v6392 = vld [vmem:[#allocation2 + $0x7e] sm:$0xff]
    %v6393 = vld [vmem:[#allocation2 + $0x86] sm:$0xff]
    %v6394 = vld [vmem:[#allocation2 + $0x8e] sm:$0xff]
    %v6395 = vld [vmem:[#allocation2 + $0x96] sm:$0xff]
    %v6396 = vld [vmem:[#allocation2 + $0x9e] sm:$0xff]
    %v6397 = vld [vmem:[#allocation2 + $0xa6] sm:$0xff]
    %v6398 = vld [vmem:[#allocation2 + $0xae] sm:$0xff]
    %v6399 = vpack.c.bf16 %v6383, %v6382
    %v6400 = vpack.c.bf16 %v6385, %v6384
    %v6401 = vpack.c.bf16 %v6387, %v6386
    %v6402 = vpack.c.bf16 %v6389, %v6388
    %v6403 = vpack.c.bf16 %v6391, %v6390
    %v6404 = vpack.c.bf16 %v6393, %v6392
    %v6405 = vpack.c.bf16 %v6395, %v6394
    %v6406 = vpack.c.bf16 %v6397, %v6396
    %v6407 = vpack.c.bf16 %v6398, %v6398
    %s6408 = scalar_lea.vmem %s4, 1216
    %v6409 = vld [vmem:[%s6408] sm:$0xf]
    %v6410 = vld [vmem:[%s6408 + $0x4] sm:$0xf]
    %v6411 = vld [vmem:[%s6408 + $0x8] sm:$0xf]
    %v6412 = vld [vmem:[%s6408 + $0xc] sm:$0xf]
    %v6413 = vld [vmem:[%s6408 + $0x10] sm:$0xf]
    %v6414 = vld [vmem:[%s6408 + $0x14] sm:$0xf]
    %v6415 = vld [vmem:[%s6408 + $0x18] sm:$0xf]
    %v6416 = vld [vmem:[%s6408 + $0x1c] sm:$0xf]
    %v6417 = vld [vmem:[%s6408 + $0x20] sm:$0xf]
    %v6418 = vld [vmem:[%s6408 + $0x24] sm:$0xf]
    %v6419 = vld [vmem:[%s6408 + $0x28] sm:$0xf]
    %v6420 = vld [vmem:[%s6408 + $0x2c] sm:$0xf]
    %v6421 = vld [vmem:[%s6408 + $0x30] sm:$0xf]
    %v6422 = vld [vmem:[%s6408 + $0x34] sm:$0xf]
    %v6423 = vld [vmem:[%s6408 + $0x38] sm:$0xf]
    %v6424 = vld [vmem:[%s6408 + $0x3c] sm:$0xf]
    %v6441 = vunpack.c.l.b16 %v6409
    %v6442 = vunpack.c.l.b16 %v6410
    %v6443 = vunpack.c.l.b16 %v6411
    %v6444 = vunpack.c.l.b16 %v6412
    %v6445 = vunpack.c.l.b16 %v6413
    %v6446 = vunpack.c.l.b16 %v6414
    %v6447 = vunpack.c.l.b16 %v6415
    %v6448 = vunpack.c.l.b16 %v6416
    %v6449 = vunpack.c.l.b16 %v6417
    %v6450 = vunpack.c.l.b16 %v6418
    %v6451 = vunpack.c.l.b16 %v6419
    %v6452 = vunpack.c.l.b16 %v6420
    %v6453 = vunpack.c.l.b16 %v6421
    %v6454 = vunpack.c.l.b16 %v6422
    %v6455 = vunpack.c.l.b16 %v6423
    %v6456 = vunpack.c.l.b16 %v6424
    %v6457 = vpack.c.b16 %v6442, %v6441
    %v6458 = vpack.c.b16 %v6444, %v6443
    %v6459 = vpack.c.b16 %v6446, %v6445
    %v6460 = vpack.c.b16 %v6448, %v6447
    %v6461 = vpack.c.b16 %v6450, %v6449
    %v6462 = vpack.c.b16 %v6452, %v6451
    %v6463 = vpack.c.b16 %v6454, %v6453
    %v6464 = vpack.c.b16 %v6456, %v6455
    %6473 = vmatprep.subr.bf16.mxu0 0
    %6474 = vmatpush1.bf16.msra.mxu0 %v6457
    %6475 = vmatprep.subr.bf16.mxu0 0
    %6476 = vmatpush1.bf16.msra.mxu0 %v6458
    %6477 = vmatprep.subr.bf16.mxu0 0
    %6478 = vmatpush1.bf16.msra.mxu0 %v6459
    %6479 = vmatprep.subr.bf16.mxu0 0
    %6480 = vmatpush1.bf16.msra.mxu0 %v6460
    %6481 = vmatprep.subr.bf16.mxu0 0
    %6482 = vmatpush1.bf16.msra.mxu0 %v6461
    %6483 = vmatprep.subr.bf16.mxu0 0
    %6484 = vmatpush1.bf16.msra.mxu0 %v6462
    %6485 = vmatprep.subr.bf16.mxu0 0
    %6486 = vmatpush1.bf16.msra.mxu0 %v6463
    %6487 = vmatprep.subr.bf16.mxu0 0
    %6488 = vmatpush1.bf16.msra.mxu0 %v6464
    %6489 = vmatprep.subr.bf16.mxu0 0
    %6490 = vmatpush1.bf16.msra.mxu0 0
    %6491 = vmatprep.subr.bf16.mxu0 0
    %6492 = vmatpush1.bf16.msra.mxu0 0
    %6493 = vmatprep.subr.bf16.mxu0 0
    %6494 = vmatpush1.bf16.msra.mxu0 0
    %6495 = vmatprep.subr.bf16.mxu0 0
    %6496 = vmatpush1.bf16.msra.mxu0 0
    %6497 = vmatprep.subr.bf16.mxu0 0
    %6498 = vmatpush1.bf16.msra.mxu0 0
    %6499 = vmatprep.subr.bf16.mxu0 0
    %6500 = vmatpush1.bf16.msra.mxu0 0
    %6501 = vmatprep.subr.bf16.mxu0 0
    %6502 = vmatpush1.bf16.msra.mxu0 0
    %6503 = vmatprep.subr.bf16.mxu0 0
    %6504 = vmatpush1.bf16.msra.mxu0 0
    %6505 = vmatprep.mubr.bf16.mxu0 0
    %6506 = vmatmul.mubr.bf16.gmra.mrb[0].mxu0 %v6399
    %v6507 = vpop.f32.mrb[0].mxu0
    %v6508 = vadd.f32 0.0, %v6507
    %v6509 = vpop.f32.mrb[0].mxu0
    %v6510 = vpop.f32.mrb[0].mxu0
    %v6511 = vadd.f32 0.0, %v6510
    %v6512 = vpop.f32.mrb[0].mxu0
    %6513 = vmatprep.mubr.bf16.mxu0 0
    %6514 = vmatmul.mubr.bf16.gmra.mrb[0].mxu0 %v6400
    %v6515 = vpop.f32.mrb[0].mxu0
    %v6516 = vadd.f32 0.0, %v6515
    %v6517 = vpop.f32.mrb[0].mxu0
    %v6518 = vpop.f32.mrb[0].mxu0
    %v6519 = vadd.f32 0.0, %v6518
    %v6520 = vpop.f32.mrb[0].mxu0
    %6521 = vmatprep.mubr.bf16.mxu0 0
    %6522 = vmatmul.mubr.bf16.gmra.mrb[0].mxu0 %v6401
    %v6523 = vpop.f32.mrb[0].mxu0
    %v6524 = vadd.f32 0.0, %v6523
    %v6525 = vpop.f32.mrb[0].mxu0
    %v6526 = vpop.f32.mrb[0].mxu0
    %v6527 = vadd.f32 0.0, %v6526
    %v6528 = vpop.f32.mrb[0].mxu0
    %6529 = vmatprep.mubr.bf16.mxu0 0
    %6530 = vmatmul.mubr.bf16.gmra.mrb[0].mxu0 %v6402
    %v6531 = vpop.f32.mrb[0].mxu0
    %v6532 = vadd.f32 0.0, %v6531
    %v6533 = vpop.f32.mrb[0].mxu0
    %v6534 = vpop.f32.mrb[0].mxu0
    %v6535 = vadd.f32 0.0, %v6534
    %v6536 = vpop.f32.mrb[0].mxu0
    %6537 = vmatprep.mubr.bf16.mxu0 0
    %6538 = vmatmul.mubr.bf16.gmra.mrb[0].mxu0 %v6403
    %v6539 = vpop.f32.mrb[0].mxu0
    %v6540 = vadd.f32 0.0, %v6539
    %v6541 = vpop.f32.mrb[0].mxu0
    %v6542 = vpop.f32.mrb[0].mxu0
    %v6543 = vadd.f32 0.0, %v6542
    %v6544 = vpop.f32.mrb[0].mxu0
    %6545 = vmatprep.mubr.bf16.mxu0 0
    %6546 = vmatmul.mubr.bf16.gmra.mrb[0].mxu0 %v6404
    %v6547 = vpop.f32.mrb[0].mxu0
    %v6548 = vadd.f32 0.0, %v6547
    %v6549 = vpop.f32.mrb[0].mxu0
    %v6550 = vpop.f32.mrb[0].mxu0
    %v6551 = vadd.f32 0.0, %v6550
    %v6552 = vpop.f32.mrb[0].mxu0
    %6553 = vmatprep.mubr.bf16.mxu0 0
    %6554 = vmatmul.mubr.bf16.gmra.mrb[0].mxu0 %v6405
    %v6555 = vpop.f32.mrb[0].mxu0
    %v6556 = vadd.f32 0.0, %v6555
    %v6557 = vpop.f32.mrb[0].mxu0
    %v6558 = vpop.f32.mrb[0].mxu0
    %v6559 = vadd.f32 0.0, %v6558
    %v6560 = vpop.f32.mrb[0].mxu0
    %6561 = vmatprep.mubr.bf16.mxu0 0
    %6562 = vmatmul.mubr.bf16.gmra.mrb[0].mxu0 %v6406
    %v6563 = vpop.f32.mrb[0].mxu0
    %v6564 = vadd.f32 0.0, %v6563
    %v6565 = vpop.f32.mrb[0].mxu0
    %v6566 = vpop.f32.mrb[0].mxu0
    %v6567 = vadd.f32 0.0, %v6566
    %v6568 = vpop.f32.mrb[0].mxu0
    %6569 = vmatprep.mubr.bf16.mxu0 0
    %6570 = vmatmul.mubr.bf16.gmra.mrb[0].mxu0 %v6407
    %v6571 = vpop.f32.mrb[0].mxu0
    %v6572 = vadd.f32 0.0, %v6571
    %v6573 = vpop.f32.mrb[0].mxu0
    %v6574 = vpop.f32.mrb[0].mxu0
    %v6575 = vpop.f32.mrb[0].mxu0
    %6576 = vdwg.mxu0
    %v6577 = vadd.f32 %v6365, %v6508
    %v6578 = vadd.f32 %v6366, %v6511
    %v6579 = vadd.f32 %v6367, %v6516
    %v6580 = vadd.f32 %v6368, %v6519
    %v6581 = vadd.f32 %v6369, %v6524
    %v6582 = vadd.f32 %v6370, %v6527
    %v6583 = vadd.f32 %v6371, %v6532
    %v6584 = vadd.f32 %v6372, %v6535
    %v6585 = vadd.f32 %v6373, %v6540
    %v6586 = vadd.f32 %v6374, %v6543
    %v6587 = vadd.f32 %v6375, %v6548
    %v6588 = vadd.f32 %v6376, %v6551
    %v6589 = vadd.f32 %v6377, %v6556
    %v6590 = vadd.f32 %v6378, %v6559
    %v6591 = vadd.f32 %v6379, %v6564
    %v6592 = vadd.f32 %v6380, %v6567
    %v6593 = vadd.f32 %v6381, %v6572
    %v6594 = vld [vmem:[#allocation2 + $0x38] sm:$0xff]
    %v6595 = vld [vmem:[#allocation2 + $0x40] sm:$0xff]
    %v6596 = vld [vmem:[#allocation2 + $0x48] sm:$0xff]
    %v6597 = vld [vmem:[#allocation2 + $0x50] sm:$0xff]
    %v6598 = vld [vmem:[#allocation2 + $0x58] sm:$0xff]
    %v6599 = vld [vmem:[#allocation2 + $0x60] sm:$0xff]
    %v6600 = vld [vmem:[#allocation2 + $0x68] sm:$0xff]
    %v6601 = vld [vmem:[#allocation2 + $0x70] sm:$0xff]
    %v6602 = vld [vmem:[#allocation2 + $0x78] sm:$0xff]
    %v6603 = vld [vmem:[#allocation2 + $0x80] sm:$0xff]
    %v6604 = vld [vmem:[#allocation2 + $0x88] sm:$0xff]
    %v6605 = vld [vmem:[#allocation2 + $0x90] sm:$0xff]
    %v6606 = vld [vmem:[#allocation2 + $0x98] sm:$0xff]
    %v6607 = vld [vmem:[#allocation2 + $0xa0] sm:$0xff]
    %v6608 = vld [vmem:[#allocation2 + $0xa8] sm:$0xff]
    %v6609 = vld [vmem:[#allocation2 + $0xb0] sm:$0xff]
    %v6610 = vld [vmem:[#allocation2 + $0xb8] sm:$0xff]
    %v6611 = vpack.c.bf16 %v6595, %v6594
    %v6612 = vpack.c.bf16 %v6597, %v6596
    %v6613 = vpack.c.bf16 %v6599, %v6598
    %v6614 = vpack.c.bf16 %v6601, %v6600
    %v6615 = vpack.c.bf16 %v6603, %v6602
    %v6616 = vpack.c.bf16 %v6605, %v6604
    %v6617 = vpack.c.bf16 %v6607, %v6606
    %v6618 = vpack.c.bf16 %v6609, %v6608
    %v6619 = vpack.c.bf16 %v6610, %v6610
    %s6620 = scalar_lea.vmem %s4, 1280
    %v6621 = vld [vmem:[%s6620] sm:$0xf]
    %v6622 = vld [vmem:[%s6620 + $0x4] sm:$0xf]
    %v6623 = vld [vmem:[%s6620 + $0x8] sm:$0xf]
    %v6624 = vld [vmem:[%s6620 + $0xc] sm:$0xf]
    %v6625 = vld [vmem:[%s6620 + $0x10] sm:$0xf]
    %v6626 = vld [vmem:[%s6620 + $0x14] sm:$0xf]
    %v6627 = vld [vmem:[%s6620 + $0x18] sm:$0xf]
    %v6628 = vld [vmem:[%s6620 + $0x1c] sm:$0xf]
    %v6629 = vld [vmem:[%s6620 + $0x20] sm:$0xf]
    %v6630 = vld [vmem:[%s6620 + $0x24] sm:$0xf]
    %v6631 = vld [vmem:[%s6620 + $0x28] sm:$0xf]
    %v6632 = vld [vmem:[%s6620 + $0x2c] sm:$0xf]
    %v6633 = vld [vmem:[%s6620 + $0x30] sm:$0xf]
    %v6634 = vld [vmem:[%s6620 + $0x34] sm:$0xf]
    %v6635 = vld [vmem:[%s6620 + $0x38] sm:$0xf]
    %v6636 = vld [vmem:[%s6620 + $0x3c] sm:$0xf]
    %v6653 = vunpack.c.l.b16 %v6621
    %v6654 = vunpack.c.l.b16 %v6622
    %v6655 = vunpack.c.l.b16 %v6623
    %v6656 = vunpack.c.l.b16 %v6624
    %v6657 = vunpack.c.l.b16 %v6625
    %v6658 = vunpack.c.l.b16 %v6626
    %v6659 = vunpack.c.l.b16 %v6627
    %v6660 = vunpack.c.l.b16 %v6628
    %v6661 = vunpack.c.l.b16 %v6629
    %v6662 = vunpack.c.l.b16 %v6630
    %v6663 = vunpack.c.l.b16 %v6631
    %v6664 = vunpack.c.l.b16 %v6632
    %v6665 = vunpack.c.l.b16 %v6633
    %v6666 = vunpack.c.l.b16 %v6634
    %v6667 = vunpack.c.l.b16 %v6635
    %v6668 = vunpack.c.l.b16 %v6636
    %v6669 = vpack.c.b16 %v6654, %v6653
    %v6670 = vpack.c.b16 %v6656, %v6655
    %v6671 = vpack.c.b16 %v6658, %v6657
    %v6672 = vpack.c.b16 %v6660, %v6659
    %v6673 = vpack.c.b16 %v6662, %v6661
    %v6674 = vpack.c.b16 %v6664, %v6663
    %v6675 = vpack.c.b16 %v6666, %v6665
    %v6676 = vpack.c.b16 %v6668, %v6667
    %6685 = vmatprep.subr.bf16.mxu0 0
    %6686 = vmatpush1.bf16.msra.mxu0 %v6669
    %6687 = vmatprep.subr.bf16.mxu0 0
    %6688 = vmatpush1.bf16.msra.mxu0 %v6670
    %6689 = vmatprep.subr.bf16.mxu0 0
    %6690 = vmatpush1.bf16.msra.mxu0 %v6671
    %6691 = vmatprep.subr.bf16.mxu0 0
    %6692 = vmatpush1.bf16.msra.mxu0 %v6672
    %6693 = vmatprep.subr.bf16.mxu0 0
    %6694 = vmatpush1.bf16.msra.mxu0 %v6673
    %6695 = vmatprep.subr.bf16.mxu0 0
    %6696 = vmatpush1.bf16.msra.mxu0 %v6674
    %6697 = vmatprep.subr.bf16.mxu0 0
    %6698 = vmatpush1.bf16.msra.mxu0 %v6675
    %6699 = vmatprep.subr.bf16.mxu0 0
    %6700 = vmatpush1.bf16.msra.mxu0 %v6676
    %6701 = vmatprep.subr.bf16.mxu0 0
    %6702 = vmatpush1.bf16.msra.mxu0 0
    %6703 = vmatprep.subr.bf16.mxu0 0
    %6704 = vmatpush1.bf16.msra.mxu0 0
    %6705 = vmatprep.subr.bf16.mxu0 0
    %6706 = vmatpush1.bf16.msra.mxu0 0
    %6707 = vmatprep.subr.bf16.mxu0 0
    %6708 = vmatpush1.bf16.msra.mxu0 0
    %6709 = vmatprep.subr.bf16.mxu0 0
    %6710 = vmatpush1.bf16.msra.mxu0 0
    %6711 = vmatprep.subr.bf16.mxu0 0
    %6712 = vmatpush1.bf16.msra.mxu0 0
    %6713 = vmatprep.subr.bf16.mxu0 0
    %6714 = vmatpush1.bf16.msra.mxu0 0
    %6715 = vmatprep.subr.bf16.mxu0 0
    %6716 = vmatpush1.bf16.msra.mxu0 0
    %6717 = vmatprep.mubr.bf16.mxu0 0
    %6718 = vmatmul.mubr.bf16.gmra.mrb[0].mxu0 %v6611
    %v6719 = vpop.f32.mrb[0].mxu0
    %v6720 = vadd.f32 0.0, %v6719
    %v6721 = vpop.f32.mrb[0].mxu0
    %v6722 = vpop.f32.mrb[0].mxu0
    %v6723 = vadd.f32 0.0, %v6722
    %v6724 = vpop.f32.mrb[0].mxu0
    %6725 = vmatprep.mubr.bf16.mxu0 0
    %6726 = vmatmul.mubr.bf16.gmra.mrb[0].mxu0 %v6612
    %v6727 = vpop.f32.mrb[0].mxu0
    %v6728 = vadd.f32 0.0, %v6727
    %v6729 = vpop.f32.mrb[0].mxu0
    %v6730 = vpop.f32.mrb[0].mxu0
    %v6731 = vadd.f32 0.0, %v6730
    %v6732 = vpop.f32.mrb[0].mxu0
    %6733 = vmatprep.mubr.bf16.mxu0 0
    %6734 = vmatmul.mubr.bf16.gmra.mrb[0].mxu0 %v6613
    %v6735 = vpop.f32.mrb[0].mxu0
    %v6736 = vadd.f32 0.0, %v6735
    %v6737 = vpop.f32.mrb[0].mxu0
    %v6738 = vpop.f32.mrb[0].mxu0
    %v6739 = vadd.f32 0.0, %v6738
    %v6740 = vpop.f32.mrb[0].mxu0
    %6741 = vmatprep.mubr.bf16.mxu0 0
    %6742 = vmatmul.mubr.bf16.gmra.mrb[0].mxu0 %v6614
    %v6743 = vpop.f32.mrb[0].mxu0
    %v6744 = vadd.f32 0.0, %v6743
    %v6745 = vpop.f32.mrb[0].mxu0
    %v6746 = vpop.f32.mrb[0].mxu0
    %v6747 = vadd.f32 0.0, %v6746
    %v6748 = vpop.f32.mrb[0].mxu0
    %6749 = vmatprep.mubr.bf16.mxu0 0
    %6750 = vmatmul.mubr.bf16.gmra.mrb[0].mxu0 %v6615
    %v6751 = vpop.f32.mrb[0].mxu0
    %v6752 = vadd.f32 0.0, %v6751
    %v6753 = vpop.f32.mrb[0].mxu0
    %v6754 = vpop.f32.mrb[0].mxu0
    %v6755 = vadd.f32 0.0, %v6754
    %v6756 = vpop.f32.mrb[0].mxu0
    %6757 = vmatprep.mubr.bf16.mxu0 0
    %6758 = vmatmul.mubr.bf16.gmra.mrb[0].mxu0 %v6616
    %v6759 = vpop.f32.mrb[0].mxu0
    %v6760 = vadd.f32 0.0, %v6759
    %v6761 = vpop.f32.mrb[0].mxu0
    %v6762 = vpop.f32.mrb[0].mxu0
    %v6763 = vadd.f32 0.0, %v6762
    %v6764 = vpop.f32.mrb[0].mxu0
    %6765 = vmatprep.mubr.bf16.mxu0 0
    %6766 = vmatmul.mubr.bf16.gmra.mrb[0].mxu0 %v6617
    %v6767 = vpop.f32.mrb[0].mxu0
    %v6768 = vadd.f32 0.0, %v6767
    %v6769 = vpop.f32.mrb[0].mxu0
    %v6770 = vpop.f32.mrb[0].mxu0
    %v6771 = vadd.f32 0.0, %v6770
    %v6772 = vpop.f32.mrb[0].mxu0
    %6773 = vmatprep.mubr.bf16.mxu0 0
    %6774 = vmatmul.mubr.bf16.gmra.mrb[0].mxu0 %v6618
    %v6775 = vpop.f32.mrb[0].mxu0
    %v6776 = vadd.f32 0.0, %v6775
    %v6777 = vpop.f32.mrb[0].mxu0
    %v6778 = vpop.f32.mrb[0].mxu0
    %v6779 = vadd.f32 0.0, %v6778
    %v6780 = vpop.f32.mrb[0].mxu0
    %6781 = vmatprep.mubr.bf16.mxu0 0
    %6782 = vmatmul.mubr.bf16.gmra.mrb[0].mxu0 %v6619
    %v6783 = vpop.f32.mrb[0].mxu0
    %v6784 = vadd.f32 0.0, %v6783
    %v6785 = vpop.f32.mrb[0].mxu0
    %v6786 = vpop.f32.mrb[0].mxu0
    %v6787 = vpop.f32.mrb[0].mxu0
    %6788 = vdwg.mxu0
    %v6789 = vadd.f32 %v6577, %v6720
    %v6790 = vadd.f32 %v6578, %v6723
    %v6791 = vadd.f32 %v6579, %v6728
    %v6792 = vadd.f32 %v6580, %v6731
    %v6793 = vadd.f32 %v6581, %v6736
    %v6794 = vadd.f32 %v6582, %v6739
    %v6795 = vadd.f32 %v6583, %v6744
    %v6796 = vadd.f32 %v6584, %v6747
    %v6797 = vadd.f32 %v6585, %v6752
    %v6798 = vadd.f32 %v6586, %v6755
    %v6799 = vadd.f32 %v6587, %v6760
    %v6800 = vadd.f32 %v6588, %v6763
    %v6801 = vadd.f32 %v6589, %v6768
    %v6802 = vadd.f32 %v6590, %v6771
    %v6803 = vadd.f32 %v6591, %v6776
    %v6804 = vadd.f32 %v6592, %v6779
    %v6805 = vadd.f32 %v6593, %v6784
    %v6806 = vld [vmem:[#allocation2 + $0x39] sm:$0xff]
    %v6807 = vld [vmem:[#allocation2 + $0x41] sm:$0xff]
    %v6808 = vld [vmem:[#allocation2 + $0x49] sm:$0xff]
    %v6809 = vld [vmem:[#allocation2 + $0x51] sm:$0xff]
    %v6810 = vld [vmem:[#allocation2 + $0x59] sm:$0xff]
    %v6811 = vld [vmem:[#allocation2 + $0x61] sm:$0xff]
    %v6812 = vld [vmem:[#allocation2 + $0x69] sm:$0xff]
    %v6813 = vld [vmem:[#allocation2 + $0x71] sm:$0xff]
    %v6814 = vld [vmem:[#allocation2 + $0x79] sm:$0xff]
    %v6815 = vld [vmem:[#allocation2 + $0x81] sm:$0xff]
    %v6816 = vld [vmem:[#allocation2 + $0x89] sm:$0xff]
    %v6817 = vld [vmem:[#allocation2 + $0x91] sm:$0xff]
    %v6818 = vld [vmem:[#allocation2 + $0x99] sm:$0xff]
    %v6819 = vld [vmem:[#allocation2 + $0xa1] sm:$0xff]
    %v6820 = vld [vmem:[#allocation2 + $0xa9] sm:$0xff]
    %v6821 = vld [vmem:[#allocation2 + $0xb1] sm:$0xff]
    %v6822 = vld [vmem:[#allocation2 + $0xb9] sm:$0xff]
    %v6823 = vpack.c.bf16 %v6807, %v6806
    %v6824 = vpack.c.bf16 %v6809, %v6808
    %v6825 = vpack.c.bf16 %v6811, %v6810
    %v6826 = vpack.c.bf16 %v6813, %v6812
    %v6827 = vpack.c.bf16 %v6815, %v6814
    %v6828 = vpack.c.bf16 %v6817, %v6816
    %v6829 = vpack.c.bf16 %v6819, %v6818
    %v6830 = vpack.c.bf16 %v6821, %v6820
    %v6831 = vpack.c.bf16 %v6822, %v6822
    %s6832 = scalar_lea.vmem %s4, 1344
    %v6833 = vld [vmem:[%s6832] sm:$0xf]
    %v6834 = vld [vmem:[%s6832 + $0x4] sm:$0xf]
    %v6835 = vld [vmem:[%s6832 + $0x8] sm:$0xf]
    %v6836 = vld [vmem:[%s6832 + $0xc] sm:$0xf]
    %v6837 = vld [vmem:[%s6832 + $0x10] sm:$0xf]
    %v6838 = vld [vmem:[%s6832 + $0x14] sm:$0xf]
    %v6839 = vld [vmem:[%s6832 + $0x18] sm:$0xf]
    %v6840 = vld [vmem:[%s6832 + $0x1c] sm:$0xf]
    %v6841 = vld [vmem:[%s6832 + $0x20] sm:$0xf]
    %v6842 = vld [vmem:[%s6832 + $0x24] sm:$0xf]
    %v6843 = vld [vmem:[%s6832 + $0x28] sm:$0xf]
    %v6844 = vld [vmem:[%s6832 + $0x2c] sm:$0xf]
    %v6845 = vld [vmem:[%s6832 + $0x30] sm:$0xf]
    %v6846 = vld [vmem:[%s6832 + $0x34] sm:$0xf]
    %v6847 = vld [vmem:[%s6832 + $0x38] sm:$0xf]
    %v6848 = vld [vmem:[%s6832 + $0x3c] sm:$0xf]
    %v6865 = vunpack.c.l.b16 %v6833
    %v6866 = vunpack.c.l.b16 %v6834
    %v6867 = vunpack.c.l.b16 %v6835
    %v6868 = vunpack.c.l.b16 %v6836
    %v6869 = vunpack.c.l.b16 %v6837
    %v6870 = vunpack.c.l.b16 %v6838
    %v6871 = vunpack.c.l.b16 %v6839
    %v6872 = vunpack.c.l.b16 %v6840
    %v6873 = vunpack.c.l.b16 %v6841
    %v6874 = vunpack.c.l.b16 %v6842
    %v6875 = vunpack.c.l.b16 %v6843
    %v6876 = vunpack.c.l.b16 %v6844
    %v6877 = vunpack.c.l.b16 %v6845
    %v6878 = vunpack.c.l.b16 %v6846
    %v6879 = vunpack.c.l.b16 %v6847
    %v6880 = vunpack.c.l.b16 %v6848
    %v6881 = vpack.c.b16 %v6866, %v6865
    %v6882 = vpack.c.b16 %v6868, %v6867
    %v6883 = vpack.c.b16 %v6870, %v6869
    %v6884 = vpack.c.b16 %v6872, %v6871
    %v6885 = vpack.c.b16 %v6874, %v6873
    %v6886 = vpack.c.b16 %v6876, %v6875
    %v6887 = vpack.c.b16 %v6878, %v6877
    %v6888 = vpack.c.b16 %v6880, %v6879
    %6897 = vmatprep.subr.bf16.mxu0 0
    %6898 = vmatpush1.bf16.msra.mxu0 %v6881
    %6899 = vmatprep.subr.bf16.mxu0 0
    %6900 = vmatpush1.bf16.msra.mxu0 %v6882
    %6901 = vmatprep.subr.bf16.mxu0 0
    %6902 = vmatpush1.bf16.msra.mxu0 %v6883
    %6903 = vmatprep.subr.bf16.mxu0 0
    %6904 = vmatpush1.bf16.msra.mxu0 %v6884
    %6905 = vmatprep.subr.bf16.mxu0 0
    %6906 = vmatpush1.bf16.msra.mxu0 %v6885
    %6907 = vmatprep.subr.bf16.mxu0 0
    %6908 = vmatpush1.bf16.msra.mxu0 %v6886
    %6909 = vmatprep.subr.bf16.mxu0 0
    %6910 = vmatpush1.bf16.msra.mxu0 %v6887
    %6911 = vmatprep.subr.bf16.mxu0 0
    %6912 = vmatpush1.bf16.msra.mxu0 %v6888
    %6913 = vmatprep.subr.bf16.mxu0 0
    %6914 = vmatpush1.bf16.msra.mxu0 0
    %6915 = vmatprep.subr.bf16.mxu0 0
    %6916 = vmatpush1.bf16.msra.mxu0 0
    %6917 = vmatprep.subr.bf16.mxu0 0
    %6918 = vmatpush1.bf16.msra.mxu0 0
    %6919 = vmatprep.subr.bf16.mxu0 0
    %6920 = vmatpush1.bf16.msra.mxu0 0
    %6921 = vmatprep.subr.bf16.mxu0 0
    %6922 = vmatpush1.bf16.msra.mxu0 0
    %6923 = vmatprep.subr.bf16.mxu0 0
    %6924 = vmatpush1.bf16.msra.mxu0 0
    %6925 = vmatprep.subr.bf16.mxu0 0
    %6926 = vmatpush1.bf16.msra.mxu0 0
    %6927 = vmatprep.subr.bf16.mxu0 0
    %6928 = vmatpush1.bf16.msra.mxu0 0
    %6929 = vmatprep.mubr.bf16.mxu0 0
    %6930 = vmatmul.mubr.bf16.gmra.mrb[0].mxu0 %v6823
    %v6931 = vpop.f32.mrb[0].mxu0
    %v6932 = vadd.f32 0.0, %v6931
    %v6933 = vpop.f32.mrb[0].mxu0
    %v6934 = vpop.f32.mrb[0].mxu0
    %v6935 = vadd.f32 0.0, %v6934
    %v6936 = vpop.f32.mrb[0].mxu0
    %6937 = vmatprep.mubr.bf16.mxu0 0
    %6938 = vmatmul.mubr.bf16.gmra.mrb[0].mxu0 %v6824
    %v6939 = vpop.f32.mrb[0].mxu0
    %v6940 = vadd.f32 0.0, %v6939
    %v6941 = vpop.f32.mrb[0].mxu0
    %v6942 = vpop.f32.mrb[0].mxu0
    %v6943 = vadd.f32 0.0, %v6942
    %v6944 = vpop.f32.mrb[0].mxu0
    %6945 = vmatprep.mubr.bf16.mxu0 0
    %6946 = vmatmul.mubr.bf16.gmra.mrb[0].mxu0 %v6825
    %v6947 = vpop.f32.mrb[0].mxu0
    %v6948 = vadd.f32 0.0, %v6947
    %v6949 = vpop.f32.mrb[0].mxu0
    %v6950 = vpop.f32.mrb[0].mxu0
    %v6951 = vadd.f32 0.0, %v6950
    %v6952 = vpop.f32.mrb[0].mxu0
    %6953 = vmatprep.mubr.bf16.mxu0 0
    %6954 = vmatmul.mubr.bf16.gmra.mrb[0].mxu0 %v6826
    %v6955 = vpop.f32.mrb[0].mxu0
    %v6956 = vadd.f32 0.0, %v6955
    %v6957 = vpop.f32.mrb[0].mxu0
    %v6958 = vpop.f32.mrb[0].mxu0
    %v6959 = vadd.f32 0.0, %v6958
    %v6960 = vpop.f32.mrb[0].mxu0
    %6961 = vmatprep.mubr.bf16.mxu0 0
    %6962 = vmatmul.mubr.bf16.gmra.mrb[0].mxu0 %v6827
    %v6963 = vpop.f32.mrb[0].mxu0
    %v6964 = vadd.f32 0.0, %v6963
    %v6965 = vpop.f32.mrb[0].mxu0
    %v6966 = vpop.f32.mrb[0].mxu0
    %v6967 = vadd.f32 0.0, %v6966
    %v6968 = vpop.f32.mrb[0].mxu0
    %6969 = vmatprep.mubr.bf16.mxu0 0
    %6970 = vmatmul.mubr.bf16.gmra.mrb[0].mxu0 %v6828
    %v6971 = vpop.f32.mrb[0].mxu0
    %v6972 = vadd.f32 0.0, %v6971
    %v6973 = vpop.f32.mrb[0].mxu0
    %v6974 = vpop.f32.mrb[0].mxu0
    %v6975 = vadd.f32 0.0, %v6974
    %v6976 = vpop.f32.mrb[0].mxu0
    %6977 = vmatprep.mubr.bf16.mxu0 0
    %6978 = vmatmul.mubr.bf16.gmra.mrb[0].mxu0 %v6829
    %v6979 = vpop.f32.mrb[0].mxu0
    %v6980 = vadd.f32 0.0, %v6979
    %v6981 = vpop.f32.mrb[0].mxu0
    %v6982 = vpop.f32.mrb[0].mxu0
    %v6983 = vadd.f32 0.0, %v6982
    %v6984 = vpop.f32.mrb[0].mxu0
    %6985 = vmatprep.mubr.bf16.mxu0 0
    %6986 = vmatmul.mubr.bf16.gmra.mrb[0].mxu0 %v6830
    %v6987 = vpop.f32.mrb[0].mxu0
    %v6988 = vadd.f32 0.0, %v6987
    %v6989 = vpop.f32.mrb[0].mxu0
    %v6990 = vpop.f32.mrb[0].mxu0
    %v6991 = vadd.f32 0.0, %v6990
    %v6992 = vpop.f32.mrb[0].mxu0
    %6993 = vmatprep.mubr.bf16.mxu0 0
    %6994 = vmatmul.mubr.bf16.gmra.mrb[0].mxu0 %v6831
    %v6995 = vpop.f32.mrb[0].mxu0
    %v6996 = vadd.f32 0.0, %v6995
    %v6997 = vpop.f32.mrb[0].mxu0
    %v6998 = vpop.f32.mrb[0].mxu0
    %v6999 = vpop.f32.mrb[0].mxu0
    %7000 = vdwg.mxu0
    %v7001 = vadd.f32 %v6789, %v6932
    %v7002 = vadd.f32 %v6790, %v6935
    %v7003 = vadd.f32 %v6791, %v6940
    %v7004 = vadd.f32 %v6792, %v6943
    %v7005 = vadd.f32 %v6793, %v6948
    %v7006 = vadd.f32 %v6794, %v6951
    %v7007 = vadd.f32 %v6795, %v6956
    %v7008 = vadd.f32 %v6796, %v6959
    %v7009 = vadd.f32 %v6797, %v6964
    %v7010 = vadd.f32 %v6798, %v6967
    %v7011 = vadd.f32 %v6799, %v6972
    %v7012 = vadd.f32 %v6800, %v6975
    %v7013 = vadd.f32 %v6801, %v6980
    %v7014 = vadd.f32 %v6802, %v6983
    %v7015 = vadd.f32 %v6803, %v6988
    %v7016 = vadd.f32 %v6804, %v6991
    %v7017 = vadd.f32 %v6805, %v6996
    %v7018 = vld [vmem:[#allocation2 + $0x3a] sm:$0xff]
    %v7019 = vld [vmem:[#allocation2 + $0x42] sm:$0xff]
    %v7020 = vld [vmem:[#allocation2 + $0x4a] sm:$0xff]
    %v7021 = vld [vmem:[#allocation2 + $0x52] sm:$0xff]
    %v7022 = vld [vmem:[#allocation2 + $0x5a] sm:$0xff]
    %v7023 = vld [vmem:[#allocation2 + $0x62] sm:$0xff]
    %v7024 = vld [vmem:[#allocation2 + $0x6a] sm:$0xff]
    %v7025 = vld [vmem:[#allocation2 + $0x72] sm:$0xff]
    %v7026 = vld [vmem:[#allocation2 + $0x7a] sm:$0xff]
    %v7027 = vld [vmem:[#allocation2 + $0x82] sm:$0xff]
    %v7028 = vld [vmem:[#allocation2 + $0x8a] sm:$0xff]
    %v7029 = vld [vmem:[#allocation2 + $0x92] sm:$0xff]
    %v7030 = vld [vmem:[#allocation2 + $0x9a] sm:$0xff]
    %v7031 = vld [vmem:[#allocation2 + $0xa2] sm:$0xff]
    %v7032 = vld [vmem:[#allocation2 + $0xaa] sm:$0xff]
    %v7033 = vld [vmem:[#allocation2 + $0xb2] sm:$0xff]
    %v7034 = vld [vmem:[#allocation2 + $0xba] sm:$0xff]
    %v7035 = vpack.c.bf16 %v7019, %v7018
    %v7036 = vpack.c.bf16 %v7021, %v7020
    %v7037 = vpack.c.bf16 %v7023, %v7022
    %v7038 = vpack.c.bf16 %v7025, %v7024
    %v7039 = vpack.c.bf16 %v7027, %v7026
    %v7040 = vpack.c.bf16 %v7029, %v7028
    %v7041 = vpack.c.bf16 %v7031, %v7030
    %v7042 = vpack.c.bf16 %v7033, %v7032
    %v7043 = vpack.c.bf16 %v7034, %v7034
    %s7044 = scalar_lea.vmem %s4, 1408
    %v7045 = vld [vmem:[%s7044] sm:$0xf]
    %v7046 = vld [vmem:[%s7044 + $0x4] sm:$0xf]
    %v7047 = vld [vmem:[%s7044 + $0x8] sm:$0xf]
    %v7048 = vld [vmem:[%s7044 + $0xc] sm:$0xf]
    %v7049 = vld [vmem:[%s7044 + $0x10] sm:$0xf]
    %v7050 = vld [vmem:[%s7044 + $0x14] sm:$0xf]
    %v7051 = vld [vmem:[%s7044 + $0x18] sm:$0xf]
    %v7052 = vld [vmem:[%s7044 + $0x1c] sm:$0xf]
    %v7053 = vld [vmem:[%s7044 + $0x20] sm:$0xf]
    %v7054 = vld [vmem:[%s7044 + $0x24] sm:$0xf]
    %v7055 = vld [vmem:[%s7044 + $0x28] sm:$0xf]
    %v7056 = vld [vmem:[%s7044 + $0x2c] sm:$0xf]
    %v7057 = vld [vmem:[%s7044 + $0x30] sm:$0xf]
    %v7058 = vld [vmem:[%s7044 + $0x34] sm:$0xf]
    %v7059 = vld [vmem:[%s7044 + $0x38] sm:$0xf]
    %v7060 = vld [vmem:[%s7044 + $0x3c] sm:$0xf]
    %v7077 = vunpack.c.l.b16 %v7045
    %v7078 = vunpack.c.l.b16 %v7046
    %v7079 = vunpack.c.l.b16 %v7047
    %v7080 = vunpack.c.l.b16 %v7048
    %v7081 = vunpack.c.l.b16 %v7049
    %v7082 = vunpack.c.l.b16 %v7050
    %v7083 = vunpack.c.l.b16 %v7051
    %v7084 = vunpack.c.l.b16 %v7052
    %v7085 = vunpack.c.l.b16 %v7053
    %v7086 = vunpack.c.l.b16 %v7054
    %v7087 = vunpack.c.l.b16 %v7055
    %v7088 = vunpack.c.l.b16 %v7056
    %v7089 = vunpack.c.l.b16 %v7057
    %v7090 = vunpack.c.l.b16 %v7058
    %v7091 = vunpack.c.l.b16 %v7059
    %v7092 = vunpack.c.l.b16 %v7060
    %v7093 = vpack.c.b16 %v7078, %v7077
    %v7094 = vpack.c.b16 %v7080, %v7079
    %v7095 = vpack.c.b16 %v7082, %v7081
    %v7096 = vpack.c.b16 %v7084, %v7083
    %v7097 = vpack.c.b16 %v7086, %v7085
    %v7098 = vpack.c.b16 %v7088, %v7087
    %v7099 = vpack.c.b16 %v7090, %v7089
    %v7100 = vpack.c.b16 %v7092, %v7091
    %7109 = vmatprep.subr.bf16.mxu0 0
    %7110 = vmatpush1.bf16.msra.mxu0 %v7093
    %7111 = vmatprep.subr.bf16.mxu0 0
    %7112 = vmatpush1.bf16.msra.mxu0 %v7094
    %7113 = vmatprep.subr.bf16.mxu0 0
    %7114 = vmatpush1.bf16.msra.mxu0 %v7095
    %7115 = vmatprep.subr.bf16.mxu0 0
    %7116 = vmatpush1.bf16.msra.mxu0 %v7096
    %7117 = vmatprep.subr.bf16.mxu0 0
    %7118 = vmatpush1.bf16.msra.mxu0 %v7097
    %7119 = vmatprep.subr.bf16.mxu0 0
    %7120 = vmatpush1.bf16.msra.mxu0 %v7098
    %7121 = vmatprep.subr.bf16.mxu0 0
    %7122 = vmatpush1.bf16.msra.mxu0 %v7099
    %7123 = vmatprep.subr.bf16.mxu0 0
    %7124 = vmatpush1.bf16.msra.mxu0 %v7100
    %7125 = vmatprep.subr.bf16.mxu0 0
    %7126 = vmatpush1.bf16.msra.mxu0 0
    %7127 = vmatprep.subr.bf16.mxu0 0
    %7128 = vmatpush1.bf16.msra.mxu0 0
    %7129 = vmatprep.subr.bf16.mxu0 0
    %7130 = vmatpush1.bf16.msra.mxu0 0
    %7131 = vmatprep.subr.bf16.mxu0 0
    %7132 = vmatpush1.bf16.msra.mxu0 0
    %7133 = vmatprep.subr.bf16.mxu0 0
    %7134 = vmatpush1.bf16.msra.mxu0 0
    %7135 = vmatprep.subr.bf16.mxu0 0
    %7136 = vmatpush1.bf16.msra.mxu0 0
    %7137 = vmatprep.subr.bf16.mxu0 0
    %7138 = vmatpush1.bf16.msra.mxu0 0
    %7139 = vmatprep.subr.bf16.mxu0 0
    %7140 = vmatpush1.bf16.msra.mxu0 0
    %7141 = vmatprep.mubr.bf16.mxu0 0
    %7142 = vmatmul.mubr.bf16.gmra.mrb[0].mxu0 %v7035
    %v7143 = vpop.f32.mrb[0].mxu0
    %v7144 = vadd.f32 0.0, %v7143
    %v7145 = vpop.f32.mrb[0].mxu0
    %v7146 = vpop.f32.mrb[0].mxu0
    %v7147 = vadd.f32 0.0, %v7146
    %v7148 = vpop.f32.mrb[0].mxu0
    %7149 = vmatprep.mubr.bf16.mxu0 0
    %7150 = vmatmul.mubr.bf16.gmra.mrb[0].mxu0 %v7036
    %v7151 = vpop.f32.mrb[0].mxu0
    %v7152 = vadd.f32 0.0, %v7151
    %v7153 = vpop.f32.mrb[0].mxu0
    %v7154 = vpop.f32.mrb[0].mxu0
    %v7155 = vadd.f32 0.0, %v7154
    %v7156 = vpop.f32.mrb[0].mxu0
    %7157 = vmatprep.mubr.bf16.mxu0 0
    %7158 = vmatmul.mubr.bf16.gmra.mrb[0].mxu0 %v7037
    %v7159 = vpop.f32.mrb[0].mxu0
    %v7160 = vadd.f32 0.0, %v7159
    %v7161 = vpop.f32.mrb[0].mxu0
    %v7162 = vpop.f32.mrb[0].mxu0
    %v7163 = vadd.f32 0.0, %v7162
    %v7164 = vpop.f32.mrb[0].mxu0
    %7165 = vmatprep.mubr.bf16.mxu0 0
    %7166 = vmatmul.mubr.bf16.gmra.mrb[0].mxu0 %v7038
    %v7167 = vpop.f32.mrb[0].mxu0
    %v7168 = vadd.f32 0.0, %v7167
    %v7169 = vpop.f32.mrb[0].mxu0
    %v7170 = vpop.f32.mrb[0].mxu0
    %v7171 = vadd.f32 0.0, %v7170
    %v7172 = vpop.f32.mrb[0].mxu0
    %7173 = vmatprep.mubr.bf16.mxu0 0
    %7174 = vmatmul.mubr.bf16.gmra.mrb[0].mxu0 %v7039
    %v7175 = vpop.f32.mrb[0].mxu0
    %v7176 = vadd.f32 0.0, %v7175
    %v7177 = vpop.f32.mrb[0].mxu0
    %v7178 = vpop.f32.mrb[0].mxu0
    %v7179 = vadd.f32 0.0, %v7178
    %v7180 = vpop.f32.mrb[0].mxu0
    %7181 = vmatprep.mubr.bf16.mxu0 0
    %7182 = vmatmul.mubr.bf16.gmra.mrb[0].mxu0 %v7040
    %v7183 = vpop.f32.mrb[0].mxu0
    %v7184 = vadd.f32 0.0, %v7183
    %v7185 = vpop.f32.mrb[0].mxu0
    %v7186 = vpop.f32.mrb[0].mxu0
    %v7187 = vadd.f32 0.0, %v7186
    %v7188 = vpop.f32.mrb[0].mxu0
    %7189 = vmatprep.mubr.bf16.mxu0 0
    %7190 = vmatmul.mubr.bf16.gmra.mrb[0].mxu0 %v7041
    %v7191 = vpop.f32.mrb[0].mxu0
    %v7192 = vadd.f32 0.0, %v7191
    %v7193 = vpop.f32.mrb[0].mxu0
    %v7194 = vpop.f32.mrb[0].mxu0
    %v7195 = vadd.f32 0.0, %v7194
    %v7196 = vpop.f32.mrb[0].mxu0
    %7197 = vmatprep.mubr.bf16.mxu0 0
    %7198 = vmatmul.mubr.bf16.gmra.mrb[0].mxu0 %v7042
    %v7199 = vpop.f32.mrb[0].mxu0
    %v7200 = vadd.f32 0.0, %v7199
    %v7201 = vpop.f32.mrb[0].mxu0
    %v7202 = vpop.f32.mrb[0].mxu0
    %v7203 = vadd.f32 0.0, %v7202
    %v7204 = vpop.f32.mrb[0].mxu0
    %7205 = vmatprep.mubr.bf16.mxu0 0
    %7206 = vmatmul.mubr.bf16.gmra.mrb[0].mxu0 %v7043
    %v7207 = vpop.f32.mrb[0].mxu0
    %v7208 = vadd.f32 0.0, %v7207
    %v7209 = vpop.f32.mrb[0].mxu0
    %v7210 = vpop.f32.mrb[0].mxu0
    %v7211 = vpop.f32.mrb[0].mxu0
    %7212 = vdwg.mxu0
    %v7213 = vadd.f32 %v7001, %v7144
    %v7214 = vadd.f32 %v7002, %v7147
    %v7215 = vadd.f32 %v7003, %v7152
    %v7216 = vadd.f32 %v7004, %v7155
    %v7217 = vadd.f32 %v7005, %v7160
    %v7218 = vadd.f32 %v7006, %v7163
    %v7219 = vadd.f32 %v7007, %v7168
    %v7220 = vadd.f32 %v7008, %v7171
    %v7221 = vadd.f32 %v7009, %v7176
    %v7222 = vadd.f32 %v7010, %v7179
    %v7223 = vadd.f32 %v7011, %v7184
    %v7224 = vadd.f32 %v7012, %v7187
    %v7225 = vadd.f32 %v7013, %v7192
    %v7226 = vadd.f32 %v7014, %v7195
    %v7227 = vadd.f32 %v7015, %v7200
    %v7228 = vadd.f32 %v7016, %v7203
    %v7229 = vadd.f32 %v7017, %v7208
    %v7230 = vld [vmem:[#allocation2 + $0x3b] sm:$0xff]
    %v7231 = vld [vmem:[#allocation2 + $0x43] sm:$0xff]
    %v7232 = vld [vmem:[#allocation2 + $0x4b] sm:$0xff]
    %v7233 = vld [vmem:[#allocation2 + $0x53] sm:$0xff]
    %v7234 = vld [vmem:[#allocation2 + $0x5b] sm:$0xff]
    %v7235 = vld [vmem:[#allocation2 + $0x63] sm:$0xff]
    %v7236 = vld [vmem:[#allocation2 + $0x6b] sm:$0xff]
    %v7237 = vld [vmem:[#allocation2 + $0x73] sm:$0xff]
    %v7238 = vld [vmem:[#allocation2 + $0x7b] sm:$0xff]
    %v7239 = vld [vmem:[#allocation2 + $0x83] sm:$0xff]
    %v7240 = vld [vmem:[#allocation2 + $0x8b] sm:$0xff]
    %v7241 = vld [vmem:[#allocation2 + $0x93] sm:$0xff]
    %v7242 = vld [vmem:[#allocation2 + $0x9b] sm:$0xff]
    %v7243 = vld [vmem:[#allocation2 + $0xa3] sm:$0xff]
    %v7244 = vld [vmem:[#allocation2 + $0xab] sm:$0xff]
    %v7245 = vld [vmem:[#allocation2 + $0xb3] sm:$0xff]
    %v7246 = vld [vmem:[#allocation2 + $0xbb] sm:$0xff]
    %v7247 = vpack.c.bf16 %v7231, %v7230
    %v7248 = vpack.c.bf16 %v7233, %v7232
    %v7249 = vpack.c.bf16 %v7235, %v7234
    %v7250 = vpack.c.bf16 %v7237, %v7236
    %v7251 = vpack.c.bf16 %v7239, %v7238
    %v7252 = vpack.c.bf16 %v7241, %v7240
    %v7253 = vpack.c.bf16 %v7243, %v7242
    %v7254 = vpack.c.bf16 %v7245, %v7244
    %v7255 = vpack.c.bf16 %v7246, %v7246
    %s7256 = scalar_lea.vmem %s4, 1472
    %v7257 = vld [vmem:[%s7256] sm:$0xf]
    %v7258 = vld [vmem:[%s7256 + $0x4] sm:$0xf]
    %v7259 = vld [vmem:[%s7256 + $0x8] sm:$0xf]
    %v7260 = vld [vmem:[%s7256 + $0xc] sm:$0xf]
    %v7261 = vld [vmem:[%s7256 + $0x10] sm:$0xf]
    %v7262 = vld [vmem:[%s7256 + $0x14] sm:$0xf]
    %v7263 = vld [vmem:[%s7256 + $0x18] sm:$0xf]
    %v7264 = vld [vmem:[%s7256 + $0x1c] sm:$0xf]
    %v7265 = vld [vmem:[%s7256 + $0x20] sm:$0xf]
    %v7266 = vld [vmem:[%s7256 + $0x24] sm:$0xf]
    %v7267 = vld [vmem:[%s7256 + $0x28] sm:$0xf]
    %v7268 = vld [vmem:[%s7256 + $0x2c] sm:$0xf]
    %v7269 = vld [vmem:[%s7256 + $0x30] sm:$0xf]
    %v7270 = vld [vmem:[%s7256 + $0x34] sm:$0xf]
    %v7271 = vld [vmem:[%s7256 + $0x38] sm:$0xf]
    %v7272 = vld [vmem:[%s7256 + $0x3c] sm:$0xf]
    %v7289 = vunpack.c.l.b16 %v7257
    %v7290 = vunpack.c.l.b16 %v7258
    %v7291 = vunpack.c.l.b16 %v7259
    %v7292 = vunpack.c.l.b16 %v7260
    %v7293 = vunpack.c.l.b16 %v7261
    %v7294 = vunpack.c.l.b16 %v7262
    %v7295 = vunpack.c.l.b16 %v7263
    %v7296 = vunpack.c.l.b16 %v7264
    %v7297 = vunpack.c.l.b16 %v7265
    %v7298 = vunpack.c.l.b16 %v7266
    %v7299 = vunpack.c.l.b16 %v7267
    %v7300 = vunpack.c.l.b16 %v7268
    %v7301 = vunpack.c.l.b16 %v7269
    %v7302 = vunpack.c.l.b16 %v7270
    %v7303 = vunpack.c.l.b16 %v7271
    %v7304 = vunpack.c.l.b16 %v7272
    %v7305 = vpack.c.b16 %v7290, %v7289
    %v7306 = vpack.c.b16 %v7292, %v7291
    %v7307 = vpack.c.b16 %v7294, %v7293
    %v7308 = vpack.c.b16 %v7296, %v7295
    %v7309 = vpack.c.b16 %v7298, %v7297
    %v7310 = vpack.c.b16 %v7300, %v7299
    %v7311 = vpack.c.b16 %v7302, %v7301
    %v7312 = vpack.c.b16 %v7304, %v7303
    %7321 = vmatprep.subr.bf16.mxu0 0
    %7322 = vmatpush1.bf16.msra.mxu0 %v7305
    %7323 = vmatprep.subr.bf16.mxu0 0
    %7324 = vmatpush1.bf16.msra.mxu0 %v7306
    %7325 = vmatprep.subr.bf16.mxu0 0
    %7326 = vmatpush1.bf16.msra.mxu0 %v7307
    %7327 = vmatprep.subr.bf16.mxu0 0
    %7328 = vmatpush1.bf16.msra.mxu0 %v7308
    %7329 = vmatprep.subr.bf16.mxu0 0
    %7330 = vmatpush1.bf16.msra.mxu0 %v7309
    %7331 = vmatprep.subr.bf16.mxu0 0
    %7332 = vmatpush1.bf16.msra.mxu0 %v7310
    %7333 = vmatprep.subr.bf16.mxu0 0
    %7334 = vmatpush1.bf16.msra.mxu0 %v7311
    %7335 = vmatprep.subr.bf16.mxu0 0
    %7336 = vmatpush1.bf16.msra.mxu0 %v7312
    %7337 = vmatprep.subr.bf16.mxu0 0
    %7338 = vmatpush1.bf16.msra.mxu0 0
    %7339 = vmatprep.subr.bf16.mxu0 0
    %7340 = vmatpush1.bf16.msra.mxu0 0
    %7341 = vmatprep.subr.bf16.mxu0 0
    %7342 = vmatpush1.bf16.msra.mxu0 0
    %7343 = vmatprep.subr.bf16.mxu0 0
    %7344 = vmatpush1.bf16.msra.mxu0 0
    %7345 = vmatprep.subr.bf16.mxu0 0
    %7346 = vmatpush1.bf16.msra.mxu0 0
    %7347 = vmatprep.subr.bf16.mxu0 0
    %7348 = vmatpush1.bf16.msra.mxu0 0
    %7349 = vmatprep.subr.bf16.mxu0 0
    %7350 = vmatpush1.bf16.msra.mxu0 0
    %7351 = vmatprep.subr.bf16.mxu0 0
    %7352 = vmatpush1.bf16.msra.mxu0 0
    %7353 = vmatprep.mubr.bf16.mxu0 0
    %7354 = vmatmul.mubr.bf16.gmra.mrb[0].mxu0 %v7247
    %v7355 = vpop.f32.mrb[0].mxu0
    %v7356 = vadd.f32 0.0, %v7355
    %v7357 = vpop.f32.mrb[0].mxu0
    %v7358 = vpop.f32.mrb[0].mxu0
    %v7359 = vadd.f32 0.0, %v7358
    %v7360 = vpop.f32.mrb[0].mxu0
    %7361 = vmatprep.mubr.bf16.mxu0 0
    %7362 = vmatmul.mubr.bf16.gmra.mrb[0].mxu0 %v7248
    %v7363 = vpop.f32.mrb[0].mxu0
    %v7364 = vadd.f32 0.0, %v7363
    %v7365 = vpop.f32.mrb[0].mxu0
    %v7366 = vpop.f32.mrb[0].mxu0
    %v7367 = vadd.f32 0.0, %v7366
    %v7368 = vpop.f32.mrb[0].mxu0
    %7369 = vmatprep.mubr.bf16.mxu0 0
    %7370 = vmatmul.mubr.bf16.gmra.mrb[0].mxu0 %v7249
    %v7371 = vpop.f32.mrb[0].mxu0
    %v7372 = vadd.f32 0.0, %v7371
    %v7373 = vpop.f32.mrb[0].mxu0
    %v7374 = vpop.f32.mrb[0].mxu0
    %v7375 = vadd.f32 0.0, %v7374
    %v7376 = vpop.f32.mrb[0].mxu0
    %7377 = vmatprep.mubr.bf16.mxu0 0
    %7378 = vmatmul.mubr.bf16.gmra.mrb[0].mxu0 %v7250
    %v7379 = vpop.f32.mrb[0].mxu0
    %v7380 = vadd.f32 0.0, %v7379
    %v7381 = vpop.f32.mrb[0].mxu0
    %v7382 = vpop.f32.mrb[0].mxu0
    %v7383 = vadd.f32 0.0, %v7382
    %v7384 = vpop.f32.mrb[0].mxu0
    %7385 = vmatprep.mubr.bf16.mxu0 0
    %7386 = vmatmul.mubr.bf16.gmra.mrb[0].mxu0 %v7251
    %v7387 = vpop.f32.mrb[0].mxu0
    %v7388 = vadd.f32 0.0, %v7387
    %v7389 = vpop.f32.mrb[0].mxu0
    %v7390 = vpop.f32.mrb[0].mxu0
    %v7391 = vadd.f32 0.0, %v7390
    %v7392 = vpop.f32.mrb[0].mxu0
    %7393 = vmatprep.mubr.bf16.mxu0 0
    %7394 = vmatmul.mubr.bf16.gmra.mrb[0].mxu0 %v7252
    %v7395 = vpop.f32.mrb[0].mxu0
    %v7396 = vadd.f32 0.0, %v7395
    %v7397 = vpop.f32.mrb[0].mxu0
    %v7398 = vpop.f32.mrb[0].mxu0
    %v7399 = vadd.f32 0.0, %v7398
    %v7400 = vpop.f32.mrb[0].mxu0
    %7401 = vmatprep.mubr.bf16.mxu0 0
    %7402 = vmatmul.mubr.bf16.gmra.mrb[0].mxu0 %v7253
    %v7403 = vpop.f32.mrb[0].mxu0
    %v7404 = vadd.f32 0.0, %v7403
    %v7405 = vpop.f32.mrb[0].mxu0
    %v7406 = vpop.f32.mrb[0].mxu0
    %v7407 = vadd.f32 0.0, %v7406
    %v7408 = vpop.f32.mrb[0].mxu0
    %7409 = vmatprep.mubr.bf16.mxu0 0
    %7410 = vmatmul.mubr.bf16.gmra.mrb[0].mxu0 %v7254
    %v7411 = vpop.f32.mrb[0].mxu0
    %v7412 = vadd.f32 0.0, %v7411
    %v7413 = vpop.f32.mrb[0].mxu0
    %v7414 = vpop.f32.mrb[0].mxu0
    %v7415 = vadd.f32 0.0, %v7414
    %v7416 = vpop.f32.mrb[0].mxu0
    %7417 = vmatprep.mubr.bf16.mxu0 0
    %7418 = vmatmul.mubr.bf16.gmra.mrb[0].mxu0 %v7255
    %v7419 = vpop.f32.mrb[0].mxu0
    %v7420 = vadd.f32 0.0, %v7419
    %v7421 = vpop.f32.mrb[0].mxu0
    %v7422 = vpop.f32.mrb[0].mxu0
    %v7423 = vpop.f32.mrb[0].mxu0
    %7424 = vdwg.mxu0
    %v7425 = vadd.f32 %v7213, %v7356
    %v7426 = vadd.f32 %v7214, %v7359
    %v7427 = vadd.f32 %v7215, %v7364
    %v7428 = vadd.f32 %v7216, %v7367
    %v7429 = vadd.f32 %v7217, %v7372
    %v7430 = vadd.f32 %v7218, %v7375
    %v7431 = vadd.f32 %v7219, %v7380
    %v7432 = vadd.f32 %v7220, %v7383
    %v7433 = vadd.f32 %v7221, %v7388
    %v7434 = vadd.f32 %v7222, %v7391
    %v7435 = vadd.f32 %v7223, %v7396
    %v7436 = vadd.f32 %v7224, %v7399
    %v7437 = vadd.f32 %v7225, %v7404
    %v7438 = vadd.f32 %v7226, %v7407
    %v7439 = vadd.f32 %v7227, %v7412
    %v7440 = vadd.f32 %v7228, %v7415
    %v7441 = vadd.f32 %v7229, %v7420
    %v7442 = vld [vmem:[#allocation2 + $0x3c] sm:$0xff]
    %v7443 = vld [vmem:[#allocation2 + $0x44] sm:$0xff]
    %v7444 = vld [vmem:[#allocation2 + $0x4c] sm:$0xff]
    %v7445 = vld [vmem:[#allocation2 + $0x54] sm:$0xff]
    %v7446 = vld [vmem:[#allocation2 + $0x5c] sm:$0xff]
    %v7447 = vld [vmem:[#allocation2 + $0x64] sm:$0xff]
    %v7448 = vld [vmem:[#allocation2 + $0x6c] sm:$0xff]
    %v7449 = vld [vmem:[#allocation2 + $0x74] sm:$0xff]
    %v7450 = vld [vmem:[#allocation2 + $0x7c] sm:$0xff]
    %v7451 = vld [vmem:[#allocation2 + $0x84] sm:$0xff]
    %v7452 = vld [vmem:[#allocation2 + $0x8c] sm:$0xff]
    %v7453 = vld [vmem:[#allocation2 + $0x94] sm:$0xff]
    %v7454 = vld [vmem:[#allocation2 + $0x9c] sm:$0xff]
    %v7455 = vld [vmem:[#allocation2 + $0xa4] sm:$0xff]
    %v7456 = vld [vmem:[#allocation2 + $0xac] sm:$0xff]
    %v7457 = vld [vmem:[#allocation2 + $0xb4] sm:$0xff]
    %v7458 = vld [vmem:[#allocation2 + $0xbc] sm:$0xff]
    %v7459 = vpack.c.bf16 %v7443, %v7442
    %v7460 = vpack.c.bf16 %v7445, %v7444
    %v7461 = vpack.c.bf16 %v7447, %v7446
    %v7462 = vpack.c.bf16 %v7449, %v7448
    %v7463 = vpack.c.bf16 %v7451, %v7450
    %v7464 = vpack.c.bf16 %v7453, %v7452
    %v7465 = vpack.c.bf16 %v7455, %v7454
    %v7466 = vpack.c.bf16 %v7457, %v7456
    %v7467 = vpack.c.bf16 %v7458, %v7458
    %s7468 = scalar_lea.vmem %s4, 1536
    %v7469 = vld [vmem:[%s7468] sm:$0xf]
    %v7470 = vld [vmem:[%s7468 + $0x4] sm:$0xf]
    %v7471 = vld [vmem:[%s7468 + $0x8] sm:$0xf]
    %v7472 = vld [vmem:[%s7468 + $0xc] sm:$0xf]
    %v7473 = vld [vmem:[%s7468 + $0x10] sm:$0xf]
    %v7474 = vld [vmem:[%s7468 + $0x14] sm:$0xf]
    %v7475 = vld [vmem:[%s7468 + $0x18] sm:$0xf]
    %v7476 = vld [vmem:[%s7468 + $0x1c] sm:$0xf]
    %v7477 = vld [vmem:[%s7468 + $0x20] sm:$0xf]
    %v7478 = vld [vmem:[%s7468 + $0x24] sm:$0xf]
    %v7479 = vld [vmem:[%s7468 + $0x28] sm:$0xf]
    %v7480 = vld [vmem:[%s7468 + $0x2c] sm:$0xf]
    %v7481 = vld [vmem:[%s7468 + $0x30] sm:$0xf]
    %v7482 = vld [vmem:[%s7468 + $0x34] sm:$0xf]
    %v7483 = vld [vmem:[%s7468 + $0x38] sm:$0xf]
    %v7484 = vld [vmem:[%s7468 + $0x3c] sm:$0xf]
    %v7501 = vunpack.c.l.b16 %v7469
    %v7502 = vunpack.c.l.b16 %v7470
    %v7503 = vunpack.c.l.b16 %v7471
    %v7504 = vunpack.c.l.b16 %v7472
    %v7505 = vunpack.c.l.b16 %v7473
    %v7506 = vunpack.c.l.b16 %v7474
    %v7507 = vunpack.c.l.b16 %v7475
    %v7508 = vunpack.c.l.b16 %v7476
    %v7509 = vunpack.c.l.b16 %v7477
    %v7510 = vunpack.c.l.b16 %v7478
    %v7511 = vunpack.c.l.b16 %v7479
    %v7512 = vunpack.c.l.b16 %v7480
    %v7513 = vunpack.c.l.b16 %v7481
    %v7514 = vunpack.c.l.b16 %v7482
    %v7515 = vunpack.c.l.b16 %v7483
    %v7516 = vunpack.c.l.b16 %v7484
    %v7517 = vpack.c.b16 %v7502, %v7501
    %v7518 = vpack.c.b16 %v7504, %v7503
    %v7519 = vpack.c.b16 %v7506, %v7505
    %v7520 = vpack.c.b16 %v7508, %v7507
    %v7521 = vpack.c.b16 %v7510, %v7509
    %v7522 = vpack.c.b16 %v7512, %v7511
    %v7523 = vpack.c.b16 %v7514, %v7513
    %v7524 = vpack.c.b16 %v7516, %v7515
    %7533 = vmatprep.subr.bf16.mxu0 0
    %7534 = vmatpush1.bf16.msra.mxu0 %v7517
    %7535 = vmatprep.subr.bf16.mxu0 0
    %7536 = vmatpush1.bf16.msra.mxu0 %v7518
    %7537 = vmatprep.subr.bf16.mxu0 0
    %7538 = vmatpush1.bf16.msra.mxu0 %v7519
    %7539 = vmatprep.subr.bf16.mxu0 0
    %7540 = vmatpush1.bf16.msra.mxu0 %v7520
    %7541 = vmatprep.subr.bf16.mxu0 0
    %7542 = vmatpush1.bf16.msra.mxu0 %v7521
    %7543 = vmatprep.subr.bf16.mxu0 0
    %7544 = vmatpush1.bf16.msra.mxu0 %v7522
    %7545 = vmatprep.subr.bf16.mxu0 0
    %7546 = vmatpush1.bf16.msra.mxu0 %v7523
    %7547 = vmatprep.subr.bf16.mxu0 0
    %7548 = vmatpush1.bf16.msra.mxu0 %v7524
    %7549 = vmatprep.subr.bf16.mxu0 0
    %7550 = vmatpush1.bf16.msra.mxu0 0
    %7551 = vmatprep.subr.bf16.mxu0 0
    %7552 = vmatpush1.bf16.msra.mxu0 0
    %7553 = vmatprep.subr.bf16.mxu0 0
    %7554 = vmatpush1.bf16.msra.mxu0 0
    %7555 = vmatprep.subr.bf16.mxu0 0
    %7556 = vmatpush1.bf16.msra.mxu0 0
    %7557 = vmatprep.subr.bf16.mxu0 0
    %7558 = vmatpush1.bf16.msra.mxu0 0
    %7559 = vmatprep.subr.bf16.mxu0 0
    %7560 = vmatpush1.bf16.msra.mxu0 0
    %7561 = vmatprep.subr.bf16.mxu0 0
    %7562 = vmatpush1.bf16.msra.mxu0 0
    %7563 = vmatprep.subr.bf16.mxu0 0
    %7564 = vmatpush1.bf16.msra.mxu0 0
    %7565 = vmatprep.mubr.bf16.mxu0 0
    %7566 = vmatmul.mubr.bf16.gmra.mrb[0].mxu0 %v7459
    %v7567 = vpop.f32.mrb[0].mxu0
    %v7568 = vadd.f32 0.0, %v7567
    %v7569 = vpop.f32.mrb[0].mxu0
    %v7570 = vpop.f32.mrb[0].mxu0
    %v7571 = vadd.f32 0.0, %v7570
    %v7572 = vpop.f32.mrb[0].mxu0
    %7573 = vmatprep.mubr.bf16.mxu0 0
    %7574 = vmatmul.mubr.bf16.gmra.mrb[0].mxu0 %v7460
    %v7575 = vpop.f32.mrb[0].mxu0
    %v7576 = vadd.f32 0.0, %v7575
    %v7577 = vpop.f32.mrb[0].mxu0
    %v7578 = vpop.f32.mrb[0].mxu0
    %v7579 = vadd.f32 0.0, %v7578
    %v7580 = vpop.f32.mrb[0].mxu0
    %7581 = vmatprep.mubr.bf16.mxu0 0
    %7582 = vmatmul.mubr.bf16.gmra.mrb[0].mxu0 %v7461
    %v7583 = vpop.f32.mrb[0].mxu0
    %v7584 = vadd.f32 0.0, %v7583
    %v7585 = vpop.f32.mrb[0].mxu0
    %v7586 = vpop.f32.mrb[0].mxu0
    %v7587 = vadd.f32 0.0, %v7586
    %v7588 = vpop.f32.mrb[0].mxu0
    %7589 = vmatprep.mubr.bf16.mxu0 0
    %7590 = vmatmul.mubr.bf16.gmra.mrb[0].mxu0 %v7462
    %v7591 = vpop.f32.mrb[0].mxu0
    %v7592 = vadd.f32 0.0, %v7591
    %v7593 = vpop.f32.mrb[0].mxu0
    %v7594 = vpop.f32.mrb[0].mxu0
    %v7595 = vadd.f32 0.0, %v7594
    %v7596 = vpop.f32.mrb[0].mxu0
    %7597 = vmatprep.mubr.bf16.mxu0 0
    %7598 = vmatmul.mubr.bf16.gmra.mrb[0].mxu0 %v7463
    %v7599 = vpop.f32.mrb[0].mxu0
    %v7600 = vadd.f32 0.0, %v7599
    %v7601 = vpop.f32.mrb[0].mxu0
    %v7602 = vpop.f32.mrb[0].mxu0
    %v7603 = vadd.f32 0.0, %v7602
    %v7604 = vpop.f32.mrb[0].mxu0
    %7605 = vmatprep.mubr.bf16.mxu0 0
    %7606 = vmatmul.mubr.bf16.gmra.mrb[0].mxu0 %v7464
    %v7607 = vpop.f32.mrb[0].mxu0
    %v7608 = vadd.f32 0.0, %v7607
    %v7609 = vpop.f32.mrb[0].mxu0
    %v7610 = vpop.f32.mrb[0].mxu0
    %v7611 = vadd.f32 0.0, %v7610
    %v7612 = vpop.f32.mrb[0].mxu0
    %7613 = vmatprep.mubr.bf16.mxu0 0
    %7614 = vmatmul.mubr.bf16.gmra.mrb[0].mxu0 %v7465
    %v7615 = vpop.f32.mrb[0].mxu0
    %v7616 = vadd.f32 0.0, %v7615
    %v7617 = vpop.f32.mrb[0].mxu0
    %v7618 = vpop.f32.mrb[0].mxu0
    %v7619 = vadd.f32 0.0, %v7618
    %v7620 = vpop.f32.mrb[0].mxu0
    %7621 = vmatprep.mubr.bf16.mxu0 0
    %7622 = vmatmul.mubr.bf16.gmra.mrb[0].mxu0 %v7466
    %v7623 = vpop.f32.mrb[0].mxu0
    %v7624 = vadd.f32 0.0, %v7623
    %v7625 = vpop.f32.mrb[0].mxu0
    %v7626 = vpop.f32.mrb[0].mxu0
    %v7627 = vadd.f32 0.0, %v7626
    %v7628 = vpop.f32.mrb[0].mxu0
    %7629 = vmatprep.mubr.bf16.mxu0 0
    %7630 = vmatmul.mubr.bf16.gmra.mrb[0].mxu0 %v7467
    %v7631 = vpop.f32.mrb[0].mxu0
    %v7632 = vadd.f32 0.0, %v7631
    %v7633 = vpop.f32.mrb[0].mxu0
    %v7634 = vpop.f32.mrb[0].mxu0
    %v7635 = vpop.f32.mrb[0].mxu0
    %7636 = vdwg.mxu0
    %v7637 = vadd.f32 %v7425, %v7568
    %v7638 = vadd.f32 %v7426, %v7571
    %v7639 = vadd.f32 %v7427, %v7576
    %v7640 = vadd.f32 %v7428, %v7579
    %v7641 = vadd.f32 %v7429, %v7584
    %v7642 = vadd.f32 %v7430, %v7587
    %v7643 = vadd.f32 %v7431, %v7592
    %v7644 = vadd.f32 %v7432, %v7595
    %v7645 = vadd.f32 %v7433, %v7600
    %v7646 = vadd.f32 %v7434, %v7603
    %v7647 = vadd.f32 %v7435, %v7608
    %v7648 = vadd.f32 %v7436, %v7611
    %v7649 = vadd.f32 %v7437, %v7616
    %v7650 = vadd.f32 %v7438, %v7619
    %v7651 = vadd.f32 %v7439, %v7624
    %v7652 = vadd.f32 %v7440, %v7627
    %v7653 = vadd.f32 %v7441, %v7632
    %v7654 = vtanh.pop %v7637
    %v7655 = vtanh.pop %v7638
    %v7656 = vtanh.pop %v7639
    %v7657 = vtanh.pop %v7640
    %v7658 = vtanh.pop %v7641
    %v7659 = vtanh.pop %v7642
    %v7660 = vtanh.pop %v7643
    %v7661 = vtanh.pop %v7644
    %v7662 = vtanh.pop %v7645
    %v7663 = vtanh.pop %v7646
    %v7664 = vtanh.pop %v7647
    %v7665 = vtanh.pop %v7648
    %v7666 = vtanh.pop %v7649
    %v7667 = vtanh.pop %v7650
    %v7668 = vtanh.pop %v7651
    %v7669 = vtanh.pop %v7652
    %v7670 = vtanh.pop %v7653
    %v7671 = vld [vmem:[%s6] sm:$0xff]
    %v7672 = vld [vmem:[%s6 + $0x8] sm:$0xff]
    %v7673 = vld [vmem:[%s6 + $0x10] sm:$0xff]
    %v7674 = vld [vmem:[%s6 + $0x18] sm:$0x11]
    %v7675 = vpack.c.bf16 %v7655, %v7654
    %v7676 = vpack.c.bf16 %v7657, %v7656
    %v7677 = vpack.c.bf16 %v7659, %v7658
    %v7678 = vpack.c.bf16 %v7661, %v7660
    %v7679 = vpack.c.bf16 %v7663, %v7662
    %v7680 = vpack.c.bf16 %v7665, %v7664
    %v7681 = vpack.c.bf16 %v7667, %v7666
    %v7682 = vpack.c.bf16 %v7669, %v7668
    %v7683 = vpack.c.bf16 %v7670, %v7670
    %v7688 = vunpack.c.l.b16 %v7671
    %v7689 = vunpack.c.h.b16 %v7671
    %v7690 = vunpack.c.l.b16 %v7672
    %v7691 = vunpack.c.h.b16 %v7672
    %v7692 = vunpack.c.l.b16 %v7673
    %v7693 = vunpack.c.h.b16 %v7673
    %v7694 = vunpack.c.l.b16 %v7674
    %v7695 = vunpack.c.h.b16 %v7674
    %v7696 = vpack.c.b16 %v7690, %v7688
    %v7697 = vpack.c.b16 %v7691, %v7689
    %v7698 = vpack.c.b16 %v7694, %v7692
    %v7699 = vpack.c.b16 %v7695, %v7693
    %vm7702 = vcmask 64512
    %v7704 = vsel %vm7702, %v7697, 0
    %v7707 = vsel %vm7702, %v7699, 0
    %vm7709 = vcmask 1043456
    %v7711 = vsel %vm7709, %v7683, 0
    %7713 = vmatprep.subr.bf16.mxu0 0
    %7714 = vmatpush1.bf16.msra.mxu0 %v7675
    %7715 = vmatprep.subr.bf16.mxu0 0
    %7716 = vmatpush1.bf16.msra.mxu0 %v7676
    %7717 = vmatprep.subr.bf16.mxu0 0
    %7718 = vmatpush1.bf16.msra.mxu0 %v7677
    %7719 = vmatprep.subr.bf16.mxu0 0
    %7720 = vmatpush1.bf16.msra.mxu0 %v7678
    %7721 = vmatprep.subr.bf16.mxu0 0
    %7722 = vmatpush1.bf16.msra.mxu0 %v7679
    %7723 = vmatprep.subr.bf16.mxu0 0
    %7724 = vmatpush1.bf16.msra.mxu0 %v7680
    %7725 = vmatprep.subr.bf16.mxu0 0
    %7726 = vmatpush1.bf16.msra.mxu0 %v7681
    %7727 = vmatprep.subr.bf16.mxu0 0
    %7728 = vmatpush1.bf16.msra.mxu0 %v7682
    %7729 = vmatprep.subr.bf16.mxu0 0
    %7730 = vmatpush1.bf16.msra.mxu0 %v7711
    %7731 = vmatprep.subr.bf16.mxu0 0
    %7732 = vmatpush1.bf16.msra.mxu0 0
    %7733 = vmatprep.subr.bf16.mxu0 0
    %7734 = vmatpush1.bf16.msra.mxu0 0
    %7735 = vmatprep.subr.bf16.mxu0 0
    %7736 = vmatpush1.bf16.msra.mxu0 0
    %7737 = vmatprep.subr.bf16.mxu0 0
    %7738 = vmatpush1.bf16.msra.mxu0 0
    %7739 = vmatprep.subr.bf16.mxu0 0
    %7740 = vmatpush1.bf16.msra.mxu0 0
    %7741 = vmatprep.subr.bf16.mxu0 0
    %7742 = vmatpush1.bf16.msra.mxu0 0
    %7743 = vmatprep.subr.bf16.mxu0 0
    %7744 = vmatpush1.bf16.msra.mxu0 0
    %7745 = vmatprep.mubr.bf16.mxu0 %v7704
    %7746 = vmatmul.mubr.bf16.gmra.mrb[0].mxu0 %v7696
    %v7747 = vpop.f32.mrb[0].mxu0
    %v7748 = vadd.f32 0.0, %v7747
    %v7749 = vpop.f32.mrb[0].mxu0
    %v7750 = vpop.f32.mrb[0].mxu0
    %v7751 = vadd.f32 0.0, %v7750
    %v7752 = vpop.f32.mrb[0].mxu0
    %7753 = vmatprep.mubr.bf16.mxu0 %v7707
    %7754 = vmatmul.mubr.bf16.gmra.mrb[0].mxu0 %v7698
    %v7755 = vpop.f32.mrb[0].mxu0
    %v7756 = vadd.f32 0.0, %v7755
    %v7757 = vpop.f32.mrb[0].mxu0
    %v7758 = vpop.f32.mrb[0].mxu0
    %v7759 = vadd.f32 0.0, %v7758
    %v7760 = vpop.f32.mrb[0].mxu0
    %7761 = vdwg.mxu0
    %7762 = vst [vmem:[#allocation3] sm:$0xff] %v7748
    %7763 = vst [vmem:[#allocation3 + $0x8] sm:$0xff] %v7751
    %7764 = vst [vmem:[#allocation3 + $0x10] sm:$0xff] %v7756
    %7765 = vst [vmem:[#allocation3 + $0x18] sm:$0x1] %v7759
    %v7766 = vld [vmem:[%s8] sm:$0x1]
    %v7767 = vld [vmem:[#allocation3] sm:$0x1]
    %v7768 = vpack.c.bf16 %v7767, %v7767
    %v7769 = vld [vmem:[%s7] sm:$0xf]
    %v7770 = vld [vmem:[%s7 + $0x4] sm:$0xf]
    %v7771 = vld [vmem:[%s7 + $0x8] sm:$0xf]
    %v7772 = vld [vmem:[%s7 + $0xc] sm:$0xf]
    %v7773 = vld [vmem:[%s7 + $0x10] sm:$0xf]
    %v7774 = vld [vmem:[%s7 + $0x14] sm:$0xf]
    %v7775 = vld [vmem:[%s7 + $0x18] sm:$0xf]
    %v7776 = vld [vmem:[%s7 + $0x1c] sm:$0xf]
    %v7777 = vld [vmem:[%s7 + $0x20] sm:$0xf]
    %v7778 = vld [vmem:[%s7 + $0x24] sm:$0xf]
    %v7779 = vld [vmem:[%s7 + $0x28] sm:$0xf]
    %v7780 = vld [vmem:[%s7 + $0x2c] sm:$0xf]
    %v7781 = vld [vmem:[%s7 + $0x30] sm:$0xf]
    %v7782 = vld [vmem:[%s7 + $0x34] sm:$0xf]
    %v7783 = vld [vmem:[%s7 + $0x38] sm:$0xf]
    %v7784 = vld [vmem:[%s7 + $0x3c] sm:$0xf]
    %v7801 = vunpack.c.l.b16 %v7769
    %v7802 = vunpack.c.l.b16 %v7770
    %v7803 = vunpack.c.l.b16 %v7771
    %v7804 = vunpack.c.l.b16 %v7772
    %v7805 = vunpack.c.l.b16 %v7773
    %v7806 = vunpack.c.l.b16 %v7774
    %v7807 = vunpack.c.l.b16 %v7775
    %v7808 = vunpack.c.l.b16 %v7776
    %v7809 = vunpack.c.l.b16 %v7777
    %v7810 = vunpack.c.l.b16 %v7778
    %v7811 = vunpack.c.l.b16 %v7779
    %v7812 = vunpack.c.l.b16 %v7780
    %v7813 = vunpack.c.l.b16 %v7781
    %v7814 = vunpack.c.l.b16 %v7782
    %v7815 = vunpack.c.l.b16 %v7783
    %v7816 = vunpack.c.l.b16 %v7784
    %v7817 = vpack.c.b16 %v7802, %v7801
    %v7818 = vpack.c.b16 %v7804, %v7803
    %v7819 = vpack.c.b16 %v7806, %v7805
    %v7820 = vpack.c.b16 %v7808, %v7807
    %v7821 = vpack.c.b16 %v7810, %v7809
    %v7822 = vpack.c.b16 %v7812, %v7811
    %v7823 = vpack.c.b16 %v7814, %v7813
    %v7824 = vpack.c.b16 %v7816, %v7815
    %7833 = vmatprep.subr.bf16.mxu0 0
    %7834 = vmatpush1.bf16.msra.mxu0 %v7817
    %7835 = vmatprep.subr.bf16.mxu0 0
    %7836 = vmatpush1.bf16.msra.mxu0 %v7818
    %7837 = vmatprep.subr.bf16.mxu0 0
    %7838 = vmatpush1.bf16.msra.mxu0 %v7819
    %7839 = vmatprep.subr.bf16.mxu0 0
    %7840 = vmatpush1.bf16.msra.mxu0 %v7820
    %7841 = vmatprep.subr.bf16.mxu0 0
    %7842 = vmatpush1.bf16.msra.mxu0 %v7821
    %7843 = vmatprep.subr.bf16.mxu0 0
    %7844 = vmatpush1.bf16.msra.mxu0 %v7822
    %7845 = vmatprep.subr.bf16.mxu0 0
    %7846 = vmatpush1.bf16.msra.mxu0 %v7823
    %7847 = vmatprep.subr.bf16.mxu0 0
    %7848 = vmatpush1.bf16.msra.mxu0 %v7824
    %7849 = vmatprep.subr.bf16.mxu0 0
    %7850 = vmatpush1.bf16.msra.mxu0 0
    %7851 = vmatprep.subr.bf16.mxu0 0
    %7852 = vmatpush1.bf16.msra.mxu0 0
    %7853 = vmatprep.subr.bf16.mxu0 0
    %7854 = vmatpush1.bf16.msra.mxu0 0
    %7855 = vmatprep.subr.bf16.mxu0 0
    %7856 = vmatpush1.bf16.msra.mxu0 0
    %7857 = vmatprep.subr.bf16.mxu0 0
    %7858 = vmatpush1.bf16.msra.mxu0 0
    %7859 = vmatprep.subr.bf16.mxu0 0
    %7860 = vmatpush1.bf16.msra.mxu0 0
    %7861 = vmatprep.subr.bf16.mxu0 0
    %7862 = vmatpush1.bf16.msra.mxu0 0
    %7863 = vmatprep.subr.bf16.mxu0 0
    %7864 = vmatpush1.bf16.msra.mxu0 0
    %7865 = vmatprep.mubr.bf16.mxu0 0
    %7866 = vmatmul.mubr.bf16.gmra.mrb[0].mxu0 %v7768
    %v7867 = vpop.f32.mrb[0].mxu0
    %v7868 = vadd.f32 0.0, %v7867
    %v7869 = vpop.f32.mrb[0].mxu0
    %v7870 = vpop.f32.mrb[0].mxu0
    %v7871 = vpop.f32.mrb[0].mxu0
    %7872 = vdwg.mxu0
    %v7873 = vadd.f32 %v7766, %v7868
    %v7874 = vld [vmem:[#allocation3 + $0x1] sm:$0x1]
    %v7875 = vpack.c.bf16 %v7874, %v7874
    %s7876 = scalar_lea.vmem %s7, 64
    %v7877 = vld [vmem:[%s7876] sm:$0xf]
    %v7878 = vld [vmem:[%s7876 + $0x4] sm:$0xf]
    %v7879 = vld [vmem:[%s7876 + $0x8] sm:$0xf]
    %v7880 = vld [vmem:[%s7876 + $0xc] sm:$0xf]
    %v7881 = vld [vmem:[%s7876 + $0x10] sm:$0xf]
    %v7882 = vld [vmem:[%s7876 + $0x14] sm:$0xf]
    %v7883 = vld [vmem:[%s7876 + $0x18] sm:$0xf]
    %v7884 = vld [vmem:[%s7876 + $0x1c] sm:$0xf]
    %v7885 = vld [vmem:[%s7876 + $0x20] sm:$0xf]
    %v7886 = vld [vmem:[%s7876 + $0x24] sm:$0xf]
    %v7887 = vld [vmem:[%s7876 + $0x28] sm:$0xf]
    %v7888 = vld [vmem:[%s7876 + $0x2c] sm:$0xf]
    %v7889 = vld [vmem:[%s7876 + $0x30] sm:$0xf]
    %v7890 = vld [vmem:[%s7876 + $0x34] sm:$0xf]
    %v7891 = vld [vmem:[%s7876 + $0x38] sm:$0xf]
    %v7892 = vld [vmem:[%s7876 + $0x3c] sm:$0xf]
    %v7909 = vunpack.c.l.b16 %v7877
    %v7910 = vunpack.c.l.b16 %v7878
    %v7911 = vunpack.c.l.b16 %v7879
    %v7912 = vunpack.c.l.b16 %v7880
    %v7913 = vunpack.c.l.b16 %v7881
    %v7914 = vunpack.c.l.b16 %v7882
    %v7915 = vunpack.c.l.b16 %v7883
    %v7916 = vunpack.c.l.b16 %v7884
    %v7917 = vunpack.c.l.b16 %v7885
    %v7918 = vunpack.c.l.b16 %v7886
    %v7919 = vunpack.c.l.b16 %v7887
    %v7920 = vunpack.c.l.b16 %v7888
    %v7921 = vunpack.c.l.b16 %v7889
    %v7922 = vunpack.c.l.b16 %v7890
    %v7923 = vunpack.c.l.b16 %v7891
    %v7924 = vunpack.c.l.b16 %v7892
    %v7925 = vpack.c.b16 %v7910, %v7909
    %v7926 = vpack.c.b16 %v7912, %v7911
    %v7927 = vpack.c.b16 %v7914, %v7913
    %v7928 = vpack.c.b16 %v7916, %v7915
    %v7929 = vpack.c.b16 %v7918, %v7917
    %v7930 = vpack.c.b16 %v7920, %v7919
    %v7931 = vpack.c.b16 %v7922, %v7921
    %v7932 = vpack.c.b16 %v7924, %v7923
    %7941 = vmatprep.subr.bf16.mxu0 0
    %7942 = vmatpush1.bf16.msra.mxu0 %v7925
    %7943 = vmatprep.subr.bf16.mxu0 0
    %7944 = vmatpush1.bf16.msra.mxu0 %v7926
    %7945 = vmatprep.subr.bf16.mxu0 0
    %7946 = vmatpush1.bf16.msra.mxu0 %v7927
    %7947 = vmatprep.subr.bf16.mxu0 0
    %7948 = vmatpush1.bf16.msra.mxu0 %v7928
    %7949 = vmatprep.subr.bf16.mxu0 0
    %7950 = vmatpush1.bf16.msra.mxu0 %v7929
    %7951 = vmatprep.subr.bf16.mxu0 0
    %7952 = vmatpush1.bf16.msra.mxu0 %v7930
    %7953 = vmatprep.subr.bf16.mxu0 0
    %7954 = vmatpush1.bf16.msra.mxu0 %v7931
    %7955 = vmatprep.subr.bf16.mxu0 0
    %7956 = vmatpush1.bf16.msra.mxu0 %v7932
    %7957 = vmatprep.subr.bf16.mxu0 0
    %7958 = vmatpush1.bf16.msra.mxu0 0
    %7959 = vmatprep.subr.bf16.mxu0 0
    %7960 = vmatpush1.bf16.msra.mxu0 0
    %7961 = vmatprep.subr.bf16.mxu0 0
    %7962 = vmatpush1.bf16.msra.mxu0 0
    %7963 = vmatprep.subr.bf16.mxu0 0
    %7964 = vmatpush1.bf16.msra.mxu0 0
    %7965 = vmatprep.subr.bf16.mxu0 0
    %7966 = vmatpush1.bf16.msra.mxu0 0
    %7967 = vmatprep.subr.bf16.mxu0 0
    %7968 = vmatpush1.bf16.msra.mxu0 0
    %7969 = vmatprep.subr.bf16.mxu0 0
    %7970 = vmatpush1.bf16.msra.mxu0 0
    %7971 = vmatprep.subr.bf16.mxu0 0
    %7972 = vmatpush1.bf16.msra.mxu0 0
    %7973 = vmatprep.mubr.bf16.mxu0 0
    %7974 = vmatmul.mubr.bf16.gmra.mrb[0].mxu0 %v7875
    %v7975 = vpop.f32.mrb[0].mxu0
    %v7976 = vadd.f32 0.0, %v7975
    %v7977 = vpop.f32.mrb[0].mxu0
    %v7978 = vpop.f32.mrb[0].mxu0
    %v7979 = vpop.f32.mrb[0].mxu0
    %7980 = vdwg.mxu0
    %v7981 = vadd.f32 %v7873, %v7976
    %v7982 = vld [vmem:[#allocation3 + $0x2] sm:$0x1]
    %v7983 = vpack.c.bf16 %v7982, %v7982
    %s7984 = scalar_lea.vmem %s7, 128
    %v7985 = vld [vmem:[%s7984] sm:$0xf]
    %v7986 = vld [vmem:[%s7984 + $0x4] sm:$0xf]
    %v7987 = vld [vmem:[%s7984 + $0x8] sm:$0xf]
    %v7988 = vld [vmem:[%s7984 + $0xc] sm:$0xf]
    %v7989 = vld [vmem:[%s7984 + $0x10] sm:$0xf]
    %v7990 = vld [vmem:[%s7984 + $0x14] sm:$0xf]
    %v7991 = vld [vmem:[%s7984 + $0x18] sm:$0xf]
    %v7992 = vld [vmem:[%s7984 + $0x1c] sm:$0xf]
    %v7993 = vld [vmem:[%s7984 + $0x20] sm:$0xf]
    %v7994 = vld [vmem:[%s7984 + $0x24] sm:$0xf]
    %v7995 = vld [vmem:[%s7984 + $0x28] sm:$0xf]
    %v7996 = vld [vmem:[%s7984 + $0x2c] sm:$0xf]
    %v7997 = vld [vmem:[%s7984 + $0x30] sm:$0xf]
    %v7998 = vld [vmem:[%s7984 + $0x34] sm:$0xf]
    %v7999 = vld [vmem:[%s7984 + $0x38] sm:$0xf]
    %v8000 = vld [vmem:[%s7984 + $0x3c] sm:$0xf]
    %v8017 = vunpack.c.l.b16 %v7985
    %v8018 = vunpack.c.l.b16 %v7986
    %v8019 = vunpack.c.l.b16 %v7987
    %v8020 = vunpack.c.l.b16 %v7988
    %v8021 = vunpack.c.l.b16 %v7989
    %v8022 = vunpack.c.l.b16 %v7990
    %v8023 = vunpack.c.l.b16 %v7991
    %v8024 = vunpack.c.l.b16 %v7992
    %v8025 = vunpack.c.l.b16 %v7993
    %v8026 = vunpack.c.l.b16 %v7994
    %v8027 = vunpack.c.l.b16 %v7995
    %v8028 = vunpack.c.l.b16 %v7996
    %v8029 = vunpack.c.l.b16 %v7997
    %v8030 = vunpack.c.l.b16 %v7998
    %v8031 = vunpack.c.l.b16 %v7999
    %v8032 = vunpack.c.l.b16 %v8000
    %v8033 = vpack.c.b16 %v8018, %v8017
    %v8034 = vpack.c.b16 %v8020, %v8019
    %v8035 = vpack.c.b16 %v8022, %v8021
    %v8036 = vpack.c.b16 %v8024, %v8023
    %v8037 = vpack.c.b16 %v8026, %v8025
    %v8038 = vpack.c.b16 %v8028, %v8027
    %v8039 = vpack.c.b16 %v8030, %v8029
    %v8040 = vpack.c.b16 %v8032, %v8031
    %8049 = vmatprep.subr.bf16.mxu0 0
    %8050 = vmatpush1.bf16.msra.mxu0 %v8033
    %8051 = vmatprep.subr.bf16.mxu0 0
    %8052 = vmatpush1.bf16.msra.mxu0 %v8034
    %8053 = vmatprep.subr.bf16.mxu0 0
    %8054 = vmatpush1.bf16.msra.mxu0 %v8035
    %8055 = vmatprep.subr.bf16.mxu0 0
    %8056 = vmatpush1.bf16.msra.mxu0 %v8036
    %8057 = vmatprep.subr.bf16.mxu0 0
    %8058 = vmatpush1.bf16.msra.mxu0 %v8037
    %8059 = vmatprep.subr.bf16.mxu0 0
    %8060 = vmatpush1.bf16.msra.mxu0 %v8038
    %8061 = vmatprep.subr.bf16.mxu0 0
    %8062 = vmatpush1.bf16.msra.mxu0 %v8039
    %8063 = vmatprep.subr.bf16.mxu0 0
    %8064 = vmatpush1.bf16.msra.mxu0 %v8040
    %8065 = vmatprep.subr.bf16.mxu0 0
    %8066 = vmatpush1.bf16.msra.mxu0 0
    %8067 = vmatprep.subr.bf16.mxu0 0
    %8068 = vmatpush1.bf16.msra.mxu0 0
    %8069 = vmatprep.subr.bf16.mxu0 0
    %8070 = vmatpush1.bf16.msra.mxu0 0
    %8071 = vmatprep.subr.bf16.mxu0 0
    %8072 = vmatpush1.bf16.msra.mxu0 0
    %8073 = vmatprep.subr.bf16.mxu0 0
    %8074 = vmatpush1.bf16.msra.mxu0 0
    %8075 = vmatprep.subr.bf16.mxu0 0
    %8076 = vmatpush1.bf16.msra.mxu0 0
    %8077 = vmatprep.subr.bf16.mxu0 0
    %8078 = vmatpush1.bf16.msra.mxu0 0
    %8079 = vmatprep.subr.bf16.mxu0 0
    %8080 = vmatpush1.bf16.msra.mxu0 0
    %8081 = vmatprep.mubr.bf16.mxu0 0
    %8082 = vmatmul.mubr.bf16.gmra.mrb[0].mxu0 %v7983
    %v8083 = vpop.f32.mrb[0].mxu0
    %v8084 = vadd.f32 0.0, %v8083
    %v8085 = vpop.f32.mrb[0].mxu0
    %v8086 = vpop.f32.mrb[0].mxu0
    %v8087 = vpop.f32.mrb[0].mxu0
    %8088 = vdwg.mxu0
    %v8089 = vadd.f32 %v7981, %v8084
    %v8090 = vld [vmem:[#allocation3 + $0x3] sm:$0x1]
    %v8091 = vpack.c.bf16 %v8090, %v8090
    %s8092 = scalar_lea.vmem %s7, 192
    %v8093 = vld [vmem:[%s8092] sm:$0xf]
    %v8094 = vld [vmem:[%s8092 + $0x4] sm:$0xf]
    %v8095 = vld [vmem:[%s8092 + $0x8] sm:$0xf]
    %v8096 = vld [vmem:[%s8092 + $0xc] sm:$0xf]
    %v8097 = vld [vmem:[%s8092 + $0x10] sm:$0xf]
    %v8098 = vld [vmem:[%s8092 + $0x14] sm:$0xf]
    %v8099 = vld [vmem:[%s8092 + $0x18] sm:$0xf]
    %v8100 = vld [vmem:[%s8092 + $0x1c] sm:$0xf]
    %v8101 = vld [vmem:[%s8092 + $0x20] sm:$0xf]
    %v8102 = vld [vmem:[%s8092 + $0x24] sm:$0xf]
    %v8103 = vld [vmem:[%s8092 + $0x28] sm:$0xf]
    %v8104 = vld [vmem:[%s8092 + $0x2c] sm:$0xf]
    %v8105 = vld [vmem:[%s8092 + $0x30] sm:$0xf]
    %v8106 = vld [vmem:[%s8092 + $0x34] sm:$0xf]
    %v8107 = vld [vmem:[%s8092 + $0x38] sm:$0xf]
    %v8108 = vld [vmem:[%s8092 + $0x3c] sm:$0xf]
    %v8125 = vunpack.c.l.b16 %v8093
    %v8126 = vunpack.c.l.b16 %v8094
    %v8127 = vunpack.c.l.b16 %v8095
    %v8128 = vunpack.c.l.b16 %v8096
    %v8129 = vunpack.c.l.b16 %v8097
    %v8130 = vunpack.c.l.b16 %v8098
    %v8131 = vunpack.c.l.b16 %v8099
    %v8132 = vunpack.c.l.b16 %v8100
    %v8133 = vunpack.c.l.b16 %v8101
    %v8134 = vunpack.c.l.b16 %v8102
    %v8135 = vunpack.c.l.b16 %v8103
    %v8136 = vunpack.c.l.b16 %v8104
    %v8137 = vunpack.c.l.b16 %v8105
    %v8138 = vunpack.c.l.b16 %v8106
    %v8139 = vunpack.c.l.b16 %v8107
    %v8140 = vunpack.c.l.b16 %v8108
    %v8141 = vpack.c.b16 %v8126, %v8125
    %v8142 = vpack.c.b16 %v8128, %v8127
    %v8143 = vpack.c.b16 %v8130, %v8129
    %v8144 = vpack.c.b16 %v8132, %v8131
    %v8145 = vpack.c.b16 %v8134, %v8133
    %v8146 = vpack.c.b16 %v8136, %v8135
    %v8147 = vpack.c.b16 %v8138, %v8137
    %v8148 = vpack.c.b16 %v8140, %v8139
    %8157 = vmatprep.subr.bf16.mxu0 0
    %8158 = vmatpush1.bf16.msra.mxu0 %v8141
    %8159 = vmatprep.subr.bf16.mxu0 0
    %8160 = vmatpush1.bf16.msra.mxu0 %v8142
    %8161 = vmatprep.subr.bf16.mxu0 0
    %8162 = vmatpush1.bf16.msra.mxu0 %v8143
    %8163 = vmatprep.subr.bf16.mxu0 0
    %8164 = vmatpush1.bf16.msra.mxu0 %v8144
    %8165 = vmatprep.subr.bf16.mxu0 0
    %8166 = vmatpush1.bf16.msra.mxu0 %v8145
    %8167 = vmatprep.subr.bf16.mxu0 0
    %8168 = vmatpush1.bf16.msra.mxu0 %v8146
    %8169 = vmatprep.subr.bf16.mxu0 0
    %8170 = vmatpush1.bf16.msra.mxu0 %v8147
    %8171 = vmatprep.subr.bf16.mxu0 0
    %8172 = vmatpush1.bf16.msra.mxu0 %v8148
    %8173 = vmatprep.subr.bf16.mxu0 0
    %8174 = vmatpush1.bf16.msra.mxu0 0
    %8175 = vmatprep.subr.bf16.mxu0 0
    %8176 = vmatpush1.bf16.msra.mxu0 0
    %8177 = vmatprep.subr.bf16.mxu0 0
    %8178 = vmatpush1.bf16.msra.mxu0 0
    %8179 = vmatprep.subr.bf16.mxu0 0
    %8180 = vmatpush1.bf16.msra.mxu0 0
    %8181 = vmatprep.subr.bf16.mxu0 0
    %8182 = vmatpush1.bf16.msra.mxu0 0
    %8183 = vmatprep.subr.bf16.mxu0 0
    %8184 = vmatpush1.bf16.msra.mxu0 0
    %8185 = vmatprep.subr.bf16.mxu0 0
    %8186 = vmatpush1.bf16.msra.mxu0 0
    %8187 = vmatprep.subr.bf16.mxu0 0
    %8188 = vmatpush1.bf16.msra.mxu0 0
    %8189 = vmatprep.mubr.bf16.mxu0 0
    %8190 = vmatmul.mubr.bf16.gmra.mrb[0].mxu0 %v8091
    %v8191 = vpop.f32.mrb[0].mxu0
    %v8192 = vadd.f32 0.0, %v8191
    %v8193 = vpop.f32.mrb[0].mxu0
    %v8194 = vpop.f32.mrb[0].mxu0
    %v8195 = vpop.f32.mrb[0].mxu0
    %8196 = vdwg.mxu0
    %v8197 = vadd.f32 %v8089, %v8192
    %v8198 = vld [vmem:[#allocation3 + $0x4] sm:$0x1]
    %v8199 = vpack.c.bf16 %v8198, %v8198
    %s8200 = scalar_lea.vmem %s7, 256
    %v8201 = vld [vmem:[%s8200] sm:$0xf]
    %v8202 = vld [vmem:[%s8200 + $0x4] sm:$0xf]
    %v8203 = vld [vmem:[%s8200 + $0x8] sm:$0xf]
    %v8204 = vld [vmem:[%s8200 + $0xc] sm:$0xf]
    %v8205 = vld [vmem:[%s8200 + $0x10] sm:$0xf]
    %v8206 = vld [vmem:[%s8200 + $0x14] sm:$0xf]
    %v8207 = vld [vmem:[%s8200 + $0x18] sm:$0xf]
    %v8208 = vld [vmem:[%s8200 + $0x1c] sm:$0xf]
    %v8209 = vld [vmem:[%s8200 + $0x20] sm:$0xf]
    %v8210 = vld [vmem:[%s8200 + $0x24] sm:$0xf]
    %v8211 = vld [vmem:[%s8200 + $0x28] sm:$0xf]
    %v8212 = vld [vmem:[%s8200 + $0x2c] sm:$0xf]
    %v8213 = vld [vmem:[%s8200 + $0x30] sm:$0xf]
    %v8214 = vld [vmem:[%s8200 + $0x34] sm:$0xf]
    %v8215 = vld [vmem:[%s8200 + $0x38] sm:$0xf]
    %v8216 = vld [vmem:[%s8200 + $0x3c] sm:$0xf]
    %v8233 = vunpack.c.l.b16 %v8201
    %v8234 = vunpack.c.l.b16 %v8202
    %v8235 = vunpack.c.l.b16 %v8203
    %v8236 = vunpack.c.l.b16 %v8204
    %v8237 = vunpack.c.l.b16 %v8205
    %v8238 = vunpack.c.l.b16 %v8206
    %v8239 = vunpack.c.l.b16 %v8207
    %v8240 = vunpack.c.l.b16 %v8208
    %v8241 = vunpack.c.l.b16 %v8209
    %v8242 = vunpack.c.l.b16 %v8210
    %v8243 = vunpack.c.l.b16 %v8211
    %v8244 = vunpack.c.l.b16 %v8212
    %v8245 = vunpack.c.l.b16 %v8213
    %v8246 = vunpack.c.l.b16 %v8214
    %v8247 = vunpack.c.l.b16 %v8215
    %v8248 = vunpack.c.l.b16 %v8216
    %v8249 = vpack.c.b16 %v8234, %v8233
    %v8250 = vpack.c.b16 %v8236, %v8235
    %v8251 = vpack.c.b16 %v8238, %v8237
    %v8252 = vpack.c.b16 %v8240, %v8239
    %v8253 = vpack.c.b16 %v8242, %v8241
    %v8254 = vpack.c.b16 %v8244, %v8243
    %v8255 = vpack.c.b16 %v8246, %v8245
    %v8256 = vpack.c.b16 %v8248, %v8247
    %8265 = vmatprep.subr.bf16.mxu0 0
    %8266 = vmatpush1.bf16.msra.mxu0 %v8249
    %8267 = vmatprep.subr.bf16.mxu0 0
    %8268 = vmatpush1.bf16.msra.mxu0 %v8250
    %8269 = vmatprep.subr.bf16.mxu0 0
    %8270 = vmatpush1.bf16.msra.mxu0 %v8251
    %8271 = vmatprep.subr.bf16.mxu0 0
    %8272 = vmatpush1.bf16.msra.mxu0 %v8252
    %8273 = vmatprep.subr.bf16.mxu0 0
    %8274 = vmatpush1.bf16.msra.mxu0 %v8253
    %8275 = vmatprep.subr.bf16.mxu0 0
    %8276 = vmatpush1.bf16.msra.mxu0 %v8254
    %8277 = vmatprep.subr.bf16.mxu0 0
    %8278 = vmatpush1.bf16.msra.mxu0 %v8255
    %8279 = vmatprep.subr.bf16.mxu0 0
    %8280 = vmatpush1.bf16.msra.mxu0 %v8256
    %8281 = vmatprep.subr.bf16.mxu0 0
    %8282 = vmatpush1.bf16.msra.mxu0 0
    %8283 = vmatprep.subr.bf16.mxu0 0
    %8284 = vmatpush1.bf16.msra.mxu0 0
    %8285 = vmatprep.subr.bf16.mxu0 0
    %8286 = vmatpush1.bf16.msra.mxu0 0
    %8287 = vmatprep.subr.bf16.mxu0 0
    %8288 = vmatpush1.bf16.msra.mxu0 0
    %8289 = vmatprep.subr.bf16.mxu0 0
    %8290 = vmatpush1.bf16.msra.mxu0 0
    %8291 = vmatprep.subr.bf16.mxu0 0
    %8292 = vmatpush1.bf16.msra.mxu0 0
    %8293 = vmatprep.subr.bf16.mxu0 0
    %8294 = vmatpush1.bf16.msra.mxu0 0
    %8295 = vmatprep.subr.bf16.mxu0 0
    %8296 = vmatpush1.bf16.msra.mxu0 0
    %8297 = vmatprep.mubr.bf16.mxu0 0
    %8298 = vmatmul.mubr.bf16.gmra.mrb[0].mxu0 %v8199
    %v8299 = vpop.f32.mrb[0].mxu0
    %v8300 = vadd.f32 0.0, %v8299
    %v8301 = vpop.f32.mrb[0].mxu0
    %v8302 = vpop.f32.mrb[0].mxu0
    %v8303 = vpop.f32.mrb[0].mxu0
    %8304 = vdwg.mxu0
    %v8305 = vadd.f32 %v8197, %v8300
    %v8306 = vld [vmem:[#allocation3 + $0x5] sm:$0x1]
    %v8307 = vpack.c.bf16 %v8306, %v8306
    %s8308 = scalar_lea.vmem %s7, 320
    %v8309 = vld [vmem:[%s8308] sm:$0xf]
    %v8310 = vld [vmem:[%s8308 + $0x4] sm:$0xf]
    %v8311 = vld [vmem:[%s8308 + $0x8] sm:$0xf]
    %v8312 = vld [vmem:[%s8308 + $0xc] sm:$0xf]
    %v8313 = vld [vmem:[%s8308 + $0x10] sm:$0xf]
    %v8314 = vld [vmem:[%s8308 + $0x14] sm:$0xf]
    %v8315 = vld [vmem:[%s8308 + $0x18] sm:$0xf]
    %v8316 = vld [vmem:[%s8308 + $0x1c] sm:$0xf]
    %v8317 = vld [vmem:[%s8308 + $0x20] sm:$0xf]
    %v8318 = vld [vmem:[%s8308 + $0x24] sm:$0xf]
    %v8319 = vld [vmem:[%s8308 + $0x28] sm:$0xf]
    %v8320 = vld [vmem:[%s8308 + $0x2c] sm:$0xf]
    %v8321 = vld [vmem:[%s8308 + $0x30] sm:$0xf]
    %v8322 = vld [vmem:[%s8308 + $0x34] sm:$0xf]
    %v8323 = vld [vmem:[%s8308 + $0x38] sm:$0xf]
    %v8324 = vld [vmem:[%s8308 + $0x3c] sm:$0xf]
    %v8341 = vunpack.c.l.b16 %v8309
    %v8342 = vunpack.c.l.b16 %v8310
    %v8343 = vunpack.c.l.b16 %v8311
    %v8344 = vunpack.c.l.b16 %v8312
    %v8345 = vunpack.c.l.b16 %v8313
    %v8346 = vunpack.c.l.b16 %v8314
    %v8347 = vunpack.c.l.b16 %v8315
    %v8348 = vunpack.c.l.b16 %v8316
    %v8349 = vunpack.c.l.b16 %v8317
    %v8350 = vunpack.c.l.b16 %v8318
    %v8351 = vunpack.c.l.b16 %v8319
    %v8352 = vunpack.c.l.b16 %v8320
    %v8353 = vunpack.c.l.b16 %v8321
    %v8354 = vunpack.c.l.b16 %v8322
    %v8355 = vunpack.c.l.b16 %v8323
    %v8356 = vunpack.c.l.b16 %v8324
    %v8357 = vpack.c.b16 %v8342, %v8341
    %v8358 = vpack.c.b16 %v8344, %v8343
    %v8359 = vpack.c.b16 %v8346, %v8345
    %v8360 = vpack.c.b16 %v8348, %v8347
    %v8361 = vpack.c.b16 %v8350, %v8349
    %v8362 = vpack.c.b16 %v8352, %v8351
    %v8363 = vpack.c.b16 %v8354, %v8353
    %v8364 = vpack.c.b16 %v8356, %v8355
    %8373 = vmatprep.subr.bf16.mxu0 0
    %8374 = vmatpush1.bf16.msra.mxu0 %v8357
    %8375 = vmatprep.subr.bf16.mxu0 0
    %8376 = vmatpush1.bf16.msra.mxu0 %v8358
    %8377 = vmatprep.subr.bf16.mxu0 0
    %8378 = vmatpush1.bf16.msra.mxu0 %v8359
    %8379 = vmatprep.subr.bf16.mxu0 0
    %8380 = vmatpush1.bf16.msra.mxu0 %v8360
    %8381 = vmatprep.subr.bf16.mxu0 0
    %8382 = vmatpush1.bf16.msra.mxu0 %v8361
    %8383 = vmatprep.subr.bf16.mxu0 0
    %8384 = vmatpush1.bf16.msra.mxu0 %v8362
    %8385 = vmatprep.subr.bf16.mxu0 0
    %8386 = vmatpush1.bf16.msra.mxu0 %v8363
    %8387 = vmatprep.subr.bf16.mxu0 0
    %8388 = vmatpush1.bf16.msra.mxu0 %v8364
    %8389 = vmatprep.subr.bf16.mxu0 0
    %8390 = vmatpush1.bf16.msra.mxu0 0
    %8391 = vmatprep.subr.bf16.mxu0 0
    %8392 = vmatpush1.bf16.msra.mxu0 0
    %8393 = vmatprep.subr.bf16.mxu0 0
    %8394 = vmatpush1.bf16.msra.mxu0 0
    %8395 = vmatprep.subr.bf16.mxu0 0
    %8396 = vmatpush1.bf16.msra.mxu0 0
    %8397 = vmatprep.subr.bf16.mxu0 0
    %8398 = vmatpush1.bf16.msra.mxu0 0
    %8399 = vmatprep.subr.bf16.mxu0 0
    %8400 = vmatpush1.bf16.msra.mxu0 0
    %8401 = vmatprep.subr.bf16.mxu0 0
    %8402 = vmatpush1.bf16.msra.mxu0 0
    %8403 = vmatprep.subr.bf16.mxu0 0
    %8404 = vmatpush1.bf16.msra.mxu0 0
    %8405 = vmatprep.mubr.bf16.mxu0 0
    %8406 = vmatmul.mubr.bf16.gmra.mrb[0].mxu0 %v8307
    %v8407 = vpop.f32.mrb[0].mxu0
    %v8408 = vadd.f32 0.0, %v8407
    %v8409 = vpop.f32.mrb[0].mxu0
    %v8410 = vpop.f32.mrb[0].mxu0
    %v8411 = vpop.f32.mrb[0].mxu0
    %8412 = vdwg.mxu0
    %v8413 = vadd.f32 %v8305, %v8408
    %v8414 = vld [vmem:[#allocation3 + $0x6] sm:$0x1]
    %v8415 = vpack.c.bf16 %v8414, %v8414
    %s8416 = scalar_lea.vmem %s7, 384
    %v8417 = vld [vmem:[%s8416] sm:$0xf]
    %v8418 = vld [vmem:[%s8416 + $0x4] sm:$0xf]
    %v8419 = vld [vmem:[%s8416 + $0x8] sm:$0xf]
    %v8420 = vld [vmem:[%s8416 + $0xc] sm:$0xf]
    %v8421 = vld [vmem:[%s8416 + $0x10] sm:$0xf]
    %v8422 = vld [vmem:[%s8416 + $0x14] sm:$0xf]
    %v8423 = vld [vmem:[%s8416 + $0x18] sm:$0xf]
    %v8424 = vld [vmem:[%s8416 + $0x1c] sm:$0xf]
    %v8425 = vld [vmem:[%s8416 + $0x20] sm:$0xf]
    %v8426 = vld [vmem:[%s8416 + $0x24] sm:$0xf]
    %v8427 = vld [vmem:[%s8416 + $0x28] sm:$0xf]
    %v8428 = vld [vmem:[%s8416 + $0x2c] sm:$0xf]
    %v8429 = vld [vmem:[%s8416 + $0x30] sm:$0xf]
    %v8430 = vld [vmem:[%s8416 + $0x34] sm:$0xf]
    %v8431 = vld [vmem:[%s8416 + $0x38] sm:$0xf]
    %v8432 = vld [vmem:[%s8416 + $0x3c] sm:$0xf]
    %v8449 = vunpack.c.l.b16 %v8417
    %v8450 = vunpack.c.l.b16 %v8418
    %v8451 = vunpack.c.l.b16 %v8419
    %v8452 = vunpack.c.l.b16 %v8420
    %v8453 = vunpack.c.l.b16 %v8421
    %v8454 = vunpack.c.l.b16 %v8422
    %v8455 = vunpack.c.l.b16 %v8423
    %v8456 = vunpack.c.l.b16 %v8424
    %v8457 = vunpack.c.l.b16 %v8425
    %v8458 = vunpack.c.l.b16 %v8426
    %v8459 = vunpack.c.l.b16 %v8427
    %v8460 = vunpack.c.l.b16 %v8428
    %v8461 = vunpack.c.l.b16 %v8429
    %v8462 = vunpack.c.l.b16 %v8430
    %v8463 = vunpack.c.l.b16 %v8431
    %v8464 = vunpack.c.l.b16 %v8432
    %v8465 = vpack.c.b16 %v8450, %v8449
    %v8466 = vpack.c.b16 %v8452, %v8451
    %v8467 = vpack.c.b16 %v8454, %v8453
    %v8468 = vpack.c.b16 %v8456, %v8455
    %v8469 = vpack.c.b16 %v8458, %v8457
    %v8470 = vpack.c.b16 %v8460, %v8459
    %v8471 = vpack.c.b16 %v8462, %v8461
    %v8472 = vpack.c.b16 %v8464, %v8463
    %8481 = vmatprep.subr.bf16.mxu0 0
    %8482 = vmatpush1.bf16.msra.mxu0 %v8465
    %8483 = vmatprep.subr.bf16.mxu0 0
    %8484 = vmatpush1.bf16.msra.mxu0 %v8466
    %8485 = vmatprep.subr.bf16.mxu0 0
    %8486 = vmatpush1.bf16.msra.mxu0 %v8467
    %8487 = vmatprep.subr.bf16.mxu0 0
    %8488 = vmatpush1.bf16.msra.mxu0 %v8468
    %8489 = vmatprep.subr.bf16.mxu0 0
    %8490 = vmatpush1.bf16.msra.mxu0 %v8469
    %8491 = vmatprep.subr.bf16.mxu0 0
    %8492 = vmatpush1.bf16.msra.mxu0 %v8470
    %8493 = vmatprep.subr.bf16.mxu0 0
    %8494 = vmatpush1.bf16.msra.mxu0 %v8471
    %8495 = vmatprep.subr.bf16.mxu0 0
    %8496 = vmatpush1.bf16.msra.mxu0 %v8472
    %8497 = vmatprep.subr.bf16.mxu0 0
    %8498 = vmatpush1.bf16.msra.mxu0 0
    %8499 = vmatprep.subr.bf16.mxu0 0
    %8500 = vmatpush1.bf16.msra.mxu0 0
    %8501 = vmatprep.subr.bf16.mxu0 0
    %8502 = vmatpush1.bf16.msra.mxu0 0
    %8503 = vmatprep.subr.bf16.mxu0 0
    %8504 = vmatpush1.bf16.msra.mxu0 0
    %8505 = vmatprep.subr.bf16.mxu0 0
    %8506 = vmatpush1.bf16.msra.mxu0 0
    %8507 = vmatprep.subr.bf16.mxu0 0
    %8508 = vmatpush1.bf16.msra.mxu0 0
    %8509 = vmatprep.subr.bf16.mxu0 0
    %8510 = vmatpush1.bf16.msra.mxu0 0
    %8511 = vmatprep.subr.bf16.mxu0 0
    %8512 = vmatpush1.bf16.msra.mxu0 0
    %8513 = vmatprep.mubr.bf16.mxu0 0
    %8514 = vmatmul.mubr.bf16.gmra.mrb[0].mxu0 %v8415
    %v8515 = vpop.f32.mrb[0].mxu0
    %v8516 = vadd.f32 0.0, %v8515
    %v8517 = vpop.f32.mrb[0].mxu0
    %v8518 = vpop.f32.mrb[0].mxu0
    %v8519 = vpop.f32.mrb[0].mxu0
    %8520 = vdwg.mxu0
    %v8521 = vadd.f32 %v8413, %v8516
    %v8522 = vld [vmem:[#allocation3 + $0x7] sm:$0x1]
    %v8523 = vpack.c.bf16 %v8522, %v8522
    %s8524 = scalar_lea.vmem %s7, 448
    %v8525 = vld [vmem:[%s8524] sm:$0xf]
    %v8526 = vld [vmem:[%s8524 + $0x4] sm:$0xf]
    %v8527 = vld [vmem:[%s8524 + $0x8] sm:$0xf]
    %v8528 = vld [vmem:[%s8524 + $0xc] sm:$0xf]
    %v8529 = vld [vmem:[%s8524 + $0x10] sm:$0xf]
    %v8530 = vld [vmem:[%s8524 + $0x14] sm:$0xf]
    %v8531 = vld [vmem:[%s8524 + $0x18] sm:$0xf]
    %v8532 = vld [vmem:[%s8524 + $0x1c] sm:$0xf]
    %v8533 = vld [vmem:[%s8524 + $0x20] sm:$0xf]
    %v8534 = vld [vmem:[%s8524 + $0x24] sm:$0xf]
    %v8535 = vld [vmem:[%s8524 + $0x28] sm:$0xf]
    %v8536 = vld [vmem:[%s8524 + $0x2c] sm:$0xf]
    %v8537 = vld [vmem:[%s8524 + $0x30] sm:$0xf]
    %v8538 = vld [vmem:[%s8524 + $0x34] sm:$0xf]
    %v8539 = vld [vmem:[%s8524 + $0x38] sm:$0xf]
    %v8540 = vld [vmem:[%s8524 + $0x3c] sm:$0xf]
    %v8557 = vunpack.c.l.b16 %v8525
    %v8558 = vunpack.c.l.b16 %v8526
    %v8559 = vunpack.c.l.b16 %v8527
    %v8560 = vunpack.c.l.b16 %v8528
    %v8561 = vunpack.c.l.b16 %v8529
    %v8562 = vunpack.c.l.b16 %v8530
    %v8563 = vunpack.c.l.b16 %v8531
    %v8564 = vunpack.c.l.b16 %v8532
    %v8565 = vunpack.c.l.b16 %v8533
    %v8566 = vunpack.c.l.b16 %v8534
    %v8567 = vunpack.c.l.b16 %v8535
    %v8568 = vunpack.c.l.b16 %v8536
    %v8569 = vunpack.c.l.b16 %v8537
    %v8570 = vunpack.c.l.b16 %v8538
    %v8571 = vunpack.c.l.b16 %v8539
    %v8572 = vunpack.c.l.b16 %v8540
    %v8573 = vpack.c.b16 %v8558, %v8557
    %v8574 = vpack.c.b16 %v8560, %v8559
    %v8575 = vpack.c.b16 %v8562, %v8561
    %v8576 = vpack.c.b16 %v8564, %v8563
    %v8577 = vpack.c.b16 %v8566, %v8565
    %v8578 = vpack.c.b16 %v8568, %v8567
    %v8579 = vpack.c.b16 %v8570, %v8569
    %v8580 = vpack.c.b16 %v8572, %v8571
    %8589 = vmatprep.subr.bf16.mxu0 0
    %8590 = vmatpush1.bf16.msra.mxu0 %v8573
    %8591 = vmatprep.subr.bf16.mxu0 0
    %8592 = vmatpush1.bf16.msra.mxu0 %v8574
    %8593 = vmatprep.subr.bf16.mxu0 0
    %8594 = vmatpush1.bf16.msra.mxu0 %v8575
    %8595 = vmatprep.subr.bf16.mxu0 0
    %8596 = vmatpush1.bf16.msra.mxu0 %v8576
    %8597 = vmatprep.subr.bf16.mxu0 0
    %8598 = vmatpush1.bf16.msra.mxu0 %v8577
    %8599 = vmatprep.subr.bf16.mxu0 0
    %8600 = vmatpush1.bf16.msra.mxu0 %v8578
    %8601 = vmatprep.subr.bf16.mxu0 0
    %8602 = vmatpush1.bf16.msra.mxu0 %v8579
    %8603 = vmatprep.subr.bf16.mxu0 0
    %8604 = vmatpush1.bf16.msra.mxu0 %v8580
    %8605 = vmatprep.subr.bf16.mxu0 0
    %8606 = vmatpush1.bf16.msra.mxu0 0
    %8607 = vmatprep.subr.bf16.mxu0 0
    %8608 = vmatpush1.bf16.msra.mxu0 0
    %8609 = vmatprep.subr.bf16.mxu0 0
    %8610 = vmatpush1.bf16.msra.mxu0 0
    %8611 = vmatprep.subr.bf16.mxu0 0
    %8612 = vmatpush1.bf16.msra.mxu0 0
    %8613 = vmatprep.subr.bf16.mxu0 0
    %8614 = vmatpush1.bf16.msra.mxu0 0
    %8615 = vmatprep.subr.bf16.mxu0 0
    %8616 = vmatpush1.bf16.msra.mxu0 0
    %8617 = vmatprep.subr.bf16.mxu0 0
    %8618 = vmatpush1.bf16.msra.mxu0 0
    %8619 = vmatprep.subr.bf16.mxu0 0
    %8620 = vmatpush1.bf16.msra.mxu0 0
    %8621 = vmatprep.mubr.bf16.mxu0 0
    %8622 = vmatmul.mubr.bf16.gmra.mrb[0].mxu0 %v8523
    %v8623 = vpop.f32.mrb[0].mxu0
    %v8624 = vadd.f32 0.0, %v8623
    %v8625 = vpop.f32.mrb[0].mxu0
    %v8626 = vpop.f32.mrb[0].mxu0
    %v8627 = vpop.f32.mrb[0].mxu0
    %8628 = vdwg.mxu0
    %v8629 = vadd.f32 %v8521, %v8624
    %v8630 = vld [vmem:[#allocation3 + $0x8] sm:$0x1]
    %v8631 = vpack.c.bf16 %v8630, %v8630
    %s8632 = scalar_lea.vmem %s7, 512
    %v8633 = vld [vmem:[%s8632] sm:$0xf]
    %v8634 = vld [vmem:[%s8632 + $0x4] sm:$0xf]
    %v8635 = vld [vmem:[%s8632 + $0x8] sm:$0xf]
    %v8636 = vld [vmem:[%s8632 + $0xc] sm:$0xf]
    %v8637 = vld [vmem:[%s8632 + $0x10] sm:$0xf]
    %v8638 = vld [vmem:[%s8632 + $0x14] sm:$0xf]
    %v8639 = vld [vmem:[%s8632 + $0x18] sm:$0xf]
    %v8640 = vld [vmem:[%s8632 + $0x1c] sm:$0xf]
    %v8641 = vld [vmem:[%s8632 + $0x20] sm:$0xf]
    %v8642 = vld [vmem:[%s8632 + $0x24] sm:$0xf]
    %v8643 = vld [vmem:[%s8632 + $0x28] sm:$0xf]
    %v8644 = vld [vmem:[%s8632 + $0x2c] sm:$0xf]
    %v8645 = vld [vmem:[%s8632 + $0x30] sm:$0xf]
    %v8646 = vld [vmem:[%s8632 + $0x34] sm:$0xf]
    %v8647 = vld [vmem:[%s8632 + $0x38] sm:$0xf]
    %v8648 = vld [vmem:[%s8632 + $0x3c] sm:$0xf]
    %v8665 = vunpack.c.l.b16 %v8633
    %v8666 = vunpack.c.l.b16 %v8634
    %v8667 = vunpack.c.l.b16 %v8635
    %v8668 = vunpack.c.l.b16 %v8636
    %v8669 = vunpack.c.l.b16 %v8637
    %v8670 = vunpack.c.l.b16 %v8638
    %v8671 = vunpack.c.l.b16 %v8639
    %v8672 = vunpack.c.l.b16 %v8640
    %v8673 = vunpack.c.l.b16 %v8641
    %v8674 = vunpack.c.l.b16 %v8642
    %v8675 = vunpack.c.l.b16 %v8643
    %v8676 = vunpack.c.l.b16 %v8644
    %v8677 = vunpack.c.l.b16 %v8645
    %v8678 = vunpack.c.l.b16 %v8646
    %v8679 = vunpack.c.l.b16 %v8647
    %v8680 = vunpack.c.l.b16 %v8648
    %v8681 = vpack.c.b16 %v8666, %v8665
    %v8682 = vpack.c.b16 %v8668, %v8667
    %v8683 = vpack.c.b16 %v8670, %v8669
    %v8684 = vpack.c.b16 %v8672, %v8671
    %v8685 = vpack.c.b16 %v8674, %v8673
    %v8686 = vpack.c.b16 %v8676, %v8675
    %v8687 = vpack.c.b16 %v8678, %v8677
    %v8688 = vpack.c.b16 %v8680, %v8679
    %8697 = vmatprep.subr.bf16.mxu0 0
    %8698 = vmatpush1.bf16.msra.mxu0 %v8681
    %8699 = vmatprep.subr.bf16.mxu0 0
    %8700 = vmatpush1.bf16.msra.mxu0 %v8682
    %8701 = vmatprep.subr.bf16.mxu0 0
    %8702 = vmatpush1.bf16.msra.mxu0 %v8683
    %8703 = vmatprep.subr.bf16.mxu0 0
    %8704 = vmatpush1.bf16.msra.mxu0 %v8684
    %8705 = vmatprep.subr.bf16.mxu0 0
    %8706 = vmatpush1.bf16.msra.mxu0 %v8685
    %8707 = vmatprep.subr.bf16.mxu0 0
    %8708 = vmatpush1.bf16.msra.mxu0 %v8686
    %8709 = vmatprep.subr.bf16.mxu0 0
    %8710 = vmatpush1.bf16.msra.mxu0 %v8687
    %8711 = vmatprep.subr.bf16.mxu0 0
    %8712 = vmatpush1.bf16.msra.mxu0 %v8688
    %8713 = vmatprep.subr.bf16.mxu0 0
    %8714 = vmatpush1.bf16.msra.mxu0 0
    %8715 = vmatprep.subr.bf16.mxu0 0
    %8716 = vmatpush1.bf16.msra.mxu0 0
    %8717 = vmatprep.subr.bf16.mxu0 0
    %8718 = vmatpush1.bf16.msra.mxu0 0
    %8719 = vmatprep.subr.bf16.mxu0 0
    %8720 = vmatpush1.bf16.msra.mxu0 0
    %8721 = vmatprep.subr.bf16.mxu0 0
    %8722 = vmatpush1.bf16.msra.mxu0 0
    %8723 = vmatprep.subr.bf16.mxu0 0
    %8724 = vmatpush1.bf16.msra.mxu0 0
    %8725 = vmatprep.subr.bf16.mxu0 0
    %8726 = vmatpush1.bf16.msra.mxu0 0
    %8727 = vmatprep.subr.bf16.mxu0 0
    %8728 = vmatpush1.bf16.msra.mxu0 0
    %8729 = vmatprep.mubr.bf16.mxu0 0
    %8730 = vmatmul.mubr.bf16.gmra.mrb[0].mxu0 %v8631
    %v8731 = vpop.f32.mrb[0].mxu0
    %v8732 = vadd.f32 0.0, %v8731
    %v8733 = vpop.f32.mrb[0].mxu0
    %v8734 = vpop.f32.mrb[0].mxu0
    %v8735 = vpop.f32.mrb[0].mxu0
    %8736 = vdwg.mxu0
    %v8737 = vadd.f32 %v8629, %v8732
    %v8738 = vld [vmem:[#allocation3 + $0x9] sm:$0x1]
    %v8739 = vpack.c.bf16 %v8738, %v8738
    %s8740 = scalar_lea.vmem %s7, 576
    %v8741 = vld [vmem:[%s8740] sm:$0xf]
    %v8742 = vld [vmem:[%s8740 + $0x4] sm:$0xf]
    %v8743 = vld [vmem:[%s8740 + $0x8] sm:$0xf]
    %v8744 = vld [vmem:[%s8740 + $0xc] sm:$0xf]
    %v8745 = vld [vmem:[%s8740 + $0x10] sm:$0xf]
    %v8746 = vld [vmem:[%s8740 + $0x14] sm:$0xf]
    %v8747 = vld [vmem:[%s8740 + $0x18] sm:$0xf]
    %v8748 = vld [vmem:[%s8740 + $0x1c] sm:$0xf]
    %v8749 = vld [vmem:[%s8740 + $0x20] sm:$0xf]
    %v8750 = vld [vmem:[%s8740 + $0x24] sm:$0xf]
    %v8751 = vld [vmem:[%s8740 + $0x28] sm:$0xf]
    %v8752 = vld [vmem:[%s8740 + $0x2c] sm:$0xf]
    %v8753 = vld [vmem:[%s8740 + $0x30] sm:$0xf]
    %v8754 = vld [vmem:[%s8740 + $0x34] sm:$0xf]
    %v8755 = vld [vmem:[%s8740 + $0x38] sm:$0xf]
    %v8756 = vld [vmem:[%s8740 + $0x3c] sm:$0xf]
    %v8773 = vunpack.c.l.b16 %v8741
    %v8774 = vunpack.c.l.b16 %v8742
    %v8775 = vunpack.c.l.b16 %v8743
    %v8776 = vunpack.c.l.b16 %v8744
    %v8777 = vunpack.c.l.b16 %v8745
    %v8778 = vunpack.c.l.b16 %v8746
    %v8779 = vunpack.c.l.b16 %v8747
    %v8780 = vunpack.c.l.b16 %v8748
    %v8781 = vunpack.c.l.b16 %v8749
    %v8782 = vunpack.c.l.b16 %v8750
    %v8783 = vunpack.c.l.b16 %v8751
    %v8784 = vunpack.c.l.b16 %v8752
    %v8785 = vunpack.c.l.b16 %v8753
    %v8786 = vunpack.c.l.b16 %v8754
    %v8787 = vunpack.c.l.b16 %v8755
    %v8788 = vunpack.c.l.b16 %v8756
    %v8789 = vpack.c.b16 %v8774, %v8773
    %v8790 = vpack.c.b16 %v8776, %v8775
    %v8791 = vpack.c.b16 %v8778, %v8777
    %v8792 = vpack.c.b16 %v8780, %v8779
    %v8793 = vpack.c.b16 %v8782, %v8781
    %v8794 = vpack.c.b16 %v8784, %v8783
    %v8795 = vpack.c.b16 %v8786, %v8785
    %v8796 = vpack.c.b16 %v8788, %v8787
    %8805 = vmatprep.subr.bf16.mxu0 0
    %8806 = vmatpush1.bf16.msra.mxu0 %v8789
    %8807 = vmatprep.subr.bf16.mxu0 0
    %8808 = vmatpush1.bf16.msra.mxu0 %v8790
    %8809 = vmatprep.subr.bf16.mxu0 0
    %8810 = vmatpush1.bf16.msra.mxu0 %v8791
    %8811 = vmatprep.subr.bf16.mxu0 0
    %8812 = vmatpush1.bf16.msra.mxu0 %v8792
    %8813 = vmatprep.subr.bf16.mxu0 0
    %8814 = vmatpush1.bf16.msra.mxu0 %v8793
    %8815 = vmatprep.subr.bf16.mxu0 0
    %8816 = vmatpush1.bf16.msra.mxu0 %v8794
    %8817 = vmatprep.subr.bf16.mxu0 0
    %8818 = vmatpush1.bf16.msra.mxu0 %v8795
    %8819 = vmatprep.subr.bf16.mxu0 0
    %8820 = vmatpush1.bf16.msra.mxu0 %v8796
    %8821 = vmatprep.subr.bf16.mxu0 0
    %8822 = vmatpush1.bf16.msra.mxu0 0
    %8823 = vmatprep.subr.bf16.mxu0 0
    %8824 = vmatpush1.bf16.msra.mxu0 0
    %8825 = vmatprep.subr.bf16.mxu0 0
    %8826 = vmatpush1.bf16.msra.mxu0 0
    %8827 = vmatprep.subr.bf16.mxu0 0
    %8828 = vmatpush1.bf16.msra.mxu0 0
    %8829 = vmatprep.subr.bf16.mxu0 0
    %8830 = vmatpush1.bf16.msra.mxu0 0
    %8831 = vmatprep.subr.bf16.mxu0 0
    %8832 = vmatpush1.bf16.msra.mxu0 0
    %8833 = vmatprep.subr.bf16.mxu0 0
    %8834 = vmatpush1.bf16.msra.mxu0 0
    %8835 = vmatprep.subr.bf16.mxu0 0
    %8836 = vmatpush1.bf16.msra.mxu0 0
    %8837 = vmatprep.mubr.bf16.mxu0 0
    %8838 = vmatmul.mubr.bf16.gmra.mrb[0].mxu0 %v8739
    %v8839 = vpop.f32.mrb[0].mxu0
    %v8840 = vadd.f32 0.0, %v8839
    %v8841 = vpop.f32.mrb[0].mxu0
    %v8842 = vpop.f32.mrb[0].mxu0
    %v8843 = vpop.f32.mrb[0].mxu0
    %8844 = vdwg.mxu0
    %v8845 = vadd.f32 %v8737, %v8840
    %v8846 = vld [vmem:[#allocation3 + $0xa] sm:$0x1]
    %v8847 = vpack.c.bf16 %v8846, %v8846
    %s8848 = scalar_lea.vmem %s7, 640
    %v8849 = vld [vmem:[%s8848] sm:$0xf]
    %v8850 = vld [vmem:[%s8848 + $0x4] sm:$0xf]
    %v8851 = vld [vmem:[%s8848 + $0x8] sm:$0xf]
    %v8852 = vld [vmem:[%s8848 + $0xc] sm:$0xf]
    %v8853 = vld [vmem:[%s8848 + $0x10] sm:$0xf]
    %v8854 = vld [vmem:[%s8848 + $0x14] sm:$0xf]
    %v8855 = vld [vmem:[%s8848 + $0x18] sm:$0xf]
    %v8856 = vld [vmem:[%s8848 + $0x1c] sm:$0xf]
    %v8857 = vld [vmem:[%s8848 + $0x20] sm:$0xf]
    %v8858 = vld [vmem:[%s8848 + $0x24] sm:$0xf]
    %v8859 = vld [vmem:[%s8848 + $0x28] sm:$0xf]
    %v8860 = vld [vmem:[%s8848 + $0x2c] sm:$0xf]
    %v8861 = vld [vmem:[%s8848 + $0x30] sm:$0xf]
    %v8862 = vld [vmem:[%s8848 + $0x34] sm:$0xf]
    %v8863 = vld [vmem:[%s8848 + $0x38] sm:$0xf]
    %v8864 = vld [vmem:[%s8848 + $0x3c] sm:$0xf]
    %v8881 = vunpack.c.l.b16 %v8849
    %v8882 = vunpack.c.l.b16 %v8850
    %v8883 = vunpack.c.l.b16 %v8851
    %v8884 = vunpack.c.l.b16 %v8852
    %v8885 = vunpack.c.l.b16 %v8853
    %v8886 = vunpack.c.l.b16 %v8854
    %v8887 = vunpack.c.l.b16 %v8855
    %v8888 = vunpack.c.l.b16 %v8856
    %v8889 = vunpack.c.l.b16 %v8857
    %v8890 = vunpack.c.l.b16 %v8858
    %v8891 = vunpack.c.l.b16 %v8859
    %v8892 = vunpack.c.l.b16 %v8860
    %v8893 = vunpack.c.l.b16 %v8861
    %v8894 = vunpack.c.l.b16 %v8862
    %v8895 = vunpack.c.l.b16 %v8863
    %v8896 = vunpack.c.l.b16 %v8864
    %v8897 = vpack.c.b16 %v8882, %v8881
    %v8898 = vpack.c.b16 %v8884, %v8883
    %v8899 = vpack.c.b16 %v8886, %v8885
    %v8900 = vpack.c.b16 %v8888, %v8887
    %v8901 = vpack.c.b16 %v8890, %v8889
    %v8902 = vpack.c.b16 %v8892, %v8891
    %v8903 = vpack.c.b16 %v8894, %v8893
    %v8904 = vpack.c.b16 %v8896, %v8895
    %8913 = vmatprep.subr.bf16.mxu0 0
    %8914 = vmatpush1.bf16.msra.mxu0 %v8897
    %8915 = vmatprep.subr.bf16.mxu0 0
    %8916 = vmatpush1.bf16.msra.mxu0 %v8898
    %8917 = vmatprep.subr.bf16.mxu0 0
    %8918 = vmatpush1.bf16.msra.mxu0 %v8899
    %8919 = vmatprep.subr.bf16.mxu0 0
    %8920 = vmatpush1.bf16.msra.mxu0 %v8900
    %8921 = vmatprep.subr.bf16.mxu0 0
    %8922 = vmatpush1.bf16.msra.mxu0 %v8901
    %8923 = vmatprep.subr.bf16.mxu0 0
    %8924 = vmatpush1.bf16.msra.mxu0 %v8902
    %8925 = vmatprep.subr.bf16.mxu0 0
    %8926 = vmatpush1.bf16.msra.mxu0 %v8903
    %8927 = vmatprep.subr.bf16.mxu0 0
    %8928 = vmatpush1.bf16.msra.mxu0 %v8904
    %8929 = vmatprep.subr.bf16.mxu0 0
    %8930 = vmatpush1.bf16.msra.mxu0 0
    %8931 = vmatprep.subr.bf16.mxu0 0
    %8932 = vmatpush1.bf16.msra.mxu0 0
    %8933 = vmatprep.subr.bf16.mxu0 0
    %8934 = vmatpush1.bf16.msra.mxu0 0
    %8935 = vmatprep.subr.bf16.mxu0 0
    %8936 = vmatpush1.bf16.msra.mxu0 0
    %8937 = vmatprep.subr.bf16.mxu0 0
    %8938 = vmatpush1.bf16.msra.mxu0 0
    %8939 = vmatprep.subr.bf16.mxu0 0
    %8940 = vmatpush1.bf16.msra.mxu0 0
    %8941 = vmatprep.subr.bf16.mxu0 0
    %8942 = vmatpush1.bf16.msra.mxu0 0
    %8943 = vmatprep.subr.bf16.mxu0 0
    %8944 = vmatpush1.bf16.msra.mxu0 0
    %8945 = vmatprep.mubr.bf16.mxu0 0
    %8946 = vmatmul.mubr.bf16.gmra.mrb[0].mxu0 %v8847
    %v8947 = vpop.f32.mrb[0].mxu0
    %v8948 = vadd.f32 0.0, %v8947
    %v8949 = vpop.f32.mrb[0].mxu0
    %v8950 = vpop.f32.mrb[0].mxu0
    %v8951 = vpop.f32.mrb[0].mxu0
    %8952 = vdwg.mxu0
    %v8953 = vadd.f32 %v8845, %v8948
    %v8954 = vld [vmem:[#allocation3 + $0xb] sm:$0x1]
    %v8955 = vpack.c.bf16 %v8954, %v8954
    %s8956 = scalar_lea.vmem %s7, 704
    %v8957 = vld [vmem:[%s8956] sm:$0xf]
    %v8958 = vld [vmem:[%s8956 + $0x4] sm:$0xf]
    %v8959 = vld [vmem:[%s8956 + $0x8] sm:$0xf]
    %v8960 = vld [vmem:[%s8956 + $0xc] sm:$0xf]
    %v8961 = vld [vmem:[%s8956 + $0x10] sm:$0xf]
    %v8962 = vld [vmem:[%s8956 + $0x14] sm:$0xf]
    %v8963 = vld [vmem:[%s8956 + $0x18] sm:$0xf]
    %v8964 = vld [vmem:[%s8956 + $0x1c] sm:$0xf]
    %v8965 = vld [vmem:[%s8956 + $0x20] sm:$0xf]
    %v8966 = vld [vmem:[%s8956 + $0x24] sm:$0xf]
    %v8967 = vld [vmem:[%s8956 + $0x28] sm:$0xf]
    %v8968 = vld [vmem:[%s8956 + $0x2c] sm:$0xf]
    %v8969 = vld [vmem:[%s8956 + $0x30] sm:$0xf]
    %v8970 = vld [vmem:[%s8956 + $0x34] sm:$0xf]
    %v8971 = vld [vmem:[%s8956 + $0x38] sm:$0xf]
    %v8972 = vld [vmem:[%s8956 + $0x3c] sm:$0xf]
    %v8989 = vunpack.c.l.b16 %v8957
    %v8990 = vunpack.c.l.b16 %v8958
    %v8991 = vunpack.c.l.b16 %v8959
    %v8992 = vunpack.c.l.b16 %v8960
    %v8993 = vunpack.c.l.b16 %v8961
    %v8994 = vunpack.c.l.b16 %v8962
    %v8995 = vunpack.c.l.b16 %v8963
    %v8996 = vunpack.c.l.b16 %v8964
    %v8997 = vunpack.c.l.b16 %v8965
    %v8998 = vunpack.c.l.b16 %v8966
    %v8999 = vunpack.c.l.b16 %v8967
    %v9000 = vunpack.c.l.b16 %v8968
    %v9001 = vunpack.c.l.b16 %v8969
    %v9002 = vunpack.c.l.b16 %v8970
    %v9003 = vunpack.c.l.b16 %v8971
    %v9004 = vunpack.c.l.b16 %v8972
    %v9005 = vpack.c.b16 %v8990, %v8989
    %v9006 = vpack.c.b16 %v8992, %v8991
    %v9007 = vpack.c.b16 %v8994, %v8993
    %v9008 = vpack.c.b16 %v8996, %v8995
    %v9009 = vpack.c.b16 %v8998, %v8997
    %v9010 = vpack.c.b16 %v9000, %v8999
    %v9011 = vpack.c.b16 %v9002, %v9001
    %v9012 = vpack.c.b16 %v9004, %v9003
    %9021 = vmatprep.subr.bf16.mxu0 0
    %9022 = vmatpush1.bf16.msra.mxu0 %v9005
    %9023 = vmatprep.subr.bf16.mxu0 0
    %9024 = vmatpush1.bf16.msra.mxu0 %v9006
    %9025 = vmatprep.subr.bf16.mxu0 0
    %9026 = vmatpush1.bf16.msra.mxu0 %v9007
    %9027 = vmatprep.subr.bf16.mxu0 0
    %9028 = vmatpush1.bf16.msra.mxu0 %v9008
    %9029 = vmatprep.subr.bf16.mxu0 0
    %9030 = vmatpush1.bf16.msra.mxu0 %v9009
    %9031 = vmatprep.subr.bf16.mxu0 0
    %9032 = vmatpush1.bf16.msra.mxu0 %v9010
    %9033 = vmatprep.subr.bf16.mxu0 0
    %9034 = vmatpush1.bf16.msra.mxu0 %v9011
    %9035 = vmatprep.subr.bf16.mxu0 0
    %9036 = vmatpush1.bf16.msra.mxu0 %v9012
    %9037 = vmatprep.subr.bf16.mxu0 0
    %9038 = vmatpush1.bf16.msra.mxu0 0
    %9039 = vmatprep.subr.bf16.mxu0 0
    %9040 = vmatpush1.bf16.msra.mxu0 0
    %9041 = vmatprep.subr.bf16.mxu0 0
    %9042 = vmatpush1.bf16.msra.mxu0 0
    %9043 = vmatprep.subr.bf16.mxu0 0
    %9044 = vmatpush1.bf16.msra.mxu0 0
    %9045 = vmatprep.subr.bf16.mxu0 0
    %9046 = vmatpush1.bf16.msra.mxu0 0
    %9047 = vmatprep.subr.bf16.mxu0 0
    %9048 = vmatpush1.bf16.msra.mxu0 0
    %9049 = vmatprep.subr.bf16.mxu0 0
    %9050 = vmatpush1.bf16.msra.mxu0 0
    %9051 = vmatprep.subr.bf16.mxu0 0
    %9052 = vmatpush1.bf16.msra.mxu0 0
    %9053 = vmatprep.mubr.bf16.mxu0 0
    %9054 = vmatmul.mubr.bf16.gmra.mrb[0].mxu0 %v8955
    %v9055 = vpop.f32.mrb[0].mxu0
    %v9056 = vadd.f32 0.0, %v9055
    %v9057 = vpop.f32.mrb[0].mxu0
    %v9058 = vpop.f32.mrb[0].mxu0
    %v9059 = vpop.f32.mrb[0].mxu0
    %9060 = vdwg.mxu0
    %v9061 = vadd.f32 %v8953, %v9056
    %v9062 = vld [vmem:[#allocation3 + $0xc] sm:$0x1]
    %v9063 = vpack.c.bf16 %v9062, %v9062
    %s9064 = scalar_lea.vmem %s7, 768
    %v9065 = vld [vmem:[%s9064] sm:$0xf]
    %v9066 = vld [vmem:[%s9064 + $0x4] sm:$0xf]
    %v9067 = vld [vmem:[%s9064 + $0x8] sm:$0xf]
    %v9068 = vld [vmem:[%s9064 + $0xc] sm:$0xf]
    %v9069 = vld [vmem:[%s9064 + $0x10] sm:$0xf]
    %v9070 = vld [vmem:[%s9064 + $0x14] sm:$0xf]
    %v9071 = vld [vmem:[%s9064 + $0x18] sm:$0xf]
    %v9072 = vld [vmem:[%s9064 + $0x1c] sm:$0xf]
    %v9073 = vld [vmem:[%s9064 + $0x20] sm:$0xf]
    %v9074 = vld [vmem:[%s9064 + $0x24] sm:$0xf]
    %v9075 = vld [vmem:[%s9064 + $0x28] sm:$0xf]
    %v9076 = vld [vmem:[%s9064 + $0x2c] sm:$0xf]
    %v9077 = vld [vmem:[%s9064 + $0x30] sm:$0xf]
    %v9078 = vld [vmem:[%s9064 + $0x34] sm:$0xf]
    %v9079 = vld [vmem:[%s9064 + $0x38] sm:$0xf]
    %v9080 = vld [vmem:[%s9064 + $0x3c] sm:$0xf]
    %v9097 = vunpack.c.l.b16 %v9065
    %v9098 = vunpack.c.l.b16 %v9066
    %v9099 = vunpack.c.l.b16 %v9067
    %v9100 = vunpack.c.l.b16 %v9068
    %v9101 = vunpack.c.l.b16 %v9069
    %v9102 = vunpack.c.l.b16 %v9070
    %v9103 = vunpack.c.l.b16 %v9071
    %v9104 = vunpack.c.l.b16 %v9072
    %v9105 = vunpack.c.l.b16 %v9073
    %v9106 = vunpack.c.l.b16 %v9074
    %v9107 = vunpack.c.l.b16 %v9075
    %v9108 = vunpack.c.l.b16 %v9076
    %v9109 = vunpack.c.l.b16 %v9077
    %v9110 = vunpack.c.l.b16 %v9078
    %v9111 = vunpack.c.l.b16 %v9079
    %v9112 = vunpack.c.l.b16 %v9080
    %v9113 = vpack.c.b16 %v9098, %v9097
    %v9114 = vpack.c.b16 %v9100, %v9099
    %v9115 = vpack.c.b16 %v9102, %v9101
    %v9116 = vpack.c.b16 %v9104, %v9103
    %v9117 = vpack.c.b16 %v9106, %v9105
    %v9118 = vpack.c.b16 %v9108, %v9107
    %v9119 = vpack.c.b16 %v9110, %v9109
    %v9120 = vpack.c.b16 %v9112, %v9111
    %9129 = vmatprep.subr.bf16.mxu0 0
    %9130 = vmatpush1.bf16.msra.mxu0 %v9113
    %9131 = vmatprep.subr.bf16.mxu0 0
    %9132 = vmatpush1.bf16.msra.mxu0 %v9114
    %9133 = vmatprep.subr.bf16.mxu0 0
    %9134 = vmatpush1.bf16.msra.mxu0 %v9115
    %9135 = vmatprep.subr.bf16.mxu0 0
    %9136 = vmatpush1.bf16.msra.mxu0 %v9116
    %9137 = vmatprep.subr.bf16.mxu0 0
    %9138 = vmatpush1.bf16.msra.mxu0 %v9117
    %9139 = vmatprep.subr.bf16.mxu0 0
    %9140 = vmatpush1.bf16.msra.mxu0 %v9118
    %9141 = vmatprep.subr.bf16.mxu0 0
    %9142 = vmatpush1.bf16.msra.mxu0 %v9119
    %9143 = vmatprep.subr.bf16.mxu0 0
    %9144 = vmatpush1.bf16.msra.mxu0 %v9120
    %9145 = vmatprep.subr.bf16.mxu0 0
    %9146 = vmatpush1.bf16.msra.mxu0 0
    %9147 = vmatprep.subr.bf16.mxu0 0
    %9148 = vmatpush1.bf16.msra.mxu0 0
    %9149 = vmatprep.subr.bf16.mxu0 0
    %9150 = vmatpush1.bf16.msra.mxu0 0
    %9151 = vmatprep.subr.bf16.mxu0 0
    %9152 = vmatpush1.bf16.msra.mxu0 0
    %9153 = vmatprep.subr.bf16.mxu0 0
    %9154 = vmatpush1.bf16.msra.mxu0 0
    %9155 = vmatprep.subr.bf16.mxu0 0
    %9156 = vmatpush1.bf16.msra.mxu0 0
    %9157 = vmatprep.subr.bf16.mxu0 0
    %9158 = vmatpush1.bf16.msra.mxu0 0
    %9159 = vmatprep.subr.bf16.mxu0 0
    %9160 = vmatpush1.bf16.msra.mxu0 0
    %9161 = vmatprep.mubr.bf16.mxu0 0
    %9162 = vmatmul.mubr.bf16.gmra.mrb[0].mxu0 %v9063
    %v9163 = vpop.f32.mrb[0].mxu0
    %v9164 = vadd.f32 0.0, %v9163
    %v9165 = vpop.f32.mrb[0].mxu0
    %v9166 = vpop.f32.mrb[0].mxu0
    %v9167 = vpop.f32.mrb[0].mxu0
    %9168 = vdwg.mxu0
    %v9169 = vadd.f32 %v9061, %v9164
    %v9170 = vld [vmem:[#allocation3 + $0xd] sm:$0x1]
    %v9171 = vpack.c.bf16 %v9170, %v9170
    %s9172 = scalar_lea.vmem %s7, 832
    %v9173 = vld [vmem:[%s9172] sm:$0xf]
    %v9174 = vld [vmem:[%s9172 + $0x4] sm:$0xf]
    %v9175 = vld [vmem:[%s9172 + $0x8] sm:$0xf]
    %v9176 = vld [vmem:[%s9172 + $0xc] sm:$0xf]
    %v9177 = vld [vmem:[%s9172 + $0x10] sm:$0xf]
    %v9178 = vld [vmem:[%s9172 + $0x14] sm:$0xf]
    %v9179 = vld [vmem:[%s9172 + $0x18] sm:$0xf]
    %v9180 = vld [vmem:[%s9172 + $0x1c] sm:$0xf]
    %v9181 = vld [vmem:[%s9172 + $0x20] sm:$0xf]
    %v9182 = vld [vmem:[%s9172 + $0x24] sm:$0xf]
    %v9183 = vld [vmem:[%s9172 + $0x28] sm:$0xf]
    %v9184 = vld [vmem:[%s9172 + $0x2c] sm:$0xf]
    %v9185 = vld [vmem:[%s9172 + $0x30] sm:$0xf]
    %v9186 = vld [vmem:[%s9172 + $0x34] sm:$0xf]
    %v9187 = vld [vmem:[%s9172 + $0x38] sm:$0xf]
    %v9188 = vld [vmem:[%s9172 + $0x3c] sm:$0xf]
    %v9205 = vunpack.c.l.b16 %v9173
    %v9206 = vunpack.c.l.b16 %v9174
    %v9207 = vunpack.c.l.b16 %v9175
    %v9208 = vunpack.c.l.b16 %v9176
    %v9209 = vunpack.c.l.b16 %v9177
    %v9210 = vunpack.c.l.b16 %v9178
    %v9211 = vunpack.c.l.b16 %v9179
    %v9212 = vunpack.c.l.b16 %v9180
    %v9213 = vunpack.c.l.b16 %v9181
    %v9214 = vunpack.c.l.b16 %v9182
    %v9215 = vunpack.c.l.b16 %v9183
    %v9216 = vunpack.c.l.b16 %v9184
    %v9217 = vunpack.c.l.b16 %v9185
    %v9218 = vunpack.c.l.b16 %v9186
    %v9219 = vunpack.c.l.b16 %v9187
    %v9220 = vunpack.c.l.b16 %v9188
    %v9221 = vpack.c.b16 %v9206, %v9205
    %v9222 = vpack.c.b16 %v9208, %v9207
    %v9223 = vpack.c.b16 %v9210, %v9209
    %v9224 = vpack.c.b16 %v9212, %v9211
    %v9225 = vpack.c.b16 %v9214, %v9213
    %v9226 = vpack.c.b16 %v9216, %v9215
    %v9227 = vpack.c.b16 %v9218, %v9217
    %v9228 = vpack.c.b16 %v9220, %v9219
    %9237 = vmatprep.subr.bf16.mxu0 0
    %9238 = vmatpush1.bf16.msra.mxu0 %v9221
    %9239 = vmatprep.subr.bf16.mxu0 0
    %9240 = vmatpush1.bf16.msra.mxu0 %v9222
    %9241 = vmatprep.subr.bf16.mxu0 0
    %9242 = vmatpush1.bf16.msra.mxu0 %v9223
    %9243 = vmatprep.subr.bf16.mxu0 0
    %9244 = vmatpush1.bf16.msra.mxu0 %v9224
    %9245 = vmatprep.subr.bf16.mxu0 0
    %9246 = vmatpush1.bf16.msra.mxu0 %v9225
    %9247 = vmatprep.subr.bf16.mxu0 0
    %9248 = vmatpush1.bf16.msra.mxu0 %v9226
    %9249 = vmatprep.subr.bf16.mxu0 0
    %9250 = vmatpush1.bf16.msra.mxu0 %v9227
    %9251 = vmatprep.subr.bf16.mxu0 0
    %9252 = vmatpush1.bf16.msra.mxu0 %v9228
    %9253 = vmatprep.subr.bf16.mxu0 0
    %9254 = vmatpush1.bf16.msra.mxu0 0
    %9255 = vmatprep.subr.bf16.mxu0 0
    %9256 = vmatpush1.bf16.msra.mxu0 0
    %9257 = vmatprep.subr.bf16.mxu0 0
    %9258 = vmatpush1.bf16.msra.mxu0 0
    %9259 = vmatprep.subr.bf16.mxu0 0
    %9260 = vmatpush1.bf16.msra.mxu0 0
    %9261 = vmatprep.subr.bf16.mxu0 0
    %9262 = vmatpush1.bf16.msra.mxu0 0
    %9263 = vmatprep.subr.bf16.mxu0 0
    %9264 = vmatpush1.bf16.msra.mxu0 0
    %9265 = vmatprep.subr.bf16.mxu0 0
    %9266 = vmatpush1.bf16.msra.mxu0 0
    %9267 = vmatprep.subr.bf16.mxu0 0
    %9268 = vmatpush1.bf16.msra.mxu0 0
    %9269 = vmatprep.mubr.bf16.mxu0 0
    %9270 = vmatmul.mubr.bf16.gmra.mrb[0].mxu0 %v9171
    %v9271 = vpop.f32.mrb[0].mxu0
    %v9272 = vadd.f32 0.0, %v9271
    %v9273 = vpop.f32.mrb[0].mxu0
    %v9274 = vpop.f32.mrb[0].mxu0
    %v9275 = vpop.f32.mrb[0].mxu0
    %9276 = vdwg.mxu0
    %v9277 = vadd.f32 %v9169, %v9272
    %v9278 = vld [vmem:[#allocation3 + $0xe] sm:$0x1]
    %v9279 = vpack.c.bf16 %v9278, %v9278
    %s9280 = scalar_lea.vmem %s7, 896
    %v9281 = vld [vmem:[%s9280] sm:$0xf]
    %v9282 = vld [vmem:[%s9280 + $0x4] sm:$0xf]
    %v9283 = vld [vmem:[%s9280 + $0x8] sm:$0xf]
    %v9284 = vld [vmem:[%s9280 + $0xc] sm:$0xf]
    %v9285 = vld [vmem:[%s9280 + $0x10] sm:$0xf]
    %v9286 = vld [vmem:[%s9280 + $0x14] sm:$0xf]
    %v9287 = vld [vmem:[%s9280 + $0x18] sm:$0xf]
    %v9288 = vld [vmem:[%s9280 + $0x1c] sm:$0xf]
    %v9289 = vld [vmem:[%s9280 + $0x20] sm:$0xf]
    %v9290 = vld [vmem:[%s9280 + $0x24] sm:$0xf]
    %v9291 = vld [vmem:[%s9280 + $0x28] sm:$0xf]
    %v9292 = vld [vmem:[%s9280 + $0x2c] sm:$0xf]
    %v9293 = vld [vmem:[%s9280 + $0x30] sm:$0xf]
    %v9294 = vld [vmem:[%s9280 + $0x34] sm:$0xf]
    %v9295 = vld [vmem:[%s9280 + $0x38] sm:$0xf]
    %v9296 = vld [vmem:[%s9280 + $0x3c] sm:$0xf]
    %v9313 = vunpack.c.l.b16 %v9281
    %v9314 = vunpack.c.l.b16 %v9282
    %v9315 = vunpack.c.l.b16 %v9283
    %v9316 = vunpack.c.l.b16 %v9284
    %v9317 = vunpack.c.l.b16 %v9285
    %v9318 = vunpack.c.l.b16 %v9286
    %v9319 = vunpack.c.l.b16 %v9287
    %v9320 = vunpack.c.l.b16 %v9288
    %v9321 = vunpack.c.l.b16 %v9289
    %v9322 = vunpack.c.l.b16 %v9290
    %v9323 = vunpack.c.l.b16 %v9291
    %v9324 = vunpack.c.l.b16 %v9292
    %v9325 = vunpack.c.l.b16 %v9293
    %v9326 = vunpack.c.l.b16 %v9294
    %v9327 = vunpack.c.l.b16 %v9295
    %v9328 = vunpack.c.l.b16 %v9296
    %v9329 = vpack.c.b16 %v9314, %v9313
    %v9330 = vpack.c.b16 %v9316, %v9315
    %v9331 = vpack.c.b16 %v9318, %v9317
    %v9332 = vpack.c.b16 %v9320, %v9319
    %v9333 = vpack.c.b16 %v9322, %v9321
    %v9334 = vpack.c.b16 %v9324, %v9323
    %v9335 = vpack.c.b16 %v9326, %v9325
    %v9336 = vpack.c.b16 %v9328, %v9327
    %9345 = vmatprep.subr.bf16.mxu0 0
    %9346 = vmatpush1.bf16.msra.mxu0 %v9329
    %9347 = vmatprep.subr.bf16.mxu0 0
    %9348 = vmatpush1.bf16.msra.mxu0 %v9330
    %9349 = vmatprep.subr.bf16.mxu0 0
    %9350 = vmatpush1.bf16.msra.mxu0 %v9331
    %9351 = vmatprep.subr.bf16.mxu0 0
    %9352 = vmatpush1.bf16.msra.mxu0 %v9332
    %9353 = vmatprep.subr.bf16.mxu0 0
    %9354 = vmatpush1.bf16.msra.mxu0 %v9333
    %9355 = vmatprep.subr.bf16.mxu0 0
    %9356 = vmatpush1.bf16.msra.mxu0 %v9334
    %9357 = vmatprep.subr.bf16.mxu0 0
    %9358 = vmatpush1.bf16.msra.mxu0 %v9335
    %9359 = vmatprep.subr.bf16.mxu0 0
    %9360 = vmatpush1.bf16.msra.mxu0 %v9336
    %9361 = vmatprep.subr.bf16.mxu0 0
    %9362 = vmatpush1.bf16.msra.mxu0 0
    %9363 = vmatprep.subr.bf16.mxu0 0
    %9364 = vmatpush1.bf16.msra.mxu0 0
    %9365 = vmatprep.subr.bf16.mxu0 0
    %9366 = vmatpush1.bf16.msra.mxu0 0
    %9367 = vmatprep.subr.bf16.mxu0 0
    %9368 = vmatpush1.bf16.msra.mxu0 0
    %9369 = vmatprep.subr.bf16.mxu0 0
    %9370 = vmatpush1.bf16.msra.mxu0 0
    %9371 = vmatprep.subr.bf16.mxu0 0
    %9372 = vmatpush1.bf16.msra.mxu0 0
    %9373 = vmatprep.subr.bf16.mxu0 0
    %9374 = vmatpush1.bf16.msra.mxu0 0
    %9375 = vmatprep.subr.bf16.mxu0 0
    %9376 = vmatpush1.bf16.msra.mxu0 0
    %9377 = vmatprep.mubr.bf16.mxu0 0
    %9378 = vmatmul.mubr.bf16.gmra.mrb[0].mxu0 %v9279
    %v9379 = vpop.f32.mrb[0].mxu0
    %v9380 = vadd.f32 0.0, %v9379
    %v9381 = vpop.f32.mrb[0].mxu0
    %v9382 = vpop.f32.mrb[0].mxu0
    %v9383 = vpop.f32.mrb[0].mxu0
    %9384 = vdwg.mxu0
    %v9385 = vadd.f32 %v9277, %v9380
    %v9386 = vld [vmem:[#allocation3 + $0xf] sm:$0x1]
    %v9387 = vpack.c.bf16 %v9386, %v9386
    %s9388 = scalar_lea.vmem %s7, 960
    %v9389 = vld [vmem:[%s9388] sm:$0xf]
    %v9390 = vld [vmem:[%s9388 + $0x4] sm:$0xf]
    %v9391 = vld [vmem:[%s9388 + $0x8] sm:$0xf]
    %v9392 = vld [vmem:[%s9388 + $0xc] sm:$0xf]
    %v9393 = vld [vmem:[%s9388 + $0x10] sm:$0xf]
    %v9394 = vld [vmem:[%s9388 + $0x14] sm:$0xf]
    %v9395 = vld [vmem:[%s9388 + $0x18] sm:$0xf]
    %v9396 = vld [vmem:[%s9388 + $0x1c] sm:$0xf]
    %v9397 = vld [vmem:[%s9388 + $0x20] sm:$0xf]
    %v9398 = vld [vmem:[%s9388 + $0x24] sm:$0xf]
    %v9399 = vld [vmem:[%s9388 + $0x28] sm:$0xf]
    %v9400 = vld [vmem:[%s9388 + $0x2c] sm:$0xf]
    %v9401 = vld [vmem:[%s9388 + $0x30] sm:$0xf]
    %v9402 = vld [vmem:[%s9388 + $0x34] sm:$0xf]
    %v9403 = vld [vmem:[%s9388 + $0x38] sm:$0xf]
    %v9404 = vld [vmem:[%s9388 + $0x3c] sm:$0xf]
    %v9421 = vunpack.c.l.b16 %v9389
    %v9422 = vunpack.c.l.b16 %v9390
    %v9423 = vunpack.c.l.b16 %v9391
    %v9424 = vunpack.c.l.b16 %v9392
    %v9425 = vunpack.c.l.b16 %v9393
    %v9426 = vunpack.c.l.b16 %v9394
    %v9427 = vunpack.c.l.b16 %v9395
    %v9428 = vunpack.c.l.b16 %v9396
    %v9429 = vunpack.c.l.b16 %v9397
    %v9430 = vunpack.c.l.b16 %v9398
    %v9431 = vunpack.c.l.b16 %v9399
    %v9432 = vunpack.c.l.b16 %v9400
    %v9433 = vunpack.c.l.b16 %v9401
    %v9434 = vunpack.c.l.b16 %v9402
    %v9435 = vunpack.c.l.b16 %v9403
    %v9436 = vunpack.c.l.b16 %v9404
    %v9437 = vpack.c.b16 %v9422, %v9421
    %v9438 = vpack.c.b16 %v9424, %v9423
    %v9439 = vpack.c.b16 %v9426, %v9425
    %v9440 = vpack.c.b16 %v9428, %v9427
    %v9441 = vpack.c.b16 %v9430, %v9429
    %v9442 = vpack.c.b16 %v9432, %v9431
    %v9443 = vpack.c.b16 %v9434, %v9433
    %v9444 = vpack.c.b16 %v9436, %v9435
    %9453 = vmatprep.subr.bf16.mxu0 0
    %9454 = vmatpush1.bf16.msra.mxu0 %v9437
    %9455 = vmatprep.subr.bf16.mxu0 0
    %9456 = vmatpush1.bf16.msra.mxu0 %v9438
    %9457 = vmatprep.subr.bf16.mxu0 0
    %9458 = vmatpush1.bf16.msra.mxu0 %v9439
    %9459 = vmatprep.subr.bf16.mxu0 0
    %9460 = vmatpush1.bf16.msra.mxu0 %v9440
    %9461 = vmatprep.subr.bf16.mxu0 0
    %9462 = vmatpush1.bf16.msra.mxu0 %v9441
    %9463 = vmatprep.subr.bf16.mxu0 0
    %9464 = vmatpush1.bf16.msra.mxu0 %v9442
    %9465 = vmatprep.subr.bf16.mxu0 0
    %9466 = vmatpush1.bf16.msra.mxu0 %v9443
    %9467 = vmatprep.subr.bf16.mxu0 0
    %9468 = vmatpush1.bf16.msra.mxu0 %v9444
    %9469 = vmatprep.subr.bf16.mxu0 0
    %9470 = vmatpush1.bf16.msra.mxu0 0
    %9471 = vmatprep.subr.bf16.mxu0 0
    %9472 = vmatpush1.bf16.msra.mxu0 0
    %9473 = vmatprep.subr.bf16.mxu0 0
    %9474 = vmatpush1.bf16.msra.mxu0 0
    %9475 = vmatprep.subr.bf16.mxu0 0
    %9476 = vmatpush1.bf16.msra.mxu0 0
    %9477 = vmatprep.subr.bf16.mxu0 0
    %9478 = vmatpush1.bf16.msra.mxu0 0
    %9479 = vmatprep.subr.bf16.mxu0 0
    %9480 = vmatpush1.bf16.msra.mxu0 0
    %9481 = vmatprep.subr.bf16.mxu0 0
    %9482 = vmatpush1.bf16.msra.mxu0 0
    %9483 = vmatprep.subr.bf16.mxu0 0
    %9484 = vmatpush1.bf16.msra.mxu0 0
    %9485 = vmatprep.mubr.bf16.mxu0 0
    %9486 = vmatmul.mubr.bf16.gmra.mrb[0].mxu0 %v9387
    %v9487 = vpop.f32.mrb[0].mxu0
    %v9488 = vadd.f32 0.0, %v9487
    %v9489 = vpop.f32.mrb[0].mxu0
    %v9490 = vpop.f32.mrb[0].mxu0
    %v9491 = vpop.f32.mrb[0].mxu0
    %9492 = vdwg.mxu0
    %v9493 = vadd.f32 %v9385, %v9488
    %v9494 = vld [vmem:[#allocation3 + $0x10] sm:$0x1]
    %v9495 = vpack.c.bf16 %v9494, %v9494
    %s9496 = scalar_lea.vmem %s7, 1024
    %v9497 = vld [vmem:[%s9496] sm:$0xf]
    %v9498 = vld [vmem:[%s9496 + $0x4] sm:$0xf]
    %v9499 = vld [vmem:[%s9496 + $0x8] sm:$0xf]
    %v9500 = vld [vmem:[%s9496 + $0xc] sm:$0xf]
    %v9501 = vld [vmem:[%s9496 + $0x10] sm:$0xf]
    %v9502 = vld [vmem:[%s9496 + $0x14] sm:$0xf]
    %v9503 = vld [vmem:[%s9496 + $0x18] sm:$0xf]
    %v9504 = vld [vmem:[%s9496 + $0x1c] sm:$0xf]
    %v9505 = vld [vmem:[%s9496 + $0x20] sm:$0xf]
    %v9506 = vld [vmem:[%s9496 + $0x24] sm:$0xf]
    %v9507 = vld [vmem:[%s9496 + $0x28] sm:$0xf]
    %v9508 = vld [vmem:[%s9496 + $0x2c] sm:$0xf]
    %v9509 = vld [vmem:[%s9496 + $0x30] sm:$0xf]
    %v9510 = vld [vmem:[%s9496 + $0x34] sm:$0xf]
    %v9511 = vld [vmem:[%s9496 + $0x38] sm:$0xf]
    %v9512 = vld [vmem:[%s9496 + $0x3c] sm:$0xf]
    %v9529 = vunpack.c.l.b16 %v9497
    %v9530 = vunpack.c.l.b16 %v9498
    %v9531 = vunpack.c.l.b16 %v9499
    %v9532 = vunpack.c.l.b16 %v9500
    %v9533 = vunpack.c.l.b16 %v9501
    %v9534 = vunpack.c.l.b16 %v9502
    %v9535 = vunpack.c.l.b16 %v9503
    %v9536 = vunpack.c.l.b16 %v9504
    %v9537 = vunpack.c.l.b16 %v9505
    %v9538 = vunpack.c.l.b16 %v9506
    %v9539 = vunpack.c.l.b16 %v9507
    %v9540 = vunpack.c.l.b16 %v9508
    %v9541 = vunpack.c.l.b16 %v9509
    %v9542 = vunpack.c.l.b16 %v9510
    %v9543 = vunpack.c.l.b16 %v9511
    %v9544 = vunpack.c.l.b16 %v9512
    %v9545 = vpack.c.b16 %v9530, %v9529
    %v9546 = vpack.c.b16 %v9532, %v9531
    %v9547 = vpack.c.b16 %v9534, %v9533
    %v9548 = vpack.c.b16 %v9536, %v9535
    %v9549 = vpack.c.b16 %v9538, %v9537
    %v9550 = vpack.c.b16 %v9540, %v9539
    %v9551 = vpack.c.b16 %v9542, %v9541
    %v9552 = vpack.c.b16 %v9544, %v9543
    %9561 = vmatprep.subr.bf16.mxu0 0
    %9562 = vmatpush1.bf16.msra.mxu0 %v9545
    %9563 = vmatprep.subr.bf16.mxu0 0
    %9564 = vmatpush1.bf16.msra.mxu0 %v9546
    %9565 = vmatprep.subr.bf16.mxu0 0
    %9566 = vmatpush1.bf16.msra.mxu0 %v9547
    %9567 = vmatprep.subr.bf16.mxu0 0
    %9568 = vmatpush1.bf16.msra.mxu0 %v9548
    %9569 = vmatprep.subr.bf16.mxu0 0
    %9570 = vmatpush1.bf16.msra.mxu0 %v9549
    %9571 = vmatprep.subr.bf16.mxu0 0
    %9572 = vmatpush1.bf16.msra.mxu0 %v9550
    %9573 = vmatprep.subr.bf16.mxu0 0
    %9574 = vmatpush1.bf16.msra.mxu0 %v9551
    %9575 = vmatprep.subr.bf16.mxu0 0
    %9576 = vmatpush1.bf16.msra.mxu0 %v9552
    %9577 = vmatprep.subr.bf16.mxu0 0
    %9578 = vmatpush1.bf16.msra.mxu0 0
    %9579 = vmatprep.subr.bf16.mxu0 0
    %9580 = vmatpush1.bf16.msra.mxu0 0
    %9581 = vmatprep.subr.bf16.mxu0 0
    %9582 = vmatpush1.bf16.msra.mxu0 0
    %9583 = vmatprep.subr.bf16.mxu0 0
    %9584 = vmatpush1.bf16.msra.mxu0 0
    %9585 = vmatprep.subr.bf16.mxu0 0
    %9586 = vmatpush1.bf16.msra.mxu0 0
    %9587 = vmatprep.subr.bf16.mxu0 0
    %9588 = vmatpush1.bf16.msra.mxu0 0
    %9589 = vmatprep.subr.bf16.mxu0 0
    %9590 = vmatpush1.bf16.msra.mxu0 0
    %9591 = vmatprep.subr.bf16.mxu0 0
    %9592 = vmatpush1.bf16.msra.mxu0 0
    %9593 = vmatprep.mubr.bf16.mxu0 0
    %9594 = vmatmul.mubr.bf16.gmra.mrb[0].mxu0 %v9495
    %v9595 = vpop.f32.mrb[0].mxu0
    %v9596 = vadd.f32 0.0, %v9595
    %v9597 = vpop.f32.mrb[0].mxu0
    %v9598 = vpop.f32.mrb[0].mxu0
    %v9599 = vpop.f32.mrb[0].mxu0
    %9600 = vdwg.mxu0
    %v9601 = vadd.f32 %v9493, %v9596
    %v9602 = vld [vmem:[#allocation3 + $0x11] sm:$0x1]
    %v9603 = vpack.c.bf16 %v9602, %v9602
    %s9604 = scalar_lea.vmem %s7, 1088
    %v9605 = vld [vmem:[%s9604] sm:$0xf]
    %v9606 = vld [vmem:[%s9604 + $0x4] sm:$0xf]
    %v9607 = vld [vmem:[%s9604 + $0x8] sm:$0xf]
    %v9608 = vld [vmem:[%s9604 + $0xc] sm:$0xf]
    %v9609 = vld [vmem:[%s9604 + $0x10] sm:$0xf]
    %v9610 = vld [vmem:[%s9604 + $0x14] sm:$0xf]
    %v9611 = vld [vmem:[%s9604 + $0x18] sm:$0xf]
    %v9612 = vld [vmem:[%s9604 + $0x1c] sm:$0xf]
    %v9613 = vld [vmem:[%s9604 + $0x20] sm:$0xf]
    %v9614 = vld [vmem:[%s9604 + $0x24] sm:$0xf]
    %v9615 = vld [vmem:[%s9604 + $0x28] sm:$0xf]
    %v9616 = vld [vmem:[%s9604 + $0x2c] sm:$0xf]
    %v9617 = vld [vmem:[%s9604 + $0x30] sm:$0xf]
    %v9618 = vld [vmem:[%s9604 + $0x34] sm:$0xf]
    %v9619 = vld [vmem:[%s9604 + $0x38] sm:$0xf]
    %v9620 = vld [vmem:[%s9604 + $0x3c] sm:$0xf]
    %v9637 = vunpack.c.l.b16 %v9605
    %v9638 = vunpack.c.l.b16 %v9606
    %v9639 = vunpack.c.l.b16 %v9607
    %v9640 = vunpack.c.l.b16 %v9608
    %v9641 = vunpack.c.l.b16 %v9609
    %v9642 = vunpack.c.l.b16 %v9610
    %v9643 = vunpack.c.l.b16 %v9611
    %v9644 = vunpack.c.l.b16 %v9612
    %v9645 = vunpack.c.l.b16 %v9613
    %v9646 = vunpack.c.l.b16 %v9614
    %v9647 = vunpack.c.l.b16 %v9615
    %v9648 = vunpack.c.l.b16 %v9616
    %v9649 = vunpack.c.l.b16 %v9617
    %v9650 = vunpack.c.l.b16 %v9618
    %v9651 = vunpack.c.l.b16 %v9619
    %v9652 = vunpack.c.l.b16 %v9620
    %v9653 = vpack.c.b16 %v9638, %v9637
    %v9654 = vpack.c.b16 %v9640, %v9639
    %v9655 = vpack.c.b16 %v9642, %v9641
    %v9656 = vpack.c.b16 %v9644, %v9643
    %v9657 = vpack.c.b16 %v9646, %v9645
    %v9658 = vpack.c.b16 %v9648, %v9647
    %v9659 = vpack.c.b16 %v9650, %v9649
    %v9660 = vpack.c.b16 %v9652, %v9651
    %9669 = vmatprep.subr.bf16.mxu0 0
    %9670 = vmatpush1.bf16.msra.mxu0 %v9653
    %9671 = vmatprep.subr.bf16.mxu0 0
    %9672 = vmatpush1.bf16.msra.mxu0 %v9654
    %9673 = vmatprep.subr.bf16.mxu0 0
    %9674 = vmatpush1.bf16.msra.mxu0 %v9655
    %9675 = vmatprep.subr.bf16.mxu0 0
    %9676 = vmatpush1.bf16.msra.mxu0 %v9656
    %9677 = vmatprep.subr.bf16.mxu0 0
    %9678 = vmatpush1.bf16.msra.mxu0 %v9657
    %9679 = vmatprep.subr.bf16.mxu0 0
    %9680 = vmatpush1.bf16.msra.mxu0 %v9658
    %9681 = vmatprep.subr.bf16.mxu0 0
    %9682 = vmatpush1.bf16.msra.mxu0 %v9659
    %9683 = vmatprep.subr.bf16.mxu0 0
    %9684 = vmatpush1.bf16.msra.mxu0 %v9660
    %9685 = vmatprep.subr.bf16.mxu0 0
    %9686 = vmatpush1.bf16.msra.mxu0 0
    %9687 = vmatprep.subr.bf16.mxu0 0
    %9688 = vmatpush1.bf16.msra.mxu0 0
    %9689 = vmatprep.subr.bf16.mxu0 0
    %9690 = vmatpush1.bf16.msra.mxu0 0
    %9691 = vmatprep.subr.bf16.mxu0 0
    %9692 = vmatpush1.bf16.msra.mxu0 0
    %9693 = vmatprep.subr.bf16.mxu0 0
    %9694 = vmatpush1.bf16.msra.mxu0 0
    %9695 = vmatprep.subr.bf16.mxu0 0
    %9696 = vmatpush1.bf16.msra.mxu0 0
    %9697 = vmatprep.subr.bf16.mxu0 0
    %9698 = vmatpush1.bf16.msra.mxu0 0
    %9699 = vmatprep.subr.bf16.mxu0 0
    %9700 = vmatpush1.bf16.msra.mxu0 0
    %9701 = vmatprep.mubr.bf16.mxu0 0
    %9702 = vmatmul.mubr.bf16.gmra.mrb[0].mxu0 %v9603
    %v9703 = vpop.f32.mrb[0].mxu0
    %v9704 = vadd.f32 0.0, %v9703
    %v9705 = vpop.f32.mrb[0].mxu0
    %v9706 = vpop.f32.mrb[0].mxu0
    %v9707 = vpop.f32.mrb[0].mxu0
    %9708 = vdwg.mxu0
    %v9709 = vadd.f32 %v9601, %v9704
    %v9710 = vld [vmem:[#allocation3 + $0x12] sm:$0x1]
    %v9711 = vpack.c.bf16 %v9710, %v9710
    %s9712 = scalar_lea.vmem %s7, 1152
    %v9713 = vld [vmem:[%s9712] sm:$0xf]
    %v9714 = vld [vmem:[%s9712 + $0x4] sm:$0xf]
    %v9715 = vld [vmem:[%s9712 + $0x8] sm:$0xf]
    %v9716 = vld [vmem:[%s9712 + $0xc] sm:$0xf]
    %v9717 = vld [vmem:[%s9712 + $0x10] sm:$0xf]
    %v9718 = vld [vmem:[%s9712 + $0x14] sm:$0xf]
    %v9719 = vld [vmem:[%s9712 + $0x18] sm:$0xf]
    %v9720 = vld [vmem:[%s9712 + $0x1c] sm:$0xf]
    %v9721 = vld [vmem:[%s9712 + $0x20] sm:$0xf]
    %v9722 = vld [vmem:[%s9712 + $0x24] sm:$0xf]
    %v9723 = vld [vmem:[%s9712 + $0x28] sm:$0xf]
    %v9724 = vld [vmem:[%s9712 + $0x2c] sm:$0xf]
    %v9725 = vld [vmem:[%s9712 + $0x30] sm:$0xf]
    %v9726 = vld [vmem:[%s9712 + $0x34] sm:$0xf]
    %v9727 = vld [vmem:[%s9712 + $0x38] sm:$0xf]
    %v9728 = vld [vmem:[%s9712 + $0x3c] sm:$0xf]
    %v9745 = vunpack.c.l.b16 %v9713
    %v9746 = vunpack.c.l.b16 %v9714
    %v9747 = vunpack.c.l.b16 %v9715
    %v9748 = vunpack.c.l.b16 %v9716
    %v9749 = vunpack.c.l.b16 %v9717
    %v9750 = vunpack.c.l.b16 %v9718
    %v9751 = vunpack.c.l.b16 %v9719
    %v9752 = vunpack.c.l.b16 %v9720
    %v9753 = vunpack.c.l.b16 %v9721
    %v9754 = vunpack.c.l.b16 %v9722
    %v9755 = vunpack.c.l.b16 %v9723
    %v9756 = vunpack.c.l.b16 %v9724
    %v9757 = vunpack.c.l.b16 %v9725
    %v9758 = vunpack.c.l.b16 %v9726
    %v9759 = vunpack.c.l.b16 %v9727
    %v9760 = vunpack.c.l.b16 %v9728
    %v9761 = vpack.c.b16 %v9746, %v9745
    %v9762 = vpack.c.b16 %v9748, %v9747
    %v9763 = vpack.c.b16 %v9750, %v9749
    %v9764 = vpack.c.b16 %v9752, %v9751
    %v9765 = vpack.c.b16 %v9754, %v9753
    %v9766 = vpack.c.b16 %v9756, %v9755
    %v9767 = vpack.c.b16 %v9758, %v9757
    %v9768 = vpack.c.b16 %v9760, %v9759
    %9777 = vmatprep.subr.bf16.mxu0 0
    %9778 = vmatpush1.bf16.msra.mxu0 %v9761
    %9779 = vmatprep.subr.bf16.mxu0 0
    %9780 = vmatpush1.bf16.msra.mxu0 %v9762
    %9781 = vmatprep.subr.bf16.mxu0 0
    %9782 = vmatpush1.bf16.msra.mxu0 %v9763
    %9783 = vmatprep.subr.bf16.mxu0 0
    %9784 = vmatpush1.bf16.msra.mxu0 %v9764
    %9785 = vmatprep.subr.bf16.mxu0 0
    %9786 = vmatpush1.bf16.msra.mxu0 %v9765
    %9787 = vmatprep.subr.bf16.mxu0 0
    %9788 = vmatpush1.bf16.msra.mxu0 %v9766
    %9789 = vmatprep.subr.bf16.mxu0 0
    %9790 = vmatpush1.bf16.msra.mxu0 %v9767
    %9791 = vmatprep.subr.bf16.mxu0 0
    %9792 = vmatpush1.bf16.msra.mxu0 %v9768
    %9793 = vmatprep.subr.bf16.mxu0 0
    %9794 = vmatpush1.bf16.msra.mxu0 0
    %9795 = vmatprep.subr.bf16.mxu0 0
    %9796 = vmatpush1.bf16.msra.mxu0 0
    %9797 = vmatprep.subr.bf16.mxu0 0
    %9798 = vmatpush1.bf16.msra.mxu0 0
    %9799 = vmatprep.subr.bf16.mxu0 0
    %9800 = vmatpush1.bf16.msra.mxu0 0
    %9801 = vmatprep.subr.bf16.mxu0 0
    %9802 = vmatpush1.bf16.msra.mxu0 0
    %9803 = vmatprep.subr.bf16.mxu0 0
    %9804 = vmatpush1.bf16.msra.mxu0 0
    %9805 = vmatprep.subr.bf16.mxu0 0
    %9806 = vmatpush1.bf16.msra.mxu0 0
    %9807 = vmatprep.subr.bf16.mxu0 0
    %9808 = vmatpush1.bf16.msra.mxu0 0
    %9809 = vmatprep.mubr.bf16.mxu0 0
    %9810 = vmatmul.mubr.bf16.gmra.mrb[0].mxu0 %v9711
    %v9811 = vpop.f32.mrb[0].mxu0
    %v9812 = vadd.f32 0.0, %v9811
    %v9813 = vpop.f32.mrb[0].mxu0
    %v9814 = vpop.f32.mrb[0].mxu0
    %v9815 = vpop.f32.mrb[0].mxu0
    %9816 = vdwg.mxu0
    %v9817 = vadd.f32 %v9709, %v9812
    %v9818 = vld [vmem:[#allocation3 + $0x13] sm:$0x1]
    %v9819 = vpack.c.bf16 %v9818, %v9818
    %s9820 = scalar_lea.vmem %s7, 1216
    %v9821 = vld [vmem:[%s9820] sm:$0xf]
    %v9822 = vld [vmem:[%s9820 + $0x4] sm:$0xf]
    %v9823 = vld [vmem:[%s9820 + $0x8] sm:$0xf]
    %v9824 = vld [vmem:[%s9820 + $0xc] sm:$0xf]
    %v9825 = vld [vmem:[%s9820 + $0x10] sm:$0xf]
    %v9826 = vld [vmem:[%s9820 + $0x14] sm:$0xf]
    %v9827 = vld [vmem:[%s9820 + $0x18] sm:$0xf]
    %v9828 = vld [vmem:[%s9820 + $0x1c] sm:$0xf]
    %v9829 = vld [vmem:[%s9820 + $0x20] sm:$0xf]
    %v9830 = vld [vmem:[%s9820 + $0x24] sm:$0xf]
    %v9831 = vld [vmem:[%s9820 + $0x28] sm:$0xf]
    %v9832 = vld [vmem:[%s9820 + $0x2c] sm:$0xf]
    %v9833 = vld [vmem:[%s9820 + $0x30] sm:$0xf]
    %v9834 = vld [vmem:[%s9820 + $0x34] sm:$0xf]
    %v9835 = vld [vmem:[%s9820 + $0x38] sm:$0xf]
    %v9836 = vld [vmem:[%s9820 + $0x3c] sm:$0xf]
    %v9853 = vunpack.c.l.b16 %v9821
    %v9854 = vunpack.c.l.b16 %v9822
    %v9855 = vunpack.c.l.b16 %v9823
    %v9856 = vunpack.c.l.b16 %v9824
    %v9857 = vunpack.c.l.b16 %v9825
    %v9858 = vunpack.c.l.b16 %v9826
    %v9859 = vunpack.c.l.b16 %v9827
    %v9860 = vunpack.c.l.b16 %v9828
    %v9861 = vunpack.c.l.b16 %v9829
    %v9862 = vunpack.c.l.b16 %v9830
    %v9863 = vunpack.c.l.b16 %v9831
    %v9864 = vunpack.c.l.b16 %v9832
    %v9865 = vunpack.c.l.b16 %v9833
    %v9866 = vunpack.c.l.b16 %v9834
    %v9867 = vunpack.c.l.b16 %v9835
    %v9868 = vunpack.c.l.b16 %v9836
    %v9869 = vpack.c.b16 %v9854, %v9853
    %v9870 = vpack.c.b16 %v9856, %v9855
    %v9871 = vpack.c.b16 %v9858, %v9857
    %v9872 = vpack.c.b16 %v9860, %v9859
    %v9873 = vpack.c.b16 %v9862, %v9861
    %v9874 = vpack.c.b16 %v9864, %v9863
    %v9875 = vpack.c.b16 %v9866, %v9865
    %v9876 = vpack.c.b16 %v9868, %v9867
    %9885 = vmatprep.subr.bf16.mxu0 0
    %9886 = vmatpush1.bf16.msra.mxu0 %v9869
    %9887 = vmatprep.subr.bf16.mxu0 0
    %9888 = vmatpush1.bf16.msra.mxu0 %v9870
    %9889 = vmatprep.subr.bf16.mxu0 0
    %9890 = vmatpush1.bf16.msra.mxu0 %v9871
    %9891 = vmatprep.subr.bf16.mxu0 0
    %9892 = vmatpush1.bf16.msra.mxu0 %v9872
    %9893 = vmatprep.subr.bf16.mxu0 0
    %9894 = vmatpush1.bf16.msra.mxu0 %v9873
    %9895 = vmatprep.subr.bf16.mxu0 0
    %9896 = vmatpush1.bf16.msra.mxu0 %v9874
    %9897 = vmatprep.subr.bf16.mxu0 0
    %9898 = vmatpush1.bf16.msra.mxu0 %v9875
    %9899 = vmatprep.subr.bf16.mxu0 0
    %9900 = vmatpush1.bf16.msra.mxu0 %v9876
    %9901 = vmatprep.subr.bf16.mxu0 0
    %9902 = vmatpush1.bf16.msra.mxu0 0
    %9903 = vmatprep.subr.bf16.mxu0 0
    %9904 = vmatpush1.bf16.msra.mxu0 0
    %9905 = vmatprep.subr.bf16.mxu0 0
    %9906 = vmatpush1.bf16.msra.mxu0 0
    %9907 = vmatprep.subr.bf16.mxu0 0
    %9908 = vmatpush1.bf16.msra.mxu0 0
    %9909 = vmatprep.subr.bf16.mxu0 0
    %9910 = vmatpush1.bf16.msra.mxu0 0
    %9911 = vmatprep.subr.bf16.mxu0 0
    %9912 = vmatpush1.bf16.msra.mxu0 0
    %9913 = vmatprep.subr.bf16.mxu0 0
    %9914 = vmatpush1.bf16.msra.mxu0 0
    %9915 = vmatprep.subr.bf16.mxu0 0
    %9916 = vmatpush1.bf16.msra.mxu0 0
    %9917 = vmatprep.mubr.bf16.mxu0 0
    %9918 = vmatmul.mubr.bf16.gmra.mrb[0].mxu0 %v9819
    %v9919 = vpop.f32.mrb[0].mxu0
    %v9920 = vadd.f32 0.0, %v9919
    %v9921 = vpop.f32.mrb[0].mxu0
    %v9922 = vpop.f32.mrb[0].mxu0
    %v9923 = vpop.f32.mrb[0].mxu0
    %9924 = vdwg.mxu0
    %v9925 = vadd.f32 %v9817, %v9920
    %v9926 = vld [vmem:[#allocation3 + $0x14] sm:$0x1]
    %v9927 = vpack.c.bf16 %v9926, %v9926
    %s9928 = scalar_lea.vmem %s7, 1280
    %v9929 = vld [vmem:[%s9928] sm:$0xf]
    %v9930 = vld [vmem:[%s9928 + $0x4] sm:$0xf]
    %v9931 = vld [vmem:[%s9928 + $0x8] sm:$0xf]
    %v9932 = vld [vmem:[%s9928 + $0xc] sm:$0xf]
    %v9933 = vld [vmem:[%s9928 + $0x10] sm:$0xf]
    %v9934 = vld [vmem:[%s9928 + $0x14] sm:$0xf]
    %v9935 = vld [vmem:[%s9928 + $0x18] sm:$0xf]
    %v9936 = vld [vmem:[%s9928 + $0x1c] sm:$0xf]
    %v9937 = vld [vmem:[%s9928 + $0x20] sm:$0xf]
    %v9938 = vld [vmem:[%s9928 + $0x24] sm:$0xf]
    %v9939 = vld [vmem:[%s9928 + $0x28] sm:$0xf]
    %v9940 = vld [vmem:[%s9928 + $0x2c] sm:$0xf]
    %v9941 = vld [vmem:[%s9928 + $0x30] sm:$0xf]
    %v9942 = vld [vmem:[%s9928 + $0x34] sm:$0xf]
    %v9943 = vld [vmem:[%s9928 + $0x38] sm:$0xf]
    %v9944 = vld [vmem:[%s9928 + $0x3c] sm:$0xf]
    %v9961 = vunpack.c.l.b16 %v9929
    %v9962 = vunpack.c.l.b16 %v9930
    %v9963 = vunpack.c.l.b16 %v9931
    %v9964 = vunpack.c.l.b16 %v9932
    %v9965 = vunpack.c.l.b16 %v9933
    %v9966 = vunpack.c.l.b16 %v9934
    %v9967 = vunpack.c.l.b16 %v9935
    %v9968 = vunpack.c.l.b16 %v9936
    %v9969 = vunpack.c.l.b16 %v9937
    %v9970 = vunpack.c.l.b16 %v9938
    %v9971 = vunpack.c.l.b16 %v9939
    %v9972 = vunpack.c.l.b16 %v9940
    %v9973 = vunpack.c.l.b16 %v9941
    %v9974 = vunpack.c.l.b16 %v9942
    %v9975 = vunpack.c.l.b16 %v9943
    %v9976 = vunpack.c.l.b16 %v9944
    %v9977 = vpack.c.b16 %v9962, %v9961
    %v9978 = vpack.c.b16 %v9964, %v9963
    %v9979 = vpack.c.b16 %v9966, %v9965
    %v9980 = vpack.c.b16 %v9968, %v9967
    %v9981 = vpack.c.b16 %v9970, %v9969
    %v9982 = vpack.c.b16 %v9972, %v9971
    %v9983 = vpack.c.b16 %v9974, %v9973
    %v9984 = vpack.c.b16 %v9976, %v9975
    %9993 = vmatprep.subr.bf16.mxu0 0
    %9994 = vmatpush1.bf16.msra.mxu0 %v9977
    %9995 = vmatprep.subr.bf16.mxu0 0
    %9996 = vmatpush1.bf16.msra.mxu0 %v9978
    %9997 = vmatprep.subr.bf16.mxu0 0
    %9998 = vmatpush1.bf16.msra.mxu0 %v9979
    %9999 = vmatprep.subr.bf16.mxu0 0
    %10000 = vmatpush1.bf16.msra.mxu0 %v9980
    %10001 = vmatprep.subr.bf16.mxu0 0
    %10002 = vmatpush1.bf16.msra.mxu0 %v9981
    %10003 = vmatprep.subr.bf16.mxu0 0
    %10004 = vmatpush1.bf16.msra.mxu0 %v9982
    %10005 = vmatprep.subr.bf16.mxu0 0
    %10006 = vmatpush1.bf16.msra.mxu0 %v9983
    %10007 = vmatprep.subr.bf16.mxu0 0
    %10008 = vmatpush1.bf16.msra.mxu0 %v9984
    %10009 = vmatprep.subr.bf16.mxu0 0
    %10010 = vmatpush1.bf16.msra.mxu0 0
    %10011 = vmatprep.subr.bf16.mxu0 0
    %10012 = vmatpush1.bf16.msra.mxu0 0
    %10013 = vmatprep.subr.bf16.mxu0 0
    %10014 = vmatpush1.bf16.msra.mxu0 0
    %10015 = vmatprep.subr.bf16.mxu0 0
    %10016 = vmatpush1.bf16.msra.mxu0 0
    %10017 = vmatprep.subr.bf16.mxu0 0
    %10018 = vmatpush1.bf16.msra.mxu0 0
    %10019 = vmatprep.subr.bf16.mxu0 0
    %10020 = vmatpush1.bf16.msra.mxu0 0
    %10021 = vmatprep.subr.bf16.mxu0 0
    %10022 = vmatpush1.bf16.msra.mxu0 0
    %10023 = vmatprep.subr.bf16.mxu0 0
    %10024 = vmatpush1.bf16.msra.mxu0 0
    %10025 = vmatprep.mubr.bf16.mxu0 0
    %10026 = vmatmul.mubr.bf16.gmra.mrb[0].mxu0 %v9927
    %v10027 = vpop.f32.mrb[0].mxu0
    %v10028 = vadd.f32 0.0, %v10027
    %v10029 = vpop.f32.mrb[0].mxu0
    %v10030 = vpop.f32.mrb[0].mxu0
    %v10031 = vpop.f32.mrb[0].mxu0
    %10032 = vdwg.mxu0
    %v10033 = vadd.f32 %v9925, %v10028
    %v10034 = vld [vmem:[#allocation3 + $0x15] sm:$0x1]
    %v10035 = vpack.c.bf16 %v10034, %v10034
    %s10036 = scalar_lea.vmem %s7, 1344
    %v10037 = vld [vmem:[%s10036] sm:$0xf]
    %v10038 = vld [vmem:[%s10036 + $0x4] sm:$0xf]
    %v10039 = vld [vmem:[%s10036 + $0x8] sm:$0xf]
    %v10040 = vld [vmem:[%s10036 + $0xc] sm:$0xf]
    %v10041 = vld [vmem:[%s10036 + $0x10] sm:$0xf]
    %v10042 = vld [vmem:[%s10036 + $0x14] sm:$0xf]
    %v10043 = vld [vmem:[%s10036 + $0x18] sm:$0xf]
    %v10044 = vld [vmem:[%s10036 + $0x1c] sm:$0xf]
    %v10045 = vld [vmem:[%s10036 + $0x20] sm:$0xf]
    %v10046 = vld [vmem:[%s10036 + $0x24] sm:$0xf]
    %v10047 = vld [vmem:[%s10036 + $0x28] sm:$0xf]
    %v10048 = vld [vmem:[%s10036 + $0x2c] sm:$0xf]
    %v10049 = vld [vmem:[%s10036 + $0x30] sm:$0xf]
    %v10050 = vld [vmem:[%s10036 + $0x34] sm:$0xf]
    %v10051 = vld [vmem:[%s10036 + $0x38] sm:$0xf]
    %v10052 = vld [vmem:[%s10036 + $0x3c] sm:$0xf]
    %v10069 = vunpack.c.l.b16 %v10037
    %v10070 = vunpack.c.l.b16 %v10038
    %v10071 = vunpack.c.l.b16 %v10039
    %v10072 = vunpack.c.l.b16 %v10040
    %v10073 = vunpack.c.l.b16 %v10041
    %v10074 = vunpack.c.l.b16 %v10042
    %v10075 = vunpack.c.l.b16 %v10043
    %v10076 = vunpack.c.l.b16 %v10044
    %v10077 = vunpack.c.l.b16 %v10045
    %v10078 = vunpack.c.l.b16 %v10046
    %v10079 = vunpack.c.l.b16 %v10047
    %v10080 = vunpack.c.l.b16 %v10048
    %v10081 = vunpack.c.l.b16 %v10049
    %v10082 = vunpack.c.l.b16 %v10050
    %v10083 = vunpack.c.l.b16 %v10051
    %v10084 = vunpack.c.l.b16 %v10052
    %v10085 = vpack.c.b16 %v10070, %v10069
    %v10086 = vpack.c.b16 %v10072, %v10071
    %v10087 = vpack.c.b16 %v10074, %v10073
    %v10088 = vpack.c.b16 %v10076, %v10075
    %v10089 = vpack.c.b16 %v10078, %v10077
    %v10090 = vpack.c.b16 %v10080, %v10079
    %v10091 = vpack.c.b16 %v10082, %v10081
    %v10092 = vpack.c.b16 %v10084, %v10083
    %10101 = vmatprep.subr.bf16.mxu0 0
    %10102 = vmatpush1.bf16.msra.mxu0 %v10085
    %10103 = vmatprep.subr.bf16.mxu0 0
    %10104 = vmatpush1.bf16.msra.mxu0 %v10086
    %10105 = vmatprep.subr.bf16.mxu0 0
    %10106 = vmatpush1.bf16.msra.mxu0 %v10087
    %10107 = vmatprep.subr.bf16.mxu0 0
    %10108 = vmatpush1.bf16.msra.mxu0 %v10088
    %10109 = vmatprep.subr.bf16.mxu0 0
    %10110 = vmatpush1.bf16.msra.mxu0 %v10089
    %10111 = vmatprep.subr.bf16.mxu0 0
    %10112 = vmatpush1.bf16.msra.mxu0 %v10090
    %10113 = vmatprep.subr.bf16.mxu0 0
    %10114 = vmatpush1.bf16.msra.mxu0 %v10091
    %10115 = vmatprep.subr.bf16.mxu0 0
    %10116 = vmatpush1.bf16.msra.mxu0 %v10092
    %10117 = vmatprep.subr.bf16.mxu0 0
    %10118 = vmatpush1.bf16.msra.mxu0 0
    %10119 = vmatprep.subr.bf16.mxu0 0
    %10120 = vmatpush1.bf16.msra.mxu0 0
    %10121 = vmatprep.subr.bf16.mxu0 0
    %10122 = vmatpush1.bf16.msra.mxu0 0
    %10123 = vmatprep.subr.bf16.mxu0 0
    %10124 = vmatpush1.bf16.msra.mxu0 0
    %10125 = vmatprep.subr.bf16.mxu0 0
    %10126 = vmatpush1.bf16.msra.mxu0 0
    %10127 = vmatprep.subr.bf16.mxu0 0
    %10128 = vmatpush1.bf16.msra.mxu0 0
    %10129 = vmatprep.subr.bf16.mxu0 0
    %10130 = vmatpush1.bf16.msra.mxu0 0
    %10131 = vmatprep.subr.bf16.mxu0 0
    %10132 = vmatpush1.bf16.msra.mxu0 0
    %10133 = vmatprep.mubr.bf16.mxu0 0
    %10134 = vmatmul.mubr.bf16.gmra.mrb[0].mxu0 %v10035
    %v10135 = vpop.f32.mrb[0].mxu0
    %v10136 = vadd.f32 0.0, %v10135
    %v10137 = vpop.f32.mrb[0].mxu0
    %v10138 = vpop.f32.mrb[0].mxu0
    %v10139 = vpop.f32.mrb[0].mxu0
    %10140 = vdwg.mxu0
    %v10141 = vadd.f32 %v10033, %v10136
    %v10142 = vld [vmem:[#allocation3 + $0x16] sm:$0x1]
    %v10143 = vpack.c.bf16 %v10142, %v10142
    %s10144 = scalar_lea.vmem %s7, 1408
    %v10145 = vld [vmem:[%s10144] sm:$0xf]
    %v10146 = vld [vmem:[%s10144 + $0x4] sm:$0xf]
    %v10147 = vld [vmem:[%s10144 + $0x8] sm:$0xf]
    %v10148 = vld [vmem:[%s10144 + $0xc] sm:$0xf]
    %v10149 = vld [vmem:[%s10144 + $0x10] sm:$0xf]
    %v10150 = vld [vmem:[%s10144 + $0x14] sm:$0xf]
    %v10151 = vld [vmem:[%s10144 + $0x18] sm:$0xf]
    %v10152 = vld [vmem:[%s10144 + $0x1c] sm:$0xf]
    %v10153 = vld [vmem:[%s10144 + $0x20] sm:$0xf]
    %v10154 = vld [vmem:[%s10144 + $0x24] sm:$0xf]
    %v10155 = vld [vmem:[%s10144 + $0x28] sm:$0xf]
    %v10156 = vld [vmem:[%s10144 + $0x2c] sm:$0xf]
    %v10157 = vld [vmem:[%s10144 + $0x30] sm:$0xf]
    %v10158 = vld [vmem:[%s10144 + $0x34] sm:$0xf]
    %v10159 = vld [vmem:[%s10144 + $0x38] sm:$0xf]
    %v10160 = vld [vmem:[%s10144 + $0x3c] sm:$0xf]
    %v10177 = vunpack.c.l.b16 %v10145
    %v10178 = vunpack.c.l.b16 %v10146
    %v10179 = vunpack.c.l.b16 %v10147
    %v10180 = vunpack.c.l.b16 %v10148
    %v10181 = vunpack.c.l.b16 %v10149
    %v10182 = vunpack.c.l.b16 %v10150
    %v10183 = vunpack.c.l.b16 %v10151
    %v10184 = vunpack.c.l.b16 %v10152
    %v10185 = vunpack.c.l.b16 %v10153
    %v10186 = vunpack.c.l.b16 %v10154
    %v10187 = vunpack.c.l.b16 %v10155
    %v10188 = vunpack.c.l.b16 %v10156
    %v10189 = vunpack.c.l.b16 %v10157
    %v10190 = vunpack.c.l.b16 %v10158
    %v10191 = vunpack.c.l.b16 %v10159
    %v10192 = vunpack.c.l.b16 %v10160
    %v10193 = vpack.c.b16 %v10178, %v10177
    %v10194 = vpack.c.b16 %v10180, %v10179
    %v10195 = vpack.c.b16 %v10182, %v10181
    %v10196 = vpack.c.b16 %v10184, %v10183
    %v10197 = vpack.c.b16 %v10186, %v10185
    %v10198 = vpack.c.b16 %v10188, %v10187
    %v10199 = vpack.c.b16 %v10190, %v10189
    %v10200 = vpack.c.b16 %v10192, %v10191
    %10209 = vmatprep.subr.bf16.mxu0 0
    %10210 = vmatpush1.bf16.msra.mxu0 %v10193
    %10211 = vmatprep.subr.bf16.mxu0 0
    %10212 = vmatpush1.bf16.msra.mxu0 %v10194
    %10213 = vmatprep.subr.bf16.mxu0 0
    %10214 = vmatpush1.bf16.msra.mxu0 %v10195
    %10215 = vmatprep.subr.bf16.mxu0 0
    %10216 = vmatpush1.bf16.msra.mxu0 %v10196
    %10217 = vmatprep.subr.bf16.mxu0 0
    %10218 = vmatpush1.bf16.msra.mxu0 %v10197
    %10219 = vmatprep.subr.bf16.mxu0 0
    %10220 = vmatpush1.bf16.msra.mxu0 %v10198
    %10221 = vmatprep.subr.bf16.mxu0 0
    %10222 = vmatpush1.bf16.msra.mxu0 %v10199
    %10223 = vmatprep.subr.bf16.mxu0 0
    %10224 = vmatpush1.bf16.msra.mxu0 %v10200
    %10225 = vmatprep.subr.bf16.mxu0 0
    %10226 = vmatpush1.bf16.msra.mxu0 0
    %10227 = vmatprep.subr.bf16.mxu0 0
    %10228 = vmatpush1.bf16.msra.mxu0 0
    %10229 = vmatprep.subr.bf16.mxu0 0
    %10230 = vmatpush1.bf16.msra.mxu0 0
    %10231 = vmatprep.subr.bf16.mxu0 0
    %10232 = vmatpush1.bf16.msra.mxu0 0
    %10233 = vmatprep.subr.bf16.mxu0 0
    %10234 = vmatpush1.bf16.msra.mxu0 0
    %10235 = vmatprep.subr.bf16.mxu0 0
    %10236 = vmatpush1.bf16.msra.mxu0 0
    %10237 = vmatprep.subr.bf16.mxu0 0
    %10238 = vmatpush1.bf16.msra.mxu0 0
    %10239 = vmatprep.subr.bf16.mxu0 0
    %10240 = vmatpush1.bf16.msra.mxu0 0
    %10241 = vmatprep.mubr.bf16.mxu0 0
    %10242 = vmatmul.mubr.bf16.gmra.mrb[0].mxu0 %v10143
    %v10243 = vpop.f32.mrb[0].mxu0
    %v10244 = vadd.f32 0.0, %v10243
    %v10245 = vpop.f32.mrb[0].mxu0
    %v10246 = vpop.f32.mrb[0].mxu0
    %v10247 = vpop.f32.mrb[0].mxu0
    %10248 = vdwg.mxu0
    %v10249 = vadd.f32 %v10141, %v10244
    %v10250 = vld [vmem:[#allocation3 + $0x17] sm:$0x1]
    %v10251 = vpack.c.bf16 %v10250, %v10250
    %s10252 = scalar_lea.vmem %s7, 1472
    %v10253 = vld [vmem:[%s10252] sm:$0xf]
    %v10254 = vld [vmem:[%s10252 + $0x4] sm:$0xf]
    %v10255 = vld [vmem:[%s10252 + $0x8] sm:$0xf]
    %v10256 = vld [vmem:[%s10252 + $0xc] sm:$0xf]
    %v10257 = vld [vmem:[%s10252 + $0x10] sm:$0xf]
    %v10258 = vld [vmem:[%s10252 + $0x14] sm:$0xf]
    %v10259 = vld [vmem:[%s10252 + $0x18] sm:$0xf]
    %v10260 = vld [vmem:[%s10252 + $0x1c] sm:$0xf]
    %v10261 = vld [vmem:[%s10252 + $0x20] sm:$0xf]
    %v10262 = vld [vmem:[%s10252 + $0x24] sm:$0xf]
    %v10263 = vld [vmem:[%s10252 + $0x28] sm:$0xf]
    %v10264 = vld [vmem:[%s10252 + $0x2c] sm:$0xf]
    %v10265 = vld [vmem:[%s10252 + $0x30] sm:$0xf]
    %v10266 = vld [vmem:[%s10252 + $0x34] sm:$0xf]
    %v10267 = vld [vmem:[%s10252 + $0x38] sm:$0xf]
    %v10268 = vld [vmem:[%s10252 + $0x3c] sm:$0xf]
    %v10285 = vunpack.c.l.b16 %v10253
    %v10286 = vunpack.c.l.b16 %v10254
    %v10287 = vunpack.c.l.b16 %v10255
    %v10288 = vunpack.c.l.b16 %v10256
    %v10289 = vunpack.c.l.b16 %v10257
    %v10290 = vunpack.c.l.b16 %v10258
    %v10291 = vunpack.c.l.b16 %v10259
    %v10292 = vunpack.c.l.b16 %v10260
    %v10293 = vunpack.c.l.b16 %v10261
    %v10294 = vunpack.c.l.b16 %v10262
    %v10295 = vunpack.c.l.b16 %v10263
    %v10296 = vunpack.c.l.b16 %v10264
    %v10297 = vunpack.c.l.b16 %v10265
    %v10298 = vunpack.c.l.b16 %v10266
    %v10299 = vunpack.c.l.b16 %v10267
    %v10300 = vunpack.c.l.b16 %v10268
    %v10301 = vpack.c.b16 %v10286, %v10285
    %v10302 = vpack.c.b16 %v10288, %v10287
    %v10303 = vpack.c.b16 %v10290, %v10289
    %v10304 = vpack.c.b16 %v10292, %v10291
    %v10305 = vpack.c.b16 %v10294, %v10293
    %v10306 = vpack.c.b16 %v10296, %v10295
    %v10307 = vpack.c.b16 %v10298, %v10297
    %v10308 = vpack.c.b16 %v10300, %v10299
    %10317 = vmatprep.subr.bf16.mxu0 0
    %10318 = vmatpush1.bf16.msra.mxu0 %v10301
    %10319 = vmatprep.subr.bf16.mxu0 0
    %10320 = vmatpush1.bf16.msra.mxu0 %v10302
    %10321 = vmatprep.subr.bf16.mxu0 0
    %10322 = vmatpush1.bf16.msra.mxu0 %v10303
    %10323 = vmatprep.subr.bf16.mxu0 0
    %10324 = vmatpush1.bf16.msra.mxu0 %v10304
    %10325 = vmatprep.subr.bf16.mxu0 0
    %10326 = vmatpush1.bf16.msra.mxu0 %v10305
    %10327 = vmatprep.subr.bf16.mxu0 0
    %10328 = vmatpush1.bf16.msra.mxu0 %v10306
    %10329 = vmatprep.subr.bf16.mxu0 0
    %10330 = vmatpush1.bf16.msra.mxu0 %v10307
    %10331 = vmatprep.subr.bf16.mxu0 0
    %10332 = vmatpush1.bf16.msra.mxu0 %v10308
    %10333 = vmatprep.subr.bf16.mxu0 0
    %10334 = vmatpush1.bf16.msra.mxu0 0
    %10335 = vmatprep.subr.bf16.mxu0 0
    %10336 = vmatpush1.bf16.msra.mxu0 0
    %10337 = vmatprep.subr.bf16.mxu0 0
    %10338 = vmatpush1.bf16.msra.mxu0 0
    %10339 = vmatprep.subr.bf16.mxu0 0
    %10340 = vmatpush1.bf16.msra.mxu0 0
    %10341 = vmatprep.subr.bf16.mxu0 0
    %10342 = vmatpush1.bf16.msra.mxu0 0
    %10343 = vmatprep.subr.bf16.mxu0 0
    %10344 = vmatpush1.bf16.msra.mxu0 0
    %10345 = vmatprep.subr.bf16.mxu0 0
    %10346 = vmatpush1.bf16.msra.mxu0 0
    %10347 = vmatprep.subr.bf16.mxu0 0
    %10348 = vmatpush1.bf16.msra.mxu0 0
    %10349 = vmatprep.mubr.bf16.mxu0 0
    %10350 = vmatmul.mubr.bf16.gmra.mrb[0].mxu0 %v10251
    %v10351 = vpop.f32.mrb[0].mxu0
    %v10352 = vadd.f32 0.0, %v10351
    %v10353 = vpop.f32.mrb[0].mxu0
    %v10354 = vpop.f32.mrb[0].mxu0
    %v10355 = vpop.f32.mrb[0].mxu0
    %10356 = vdwg.mxu0
    %v10357 = vadd.f32 %v10249, %v10352
    %v10358 = vld [vmem:[#allocation3 + $0x18] sm:$0x1]
    %v10359 = vpack.c.bf16 %v10358, %v10358
    %s10360 = scalar_lea.vmem %s7, 1536
    %v10361 = vld [vmem:[%s10360] sm:$0xf]
    %v10362 = vld [vmem:[%s10360 + $0x4] sm:$0xf]
    %v10363 = vld [vmem:[%s10360 + $0x8] sm:$0xf]
    %v10364 = vld [vmem:[%s10360 + $0xc] sm:$0xf]
    %v10365 = vld [vmem:[%s10360 + $0x10] sm:$0xf]
    %v10366 = vld [vmem:[%s10360 + $0x14] sm:$0xf]
    %v10367 = vld [vmem:[%s10360 + $0x18] sm:$0xf]
    %v10368 = vld [vmem:[%s10360 + $0x1c] sm:$0xf]
    %v10369 = vld [vmem:[%s10360 + $0x20] sm:$0xf]
    %v10370 = vld [vmem:[%s10360 + $0x24] sm:$0xf]
    %v10371 = vld [vmem:[%s10360 + $0x28] sm:$0xf]
    %v10372 = vld [vmem:[%s10360 + $0x2c] sm:$0xf]
    %v10373 = vld [vmem:[%s10360 + $0x30] sm:$0xf]
    %v10374 = vld [vmem:[%s10360 + $0x34] sm:$0xf]
    %v10375 = vld [vmem:[%s10360 + $0x38] sm:$0xf]
    %v10376 = vld [vmem:[%s10360 + $0x3c] sm:$0xf]
    %v10393 = vunpack.c.l.b16 %v10361
    %v10394 = vunpack.c.l.b16 %v10362
    %v10395 = vunpack.c.l.b16 %v10363
    %v10396 = vunpack.c.l.b16 %v10364
    %v10397 = vunpack.c.l.b16 %v10365
    %v10398 = vunpack.c.l.b16 %v10366
    %v10399 = vunpack.c.l.b16 %v10367
    %v10400 = vunpack.c.l.b16 %v10368
    %v10401 = vunpack.c.l.b16 %v10369
    %v10402 = vunpack.c.l.b16 %v10370
    %v10403 = vunpack.c.l.b16 %v10371
    %v10404 = vunpack.c.l.b16 %v10372
    %v10405 = vunpack.c.l.b16 %v10373
    %v10406 = vunpack.c.l.b16 %v10374
    %v10407 = vunpack.c.l.b16 %v10375
    %v10408 = vunpack.c.l.b16 %v10376
    %v10409 = vpack.c.b16 %v10394, %v10393
    %v10410 = vpack.c.b16 %v10396, %v10395
    %v10411 = vpack.c.b16 %v10398, %v10397
    %v10412 = vpack.c.b16 %v10400, %v10399
    %v10413 = vpack.c.b16 %v10402, %v10401
    %v10414 = vpack.c.b16 %v10404, %v10403
    %v10415 = vpack.c.b16 %v10406, %v10405
    %v10416 = vpack.c.b16 %v10408, %v10407
    %10425 = vmatprep.subr.bf16.mxu0 0
    %10426 = vmatpush1.bf16.msra.mxu0 %v10409
    %10427 = vmatprep.subr.bf16.mxu0 0
    %10428 = vmatpush1.bf16.msra.mxu0 %v10410
    %10429 = vmatprep.subr.bf16.mxu0 0
    %10430 = vmatpush1.bf16.msra.mxu0 %v10411
    %10431 = vmatprep.subr.bf16.mxu0 0
    %10432 = vmatpush1.bf16.msra.mxu0 %v10412
    %10433 = vmatprep.subr.bf16.mxu0 0
    %10434 = vmatpush1.bf16.msra.mxu0 %v10413
    %10435 = vmatprep.subr.bf16.mxu0 0
    %10436 = vmatpush1.bf16.msra.mxu0 %v10414
    %10437 = vmatprep.subr.bf16.mxu0 0
    %10438 = vmatpush1.bf16.msra.mxu0 %v10415
    %10439 = vmatprep.subr.bf16.mxu0 0
    %10440 = vmatpush1.bf16.msra.mxu0 %v10416
    %10441 = vmatprep.subr.bf16.mxu0 0
    %10442 = vmatpush1.bf16.msra.mxu0 0
    %10443 = vmatprep.subr.bf16.mxu0 0
    %10444 = vmatpush1.bf16.msra.mxu0 0
    %10445 = vmatprep.subr.bf16.mxu0 0
    %10446 = vmatpush1.bf16.msra.mxu0 0
    %10447 = vmatprep.subr.bf16.mxu0 0
    %10448 = vmatpush1.bf16.msra.mxu0 0
    %10449 = vmatprep.subr.bf16.mxu0 0
    %10450 = vmatpush1.bf16.msra.mxu0 0
    %10451 = vmatprep.subr.bf16.mxu0 0
    %10452 = vmatpush1.bf16.msra.mxu0 0
    %10453 = vmatprep.subr.bf16.mxu0 0
    %10454 = vmatpush1.bf16.msra.mxu0 0
    %10455 = vmatprep.subr.bf16.mxu0 0
    %10456 = vmatpush1.bf16.msra.mxu0 0
    %10457 = vmatprep.mubr.bf16.mxu0 0
    %10458 = vmatmul.mubr.bf16.gmra.mrb[0].mxu0 %v10359
    %v10459 = vpop.f32.mrb[0].mxu0
    %v10460 = vadd.f32 0.0, %v10459
    %v10461 = vpop.f32.mrb[0].mxu0
    %v10462 = vpop.f32.mrb[0].mxu0
    %v10463 = vpop.f32.mrb[0].mxu0
    %10464 = vdwg.mxu0
    %v10465 = vadd.f32 %v10357, %v10460
    %v10466 = vtanh.pop %v10465
    %s10467 = scalar_lea.vmem [#allocation4], %s46
    %10468 = vst [vmem:[%s10467] sm:$0x1] %v10466
  $region58: #{lenet_forward.1} parent=0 // loop_footer
    %s50 = sadd.s32 1, %s46
  $region59: #{lenet_forward.1} parent=0 // loop_footer_branch
    %45 = sbr.rel target = $region55
  $region60: #{lenet_forward.1} parent=0 // loop_exit
    _
  %v10469 = vld [vmem:[#allocation4] sm:$0xff]
  %v10470 = vpack.c.bf16 %v10469, %v10469
  %v10471 = vld [vmem:[%s9] sm:$0xf]
  %v10472 = vld [vmem:[%s9 + $0x4] sm:$0xf]
  %v10473 = vld [vmem:[%s9 + $0x8] sm:$0xf]
  %v10474 = vld [vmem:[%s9 + $0xc] sm:$0xf]
  %v10475 = vld [vmem:[%s9 + $0x10] sm:$0xf]
  %v10476 = vld [vmem:[%s9 + $0x14] sm:$0xf]
  %v10477 = vld [vmem:[%s9 + $0x18] sm:$0xf]
  %v10478 = vld [vmem:[%s9 + $0x1c] sm:$0xf]
  %v10479 = vld [vmem:[%s9 + $0x20] sm:$0xf]
  %v10480 = vld [vmem:[%s9 + $0x24] sm:$0xf]
  %v10481 = vld [vmem:[%s9 + $0x28] sm:$0xf]
  %v10482 = vld [vmem:[%s9 + $0x2c] sm:$0xf]
  %v10483 = vld [vmem:[%s9 + $0x30] sm:$0xf]
  %v10484 = vld [vmem:[%s9 + $0x34] sm:$0xf]
  %v10485 = vld [vmem:[%s9 + $0x38] sm:$0xf]
  %v10486 = vld [vmem:[%s9 + $0x3c] sm:$0xf]
  %v10487 = vld [vmem:[%s10] sm:$0x1]
  %v10489 = vlaneseq
  %v10490 = vshrl.u32 %v10489, 7
  %v10491 = vsub.s32 0, %v10490
  %v10492 = vrot.slane %v10487, %v10491
  %v10510 = vunpack.c.l.b16 %v10471
  %v10511 = vunpack.c.l.b16 %v10472
  %v10512 = vunpack.c.l.b16 %v10473
  %v10513 = vunpack.c.l.b16 %v10474
  %v10514 = vunpack.c.l.b16 %v10475
  %v10515 = vunpack.c.l.b16 %v10476
  %v10516 = vunpack.c.l.b16 %v10477
  %v10517 = vunpack.c.l.b16 %v10478
  %v10518 = vunpack.c.l.b16 %v10479
  %v10519 = vunpack.c.l.b16 %v10480
  %v10520 = vunpack.c.l.b16 %v10481
  %v10521 = vunpack.c.l.b16 %v10482
  %v10522 = vunpack.c.l.b16 %v10483
  %v10523 = vunpack.c.l.b16 %v10484
  %v10524 = vunpack.c.l.b16 %v10485
  %v10525 = vunpack.c.l.b16 %v10486
  %v10526 = vpack.c.b16 %v10511, %v10510
  %v10527 = vpack.c.b16 %v10513, %v10512
  %v10528 = vpack.c.b16 %v10515, %v10514
  %v10529 = vpack.c.b16 %v10517, %v10516
  %v10530 = vpack.c.b16 %v10519, %v10518
  %v10531 = vpack.c.b16 %v10521, %v10520
  %v10532 = vpack.c.b16 %v10523, %v10522
  %v10533 = vpack.c.b16 %v10525, %v10524
  %10542 = vmatprep.subr.bf16.mxu0 0
  %10543 = vmatpush1.bf16.msra.mxu0 %v10526
  %10544 = vmatprep.subr.bf16.mxu0 0
  %10545 = vmatpush1.bf16.msra.mxu0 %v10527
  %10546 = vmatprep.subr.bf16.mxu0 0
  %10547 = vmatpush1.bf16.msra.mxu0 %v10528
  %10548 = vmatprep.subr.bf16.mxu0 0
  %10549 = vmatpush1.bf16.msra.mxu0 %v10529
  %10550 = vmatprep.subr.bf16.mxu0 0
  %10551 = vmatpush1.bf16.msra.mxu0 %v10530
  %10552 = vmatprep.subr.bf16.mxu0 0
  %10553 = vmatpush1.bf16.msra.mxu0 %v10531
  %10554 = vmatprep.subr.bf16.mxu0 0
  %10555 = vmatpush1.bf16.msra.mxu0 %v10532
  %10556 = vmatprep.subr.bf16.mxu0 0
  %10557 = vmatpush1.bf16.msra.mxu0 %v10533
  %10558 = vmatprep.subr.bf16.mxu0 0
  %10559 = vmatpush1.bf16.msra.mxu0 0
  %10560 = vmatprep.subr.bf16.mxu0 0
  %10561 = vmatpush1.bf16.msra.mxu0 0
  %10562 = vmatprep.subr.bf16.mxu0 0
  %10563 = vmatpush1.bf16.msra.mxu0 0
  %10564 = vmatprep.subr.bf16.mxu0 0
  %10565 = vmatpush1.bf16.msra.mxu0 0
  %10566 = vmatprep.subr.bf16.mxu0 0
  %10567 = vmatpush1.bf16.msra.mxu0 0
  %10568 = vmatprep.subr.bf16.mxu0 0
  %10569 = vmatpush1.bf16.msra.mxu0 0
  %10570 = vmatprep.subr.bf16.mxu0 0
  %10571 = vmatpush1.bf16.msra.mxu0 0
  %10572 = vmatprep.subr.bf16.mxu0 0
  %10573 = vmatpush1.bf16.msra.mxu0 0
  %10574 = vmatprep.mubr.bf16.mxu0 0
  %10575 = vmatmul.mubr.bf16.gmra.mrb[0].mxu0 %v10470
  %v10576 = vpop.f32.mrb[0].mxu0
  %v10577 = vadd.f32 %v10492, %v10576
  %v10578 = vpop.f32.mrb[0].mxu0
  %v10579 = vpop.f32.mrb[0].mxu0
  %v10580 = vpop.f32.mrb[0].mxu0
  %10581 = vdwg.mxu0
  %v10582 = vtanh.pop %v10577
  %v10583 = vpack.c.bf16 %v10582, %v10582
  %v10584 = vld [vmem:[%s11] sm:$0xf]
  %v10585 = vld [vmem:[%s11 + $0x4] sm:$0xf]
  %v10586 = vld [vmem:[%s11 + $0x8] sm:$0xf]
  %v10587 = vld [vmem:[%s11 + $0xc] sm:$0xf]
  %v10588 = vld [vmem:[%s11 + $0x10] sm:$0xf]
  %v10589 = vld [vmem:[%s11 + $0x14] sm:$0xf]
  %v10590 = vld [vmem:[%s11 + $0x18] sm:$0xf]
  %v10591 = vld [vmem:[%s11 + $0x1c] sm:$0xf]
  %v10592 = vld [vmem:[%s11 + $0x20] sm:$0xf]
  %v10593 = vld [vmem:[%s11 + $0x24] sm:$0xf]
  %v10594 = vld [vmem:[%s11 + $0x28] sm:$0xf]
  %v10595 = vld [vmem:[%s11 + $0x2c] sm:$0xf]
  %v10596 = vld [vmem:[%s11 + $0x30] sm:$0xf]
  %v10597 = vld [vmem:[%s11 + $0x34] sm:$0xf]
  %v10598 = vld [vmem:[%s11 + $0x38] sm:$0xf]
  %v10599 = vld [vmem:[%s11 + $0x3c] sm:$0xf]
  %v10600 = vld [vmem:[%s12] sm:$0x1]
  %v10602 = vlaneseq
  %v10603 = vshrl.u32 %v10602, 7
  %v10604 = vsub.s32 0, %v10603
  %v10605 = vrot.slane %v10600, %v10604
  %v10623 = vunpack.c.l.b16 %v10584
  %v10624 = vunpack.c.l.b16 %v10585
  %v10625 = vunpack.c.l.b16 %v10586
  %v10626 = vunpack.c.l.b16 %v10587
  %v10627 = vunpack.c.l.b16 %v10588
  %v10628 = vunpack.c.l.b16 %v10589
  %v10629 = vunpack.c.l.b16 %v10590
  %v10630 = vunpack.c.l.b16 %v10591
  %v10631 = vunpack.c.l.b16 %v10592
  %v10632 = vunpack.c.l.b16 %v10593
  %v10633 = vunpack.c.l.b16 %v10594
  %v10634 = vunpack.c.l.b16 %v10595
  %v10635 = vunpack.c.l.b16 %v10596
  %v10636 = vunpack.c.l.b16 %v10597
  %v10637 = vunpack.c.l.b16 %v10598
  %v10638 = vunpack.c.l.b16 %v10599
  %v10639 = vpack.c.b16 %v10624, %v10623
  %v10640 = vpack.c.b16 %v10626, %v10625
  %v10641 = vpack.c.b16 %v10628, %v10627
  %v10642 = vpack.c.b16 %v10630, %v10629
  %v10643 = vpack.c.b16 %v10632, %v10631
  %v10644 = vpack.c.b16 %v10634, %v10633
  %v10645 = vpack.c.b16 %v10636, %v10635
  %v10646 = vpack.c.b16 %v10638, %v10637
  %10655 = vmatprep.subr.bf16.mxu0 0
  %10656 = vmatpush1.bf16.msra.mxu0 %v10639
  %10657 = vmatprep.subr.bf16.mxu0 0
  %10658 = vmatpush1.bf16.msra.mxu0 %v10640
  %10659 = vmatprep.subr.bf16.mxu0 0
  %10660 = vmatpush1.bf16.msra.mxu0 %v10641
  %10661 = vmatprep.subr.bf16.mxu0 0
  %10662 = vmatpush1.bf16.msra.mxu0 %v10642
  %10663 = vmatprep.subr.bf16.mxu0 0
  %10664 = vmatpush1.bf16.msra.mxu0 %v10643
  %10665 = vmatprep.subr.bf16.mxu0 0
  %10666 = vmatpush1.bf16.msra.mxu0 %v10644
  %10667 = vmatprep.subr.bf16.mxu0 0
  %10668 = vmatpush1.bf16.msra.mxu0 %v10645
  %10669 = vmatprep.subr.bf16.mxu0 0
  %10670 = vmatpush1.bf16.msra.mxu0 %v10646
  %10671 = vmatprep.subr.bf16.mxu0 0
  %10672 = vmatpush1.bf16.msra.mxu0 0
  %10673 = vmatprep.subr.bf16.mxu0 0
  %10674 = vmatpush1.bf16.msra.mxu0 0
  %10675 = vmatprep.subr.bf16.mxu0 0
  %10676 = vmatpush1.bf16.msra.mxu0 0
  %10677 = vmatprep.subr.bf16.mxu0 0
  %10678 = vmatpush1.bf16.msra.mxu0 0
  %10679 = vmatprep.subr.bf16.mxu0 0
  %10680 = vmatpush1.bf16.msra.mxu0 0
  %10681 = vmatprep.subr.bf16.mxu0 0
  %10682 = vmatpush1.bf16.msra.mxu0 0
  %10683 = vmatprep.subr.bf16.mxu0 0
  %10684 = vmatpush1.bf16.msra.mxu0 0
  %10685 = vmatprep.subr.bf16.mxu0 0
  %10686 = vmatpush1.bf16.msra.mxu0 0
  %10687 = vmatprep.mubr.bf16.mxu0 0
  %10688 = vmatmul.mubr.bf16.gmra.mrb[0].mxu0 %v10583
  %v10689 = vpop.f32.mrb[0].mxu0
  %v10690 = vadd.f32 %v10605, %v10689
  %v10691 = vpop.f32.mrb[0].mxu0
  %v10692 = vpop.f32.mrb[0].mxu0
  %v10693 = vpop.f32.mrb[0].mxu0
  %10694 = vdwg.mxu0
  %10695 = vst [vmem:[%s13] sm:$0xff] %v10690
  // Predicated region
  $region61: #{lenet_forward.1} parent=0 // pred_check
    _
  $region62: #{lenet_forward.1} parent=0 // pred_check_branch
    %10697 = sbr.rel (0) target = $region64
  $region63: #{lenet_forward.1} parent=0 // pred_region
    _
  $region64: #{lenet_forward.1} parent=0 // pred_fallthru
    _
  // Predicated region
  $region65: #{lenet_forward.1} parent=0 // pred_check
    _
  $region66: #{lenet_forward.1} parent=0 // pred_check_branch
    %10699 = sbr.rel (0) target = $region68
  $region67: #{lenet_forward.1} parent=0 // pred_region
    _
  $region68: #{lenet_forward.1} parent=0 // pred_fallthru
    _

</llo_original>
